<compile_context>
chip_gen: v7x
topology: tpu7x:2x2x1
jax: 0.10.0
libtpu: 0.0.40
codegen_flags: <defaults>
</compile_context>

<pallas_src>
import functools

import jax
import jax.numpy as jnp
from jax.experimental import pallas as pl
from jax.experimental.pallas import tpu as pltpu

EPS = 1e-5
LANES = 128


# ------------------------------ small helpers ------------------------------

def _round_up(x, m):
    return (x + m - 1) // m * m


def _vmem_budget_bytes():
    # Half the physical VMEM (v5e/v6e: 64 MiB, v7x: 32 MiB); safe fallback.
    try:
        return int(pltpu.get_tpu_info().vmem_capacity_bytes) // 2
    except Exception:  # pragma: no cover - interpret/older runtimes
        return 32 * 1024 * 1024


def _compiler_params(dims, vmem_limit):
    return pltpu.CompilerParams(dimension_semantics=tuple(dims),
                                vmem_limit_bytes=int(vmem_limit))


def _pick_row_tile(m, bytes_per_row, budget, min_steps=1):
    """Largest multiple-of-8 divisor of m fitting the double-buffered budget."""
    if m % 8 != 0:
        return m
    cap = max(8, min(m, 1024, budget // (2 * max(bytes_per_row, 1))))
    if min_steps > 1 and m // min_steps >= 8:
        cap = min(cap, m // min_steps)
    best = 8
    for t in range(8, cap + 1, 8):
        if m % t == 0:
            best = t
    return best


def _pick_strip_rows(h, w, cap_rows=1024):
    """Image rows per conv2 strip so the (strip*W, 9*cp) im2col scratch stays small."""
    best = 1
    for s in range(1, h + 1):
        if h % s == 0 and s * w <= cap_rows:
            best = s
    return best


# ------------------------------ Pallas kernels ------------------------------

def _conv1_kernel(xcol_ref, xflat_ref, w1_ref, wup_ref, z1_ref, st_ref):
    """conv1 as one K=9*Cin matmul on a pre-packed im2col tile; residual 1x1 conv
    (for its BN stats only); per-tile channel sums for BN1 and BN_up."""
    cp = z1_ref.shape[-1]
    acc = jnp.dot(xcol_ref[0], w1_ref[...], preferred_element_type=jnp.float32)
    r = jnp.dot(xflat_ref[0], wup_ref[...], preferred_element_type=jnp.float32)
    z1_ref[0] = acc.astype(z1_ref.dtype)
    st_ref[:, :, 0:1, :] = jnp.sum(acc, axis=0, keepdims=True).reshape(1, 1, 1, cp)
    st_ref[:, :, 1:2, :] = jnp.sum(acc * acc, axis=0, keepdims=True).reshape(1, 1, 1, cp)
    st_ref[:, :, 2:3, :] = jnp.sum(r, axis=0, keepdims=True).reshape(1, 1, 1, cp)
    st_ref[:, :, 3:4, :] = jnp.sum(r * r, axis=0, keepdims=True).reshape(1, 1, 1, cp)


def _conv2_kernel(z1_ref, sc1_ref, sh1_ref, w2_ref, z2_ref, st_ref,
                  a1p_ref, lhs_ref, *, H, W, WP, SH):
    """BN1(affine)+ReLU -> 3x3 conv2 (single K=9*cp matmul per row strip) + stats."""
    cp = z2_ref.shape[-1]
    # BN1 affine (f32 math) + ReLU, stored bf16 into the zero-bordered scratch.
    a1 = jnp.maximum(z1_ref[0].astype(jnp.float32) * sc1_ref[...] + sh1_ref[...], 0.0)
    # Zero only the 1-pixel halo the taps actually read; interior is overwritten
    # every step, so no full-scratch re-zero (and no cross-step dependency, which
    # keeps the "parallel" grid axis safe on megacore parts).
    zrow = jnp.zeros((1, WP, cp), a1p_ref.dtype)
    zcol = jnp.zeros((H, 1, cp), a1p_ref.dtype)
    a1p_ref[0:1] = zrow
    a1p_ref[H + 1:H + 2] = zrow
    a1p_ref[1:1 + H, 0:1, :] = zcol
    a1p_ref[1:1 + H, W + 1:W + 2, :] = zcol
    a1p_ref[1:1 + H, 1:1 + W, :] = a1.astype(a1p_ref.dtype).reshape(H, W, cp)

    ssum = jnp.zeros((1, cp), jnp.float32)
    ssq = jnp.zeros((1, cp), jnp.float32)
    sm = SH * W
    for r0 in range(0, H, SH):                 # row strips bound the im2col scratch
        for t in range(9):
            dh, dw = divmod(t, 3)
            tap = a1p_ref[r0 + dh:r0 + dh + SH, dw:dw + W, :]
            lhs_ref[:, t * cp:(t + 1) * cp] = tap.reshape(sm, cp)   # lane-dense writes
        acc = jnp.dot(lhs_ref[...], w2_ref[...], preferred_element_type=jnp.float32)
        z2_ref[0, r0 * W:r0 * W + sm, :] = acc.astype(z2_ref.dtype)
        ssum = ssum + jnp.sum(acc, axis=0, keepdims=True)
        ssq = ssq + jnp.sum(acc * acc, axis=0, keepdims=True)
    st_ref[:, 0:1, :] = ssum.reshape(1, 1, cp)
    st_ref[:, 1:2, :] = ssq.reshape(1, 1, cp)


def _bn_add_relu_kernel(z2_ref, x_ref, wup_ref, sc2_ref, sh2_ref, scu_ref,
                        shu_ref, o_ref, *, W, COUT):
    """out = relu(bn2(conv2) + bn_up(x @ wup)); residual recomputed in-kernel
    (K=Cin, tiny); output written in the W-folded (rows, W*Cout) layout so the
    HBM writeback is lane-dense and un-padded."""
    tr, _, cp = z2_ref.shape
    cin = x_ref.shape[-1]
    r = jnp.dot(x_ref[...].reshape(tr * W, cin), wup_ref[...],
                preferred_element_type=jnp.float32)
    z = z2_ref[...].astype(jnp.float32).reshape(tr * W, cp)
    y = jnp.maximum(z * sc2_ref[...] + sh2_ref[...]
                    + r * scu_ref[...] + shu_ref[...], 0.0)
    y3 = y.reshape(tr, W, cp)
    for wi in range(W):                        # VMEM-local fold; the HBM DMA is dense
        o_ref[:, wi * COUT:(wi + 1) * COUT] = y3[:, wi, :COUT]


# ------------------------------ pallas_call wrappers ------------------------------

def _conv1_call(xcol, xflat, w1col, wup, n, hw, cin, cp, budget):
    k9 = 9 * cin
    tm = _pick_row_tile(hw, (k9 + cin + cp) * 2 + 16, budget, min_steps=1)
    mt = hw // tm
    flops = 2 * n * hw * (k9 + cin) * cp
    bytes_acc = (xcol.size + xflat.size + w1col.size + wup.size) * 2 \
        + n * hw * cp * 2 + n * mt * 4 * cp * 4
    return pl.pallas_call(
        _conv1_kernel,
        out_shape=(jax.ShapeDtypeStruct((n, hw, cp), jnp.bfloat16),
                   jax.ShapeDtypeStruct((n, mt, 4, cp), jnp.float32)),
        grid=(n, mt),
        in_specs=[pl.BlockSpec((1, tm, k9), lambda i, j: (i, j, 0)),
                  pl.BlockSpec((1, tm, cin), lambda i, j: (i, j, 0)),
                  pl.BlockSpec((k9, cp), lambda i, j: (0, 0)),
                  pl.BlockSpec((cin, cp), lambda i, j: (0, 0))],
        out_specs=(pl.BlockSpec((1, tm, cp), lambda i, j: (i, j, 0)),
                   pl.BlockSpec((1, 1, 4, cp), lambda i, j: (i, j, 0, 0))),
        compiler_params=_compiler_params(("parallel", "parallel"), budget),
        cost_estimate=pl.CostEstimate(flops=flops, transcendentals=0,
                                      bytes_accessed=bytes_acc),
    )(xcol, xflat, w1col, wup)


def _conv2_call(z1, sc1, sh1, w2col, n, h, w, cp, budget):
    hw = h * w
    wpad = _round_up(w + 2, 8)
    strip_h = _pick_strip_rows(h, w)
    kernel = functools.partial(_conv2_kernel, H=h, W=w, WP=wpad, SH=strip_h)
    flops = 2 * n * hw * 9 * cp * cp
    bytes_acc = (2 * n * hw * cp + w2col.size) * 2 + n * 2 * cp * 4
    return pl.pallas_call(
        kernel,
        out_shape=(jax.ShapeDtypeStruct((n, hw, cp), jnp.bfloat16),
                   jax.ShapeDtypeStruct((n, 2, cp), jnp.float32)),
        grid=(n,),
        in_specs=[pl.BlockSpec((1, hw, cp), lambda i: (i, 0, 0)),
                  pl.BlockSpec((1, cp), lambda i: (0, 0)),
                  pl.BlockSpec((1, cp), lambda i: (0, 0)),
                  pl.BlockSpec((9 * cp, cp), lambda i: (0, 0))],
        out_specs=(pl.BlockSpec((1, hw, cp), lambda i: (i, 0, 0)),
                   pl.BlockSpec((1, 2, cp), lambda i: (i, 0, 0))),
        scratch_shapes=[pltpu.VMEM((h + 2, wpad, cp), jnp.bfloat16),
                        pltpu.VMEM((strip_h * w, 9 * cp), jnp.bfloat16)],
        compiler_params=_compiler_params(("parallel",), budget),
        cost_estimate=pl.CostEstimate(flops=flops, transcendentals=0,
                                      bytes_accessed=bytes_acc),
    )(z1, sc1, sh1, w2col)


def _bn_add_relu_call(z2r, xrows, wup, sc2, sh2, scu, shu,
                      nh, w, cin, cout, cp, budget):
    wc = w * cout
    bpr = w * cp * 2 + w * cin * 2 + wc * 4
    tr = _pick_row_tile(nh, bpr, budget, min_steps=2)
    kernel = functools.partial(_bn_add_relu_kernel, W=w, COUT=cout)
    row_z = pl.BlockSpec((tr, w, cp), lambda j: (j, 0, 0))
    row_x = pl.BlockSpec((tr, w, cin), lambda j: (j, 0, 0))
    vec = pl.BlockSpec((1, cp), lambda j: (0, 0))
    flops = 2 * nh * w * cin * cp + 8 * nh * w * cp
    bytes_acc = nh * w * (cp + cin) * 2 + nh * wc * 4
    return pl.pallas_call(
        kernel,
        out_shape=jax.ShapeDtypeStruct((nh, wc), jnp.float32),
        grid=(nh // tr,),
        in_specs=[row_z, row_x, pl.BlockSpec((cin, cp), lambda j: (0, 0)),
                  vec, vec, vec, vec],
        out_specs=pl.BlockSpec((tr, wc), lambda j: (j, 0)),
        compiler_params=_compiler_params(("parallel",), budget),
        cost_estimate=pl.CostEstimate(flops=flops, transcendentals=0,
                                      bytes_accessed=bytes_acc),
    )(z2r, xrows, wup, sc2, sh2, scu, shu)


# ------------------------------ JAX glue ------------------------------

def _ct3_weight_to_taps(w_pt, cin_p, cout_p):
    """ConvTranspose2d weight (Cin,Cout,3,3) -> per-tap matmul weights (9,cin_p,cout_p).

    ConvTranspose(k3,s1,p1) == SAME correlation with the spatially flipped,
    (in,out)-transposed kernel: tap (dh,dw) weight[ci,co] = w_pt[ci,co,2-dh,2-dw].
    """
    cin, cout = w_pt.shape[0], w_pt.shape[1]
    wf = w_pt[:, :, ::-1, ::-1]
    m = jnp.transpose(wf, (2, 3, 0, 1))                          # (3,3,Cin,Cout)
    m = jnp.pad(m, ((0, 0), (0, 0), (0, cin_p - cin), (0, cout_p - cout)))
    return m.reshape(9, cin_p, cout_p)


def _pad_channels(v, cp):
    return jnp.pad(v.reshape(-1), (0, cp - v.size)).astype(jnp.float32)


def _affine_from_stats(sums, count, gamma, beta):
    # sums: (2, cp) = [sum(z), sum(z*z)] over all N*H*W rows; biased variance,
    # matching PyTorch BatchNorm2d training-mode forward.
    mean = sums[0] / count
    var = jnp.maximum(sums[1] / count - mean * mean, 0.0)
    scale = gamma * jax.lax.rsqrt(var + EPS)
    shift = beta - mean * scale
    return scale.reshape(1, -1), shift.reshape(1, -1)


@jax.jit
def residual_block_decoder_fwd(x_nchw, params):
    n, cin, h, w = x_nchw.shape
    cout = params["w1"].shape[1]
    cp = _round_up(cout, LANES)          # MXU / lane-dense matmul output width
    budget = _vmem_budget_bytes()
    count = n * h * w
    hw = h * w
    nh = n * h

    # Note: x is cast to bf16 once in the wrapper (feeds only bf16 MXU operands).
    x = jnp.transpose(x_nchw, (0, 2, 3, 1))                            # NHWC
    xb = x.astype(jnp.bfloat16)
    xpad = jnp.pad(xb, ((0, 0), (1, 1), (1, 1), (0, 0)))
    # im2col for conv1 in the wrapper: tiny (9*Cin bf16 channels / pixel) and it
    # removes all lane-sparse in-kernel tap slicing of the (.., Cin=4) input.
    xcol = jnp.concatenate(
        [xpad[:, dh:dh + h, dw:dw + w, :] for dh in range(3) for dw in range(3)],
        axis=-1).reshape(n, hw, 9 * cin)
    xflat = xb.reshape(n, hw, cin)
    xrows = xb.reshape(nh, w, cin)

    w1col = _ct3_weight_to_taps(params["w1"], cin, cp).reshape(9 * cin, cp)
    w1col = w1col.astype(jnp.bfloat16)
    w2col = _ct3_weight_to_taps(params["w2"], cp, cp).reshape(9 * cp, cp)
    w2col = w2col.astype(jnp.bfloat16)
    wup = jnp.pad(params["wup"][:, :, 0, 0],
                  ((0, 0), (0, cp - cout))).astype(jnp.bfloat16)

    g1, b1 = _pad_channels(params["g1"], cp), _pad_channels(params["b1"], cp)
    g2, b2 = _pad_channels(params["g2"], cp), _pad_channels(params["b2"], cp)
    gu, bu = _pad_channels(params["gu"], cp), _pad_channels(params["bu"], cp)

    # Stage 1: conv1 (pre-BN, bf16 out) + residual-branch stats, batch x row tiles.
    z1, st1 = _conv1_call(xcol, xflat, w1col, wup, n, hw, cin, cp, budget)
    s1 = jnp.sum(st1, axis=(0, 1))                       # (4, cp)
    sc1, sh1 = _affine_from_stats(s1[0:2], count, g1, b1)
    scu, shu = _affine_from_stats(s1[2:4], count, gu, bu)

    # Stage 2: BN1+ReLU (folded affine) -> conv2 (single K=9*cp matmul), bf16 out.
    z2, st2 = _conv2_call(z1, sc1, sh1, w2col, n, h, w, cp, budget)
    sc2, sh2 = _affine_from_stats(jnp.sum(st2, axis=0), count, g2, b2)

    # Stage 3: out = relu(bn2(conv2) + bn_up(x @ wup)), row-tiled, lane-dense,
    # un-padded (N*H, W*Cout) writeback; residual recomputed from x (no zr in HBM).
    out2d = _bn_add_relu_call(z2.reshape(nh, w, cp), xrows, wup,
                              sc2, sh2, scu, shu, nh, w, cin, cout, cp, budget)

    out = out2d.reshape(n, h, w, cout)
    return jnp.transpose(out, (0, 3, 1, 2))                            # NCHW


# ------------------------------ pure-JAX reference ------------------------------

def _reference_forward(x_nchw, params):
    x = jnp.transpose(x_nchw, (0, 2, 3, 1)).astype(jnp.float32)

    def conv_t3(inp, w_pt):
        wk = jnp.transpose(w_pt[:, :, ::-1, ::-1], (2, 3, 0, 1))       # HWIO
        return jax.lax.conv_general_dilated(
            inp, wk, window_strides=(1, 1), padding="SAME",
            dimension_numbers=("NHWC", "HWIO", "NHWC"))

    def bn(y, g, b):
        mean = jnp.mean(y, axis=(0, 1, 2), keepdims=True)
        var = jnp.mean((y - mean) ** 2, axis=(0, 1, 2), keepdims=True)
        return ((y - mean) * jax.lax.rsqrt(var + EPS) * g.reshape(1, 1, 1, -1)
                + b.reshape(1, 1, 1, -1))

    out = jnp.maximum(bn(conv_t3(x, params["w1"]), params["g1"], params["b1"]), 0.0)
    out = bn(conv_t3(out, params["w2"]), params["g2"], params["b2"])
    res = bn(jnp.einsum("nhwc,cd->nhwd", x, params["wup"][:, :, 0, 0]),
             params["gu"], params["bu"])
    out = jnp.maximum(out + res, 0.0)
    return jnp.transpose(out, (0, 3, 1, 2))


# ------------------------------ main ------------------------------

if __name__ == "__main__":
    N, CIN, COUT, H, W = 2, 4, 8, 16, 16   # in != out -> upsample branch active
    key = jax.random.PRNGKey(0)
    ks = jax.random.split(key, 10)

    params = dict(
        # PyTorch ConvTranspose2d weight layout: (in_channels, out_channels, kH, kW)
        w1=0.1 * jax.random.normal(ks[0], (CIN, COUT, 3, 3), jnp.float32),
        w2=0.1 * jax.random.normal(ks[1], (COUT, COUT, 3, 3), jnp.float32),
        wup=0.1 * jax.random.normal(ks[2], (CIN, COUT, 1, 1), jnp.float32),
        g1=1.0 + 0.1 * jax.random.normal(ks[3], (COUT,), jnp.float32),
        b1=0.1 * jax.random.normal(ks[4], (COUT,), jnp.float32),
        g2=1.0 + 0.1 * jax.random.normal(ks[5], (COUT,), jnp.float32),
        b2=0.1 * jax.random.normal(ks[6], (COUT,), jnp.float32),
        gu=1.0 + 0.1 * jax.random.normal(ks[7], (COUT,), jnp.float32),
        bu=0.1 * jax.random.normal(ks[8], (COUT,), jnp.float32),
    )
    x = jax.random.normal(ks[9], (N, CIN, H, W), jnp.float32)

    out = jax.block_until_ready(residual_block_decoder_fwd(x, params))
    ref = _reference_forward(x, params)

    assert out.shape == (N, COUT, H, W), out.shape
    assert bool(jnp.all(jnp.isfinite(out)))
    # bf16 matmul operands / bf16 intermediates vs f32 XLA-conv reference.
    assert bool(jnp.allclose(out, ref, atol=1e-1, rtol=1e-1)), float(
        jnp.max(jnp.abs(out - ref)))

    print("KERNEL_OK")
</pallas_src>

<mosaic_0001>
module attributes {stable_mosaic.version = 11 : i64} {
  func.func @_conv1_kernel(%arg0: i32, %arg1: i32, %arg2: memref<1x256x36xbf16, #tpu.memory_space<vmem>>, %arg3: memref<1x256x4xbf16, #tpu.memory_space<vmem>>, %arg4: memref<36x128xbf16, #tpu.memory_space<vmem>>, %arg5: memref<4x128xbf16, #tpu.memory_space<vmem>>, %arg6: memref<1x256x128xbf16, #tpu.memory_space<vmem>>, %arg7: memref<1x1x4x128xf32, #tpu.memory_space<vmem>>) attributes {dimension_semantics = [#tpu.dimension_semantics<parallel>, #tpu.dimension_semantics<parallel>], iteration_bounds = array<i64: 2, 1>, scalar_prefetch = 0 : i64, scratch_operands = 0 : i64, tpu.core_type = #tpu.core_type<tc>, window_params = [{transform_indices = @transform_0, window_bounds = array<i64: 1, 256, 36>}, {transform_indices = @transform_1, window_bounds = array<i64: 1, 256, 4>}, {pipeline_mode = #tpu.pipeline_mode<synchronous>, transform_indices = @transform_2, window_bounds = array<i64: 36, 128>}, {pipeline_mode = #tpu.pipeline_mode<synchronous>, transform_indices = @transform_3, window_bounds = array<i64: 4, 128>}, {transform_indices = @transform_4, window_bounds = array<i64: 1, 256, 128>}, {transform_indices = @transform_5, window_bounds = array<i64: 1, 1, 4, 128>}]} {
    %c0 = arith.constant 0 : index
    %c0_0 = arith.constant 0 : index
    %c0_1 = arith.constant 0 : index
    %0 = vector.load %arg2[%c0, %c0_0, %c0_1] : memref<1x256x36xbf16, #tpu.memory_space<vmem>>, vector<1x256x36xbf16>
    %1 = vector.shape_cast %0 : vector<1x256x36xbf16> to vector<256x36xbf16>
    %c0_2 = arith.constant 0 : index
    %c0_3 = arith.constant 0 : index
    %2 = vector.load %arg4[%c0_2, %c0_3] : memref<36x128xbf16, #tpu.memory_space<vmem>>, vector<36x128xbf16>
    %cst = arith.constant dense<0.000000e+00> : vector<256x128xf32>
    %3 = tpu.matmul %1, %2, %cst {dimension_numbers = #tpu.dot_dimension_numbers<[1], [0], [0], [1], [0, 0, 1, 1], [], []>} : vector<256x36xbf16>, vector<36x128xbf16>, vector<256x128xf32> -> vector<256x128xf32>
    %c0_4 = arith.constant 0 : index
    %c0_5 = arith.constant 0 : index
    %c0_6 = arith.constant 0 : index
    %4 = vector.load %arg3[%c0_4, %c0_5, %c0_6] : memref<1x256x4xbf16, #tpu.memory_space<vmem>>, vector<1x256x4xbf16>
    %5 = vector.shape_cast %4 : vector<1x256x4xbf16> to vector<256x4xbf16>
    %c0_7 = arith.constant 0 : index
    %c0_8 = arith.constant 0 : index
    %6 = vector.load %arg5[%c0_7, %c0_8] : memref<4x128xbf16, #tpu.memory_space<vmem>>, vector<4x128xbf16>
    %cst_9 = arith.constant dense<0.000000e+00> : vector<256x128xf32>
    %7 = tpu.matmul %5, %6, %cst_9 {dimension_numbers = #tpu.dot_dimension_numbers<[1], [0], [0], [1], [0, 0, 1, 1], [], []>} : vector<256x4xbf16>, vector<4x128xbf16>, vector<256x128xf32> -> vector<256x128xf32>
    %8 = arith.truncf %3 : vector<256x128xf32> to vector<256x128xbf16>
    %c0_10 = arith.constant 0 : index
    %c0_11 = arith.constant 0 : index
    %c0_12 = arith.constant 0 : index
    %9 = vector.load %arg6[%c0_10, %c0_11, %c0_12] : memref<1x256x128xbf16, #tpu.memory_space<vmem>>, vector<1x256x128xbf16>
    %10 = vector.shape_cast %9 : vector<1x256x128xbf16> to vector<256x128xbf16>
    %11 = vector.shape_cast %8 : vector<256x128xbf16> to vector<1x256x128xbf16>
    tpu.vector_store %arg6[%c0_10, %c0_11, %c0_12], %11 {strides = array<i32>} : memref<1x256x128xbf16, #tpu.memory_space<vmem>>, vector<1x256x128xbf16>,
    %cst_13 = arith.constant dense<0.000000e+00> : vector<128xf32>
    %12 = vector.multi_reduction <add>, %3, %cst_13 [0] : vector<256x128xf32> to vector<128xf32>
    %13 = vector.shape_cast %12 : vector<128xf32> to vector<1x128xf32>
    %14 = vector.shape_cast %13 : vector<1x128xf32> to vector<1x1x1x128xf32>
    %c0_14 = arith.constant 0 : index
    %c0_15 = arith.constant 0 : index
    %c0_16 = arith.constant 0 : index
    %c0_17 = arith.constant 0 : index
    %15 = vector.load %arg7[%c0_14, %c0_15, %c0_16, %c0_17] : memref<1x1x4x128xf32, #tpu.memory_space<vmem>>, vector<1x1x1x128xf32>
    tpu.vector_store %arg7[%c0_14, %c0_15, %c0_16, %c0_17], %14 {strides = array<i32>} : memref<1x1x4x128xf32, #tpu.memory_space<vmem>>, vector<1x1x1x128xf32>,
    %16 = arith.mulf %3, %3 : vector<256x128xf32>
    %cst_18 = arith.constant dense<0.000000e+00> : vector<128xf32>
    %17 = vector.multi_reduction <add>, %16, %cst_18 [0] : vector<256x128xf32> to vector<128xf32>
    %18 = vector.shape_cast %17 : vector<128xf32> to vector<1x128xf32>
    %19 = vector.shape_cast %18 : vector<1x128xf32> to vector<1x1x1x128xf32>
    %c0_19 = arith.constant 0 : index
    %c0_20 = arith.constant 0 : index
    %c1 = arith.constant 1 : index
    %c0_21 = arith.constant 0 : index
    %20 = vector.load %arg7[%c0_19, %c0_20, %c1, %c0_21] : memref<1x1x4x128xf32, #tpu.memory_space<vmem>>, vector<1x1x1x128xf32>
    tpu.vector_store %arg7[%c0_19, %c0_20, %c1, %c0_21], %19 {strides = array<i32>} : memref<1x1x4x128xf32, #tpu.memory_space<vmem>>, vector<1x1x1x128xf32>,
    %cst_22 = arith.constant dense<0.000000e+00> : vector<128xf32>
    %21 = vector.multi_reduction <add>, %7, %cst_22 [0] : vector<256x128xf32> to vector<128xf32>
    %22 = vector.shape_cast %21 : vector<128xf32> to vector<1x128xf32>
    %23 = vector.shape_cast %22 : vector<1x128xf32> to vector<1x1x1x128xf32>
    %c0_23 = arith.constant 0 : index
    %c0_24 = arith.constant 0 : index
    %c2 = arith.constant 2 : index
    %c0_25 = arith.constant 0 : index
    %24 = vector.load %arg7[%c0_23, %c0_24, %c2, %c0_25] : memref<1x1x4x128xf32, #tpu.memory_space<vmem>>, vector<1x1x1x128xf32>
    tpu.vector_store %arg7[%c0_23, %c0_24, %c2, %c0_25], %23 {strides = array<i32>} : memref<1x1x4x128xf32, #tpu.memory_space<vmem>>, vector<1x1x1x128xf32>,
    %25 = arith.mulf %7, %7 : vector<256x128xf32>
    %cst_26 = arith.constant dense<0.000000e+00> : vector<128xf32>
    %26 = vector.multi_reduction <add>, %25, %cst_26 [0] : vector<256x128xf32> to vector<128xf32>
    %27 = vector.shape_cast %26 : vector<128xf32> to vector<1x128xf32>
    %28 = vector.shape_cast %27 : vector<1x128xf32> to vector<1x1x1x128xf32>
    %c0_27 = arith.constant 0 : index
    %c0_28 = arith.constant 0 : index
    %c3 = arith.constant 3 : index
    %c0_29 = arith.constant 0 : index
    %29 = vector.load %arg7[%c0_27, %c0_28, %c3, %c0_29] : memref<1x1x4x128xf32, #tpu.memory_space<vmem>>, vector<1x1x1x128xf32>
    tpu.vector_store %arg7[%c0_27, %c0_28, %c3, %c0_29], %28 {strides = array<i32>} : memref<1x1x4x128xf32, #tpu.memory_space<vmem>>, vector<1x1x1x128xf32>,
    return
  }
  func.func @transform_0(%arg0: i32, %arg1: i32) -> (i32, i32, i32) {
    %c0_i32 = arith.constant 0 : i32
    %c0_i32_0 = arith.constant 0 : i32
    return %arg0, %arg1, %c0_i32 : i32, i32, i32
  }
  func.func @transform_1(%arg0: i32, %arg1: i32) -> (i32, i32, i32) {
    %c0_i32 = arith.constant 0 : i32
    %c0_i32_0 = arith.constant 0 : i32
    return %arg0, %arg1, %c0_i32 : i32, i32, i32
  }
  func.func @transform_2(%arg0: i32, %arg1: i32) -> (i32, i32) {
    %c0_i32 = arith.constant 0 : i32
    %c0_i32_0 = arith.constant 0 : i32
    %c0_i32_1 = arith.constant 0 : i32
    return %c0_i32, %c0_i32_0 : i32, i32
  }
  func.func @transform_3(%arg0: i32, %arg1: i32) -> (i32, i32) {
    %c0_i32 = arith.constant 0 : i32
    %c0_i32_0 = arith.constant 0 : i32
    %c0_i32_1 = arith.constant 0 : i32
    return %c0_i32, %c0_i32_0 : i32, i32
  }
  func.func @transform_4(%arg0: i32, %arg1: i32) -> (i32, i32, i32) {
    %c0_i32 = arith.constant 0 : i32
    %c0_i32_0 = arith.constant 0 : i32
    return %arg0, %arg1, %c0_i32 : i32, i32, i32
  }
  func.func @transform_5(%arg0: i32, %arg1: i32) -> (i32, i32, i32, i32) {
    %c0_i32 = arith.constant 0 : i32
    %c0_i32_0 = arith.constant 0 : i32
    %c0_i32_1 = arith.constant 0 : i32
    return %arg0, %arg1, %c0_i32, %c0_i32_0 : i32, i32, i32, i32
  }
}

module attributes {stable_mosaic.version = 11 : i64} {
  func.func @_conv2_kernel(%arg0: i32, %arg1: memref<1x256x128xbf16, #tpu.memory_space<vmem>>, %arg2: memref<1x128xf32, #tpu.memory_space<vmem>>, %arg3: memref<1x128xf32, #tpu.memory_space<vmem>>, %arg4: memref<1152x128xbf16, #tpu.memory_space<vmem>>, %arg5: memref<1x256x128xbf16, #tpu.memory_space<vmem>>, %arg6: memref<1x2x128xf32, #tpu.memory_space<vmem>>, %arg7: memref<18x24x128xbf16, #tpu.memory_space<vmem>>, %arg8: memref<256x1152xbf16, #tpu.memory_space<vmem>>) attributes {dimension_semantics = [#tpu.dimension_semantics<parallel>], iteration_bounds = array<i64: 2>, scalar_prefetch = 0 : i64, scratch_operands = 2 : i64, tpu.core_type = #tpu.core_type<tc>, window_params = [{transform_indices = @transform_0, window_bounds = array<i64: 1, 256, 128>}, {pipeline_mode = #tpu.pipeline_mode<synchronous>, transform_indices = @transform_1, window_bounds = array<i64: 1, 128>}, {pipeline_mode = #tpu.pipeline_mode<synchronous>, transform_indices = @transform_2, window_bounds = array<i64: 1, 128>}, {pipeline_mode = #tpu.pipeline_mode<synchronous>, transform_indices = @transform_3, window_bounds = array<i64: 1152, 128>}, {transform_indices = @transform_4, window_bounds = array<i64: 1, 256, 128>}, {transform_indices = @transform_5, window_bounds = array<i64: 1, 2, 128>}]} {
    %c0 = arith.constant 0 : index
    %c0_0 = arith.constant 0 : index
    %c0_1 = arith.constant 0 : index
    %0 = vector.load %arg1[%c0, %c0_0, %c0_1] : memref<1x256x128xbf16, #tpu.memory_space<vmem>>, vector<1x256x128xbf16>
    %1 = vector.shape_cast %0 : vector<1x256x128xbf16> to vector<256x128xbf16>
    %2 = arith.extf %1 : vector<256x128xbf16> to vector<256x128xf32>
    %c0_2 = arith.constant 0 : index
    %c0_3 = arith.constant 0 : index
    %3 = vector.load %arg2[%c0_2, %c0_3] : memref<1x128xf32, #tpu.memory_space<vmem>>, vector<1x128xf32>
    %4 = vector.broadcast %3 : vector<1x128xf32> to vector<256x128xf32>
    %5 = arith.mulf %2, %4 : vector<256x128xf32>
    %c0_4 = arith.constant 0 : index
    %c0_5 = arith.constant 0 : index
    %6 = vector.load %arg3[%c0_4, %c0_5] : memref<1x128xf32, #tpu.memory_space<vmem>>, vector<1x128xf32>
    %7 = vector.broadcast %6 : vector<1x128xf32> to vector<256x128xf32>
    %8 = arith.addf %5, %7 : vector<256x128xf32>
    %cst = arith.constant 0.000000e+00 : f32
    %9 = vector.broadcast %cst : f32 to vector<256x128xf32>
    %10 = arith.maximumf %8, %9 : vector<256x128xf32>
    %cst_6 = arith.constant 0.000000e+00 : bf16
    %11 = vector.broadcast %cst_6 : bf16 to vector<1x24x128xbf16>
    %cst_7 = arith.constant 0.000000e+00 : bf16
    %12 = vector.broadcast %cst_7 : bf16 to vector<16x1x128xbf16>
    %c0_8 = arith.constant 0 : index
    %c0_9 = arith.constant 0 : index
    %c0_10 = arith.constant 0 : index
    %13 = vector.load %arg7[%c0_8, %c0_9, %c0_10] : memref<18x24x128xbf16, #tpu.memory_space<vmem>>, vector<1x24x128xbf16>
    tpu.vector_store %arg7[%c0_8, %c0_9, %c0_10], %11 {strides = array<i32>} : memref<18x24x128xbf16, #tpu.memory_space<vmem>>, vector<1x24x128xbf16>,
    %c17 = arith.constant 17 : index
    %c0_11 = arith.constant 0 : index
    %c0_12 = arith.constant 0 : index
    %14 = vector.load %arg7[%c17, %c0_11, %c0_12] : memref<18x24x128xbf16, #tpu.memory_space<vmem>>, vector<1x24x128xbf16>
    tpu.vector_store %arg7[%c17, %c0_11, %c0_12], %11 {strides = array<i32>} : memref<18x24x128xbf16, #tpu.memory_space<vmem>>, vector<1x24x128xbf16>,
    %c1 = arith.constant 1 : index
    %c0_13 = arith.constant 0 : index
    %c0_14 = arith.constant 0 : index
    %15 = vector.load %arg7[%c1, %c0_13, %c0_14] : memref<18x24x128xbf16, #tpu.memory_space<vmem>>, vector<16x1x128xbf16>
    tpu.vector_store %arg7[%c1, %c0_13, %c0_14], %12 {strides = array<i32>} : memref<18x24x128xbf16, #tpu.memory_space<vmem>>, vector<16x1x128xbf16>,
    %c1_15 = arith.constant 1 : index
    %c17_16 = arith.constant 17 : index
    %c0_17 = arith.constant 0 : index
    %16 = vector.load %arg7[%c1_15, %c17_16, %c0_17] : memref<18x24x128xbf16, #tpu.memory_space<vmem>>, vector<16x1x128xbf16>
    tpu.vector_store %arg7[%c1_15, %c17_16, %c0_17], %12 {strides = array<i32>} : memref<18x24x128xbf16, #tpu.memory_space<vmem>>, vector<16x1x128xbf16>,
    %17 = arith.truncf %10 : vector<256x128xf32> to vector<256x128xbf16>
    %18 = vector.shape_cast %17 : vector<256x128xbf16> to vector<16x16x128xbf16>
    %c1_18 = arith.constant 1 : index
    %c1_19 = arith.constant 1 : index
    %c0_20 = arith.constant 0 : index
    %19 = vector.load %arg7[%c1_18, %c1_19, %c0_20] : memref<18x24x128xbf16, #tpu.memory_space<vmem>>, vector<16x16x128xbf16>
    tpu.vector_store %arg7[%c1_18, %c1_19, %c0_20], %18 {strides = array<i32>} : memref<18x24x128xbf16, #tpu.memory_space<vmem>>, vector<16x16x128xbf16>,
    %cst_21 = arith.constant 0.000000e+00 : f32
    %20 = vector.broadcast %cst_21 : f32 to vector<1x128xf32>
    %cst_22 = arith.constant 0.000000e+00 : f32
    %21 = vector.broadcast %cst_22 : f32 to vector<1x128xf32>
    %c0_23 = arith.constant 0 : index
    %c0_24 = arith.constant 0 : index
    %c0_25 = arith.constant 0 : index
    %22 = vector.load %arg7[%c0_23, %c0_24, %c0_25] : memref<18x24x128xbf16, #tpu.memory_space<vmem>>, vector<16x16x128xbf16>
    %23 = vector.shape_cast %22 : vector<16x16x128xbf16> to vector<256x128xbf16>
    %c0_26 = arith.constant 0 : index
    %c0_27 = arith.constant 0 : index
    %24 = vector.load %arg8[%c0_26, %c0_27] : memref<256x1152xbf16, #tpu.memory_space<vmem>>, vector<256x128xbf16>
    tpu.vector_store %arg8[%c0_26, %c0_27], %23 {strides = array<i32>} : memref<256x1152xbf16, #tpu.memory_space<vmem>>, vector<256x128xbf16>,
    %c0_28 = arith.constant 0 : index
    %c1_29 = arith.constant 1 : index
    %c0_30 = arith.constant 0 : index
    %25 = vector.load %arg7[%c0_28, %c1_29, %c0_30] : memref<18x24x128xbf16, #tpu.memory_space<vmem>>, vector<16x16x128xbf16>
    %26 = vector.shape_cast %25 : vector<16x16x128xbf16> to vector<256x128xbf16>
    %c0_31 = arith.constant 0 : index
    %c128 = arith.constant 128 : index
    %27 = vector.load %arg8[%c0_31, %c128] : memref<256x1152xbf16, #tpu.memory_space<vmem>>, vector<256x128xbf16>
    tpu.vector_store %arg8[%c0_31, %c128], %26 {strides = array<i32>} : memref<256x1152xbf16, #tpu.memory_space<vmem>>, vector<256x128xbf16>,
    %c0_32 = arith.constant 0 : index
    %c2 = arith.constant 2 : index
    %c0_33 = arith.constant 0 : index
    %28 = vector.load %arg7[%c0_32, %c2, %c0_33] : memref<18x24x128xbf16, #tpu.memory_space<vmem>>, vector<16x16x128xbf16>
    %29 = vector.shape_cast %28 : vector<16x16x128xbf16> to vector<256x128xbf16>
    %c0_34 = arith.constant 0 : index
    %c256 = arith.constant 256 : index
    %30 = vector.load %arg8[%c0_34, %c256] : memref<256x1152xbf16, #tpu.memory_space<vmem>>, vector<256x128xbf16>
    tpu.vector_store %arg8[%c0_34, %c256], %29 {strides = array<i32>} : memref<256x1152xbf16, #tpu.memory_space<vmem>>, vector<256x128xbf16>,
    %c1_35 = arith.constant 1 : index
    %c0_36 = arith.constant 0 : index
    %c0_37 = arith.constant 0 : index
    %31 = vector.load %arg7[%c1_35, %c0_36, %c0_37] : memref<18x24x128xbf16, #tpu.memory_space<vmem>>, vector<16x16x128xbf16>
    %32 = vector.shape_cast %31 : vector<16x16x128xbf16> to vector<256x128xbf16>
    %c0_38 = arith.constant 0 : index
    %c384 = arith.constant 384 : index
    %33 = vector.load %arg8[%c0_38, %c384] : memref<256x1152xbf16, #tpu.memory_space<vmem>>, vector<256x128xbf16>
    tpu.vector_store %arg8[%c0_38, %c384], %32 {strides = array<i32>} : memref<256x1152xbf16, #tpu.memory_space<vmem>>, vector<256x128xbf16>,
    %c1_39 = arith.constant 1 : index
    %c1_40 = arith.constant 1 : index
    %c0_41 = arith.constant 0 : index
    %34 = vector.load %arg7[%c1_39, %c1_40, %c0_41] : memref<18x24x128xbf16, #tpu.memory_space<vmem>>, vector<16x16x128xbf16>
    %35 = vector.shape_cast %34 : vector<16x16x128xbf16> to vector<256x128xbf16>
    %c0_42 = arith.constant 0 : index
    %c512 = arith.constant 512 : index
    %36 = vector.load %arg8[%c0_42, %c512] : memref<256x1152xbf16, #tpu.memory_space<vmem>>, vector<256x128xbf16>
    tpu.vector_store %arg8[%c0_42, %c512], %35 {strides = array<i32>} : memref<256x1152xbf16, #tpu.memory_space<vmem>>, vector<256x128xbf16>,
    %c1_43 = arith.constant 1 : index
    %c2_44 = arith.constant 2 : index
    %c0_45 = arith.constant 0 : index
    %37 = vector.load %arg7[%c1_43, %c2_44, %c0_45] : memref<18x24x128xbf16, #tpu.memory_space<vmem>>, vector<16x16x128xbf16>
    %38 = vector.shape_cast %37 : vector<16x16x128xbf16> to vector<256x128xbf16>
    %c0_46 = arith.constant 0 : index
    %c640 = arith.constant 640 : index
    %39 = vector.load %arg8[%c0_46, %c640] : memref<256x1152xbf16, #tpu.memory_space<vmem>>, vector<256x128xbf16>
    tpu.vector_store %arg8[%c0_46, %c640], %38 {strides = array<i32>} : memref<256x1152xbf16, #tpu.memory_space<vmem>>, vector<256x128xbf16>,
    %c2_47 = arith.constant 2 : index
    %c0_48 = arith.constant 0 : index
    %c0_49 = arith.constant 0 : index
    %40 = vector.load %arg7[%c2_47, %c0_48, %c0_49] : memref<18x24x128xbf16, #tpu.memory_space<vmem>>, vector<16x16x128xbf16>
    %41 = vector.shape_cast %40 : vector<16x16x128xbf16> to vector<256x128xbf16>
    %c0_50 = arith.constant 0 : index
    %c768 = arith.constant 768 : index
    %42 = vector.load %arg8[%c0_50, %c768] : memref<256x1152xbf16, #tpu.memory_space<vmem>>, vector<256x128xbf16>
    tpu.vector_store %arg8[%c0_50, %c768], %41 {strides = array<i32>} : memref<256x1152xbf16, #tpu.memory_space<vmem>>, vector<256x128xbf16>,
    %c2_51 = arith.constant 2 : index
    %c1_52 = arith.constant 1 : index
    %c0_53 = arith.constant 0 : index
    %43 = vector.load %arg7[%c2_51, %c1_52, %c0_53] : memref<18x24x128xbf16, #tpu.memory_space<vmem>>, vector<16x16x128xbf16>
    %44 = vector.shape_cast %43 : vector<16x16x128xbf16> to vector<256x128xbf16>
    %c0_54 = arith.constant 0 : index
    %c896 = arith.constant 896 : index
    %45 = vector.load %arg8[%c0_54, %c896] : memref<256x1152xbf16, #tpu.memory_space<vmem>>, vector<256x128xbf16>
    tpu.vector_store %arg8[%c0_54, %c896], %44 {strides = array<i32>} : memref<256x1152xbf16, #tpu.memory_space<vmem>>, vector<256x128xbf16>,
    %c2_55 = arith.constant 2 : index
    %c2_56 = arith.constant 2 : index
    %c0_57 = arith.constant 0 : index
    %46 = vector.load %arg7[%c2_55, %c2_56, %c0_57] : memref<18x24x128xbf16, #tpu.memory_space<vmem>>, vector<16x16x128xbf16>
    %47 = vector.shape_cast %46 : vector<16x16x128xbf16> to vector<256x128xbf16>
    %c0_58 = arith.constant 0 : index
    %c1024 = arith.constant 1024 : index
    %48 = vector.load %arg8[%c0_58, %c1024] : memref<256x1152xbf16, #tpu.memory_space<vmem>>, vector<256x128xbf16>
    tpu.vector_store %arg8[%c0_58, %c1024], %47 {strides = array<i32>} : memref<256x1152xbf16, #tpu.memory_space<vmem>>, vector<256x128xbf16>,
    %c0_59 = arith.constant 0 : index
    %c0_60 = arith.constant 0 : index
    %49 = vector.load %arg8[%c0_59, %c0_60] : memref<256x1152xbf16, #tpu.memory_space<vmem>>, vector<256x1152xbf16>
    %c0_61 = arith.constant 0 : index
    %c0_62 = arith.constant 0 : index
    %50 = vector.load %arg4[%c0_61, %c0_62] : memref<1152x128xbf16, #tpu.memory_space<vmem>>, vector<1152x128xbf16>
    %cst_63 = arith.constant dense<0.000000e+00> : vector<256x128xf32>
    %51 = tpu.matmul %49, %50, %cst_63 {dimension_numbers = #tpu.dot_dimension_numbers<[1], [0], [0], [1], [0, 0, 1, 1], [], []>} : vector<256x1152xbf16>, vector<1152x128xbf16>, vector<256x128xf32> -> vector<256x128xf32>
    %52 = arith.truncf %51 : vector<256x128xf32> to vector<256x128xbf16>
    %c0_64 = arith.constant 0 : index
    %c0_65 = arith.constant 0 : index
    %c0_66 = arith.constant 0 : index
    %53 = vector.load %arg5[%c0_64, %c0_65, %c0_66] : memref<1x256x128xbf16, #tpu.memory_space<vmem>>, vector<1x256x128xbf16>
    %54 = vector.shape_cast %53 : vector<1x256x128xbf16> to vector<256x128xbf16>
    %55 = vector.shape_cast %52 : vector<256x128xbf16> to vector<1x256x128xbf16>
    tpu.vector_store %arg5[%c0_64, %c0_65, %c0_66], %55 {strides = array<i32>} : memref<1x256x128xbf16, #tpu.memory_space<vmem>>, vector<1x256x128xbf16>,
    %cst_67 = arith.constant dense<0.000000e+00> : vector<128xf32>
    %56 = vector.multi_reduction <add>, %51, %cst_67 [0] : vector<256x128xf32> to vector<128xf32>
    %57 = vector.shape_cast %56 : vector<128xf32> to vector<1x128xf32>
    %58 = arith.addf %20, %57 : vector<1x128xf32>
    %59 = arith.mulf %51, %51 : vector<256x128xf32>
    %cst_68 = arith.constant dense<0.000000e+00> : vector<128xf32>
    %60 = vector.multi_reduction <add>, %59, %cst_68 [0] : vector<256x128xf32> to vector<128xf32>
    %61 = vector.shape_cast %60 : vector<128xf32> to vector<1x128xf32>
    %62 = arith.addf %21, %61 : vector<1x128xf32>
    %63 = vector.shape_cast %58 : vector<1x128xf32> to vector<1x1x128xf32>
    %c0_69 = arith.constant 0 : index
    %c0_70 = arith.constant 0 : index
    %c0_71 = arith.constant 0 : index
    %64 = vector.load %arg6[%c0_69, %c0_70, %c0_71] : memref<1x2x128xf32, #tpu.memory_space<vmem>>, vector<1x1x128xf32>
    tpu.vector_store %arg6[%c0_69, %c0_70, %c0_71], %63 {strides = array<i32>} : memref<1x2x128xf32, #tpu.memory_space<vmem>>, vector<1x1x128xf32>,
    %65 = vector.shape_cast %62 : vector<1x128xf32> to vector<1x1x128xf32>
    %c0_72 = arith.constant 0 : index
    %c1_73 = arith.constant 1 : index
    %c0_74 = arith.constant 0 : index
    %66 = vector.load %arg6[%c0_72, %c1_73, %c0_74] : memref<1x2x128xf32, #tpu.memory_space<vmem>>, vector<1x1x128xf32>
    tpu.vector_store %arg6[%c0_72, %c1_73, %c0_74], %65 {strides = array<i32>} : memref<1x2x128xf32, #tpu.memory_space<vmem>>, vector<1x1x128xf32>,
    return
  }
  func.func @transform_0(%arg0: i32) -> (i32, i32, i32) {
    %c0_i32 = arith.constant 0 : i32
    %c0_i32_0 = arith.constant 0 : i32
    %c0_i32_1 = arith.constant 0 : i32
    return %arg0, %c0_i32, %c0_i32_0 : i32, i32, i32
  }
  func.func @transform_1(%arg0: i32) -> (i32, i32) {
    %c0_i32 = arith.constant 0 : i32
    %c0_i32_0 = arith.constant 0 : i32
    %c0_i32_1 = arith.constant 0 : i32
    return %c0_i32, %c0_i32_0 : i32, i32
  }
  func.func @transform_2(%arg0: i32) -> (i32, i32) {
    %c0_i32 = arith.constant 0 : i32
    %c0_i32_0 = arith.constant 0 : i32
    %c0_i32_1 = arith.constant 0 : i32
    return %c0_i32, %c0_i32_0 : i32, i32
  }
  func.func @transform_3(%arg0: i32) -> (i32, i32) {
    %c0_i32 = arith.constant 0 : i32
    %c0_i32_0 = arith.constant 0 : i32
    %c0_i32_1 = arith.constant 0 : i32
    return %c0_i32, %c0_i32_0 : i32, i32
  }
  func.func @transform_4(%arg0: i32) -> (i32, i32, i32) {
    %c0_i32 = arith.constant 0 : i32
    %c0_i32_0 = arith.constant 0 : i32
    %c0_i32_1 = arith.constant 0 : i32
    return %arg0, %c0_i32, %c0_i32_0 : i32, i32, i32
  }
  func.func @transform_5(%arg0: i32) -> (i32, i32, i32) {
    %c0_i32 = arith.constant 0 : i32
    %c0_i32_0 = arith.constant 0 : i32
    %c0_i32_1 = arith.constant 0 : i32
    return %arg0, %c0_i32, %c0_i32_0 : i32, i32, i32
  }
}

module attributes {stable_mosaic.version = 11 : i64} {
  func.func @_bn_add_relu_kernel(%arg0: i32, %arg1: memref<16x16x128xbf16, #tpu.memory_space<vmem>>, %arg2: memref<16x16x4xbf16, #tpu.memory_space<vmem>>, %arg3: memref<4x128xbf16, #tpu.memory_space<vmem>>, %arg4: memref<1x128xf32, #tpu.memory_space<vmem>>, %arg5: memref<1x128xf32, #tpu.memory_space<vmem>>, %arg6: memref<1x128xf32, #tpu.memory_space<vmem>>, %arg7: memref<1x128xf32, #tpu.memory_space<vmem>>, %arg8: memref<16x128xf32, #tpu.memory_space<vmem>>) attributes {dimension_semantics = [#tpu.dimension_semantics<parallel>], iteration_bounds = array<i64: 2>, scalar_prefetch = 0 : i64, scratch_operands = 0 : i64, tpu.core_type = #tpu.core_type<tc>, window_params = [{transform_indices = @transform_0, window_bounds = array<i64: 16, 16, 128>}, {transform_indices = @transform_1, window_bounds = array<i64: 16, 16, 4>}, {pipeline_mode = #tpu.pipeline_mode<synchronous>, transform_indices = @transform_2, window_bounds = array<i64: 4, 128>}, {pipeline_mode = #tpu.pipeline_mode<synchronous>, transform_indices = @transform_3, window_bounds = array<i64: 1, 128>}, {pipeline_mode = #tpu.pipeline_mode<synchronous>, transform_indices = @transform_4, window_bounds = array<i64: 1, 128>}, {pipeline_mode = #tpu.pipeline_mode<synchronous>, transform_indices = @transform_5, window_bounds = array<i64: 1, 128>}, {pipeline_mode = #tpu.pipeline_mode<synchronous>, transform_indices = @transform_6, window_bounds = array<i64: 1, 128>}, {transform_indices = @transform_7, window_bounds = array<i64: 16, 128>}]} {
    %c0 = arith.constant 0 : index
    %c0_0 = arith.constant 0 : index
    %c0_1 = arith.constant 0 : index
    %0 = vector.load %arg2[%c0, %c0_0, %c0_1] : memref<16x16x4xbf16, #tpu.memory_space<vmem>>, vector<16x16x4xbf16>
    %1 = vector.shape_cast %0 : vector<16x16x4xbf16> to vector<256x4xbf16>
    %c0_2 = arith.constant 0 : index
    %c0_3 = arith.constant 0 : index
    %2 = vector.load %arg3[%c0_2, %c0_3] : memref<4x128xbf16, #tpu.memory_space<vmem>>, vector<4x128xbf16>
    %cst = arith.constant dense<0.000000e+00> : vector<256x128xf32>
    %3 = tpu.matmul %1, %2, %cst {dimension_numbers = #tpu.dot_dimension_numbers<[1], [0], [0], [1], [0, 0, 1, 1], [], []>} : vector<256x4xbf16>, vector<4x128xbf16>, vector<256x128xf32> -> vector<256x128xf32>
    %c0_4 = arith.constant 0 : index
    %c0_5 = arith.constant 0 : index
    %c0_6 = arith.constant 0 : index
    %4 = vector.load %arg1[%c0_4, %c0_5, %c0_6] : memref<16x16x128xbf16, #tpu.memory_space<vmem>>, vector<16x16x128xbf16>
    %5 = arith.extf %4 : vector<16x16x128xbf16> to vector<16x16x128xf32>
    %6 = vector.shape_cast %5 : vector<16x16x128xf32> to vector<256x128xf32>
    %c0_7 = arith.constant 0 : index
    %c0_8 = arith.constant 0 : index
    %7 = vector.load %arg4[%c0_7, %c0_8] : memref<1x128xf32, #tpu.memory_space<vmem>>, vector<1x128xf32>
    %8 = vector.broadcast %7 : vector<1x128xf32> to vector<256x128xf32>
    %9 = arith.mulf %6, %8 : vector<256x128xf32>
    %c0_9 = arith.constant 0 : index
    %c0_10 = arith.constant 0 : index
    %10 = vector.load %arg5[%c0_9, %c0_10] : memref<1x128xf32, #tpu.memory_space<vmem>>, vector<1x128xf32>
    %11 = vector.broadcast %10 : vector<1x128xf32> to vector<256x128xf32>
    %12 = arith.addf %9, %11 : vector<256x128xf32>
    %c0_11 = arith.constant 0 : index
    %c0_12 = arith.constant 0 : index
    %13 = vector.load %arg6[%c0_11, %c0_12] : memref<1x128xf32, #tpu.memory_space<vmem>>, vector<1x128xf32>
    %14 = vector.broadcast %13 : vector<1x128xf32> to vector<256x128xf32>
    %15 = arith.mulf %3, %14 : vector<256x128xf32>
    %16 = arith.addf %12, %15 : vector<256x128xf32>
    %c0_13 = arith.constant 0 : index
    %c0_14 = arith.constant 0 : index
    %17 = vector.load %arg7[%c0_13, %c0_14] : memref<1x128xf32, #tpu.memory_space<vmem>>, vector<1x128xf32>
    %18 = vector.broadcast %17 : vector<1x128xf32> to vector<256x128xf32>
    %19 = arith.addf %16, %18 : vector<256x128xf32>
    %cst_15 = arith.constant 0.000000e+00 : f32
    %20 = vector.broadcast %cst_15 : f32 to vector<256x128xf32>
    %21 = arith.maximumf %19, %20 : vector<256x128xf32>
    %22 = vector.shape_cast %21 : vector<256x128xf32> to vector<16x16x128xf32>
    %23 = vector.extract_strided_slice %22 {offsets = [0, 0, 0], sizes = [16, 1, 8], strides = [1, 1, 1]} : vector<16x16x128xf32> to vector<16x1x8xf32>
    %24 = vector.shape_cast %23 : vector<16x1x8xf32> to vector<16x8xf32>
    %c0_16 = arith.constant 0 : index
    %c0_17 = arith.constant 0 : index
    %25 = vector.load %arg8[%c0_16, %c0_17] : memref<16x128xf32, #tpu.memory_space<vmem>>, vector<16x8xf32>
    tpu.vector_store %arg8[%c0_16, %c0_17], %24 {strides = array<i32>} : memref<16x128xf32, #tpu.memory_space<vmem>>, vector<16x8xf32>,
    %26 = vector.extract_strided_slice %22 {offsets = [0, 1, 0], sizes = [16, 1, 8], strides = [1, 1, 1]} : vector<16x16x128xf32> to vector<16x1x8xf32>
    %27 = vector.shape_cast %26 : vector<16x1x8xf32> to vector<16x8xf32>
    %c0_18 = arith.constant 0 : index
    %c8 = arith.constant 8 : index
    %28 = vector.load %arg8[%c0_18, %c8] : memref<16x128xf32, #tpu.memory_space<vmem>>, vector<16x8xf32>
    tpu.vector_store %arg8[%c0_18, %c8], %27 {strides = array<i32>} : memref<16x128xf32, #tpu.memory_space<vmem>>, vector<16x8xf32>,
    %29 = vector.extract_strided_slice %22 {offsets = [0, 2, 0], sizes = [16, 1, 8], strides = [1, 1, 1]} : vector<16x16x128xf32> to vector<16x1x8xf32>
    %30 = vector.shape_cast %29 : vector<16x1x8xf32> to vector<16x8xf32>
    %c0_19 = arith.constant 0 : index
    %c16 = arith.constant 16 : index
    %31 = vector.load %arg8[%c0_19, %c16] : memref<16x128xf32, #tpu.memory_space<vmem>>, vector<16x8xf32>
    tpu.vector_store %arg8[%c0_19, %c16], %30 {strides = array<i32>} : memref<16x128xf32, #tpu.memory_space<vmem>>, vector<16x8xf32>,
    %32 = vector.extract_strided_slice %22 {offsets = [0, 3, 0], sizes = [16, 1, 8], strides = [1, 1, 1]} : vector<16x16x128xf32> to vector<16x1x8xf32>
    %33 = vector.shape_cast %32 : vector<16x1x8xf32> to vector<16x8xf32>
    %c0_20 = arith.constant 0 : index
    %c24 = arith.constant 24 : index
    %34 = vector.load %arg8[%c0_20, %c24] : memref<16x128xf32, #tpu.memory_space<vmem>>, vector<16x8xf32>
    tpu.vector_store %arg8[%c0_20, %c24], %33 {strides = array<i32>} : memref<16x128xf32, #tpu.memory_space<vmem>>, vector<16x8xf32>,
    %35 = vector.extract_strided_slice %22 {offsets = [0, 4, 0], sizes = [16, 1, 8], strides = [1, 1, 1]} : vector<16x16x128xf32> to vector<16x1x8xf32>
    %36 = vector.shape_cast %35 : vector<16x1x8xf32> to vector<16x8xf32>
    %c0_21 = arith.constant 0 : index
    %c32 = arith.constant 32 : index
    %37 = vector.load %arg8[%c0_21, %c32] : memref<16x128xf32, #tpu.memory_space<vmem>>, vector<16x8xf32>
    tpu.vector_store %arg8[%c0_21, %c32], %36 {strides = array<i32>} : memref<16x128xf32, #tpu.memory_space<vmem>>, vector<16x8xf32>,
    %38 = vector.extract_strided_slice %22 {offsets = [0, 5, 0], sizes = [16, 1, 8], strides = [1, 1, 1]} : vector<16x16x128xf32> to vector<16x1x8xf32>
    %39 = vector.shape_cast %38 : vector<16x1x8xf32> to vector<16x8xf32>
    %c0_22 = arith.constant 0 : index
    %c40 = arith.constant 40 : index
    %40 = vector.load %arg8[%c0_22, %c40] : memref<16x128xf32, #tpu.memory_space<vmem>>, vector<16x8xf32>
    tpu.vector_store %arg8[%c0_22, %c40], %39 {strides = array<i32>} : memref<16x128xf32, #tpu.memory_space<vmem>>, vector<16x8xf32>,
    %41 = vector.extract_strided_slice %22 {offsets = [0, 6, 0], sizes = [16, 1, 8], strides = [1, 1, 1]} : vector<16x16x128xf32> to vector<16x1x8xf32>
    %42 = vector.shape_cast %41 : vector<16x1x8xf32> to vector<16x8xf32>
    %c0_23 = arith.constant 0 : index
    %c48 = arith.constant 48 : index
    %43 = vector.load %arg8[%c0_23, %c48] : memref<16x128xf32, #tpu.memory_space<vmem>>, vector<16x8xf32>
    tpu.vector_store %arg8[%c0_23, %c48], %42 {strides = array<i32>} : memref<16x128xf32, #tpu.memory_space<vmem>>, vector<16x8xf32>,
    %44 = vector.extract_strided_slice %22 {offsets = [0, 7, 0], sizes = [16, 1, 8], strides = [1, 1, 1]} : vector<16x16x128xf32> to vector<16x1x8xf32>
    %45 = vector.shape_cast %44 : vector<16x1x8xf32> to vector<16x8xf32>
    %c0_24 = arith.constant 0 : index
    %c56 = arith.constant 56 : index
    %46 = vector.load %arg8[%c0_24, %c56] : memref<16x128xf32, #tpu.memory_space<vmem>>, vector<16x8xf32>
    tpu.vector_store %arg8[%c0_24, %c56], %45 {strides = array<i32>} : memref<16x128xf32, #tpu.memory_space<vmem>>, vector<16x8xf32>,
    %47 = vector.extract_strided_slice %22 {offsets = [0, 8, 0], sizes = [16, 1, 8], strides = [1, 1, 1]} : vector<16x16x128xf32> to vector<16x1x8xf32>
    %48 = vector.shape_cast %47 : vector<16x1x8xf32> to vector<16x8xf32>
    %c0_25 = arith.constant 0 : index
    %c64 = arith.constant 64 : index
    %49 = vector.load %arg8[%c0_25, %c64] : memref<16x128xf32, #tpu.memory_space<vmem>>, vector<16x8xf32>
    tpu.vector_store %arg8[%c0_25, %c64], %48 {strides = array<i32>} : memref<16x128xf32, #tpu.memory_space<vmem>>, vector<16x8xf32>,
    %50 = vector.extract_strided_slice %22 {offsets = [0, 9, 0], sizes = [16, 1, 8], strides = [1, 1, 1]} : vector<16x16x128xf32> to vector<16x1x8xf32>
    %51 = vector.shape_cast %50 : vector<16x1x8xf32> to vector<16x8xf32>
    %c0_26 = arith.constant 0 : index
    %c72 = arith.constant 72 : index
    %52 = vector.load %arg8[%c0_26, %c72] : memref<16x128xf32, #tpu.memory_space<vmem>>, vector<16x8xf32>
    tpu.vector_store %arg8[%c0_26, %c72], %51 {strides = array<i32>} : memref<16x128xf32, #tpu.memory_space<vmem>>, vector<16x8xf32>,
    %53 = vector.extract_strided_slice %22 {offsets = [0, 10, 0], sizes = [16, 1, 8], strides = [1, 1, 1]} : vector<16x16x128xf32> to vector<16x1x8xf32>
    %54 = vector.shape_cast %53 : vector<16x1x8xf32> to vector<16x8xf32>
    %c0_27 = arith.constant 0 : index
    %c80 = arith.constant 80 : index
    %55 = vector.load %arg8[%c0_27, %c80] : memref<16x128xf32, #tpu.memory_space<vmem>>, vector<16x8xf32>
    tpu.vector_store %arg8[%c0_27, %c80], %54 {strides = array<i32>} : memref<16x128xf32, #tpu.memory_space<vmem>>, vector<16x8xf32>,
    %56 = vector.extract_strided_slice %22 {offsets = [0, 11, 0], sizes = [16, 1, 8], strides = [1, 1, 1]} : vector<16x16x128xf32> to vector<16x1x8xf32>
    %57 = vector.shape_cast %56 : vector<16x1x8xf32> to vector<16x8xf32>
    %c0_28 = arith.constant 0 : index
    %c88 = arith.constant 88 : index
    %58 = vector.load %arg8[%c0_28, %c88] : memref<16x128xf32, #tpu.memory_space<vmem>>, vector<16x8xf32>
    tpu.vector_store %arg8[%c0_28, %c88], %57 {strides = array<i32>} : memref<16x128xf32, #tpu.memory_space<vmem>>, vector<16x8xf32>,
    %59 = vector.extract_strided_slice %22 {offsets = [0, 12, 0], sizes = [16, 1, 8], strides = [1, 1, 1]} : vector<16x16x128xf32> to vector<16x1x8xf32>
    %60 = vector.shape_cast %59 : vector<16x1x8xf32> to vector<16x8xf32>
    %c0_29 = arith.constant 0 : index
    %c96 = arith.constant 96 : index
    %61 = vector.load %arg8[%c0_29, %c96] : memref<16x128xf32, #tpu.memory_space<vmem>>, vector<16x8xf32>
    tpu.vector_store %arg8[%c0_29, %c96], %60 {strides = array<i32>} : memref<16x128xf32, #tpu.memory_space<vmem>>, vector<16x8xf32>,
    %62 = vector.extract_strided_slice %22 {offsets = [0, 13, 0], sizes = [16, 1, 8], strides = [1, 1, 1]} : vector<16x16x128xf32> to vector<16x1x8xf32>
    %63 = vector.shape_cast %62 : vector<16x1x8xf32> to vector<16x8xf32>
    %c0_30 = arith.constant 0 : index
    %c104 = arith.constant 104 : index
    %64 = vector.load %arg8[%c0_30, %c104] : memref<16x128xf32, #tpu.memory_space<vmem>>, vector<16x8xf32>
    tpu.vector_store %arg8[%c0_30, %c104], %63 {strides = array<i32>} : memref<16x128xf32, #tpu.memory_space<vmem>>, vector<16x8xf32>,
    %65 = vector.extract_strided_slice %22 {offsets = [0, 14, 0], sizes = [16, 1, 8], strides = [1, 1, 1]} : vector<16x16x128xf32> to vector<16x1x8xf32>
    %66 = vector.shape_cast %65 : vector<16x1x8xf32> to vector<16x8xf32>
    %c0_31 = arith.constant 0 : index
    %c112 = arith.constant 112 : index
    %67 = vector.load %arg8[%c0_31, %c112] : memref<16x128xf32, #tpu.memory_space<vmem>>, vector<16x8xf32>
    tpu.vector_store %arg8[%c0_31, %c112], %66 {strides = array<i32>} : memref<16x128xf32, #tpu.memory_space<vmem>>, vector<16x8xf32>,
    %68 = vector.extract_strided_slice %22 {offsets = [0, 15, 0], sizes = [16, 1, 8], strides = [1, 1, 1]} : vector<16x16x128xf32> to vector<16x1x8xf32>
    %69 = vector.shape_cast %68 : vector<16x1x8xf32> to vector<16x8xf32>
    %c0_32 = arith.constant 0 : index
    %c120 = arith.constant 120 : index
    %70 = vector.load %arg8[%c0_32, %c120] : memref<16x128xf32, #tpu.memory_space<vmem>>, vector<16x8xf32>
    tpu.vector_store %arg8[%c0_32, %c120], %69 {strides = array<i32>} : memref<16x128xf32, #tpu.memory_space<vmem>>, vector<16x8xf32>,
    return
  }
  func.func @transform_0(%arg0: i32) -> (i32, i32, i32) {
    %c0_i32 = arith.constant 0 : i32
    %c0_i32_0 = arith.constant 0 : i32
    %c0_i32_1 = arith.constant 0 : i32
    return %arg0, %c0_i32, %c0_i32_0 : i32, i32, i32
  }
  func.func @transform_1(%arg0: i32) -> (i32, i32, i32) {
    %c0_i32 = arith.constant 0 : i32
    %c0_i32_0 = arith.constant 0 : i32
    %c0_i32_1 = arith.constant 0 : i32
    return %arg0, %c0_i32, %c0_i32_0 : i32, i32, i32
  }
  func.func @transform_2(%arg0: i32) -> (i32, i32) {
    %c0_i32 = arith.constant 0 : i32
    %c0_i32_0 = arith.constant 0 : i32
    %c0_i32_1 = arith.constant 0 : i32
    return %c0_i32, %c0_i32_0 : i32, i32
  }
  func.func @transform_3(%arg0: i32) -> (i32, i32) {
    %c0_i32 = arith.constant 0 : i32
    %c0_i32_0 = arith.constant 0 : i32
    %c0_i32_1 = arith.constant 0 : i32
    return %c0_i32, %c0_i32_0 : i32, i32
  }
  func.func @transform_4(%arg0: i32) -> (i32, i32) {
    %c0_i32 = arith.constant 0 : i32
    %c0_i32_0 = arith.constant 0 : i32
    %c0_i32_1 = arith.constant 0 : i32
    return %c0_i32, %c0_i32_0 : i32, i32
  }
  func.func @transform_5(%arg0: i32) -> (i32, i32) {
    %c0_i32 = arith.constant 0 : i32
    %c0_i32_0 = arith.constant 0 : i32
    %c0_i32_1 = arith.constant 0 : i32
    return %c0_i32, %c0_i32_0 : i32, i32
  }
  func.func @transform_6(%arg0: i32) -> (i32, i32) {
    %c0_i32 = arith.constant 0 : i32
    %c0_i32_0 = arith.constant 0 : i32
    %c0_i32_1 = arith.constant 0 : i32
    return %c0_i32, %c0_i32_0 : i32, i32
  }
  func.func @transform_7(%arg0: i32) -> (i32, i32) {
    %c0_i32 = arith.constant 0 : i32
    %c0_i32_0 = arith.constant 0 : i32
    return %arg0, %c0_i32 : i32, i32
  }
}

</mosaic_0001>

<llo_original>
// kernel: residual_block_decoder_fwd.3
$region0: #{residual_block_decoder_fwd.3}
  #allocation0 [shape = 'u32[]', space=smem, size = 0x4, offset = 0x4, fixed_abs, tag = 'smem constant byte address 0x4 - core index']
  #allocation1 [shape = 'u32[144,128]{1,0:T(1,128)}', space=vmem, size = 0x12000, scoped, tag = 'internal scratch']
  %s0 = inlined_call_operand.vmem [shape: bf16[2,256,36], index: 0, kind: input, shape index: {}]
  %s1 = inlined_call_operand.vmem [shape: bf16[2,256,4], index: 1, kind: input, shape index: {}]
  %s2 = inlined_call_operand.vmem [shape: bf16[36,128], index: 2, kind: input, shape index: {}]
  %s3 = inlined_call_operand.vmem [shape: bf16[4,128], index: 3, kind: input, shape index: {}]
  %s4 = inlined_call_operand.vmem [shape: bf16[2,256,128], index: 4, kind: output, shape index: {0}]
  %s5 = inlined_call_operand.vmem [shape: f32[2,1,4,128], index: 5, kind: output, shape index: {1}]
  %6 = xla_tuple %s4, %s5
  %s7 = sld [smem:[#allocation0]]
  $region57: #{residual_block_decoder_fwd.3} parent=0
    _
  %s9 = ssub.s32 1, %s7
  %s10 = scalar_select 0, %s9, %s7
  loop: start=0, step=1, limit=4
  $region2: #{residual_block_decoder_fwd.3} parent=0 // loop_pre_header
    _
  $region3: #{residual_block_decoder_fwd.3} parent=0 // loop_header
    %s12 = sphi 0, %s16
    %p13 = scmp.ge.s32.totalorder %s12, 4
    %s19 = sphi 0, %s31
    %s20 = sphi 0, %s27
    %s21 = sphi 0, %s19
    %s22 = sphi 0, %s20
    %s23 = sphi 0, %s21
    %s24 = sphi 0, %s22
    %s36 = sphi 0, %s38
    %s39 = sphi 0, %s36
    %s40 = sphi 0, %s39
    %s56 = sphi 0, %s40
    %s64 = sphi 0, %s66
    %s67 = sphi 0, %s64
    %s68 = sphi 0, %s67
    %s84 = sphi 0, %s68
    %s88 = sphi 0, %s88
    %s90 = sphi 0, %s88
    %s91 = sphi 0, %s90
    %s105 = sphi 0, %s91
    %s109 = sphi 0, %s109
    %s111 = sphi 0, %s109
    %s112 = sphi 0, %s111
    %s126 = sphi 0, %s112
    %s134 = sphi 0, %s136
    %s137 = sphi 0, %s134
    %s138 = sphi 0, %s137
    %s154 = sphi 0, %s138
    %s162 = sphi 0, %s164
    %s165 = sphi 0, %s162
    %s166 = sphi 0, %s165
    %s182 = sphi 0, %s166
  $region4: #{residual_block_decoder_fwd.3} parent=0 // loop_header_branch
    %15 = sbr.rel (%p13) target = $region8
  $region5: #{residual_block_decoder_fwd.3} parent=0 // loop_body
    %s17 = ssub.s32 %s12, 1
    %s18 = ssub.s32 %s12, 2
    %s25 = sadd.s32 1, %s20
    %p26 = scmp.ge.s32.totalorder %s25, 1
    %s27 = scalar_select %p26, 0, %s25
    %s28 = sadd.s32 1, %s19
    %s29 = scalar_select %p26, %s28, %s19
    %p30 = scmp.ge.s32.totalorder %s29, 2
    %s31 = scalar_select %p30, 0, %s29
    %s32 = ssub.s32 %s19, %s31
    %s33 = ssub.s32 %s20, %s27
    %s34 = sor.u32 %s32, %s33
    %p35 = scmp.eq.s32.totalorder %s34, 0
    %s37 = sadd.s32 %s36, 1
    %s38 = scalar_select %p35, %s36, %s37
    %p41 = pneg %p35
    %p42 = scmp.eq.s32.totalorder %s12, 1
    %p43 = por %p41, %p42
    %p44 = scmp.ne.s32.totalorder %s36, %s39
    %p45 = scmp.eq.s32.totalorder %s12, 0
    %p46 = por %p44, %p45
    %p47 = scmp.ne.s32.totalorder %s36, %s39
    %p48 = scmp.eq.s32.totalorder %s17, 1
    %p49 = por %p47, %p48
    %p50 = scmp.ne.s32.totalorder %s39, %s40
    %p51 = scmp.eq.s32.totalorder %s17, 0
    %p52 = por %p50, %p51
    %p53 = scmp.ne.s32.totalorder %s39, %s40
    %p54 = scmp.eq.s32.totalorder %s18, 1
    %p55 = por %p53, %p54
    %p57 = scmp.ne.s32.totalorder %s40, %s56
    %p58 = scmp.eq.s32.totalorder %s18, 0
    %p59 = por %p57, %p58
    %s60 = ssub.s32 %s19, %s31
    %s61 = ssub.s32 %s20, %s27
    %s62 = sor.u32 %s60, %s61
    %p63 = scmp.eq.s32.totalorder %s62, 0
    %s65 = sadd.s32 %s64, 1
    %s66 = scalar_select %p63, %s64, %s65
    %p69 = pneg %p63
    %p70 = scmp.eq.s32.totalorder %s12, 1
    %p71 = por %p69, %p70
    %p72 = scmp.ne.s32.totalorder %s64, %s67
    %p73 = scmp.eq.s32.totalorder %s12, 0
    %p74 = por %p72, %p73
    %p75 = scmp.ne.s32.totalorder %s64, %s67
    %p76 = scmp.eq.s32.totalorder %s17, 1
    %p77 = por %p75, %p76
    %p78 = scmp.ne.s32.totalorder %s67, %s68
    %p79 = scmp.eq.s32.totalorder %s17, 0
    %p80 = por %p78, %p79
    %p81 = scmp.ne.s32.totalorder %s67, %s68
    %p82 = scmp.eq.s32.totalorder %s18, 1
    %p83 = por %p81, %p82
    %p85 = scmp.ne.s32.totalorder %s68, %s84
    %p86 = scmp.eq.s32.totalorder %s18, 0
    %p87 = por %p85, %p86
    %s89 = sadd.s32 %s88, 1
    %p92 = scmp.eq.s32.totalorder %s12, 1
    %p93 = scmp.ne.s32.totalorder %s88, %s90
    %p94 = scmp.eq.s32.totalorder %s12, 0
    %p95 = por %p93, %p94
    %p96 = scmp.ne.s32.totalorder %s88, %s90
    %p97 = scmp.eq.s32.totalorder %s17, 1
    %p98 = por %p96, %p97
    %p99 = scmp.ne.s32.totalorder %s90, %s91
    %p100 = scmp.eq.s32.totalorder %s17, 0
    %p101 = por %p99, %p100
    %p102 = scmp.ne.s32.totalorder %s90, %s91
    %p103 = scmp.eq.s32.totalorder %s18, 1
    %p104 = por %p102, %p103
    %p106 = scmp.ne.s32.totalorder %s91, %s105
    %p107 = scmp.eq.s32.totalorder %s18, 0
    %p108 = por %p106, %p107
    %s110 = sadd.s32 %s109, 1
    %p113 = scmp.eq.s32.totalorder %s12, 1
    %p114 = scmp.ne.s32.totalorder %s109, %s111
    %p115 = scmp.eq.s32.totalorder %s12, 0
    %p116 = por %p114, %p115
    %p117 = scmp.ne.s32.totalorder %s109, %s111
    %p118 = scmp.eq.s32.totalorder %s17, 1
    %p119 = por %p117, %p118
    %p120 = scmp.ne.s32.totalorder %s111, %s112
    %p121 = scmp.eq.s32.totalorder %s17, 0
    %p122 = por %p120, %p121
    %p123 = scmp.ne.s32.totalorder %s111, %s112
    %p124 = scmp.eq.s32.totalorder %s18, 1
    %p125 = por %p123, %p124
    %p127 = scmp.ne.s32.totalorder %s112, %s126
    %p128 = scmp.eq.s32.totalorder %s18, 0
    %p129 = por %p127, %p128
    %s130 = ssub.s32 %s19, %s31
    %s131 = ssub.s32 %s20, %s27
    %s132 = sor.u32 %s130, %s131
    %p133 = scmp.eq.s32.totalorder %s132, 0
    %s135 = sadd.s32 %s134, 1
    %s136 = scalar_select %p133, %s134, %s135
    %p139 = pneg %p133
    %p140 = scmp.eq.s32.totalorder %s12, 1
    %p141 = por %p139, %p140
    %p142 = scmp.ne.s32.totalorder %s134, %s137
    %p143 = scmp.eq.s32.totalorder %s12, 0
    %p144 = por %p142, %p143
    %p145 = scmp.ne.s32.totalorder %s134, %s137
    %p146 = scmp.eq.s32.totalorder %s17, 1
    %p147 = por %p145, %p146
    %p148 = scmp.ne.s32.totalorder %s137, %s138
    %p149 = scmp.eq.s32.totalorder %s17, 0
    %p150 = por %p148, %p149
    %p151 = scmp.ne.s32.totalorder %s137, %s138
    %p152 = scmp.eq.s32.totalorder %s18, 1
    %p153 = por %p151, %p152
    %p155 = scmp.ne.s32.totalorder %s138, %s154
    %p156 = scmp.eq.s32.totalorder %s18, 0
    %p157 = por %p155, %p156
    %s158 = ssub.s32 %s19, %s31
    %s159 = ssub.s32 %s20, %s27
    %s160 = sor.u32 %s158, %s159
    %p161 = scmp.eq.s32.totalorder %s160, 0
    %s163 = sadd.s32 %s162, 1
    %s164 = scalar_select %p161, %s162, %s163
    %p167 = pneg %p161
    %p168 = scmp.eq.s32.totalorder %s12, 1
    %p169 = por %p167, %p168
    %p170 = scmp.ne.s32.totalorder %s162, %s165
    %p171 = scmp.eq.s32.totalorder %s12, 0
    %p172 = por %p170, %p171
    %p173 = scmp.ne.s32.totalorder %s162, %s165
    %p174 = scmp.eq.s32.totalorder %s17, 1
    %p175 = por %p173, %p174
    %p176 = scmp.ne.s32.totalorder %s165, %s166
    %p177 = scmp.eq.s32.totalorder %s17, 0
    %p178 = por %p176, %p177
    %p179 = scmp.ne.s32.totalorder %s165, %s166
    %p180 = scmp.eq.s32.totalorder %s18, 1
    %p181 = por %p179, %p180
    %p183 = scmp.ne.s32.totalorder %s166, %s182
    %p184 = scmp.eq.s32.totalorder %s18, 0
    %p185 = por %p183, %p184
    %p186 = scmp.le.s32.totalorder 1, %s12
    %p187 = scmp.lt.s32.totalorder %s12, 3
    %p188 = pnand %p186, %p187
    %p189 = pneg %p188
    // Predicated region
    $region9: #{residual_block_decoder_fwd.3} parent=5 // pred_check
      _
    $region10: #{residual_block_decoder_fwd.3} parent=5 // pred_check_branch
      %191 = sbr.rel (%p188) target = $region12
    $region11: #{residual_block_decoder_fwd.3} parent=5 // pred_region
      %s192 = ssub.s32 %s12, 1
      // Predicated region
      $region13: #{residual_block_decoder_fwd.3} parent=11 // pred_check
        %p193 = pneg %p101
      $region14: #{residual_block_decoder_fwd.3} parent=11 // pred_check_branch
        %195 = sbr.rel (%p193) target = $region16
      $region15: #{residual_block_decoder_fwd.3} parent=11 // pred_region
        _
      $region16: #{residual_block_decoder_fwd.3} parent=11 // pred_fallthru
        _
      // Predicated region
      $region17: #{residual_block_decoder_fwd.3} parent=11 // pred_check
        %p196 = pneg %p122
      $region18: #{residual_block_decoder_fwd.3} parent=11 // pred_check_branch
        %198 = sbr.rel (%p196) target = $region20
      $region19: #{residual_block_decoder_fwd.3} parent=11 // pred_region
        _
      $region20: #{residual_block_decoder_fwd.3} parent=11 // pred_fallthru
        _
    $region12: #{residual_block_decoder_fwd.3} parent=5 // pred_fallthru
      _
    %p199 = scmp.lt.s32.totalorder %s12, 2
    // Predicated region
    $region21: #{residual_block_decoder_fwd.3} parent=5 // pred_check
      %p200 = pneg %p199
    $region22: #{residual_block_decoder_fwd.3} parent=5 // pred_check_branch
      %202 = sbr.rel (%p200) target = $region24
    $region23: #{residual_block_decoder_fwd.3} parent=5 // pred_region
      // Predicated region
      $region25: #{residual_block_decoder_fwd.3} parent=23 // pred_check
        %p203 = pneg %p46
      $region26: #{residual_block_decoder_fwd.3} parent=23 // pred_check_branch
        %205 = sbr.rel (%p203) target = $region28
      $region27: #{residual_block_decoder_fwd.3} parent=23 // pred_region
        %s206 = smul.u32 32, %s20
        %p207 = scmp.lt.s32.totalorder %s19, 1
        %s208 = scalar_select %p207, %s19, 1
        %p209 = scmp.lt.s32.totalorder %s206, 31
        %s210 = scalar_select %p209, %s206, 31
        %s211 = smul.addr %s208, 32
        %s212 = sadd.s32 %s210, %s211
        %s213 = smul.addr %s212, 4
        %s214 = scalar_lea.vmem %s0, %s213
        %s215 = smul.u32 32, %s20
      $region28: #{residual_block_decoder_fwd.3} parent=23 // pred_fallthru
        _
      // Predicated region
      $region29: #{residual_block_decoder_fwd.3} parent=23 // pred_check
        %p216 = pneg %p74
      $region30: #{residual_block_decoder_fwd.3} parent=23 // pred_check_branch
        %218 = sbr.rel (%p216) target = $region32
      $region31: #{residual_block_decoder_fwd.3} parent=23 // pred_region
        %s219 = smul.u32 32, %s20
        %p220 = scmp.lt.s32.totalorder %s19, 1
        %s221 = scalar_select %p220, %s19, 1
        %p222 = scmp.lt.s32.totalorder %s219, 31
        %s223 = scalar_select %p222, %s219, 31
        %s224 = smul.addr %s221, 32
        %s225 = sadd.s32 %s223, %s224
        %s226 = smul.addr %s225, 4
        %s227 = scalar_lea.vmem %s1, %s226
        %s228 = smul.u32 32, %s20
      $region32: #{residual_block_decoder_fwd.3} parent=23 // pred_fallthru
        _
    $region24: #{residual_block_decoder_fwd.3} parent=5 // pred_fallthru
      _
    %p229 = scmp.le.s32.totalorder 1, %s12
    %p230 = scmp.lt.s32.totalorder %s12, 3
    %p231 = pnand %p229, %p230
    %p232 = pneg %p231
    // Predicated region
    $region33: #{residual_block_decoder_fwd.3} parent=5 // pred_check
      _
    $region34: #{residual_block_decoder_fwd.3} parent=5 // pred_check_branch
      %234 = sbr.rel (%p231) target = $region36
    $region35: #{residual_block_decoder_fwd.3} parent=5 // pred_region
      %s235 = ssub.s32 %s12, 1
      %s236 = smul.u32 32, %s22
      %p237 = scmp.lt.s32.totalorder %s21, 1
      %s238 = scalar_select %p237, %s21, 1
      %p239 = scmp.lt.s32.totalorder %s236, 31
      %s240 = scalar_select %p239, %s236, 31
      %s241 = smul.addr %s238, 32
      %s242 = sadd.s32 %s240, %s241
      %s243 = smul.addr %s242, 4
      %s244 = scalar_lea.vmem %s0, %s243
      %p245 = pneg %p52
      %p246 = pneg %p49
      %s247 = smul.u32 32, %s22
      %p248 = scmp.lt.s32.totalorder %s21, 1
      %s249 = scalar_select %p248, %s21, 1
      %p250 = scmp.lt.s32.totalorder %s247, 31
      %s251 = scalar_select %p250, %s247, 31
      %s252 = smul.addr %s249, 32
      %s253 = sadd.s32 %s251, %s252
      %s254 = smul.addr %s253, 4
      %s255 = scalar_lea.vmem %s1, %s254
      %p256 = pneg %p80
      %p257 = pneg %p77
      %p258 = pneg %p101
      %p259 = pneg %p98
      %p260 = pneg %p122
      %p261 = pneg %p119
      %p262 = pneg %p150
      %p263 = pneg %p147
      %s264 = smul.u32 32, %s22
      %p265 = scmp.lt.s32.totalorder %s21, 1
      %s266 = scalar_select %p265, %s21, 1
      %p267 = scmp.lt.s32.totalorder %s264, 31
      %s268 = scalar_select %p267, %s264, 31
      %s269 = smul.addr %s266, 32
      %s270 = sadd.s32 %s268, %s269
      %s271 = smul.addr %s270, 4
      %s272 = scalar_lea.vmem %s4, %s271
      %p273 = pneg %p178
      %p274 = pneg %p175
      %p275 = scmp.lt.s32.totalorder %s21, 1
      %s276 = scalar_select %p275, %s21, 1
      %p277 = scmp.lt.s32.totalorder %s22, 0
      %s278 = scalar_select %p277, %s22, 0
      %s279 = sadd.s32 %s278, %s276
      %s280 = smul.addr %s279, 4
      %s281 = scalar_lea.vmem %s5, %s280
      %s282 = smul.u32 32, %s22
      %p283 = scmp.lt.s32.totalorder %s21, 1
      %s284 = scalar_select %p283, %s21, 1
      %p285 = scmp.lt.s32.totalorder %s282, 31
      %s286 = scalar_select %p285, %s282, 31
      %s287 = smul.addr %s284, 32
      %s288 = sadd.s32 %s286, %s287
      %s289 = smul.addr %s288, 4
      %s290 = scalar_lea.vmem %s0, %s289
      %s291 = smul.u32 32, %s22
      %s292 = smul.u32 32, %s22
      %p293 = scmp.lt.s32.totalorder %s21, 1
      %s294 = scalar_select %p293, %s21, 1
      %p295 = scmp.lt.s32.totalorder %s292, 31
      %s296 = scalar_select %p295, %s292, 31
      %s297 = smul.addr %s294, 32
      %s298 = sadd.s32 %s296, %s297
      %s299 = smul.addr %s298, 4
      %s300 = scalar_lea.vmem %s1, %s299
      %s301 = smul.u32 32, %s22
      %s302 = smul.u32 32, %s22
      %p303 = scmp.lt.s32.totalorder %s21, 1
      %s304 = scalar_select %p303, %s21, 1
      %p305 = scmp.lt.s32.totalorder %s302, 31
      %s306 = scalar_select %p305, %s302, 31
      %s307 = smul.addr %s304, 32
      %s308 = sadd.s32 %s306, %s307
      %s309 = smul.addr %s308, 4
      %s310 = scalar_lea.vmem %s4, %s309
      %s311 = smul.u32 32, %s22
      %p312 = scmp.lt.s32.totalorder %s21, 1
      %s313 = scalar_select %p312, %s21, 1
      %p314 = scmp.lt.s32.totalorder %s22, 0
      %s315 = scalar_select %p314, %s22, 0
      %s316 = sadd.s32 %s315, %s313
      %s317 = smul.addr %s316, 4
      %s318 = scalar_lea.vmem %s5, %s317
      %v320 = vld [vmem:[%s290] sm:$0xf]
      %v321 = vld [vmem:[%s290 + $0x4] sm:$0xf]
      %v322 = vld [vmem:[%s290 + $0x8] sm:$0xf]
      %v323 = vld [vmem:[%s290 + $0xc] sm:$0xf]
      %v324 = vld [vmem:[%s290 + $0x10] sm:$0xf]
      %v325 = vld [vmem:[%s290 + $0x14] sm:$0xf]
      %v326 = vld [vmem:[%s290 + $0x18] sm:$0xf]
      %v327 = vld [vmem:[%s290 + $0x1c] sm:$0xf]
      %v328 = vld [vmem:[%s290 + $0x20] sm:$0xf]
      %v329 = vld [vmem:[%s290 + $0x24] sm:$0xf]
      %v330 = vld [vmem:[%s290 + $0x28] sm:$0xf]
      %v331 = vld [vmem:[%s290 + $0x2c] sm:$0xf]
      %v332 = vld [vmem:[%s290 + $0x30] sm:$0xf]
      %v333 = vld [vmem:[%s290 + $0x34] sm:$0xf]
      %v334 = vld [vmem:[%s290 + $0x38] sm:$0xf]
      %v335 = vld [vmem:[%s290 + $0x3c] sm:$0xf]
      %v336 = vld [vmem:[%s290 + $0x40] sm:$0xf]
      %v337 = vld [vmem:[%s290 + $0x44] sm:$0xf]
      %v338 = vld [vmem:[%s290 + $0x48] sm:$0xf]
      %v339 = vld [vmem:[%s290 + $0x4c] sm:$0xf]
      %v340 = vld [vmem:[%s290 + $0x50] sm:$0xf]
      %v341 = vld [vmem:[%s290 + $0x54] sm:$0xf]
      %v342 = vld [vmem:[%s290 + $0x58] sm:$0xf]
      %v343 = vld [vmem:[%s290 + $0x5c] sm:$0xf]
      %v344 = vld [vmem:[%s290 + $0x60] sm:$0xf]
      %v345 = vld [vmem:[%s290 + $0x64] sm:$0xf]
      %v346 = vld [vmem:[%s290 + $0x68] sm:$0xf]
      %v347 = vld [vmem:[%s290 + $0x6c] sm:$0xf]
      %v348 = vld [vmem:[%s290 + $0x70] sm:$0xf]
      %v349 = vld [vmem:[%s290 + $0x74] sm:$0xf]
      %v350 = vld [vmem:[%s290 + $0x78] sm:$0xf]
      %v351 = vld [vmem:[%s290 + $0x7c] sm:$0xf]
      %v352 = vld [vmem:[%s2] sm:$0xf]
      %v353 = vld [vmem:[%s2 + $0x4] sm:$0xf]
      %v354 = vld [vmem:[%s2 + $0x8] sm:$0xf]
      %v355 = vld [vmem:[%s2 + $0xc] sm:$0xf]
      %v356 = vld [vmem:[%s2 + $0x10] sm:$0x3]
      %v389 = vunpack.c.l.b16 %v320
      %v390 = vunpack.c.l.b16 %v321
      %v391 = vunpack.c.l.b16 %v322
      %v392 = vunpack.c.l.b16 %v323
      %v393 = vunpack.c.l.b16 %v324
      %v394 = vunpack.c.l.b16 %v325
      %v395 = vunpack.c.l.b16 %v326
      %v396 = vunpack.c.l.b16 %v327
      %v397 = vunpack.c.l.b16 %v328
      %v398 = vunpack.c.l.b16 %v329
      %v399 = vunpack.c.l.b16 %v330
      %v400 = vunpack.c.l.b16 %v331
      %v401 = vunpack.c.l.b16 %v332
      %v402 = vunpack.c.l.b16 %v333
      %v403 = vunpack.c.l.b16 %v334
      %v404 = vunpack.c.l.b16 %v335
      %v405 = vunpack.c.l.b16 %v336
      %v406 = vunpack.c.l.b16 %v337
      %v407 = vunpack.c.l.b16 %v338
      %v408 = vunpack.c.l.b16 %v339
      %v409 = vunpack.c.l.b16 %v340
      %v410 = vunpack.c.l.b16 %v341
      %v411 = vunpack.c.l.b16 %v342
      %v412 = vunpack.c.l.b16 %v343
      %v413 = vunpack.c.l.b16 %v344
      %v414 = vunpack.c.l.b16 %v345
      %v415 = vunpack.c.l.b16 %v346
      %v416 = vunpack.c.l.b16 %v347
      %v417 = vunpack.c.l.b16 %v348
      %v418 = vunpack.c.l.b16 %v349
      %v419 = vunpack.c.l.b16 %v350
      %v420 = vunpack.c.l.b16 %v351
      %v421 = vpack.c.b16 %v390, %v389
      %v422 = vpack.c.b16 %v392, %v391
      %v423 = vpack.c.b16 %v394, %v393
      %v424 = vpack.c.b16 %v396, %v395
      %v425 = vpack.c.b16 %v398, %v397
      %v426 = vpack.c.b16 %v400, %v399
      %v427 = vpack.c.b16 %v402, %v401
      %v428 = vpack.c.b16 %v404, %v403
      %v429 = vpack.c.b16 %v406, %v405
      %v430 = vpack.c.b16 %v408, %v407
      %v431 = vpack.c.b16 %v410, %v409
      %v432 = vpack.c.b16 %v412, %v411
      %v433 = vpack.c.b16 %v414, %v413
      %v434 = vpack.c.b16 %v416, %v415
      %v435 = vpack.c.b16 %v418, %v417
      %v436 = vpack.c.b16 %v420, %v419
      %v442 = vunpack.c.l.b16 %v352
      %v443 = vunpack.c.l.b16 %v353
      %v444 = vunpack.c.l.b16 %v354
      %v445 = vunpack.c.l.b16 %v355
      %v446 = vunpack.c.l.b16 %v356
      %v447 = vpack.c.b16 %v443, %v442
      %v448 = vpack.c.b16 %v445, %v444
      %v449 = vpack.c.b16 %v446, %v446
      %vm452 = vcmask 293888
      %v454 = vsel %vm452, %v421, 0
      %v457 = vsel %vm452, %v422, 0
      %v460 = vsel %vm452, %v423, 0
      %v463 = vsel %vm452, %v424, 0
      %v466 = vsel %vm452, %v425, 0
      %v469 = vsel %vm452, %v426, 0
      %v472 = vsel %vm452, %v427, 0
      %v475 = vsel %vm452, %v428, 0
      %v478 = vsel %vm452, %v429, 0
      %v481 = vsel %vm452, %v430, 0
      %v484 = vsel %vm452, %v431, 0
      %v487 = vsel %vm452, %v432, 0
      %v490 = vsel %vm452, %v433, 0
      %v493 = vsel %vm452, %v434, 0
      %v496 = vsel %vm452, %v435, 0
      %v499 = vsel %vm452, %v436, 0
      %vm501 = vcmask 1041408
      %v503 = vsel %vm501, %v449, 0
      %505 = vmatprep.subr.bf16.mxu0 0
      %506 = vmatpush1.bf16.msra.mxu0 %v447
      %507 = vmatprep.subr.bf16.mxu0 0
      %508 = vmatpush1.bf16.msra.mxu0 %v448
      %509 = vmatprep.subr.bf16.mxu0 0
      %510 = vmatpush1.bf16.msra.mxu0 %v503
      %511 = vmatprep.subr.bf16.mxu0 0
      %512 = vmatpush1.bf16.msra.mxu0 0
      %513 = vmatprep.subr.bf16.mxu0 0
      %514 = vmatpush1.bf16.msra.mxu0 0
      %515 = vmatprep.subr.bf16.mxu0 0
      %516 = vmatpush1.bf16.msra.mxu0 0
      %517 = vmatprep.subr.bf16.mxu0 0
      %518 = vmatpush1.bf16.msra.mxu0 0
      %519 = vmatprep.subr.bf16.mxu0 0
      %520 = vmatpush1.bf16.msra.mxu0 0
      %521 = vmatprep.subr.bf16.mxu0 0
      %522 = vmatpush1.bf16.msra.mxu0 0
      %523 = vmatprep.subr.bf16.mxu0 0
      %524 = vmatpush1.bf16.msra.mxu0 0
      %525 = vmatprep.subr.bf16.mxu0 0
      %526 = vmatpush1.bf16.msra.mxu0 0
      %527 = vmatprep.subr.bf16.mxu0 0
      %528 = vmatpush1.bf16.msra.mxu0 0
      %529 = vmatprep.subr.bf16.mxu0 0
      %530 = vmatpush1.bf16.msra.mxu0 0
      %531 = vmatprep.subr.bf16.mxu0 0
      %532 = vmatpush1.bf16.msra.mxu0 0
      %533 = vmatprep.subr.bf16.mxu0 0
      %534 = vmatpush1.bf16.msra.mxu0 0
      %535 = vmatprep.subr.bf16.mxu0 0
      %536 = vmatpush1.bf16.msra.mxu0 0
      %537 = vmatprep.mubr.bf16.mxu0 0
      %538 = vmatmul.mubr.bf16.gmra.mrb[0].mxu0 %v454
      %v539 = vpop.f32.mrb[0].mxu0
      %v540 = vadd.f32 0.0, %v539
      %v541 = vpop.f32.mrb[0].mxu0
      %v542 = vpop.f32.mrb[0].mxu0
      %v543 = vadd.f32 0.0, %v542
      %v544 = vpop.f32.mrb[0].mxu0
      %545 = vmatprep.mubr.bf16.mxu0 0
      %546 = vmatmul.mubr.bf16.gmra.mrb[0].mxu0 %v457
      %v547 = vpop.f32.mrb[0].mxu0
      %v548 = vadd.f32 0.0, %v547
      %v549 = vpop.f32.mrb[0].mxu0
      %v550 = vpop.f32.mrb[0].mxu0
      %v551 = vadd.f32 0.0, %v550
      %v552 = vpop.f32.mrb[0].mxu0
      %553 = vmatprep.mubr.bf16.mxu0 0
      %554 = vmatmul.mubr.bf16.gmra.mrb[0].mxu0 %v460
      %v555 = vpop.f32.mrb[0].mxu0
      %v556 = vadd.f32 0.0, %v555
      %v557 = vpop.f32.mrb[0].mxu0
      %v558 = vpop.f32.mrb[0].mxu0
      %v559 = vadd.f32 0.0, %v558
      %v560 = vpop.f32.mrb[0].mxu0
      %561 = vmatprep.mubr.bf16.mxu0 0
      %562 = vmatmul.mubr.bf16.gmra.mrb[0].mxu0 %v463
      %v563 = vpop.f32.mrb[0].mxu0
      %v564 = vadd.f32 0.0, %v563
      %v565 = vpop.f32.mrb[0].mxu0
      %v566 = vpop.f32.mrb[0].mxu0
      %v567 = vadd.f32 0.0, %v566
      %v568 = vpop.f32.mrb[0].mxu0
      %569 = vmatprep.mubr.bf16.mxu0 0
      %570 = vmatmul.mubr.bf16.gmra.mrb[0].mxu0 %v466
      %v571 = vpop.f32.mrb[0].mxu0
      %v572 = vadd.f32 0.0, %v571
      %v573 = vpop.f32.mrb[0].mxu0
      %v574 = vpop.f32.mrb[0].mxu0
      %v575 = vadd.f32 0.0, %v574
      %v576 = vpop.f32.mrb[0].mxu0
      %577 = vmatprep.mubr.bf16.mxu0 0
      %578 = vmatmul.mubr.bf16.gmra.mrb[0].mxu0 %v469
      %v579 = vpop.f32.mrb[0].mxu0
      %v580 = vadd.f32 0.0, %v579
      %v581 = vpop.f32.mrb[0].mxu0
      %v582 = vpop.f32.mrb[0].mxu0
      %v583 = vadd.f32 0.0, %v582
      %v584 = vpop.f32.mrb[0].mxu0
      %585 = vmatprep.mubr.bf16.mxu0 0
      %586 = vmatmul.mubr.bf16.gmra.mrb[0].mxu0 %v472
      %v587 = vpop.f32.mrb[0].mxu0
      %v588 = vadd.f32 0.0, %v587
      %v589 = vpop.f32.mrb[0].mxu0
      %v590 = vpop.f32.mrb[0].mxu0
      %v591 = vadd.f32 0.0, %v590
      %v592 = vpop.f32.mrb[0].mxu0
      %593 = vmatprep.mubr.bf16.mxu0 0
      %594 = vmatmul.mubr.bf16.gmra.mrb[0].mxu0 %v475
      %v595 = vpop.f32.mrb[0].mxu0
      %v596 = vadd.f32 0.0, %v595
      %v597 = vpop.f32.mrb[0].mxu0
      %v598 = vpop.f32.mrb[0].mxu0
      %v599 = vadd.f32 0.0, %v598
      %v600 = vpop.f32.mrb[0].mxu0
      %601 = vmatprep.mubr.bf16.mxu0 0
      %602 = vmatmul.mubr.bf16.gmra.mrb[0].mxu0 %v478
      %v603 = vpop.f32.mrb[0].mxu0
      %v604 = vadd.f32 0.0, %v603
      %v605 = vpop.f32.mrb[0].mxu0
      %v606 = vpop.f32.mrb[0].mxu0
      %v607 = vadd.f32 0.0, %v606
      %v608 = vpop.f32.mrb[0].mxu0
      %609 = vmatprep.mubr.bf16.mxu0 0
      %610 = vmatmul.mubr.bf16.gmra.mrb[0].mxu0 %v481
      %v611 = vpop.f32.mrb[0].mxu0
      %v612 = vadd.f32 0.0, %v611
      %v613 = vpop.f32.mrb[0].mxu0
      %v614 = vpop.f32.mrb[0].mxu0
      %v615 = vadd.f32 0.0, %v614
      %v616 = vpop.f32.mrb[0].mxu0
      %617 = vmatprep.mubr.bf16.mxu0 0
      %618 = vmatmul.mubr.bf16.gmra.mrb[0].mxu0 %v484
      %v619 = vpop.f32.mrb[0].mxu0
      %v620 = vadd.f32 0.0, %v619
      %v621 = vpop.f32.mrb[0].mxu0
      %v622 = vpop.f32.mrb[0].mxu0
      %v623 = vadd.f32 0.0, %v622
      %v624 = vpop.f32.mrb[0].mxu0
      %625 = vmatprep.mubr.bf16.mxu0 0
      %626 = vmatmul.mubr.bf16.gmra.mrb[0].mxu0 %v487
      %v627 = vpop.f32.mrb[0].mxu0
      %v628 = vadd.f32 0.0, %v627
      %v629 = vpop.f32.mrb[0].mxu0
      %v630 = vpop.f32.mrb[0].mxu0
      %v631 = vadd.f32 0.0, %v630
      %v632 = vpop.f32.mrb[0].mxu0
      %633 = vmatprep.mubr.bf16.mxu0 0
      %634 = vmatmul.mubr.bf16.gmra.mrb[0].mxu0 %v490
      %v635 = vpop.f32.mrb[0].mxu0
      %v636 = vadd.f32 0.0, %v635
      %v637 = vpop.f32.mrb[0].mxu0
      %v638 = vpop.f32.mrb[0].mxu0
      %v639 = vadd.f32 0.0, %v638
      %v640 = vpop.f32.mrb[0].mxu0
      %641 = vmatprep.mubr.bf16.mxu0 0
      %642 = vmatmul.mubr.bf16.gmra.mrb[0].mxu0 %v493
      %v643 = vpop.f32.mrb[0].mxu0
      %v644 = vadd.f32 0.0, %v643
      %v645 = vpop.f32.mrb[0].mxu0
      %v646 = vpop.f32.mrb[0].mxu0
      %v647 = vadd.f32 0.0, %v646
      %v648 = vpop.f32.mrb[0].mxu0
      %649 = vmatprep.mubr.bf16.mxu0 0
      %650 = vmatmul.mubr.bf16.gmra.mrb[0].mxu0 %v496
      %v651 = vpop.f32.mrb[0].mxu0
      %v652 = vadd.f32 0.0, %v651
      %v653 = vpop.f32.mrb[0].mxu0
      %v654 = vpop.f32.mrb[0].mxu0
      %v655 = vadd.f32 0.0, %v654
      %v656 = vpop.f32.mrb[0].mxu0
      %657 = vmatprep.mubr.bf16.mxu0 0
      %658 = vmatmul.mubr.bf16.gmra.mrb[0].mxu0 %v499
      %v659 = vpop.f32.mrb[0].mxu0
      %v660 = vadd.f32 0.0, %v659
      %v661 = vpop.f32.mrb[0].mxu0
      %v662 = vpop.f32.mrb[0].mxu0
      %v663 = vadd.f32 0.0, %v662
      %v664 = vpop.f32.mrb[0].mxu0
      %665 = vdwg.mxu0
      %v666 = vld [vmem:[%s300] sm:$0xf]
      %v667 = vld [vmem:[%s300 + $0x4] sm:$0xf]
      %v668 = vld [vmem:[%s300 + $0x8] sm:$0xf]
      %v669 = vld [vmem:[%s300 + $0xc] sm:$0xf]
      %v670 = vld [vmem:[%s300 + $0x10] sm:$0xf]
      %v671 = vld [vmem:[%s300 + $0x14] sm:$0xf]
      %v672 = vld [vmem:[%s300 + $0x18] sm:$0xf]
      %v673 = vld [vmem:[%s300 + $0x1c] sm:$0xf]
      %v674 = vld [vmem:[%s300 + $0x20] sm:$0xf]
      %v675 = vld [vmem:[%s300 + $0x24] sm:$0xf]
      %v676 = vld [vmem:[%s300 + $0x28] sm:$0xf]
      %v677 = vld [vmem:[%s300 + $0x2c] sm:$0xf]
      %v678 = vld [vmem:[%s300 + $0x30] sm:$0xf]
      %v679 = vld [vmem:[%s300 + $0x34] sm:$0xf]
      %v680 = vld [vmem:[%s300 + $0x38] sm:$0xf]
      %v681 = vld [vmem:[%s300 + $0x3c] sm:$0xf]
      %v682 = vld [vmem:[%s300 + $0x40] sm:$0xf]
      %v683 = vld [vmem:[%s300 + $0x44] sm:$0xf]
      %v684 = vld [vmem:[%s300 + $0x48] sm:$0xf]
      %v685 = vld [vmem:[%s300 + $0x4c] sm:$0xf]
      %v686 = vld [vmem:[%s300 + $0x50] sm:$0xf]
      %v687 = vld [vmem:[%s300 + $0x54] sm:$0xf]
      %v688 = vld [vmem:[%s300 + $0x58] sm:$0xf]
      %v689 = vld [vmem:[%s300 + $0x5c] sm:$0xf]
      %v690 = vld [vmem:[%s300 + $0x60] sm:$0xf]
      %v691 = vld [vmem:[%s300 + $0x64] sm:$0xf]
      %v692 = vld [vmem:[%s300 + $0x68] sm:$0xf]
      %v693 = vld [vmem:[%s300 + $0x6c] sm:$0xf]
      %v694 = vld [vmem:[%s300 + $0x70] sm:$0xf]
      %v695 = vld [vmem:[%s300 + $0x74] sm:$0xf]
      %v696 = vld [vmem:[%s300 + $0x78] sm:$0xf]
      %v697 = vld [vmem:[%s300 + $0x7c] sm:$0xf]
      %v698 = vld [vmem:[%s3] sm:$0x3]
      %v731 = vunpack.c.l.b16 %v666
      %v732 = vunpack.c.l.b16 %v667
      %v733 = vunpack.c.l.b16 %v668
      %v734 = vunpack.c.l.b16 %v669
      %v735 = vunpack.c.l.b16 %v670
      %v736 = vunpack.c.l.b16 %v671
      %v737 = vunpack.c.l.b16 %v672
      %v738 = vunpack.c.l.b16 %v673
      %v739 = vunpack.c.l.b16 %v674
      %v740 = vunpack.c.l.b16 %v675
      %v741 = vunpack.c.l.b16 %v676
      %v742 = vunpack.c.l.b16 %v677
      %v743 = vunpack.c.l.b16 %v678
      %v744 = vunpack.c.l.b16 %v679
      %v745 = vunpack.c.l.b16 %v680
      %v746 = vunpack.c.l.b16 %v681
      %v747 = vunpack.c.l.b16 %v682
      %v748 = vunpack.c.l.b16 %v683
      %v749 = vunpack.c.l.b16 %v684
      %v750 = vunpack.c.l.b16 %v685
      %v751 = vunpack.c.l.b16 %v686
      %v752 = vunpack.c.l.b16 %v687
      %v753 = vunpack.c.l.b16 %v688
      %v754 = vunpack.c.l.b16 %v689
      %v755 = vunpack.c.l.b16 %v690
      %v756 = vunpack.c.l.b16 %v691
      %v757 = vunpack.c.l.b16 %v692
      %v758 = vunpack.c.l.b16 %v693
      %v759 = vunpack.c.l.b16 %v694
      %v760 = vunpack.c.l.b16 %v695
      %v761 = vunpack.c.l.b16 %v696
      %v762 = vunpack.c.l.b16 %v697
      %v763 = vpack.c.b16 %v732, %v731
      %v764 = vpack.c.b16 %v734, %v733
      %v765 = vpack.c.b16 %v736, %v735
      %v766 = vpack.c.b16 %v738, %v737
      %v767 = vpack.c.b16 %v740, %v739
      %v768 = vpack.c.b16 %v742, %v741
      %v769 = vpack.c.b16 %v744, %v743
      %v770 = vpack.c.b16 %v746, %v745
      %v771 = vpack.c.b16 %v748, %v747
      %v772 = vpack.c.b16 %v750, %v749
      %v773 = vpack.c.b16 %v752, %v751
      %v774 = vpack.c.b16 %v754, %v753
      %v775 = vpack.c.b16 %v756, %v755
      %v776 = vpack.c.b16 %v758, %v757
      %v777 = vpack.c.b16 %v760, %v759
      %v778 = vpack.c.b16 %v762, %v761
      %vm779 = vcmask 31744
      %v781 = vsel %vm779, %v763, 0
      %v784 = vsel %vm779, %v764, 0
      %v787 = vsel %vm779, %v765, 0
      %v790 = vsel %vm779, %v766, 0
      %v793 = vsel %vm779, %v767, 0
      %v796 = vsel %vm779, %v768, 0
      %v799 = vsel %vm779, %v769, 0
      %v802 = vsel %vm779, %v770, 0
      %v805 = vsel %vm779, %v771, 0
      %v808 = vsel %vm779, %v772, 0
      %v811 = vsel %vm779, %v773, 0
      %v814 = vsel %vm779, %v774, 0
      %v817 = vsel %vm779, %v775, 0
      %v820 = vsel %vm779, %v776, 0
      %v823 = vsel %vm779, %v777, 0
      %v826 = vsel %vm779, %v778, 0
      %v829 = vsel %vm501, %v698, 0
      %831 = vmatprep.subr.bf16.mxu0 0
      %832 = vmatpush1.bf16.msra.mxu0 %v829
      %833 = vmatprep.subr.bf16.mxu0 0
      %834 = vmatpush1.bf16.msra.mxu0 0
      %835 = vmatprep.subr.bf16.mxu0 0
      %836 = vmatpush1.bf16.msra.mxu0 0
      %837 = vmatprep.subr.bf16.mxu0 0
      %838 = vmatpush1.bf16.msra.mxu0 0
      %839 = vmatprep.subr.bf16.mxu0 0
      %840 = vmatpush1.bf16.msra.mxu0 0
      %841 = vmatprep.subr.bf16.mxu0 0
      %842 = vmatpush1.bf16.msra.mxu0 0
      %843 = vmatprep.subr.bf16.mxu0 0
      %844 = vmatpush1.bf16.msra.mxu0 0
      %845 = vmatprep.subr.bf16.mxu0 0
      %846 = vmatpush1.bf16.msra.mxu0 0
      %847 = vmatprep.subr.bf16.mxu0 0
      %848 = vmatpush1.bf16.msra.mxu0 0
      %849 = vmatprep.subr.bf16.mxu0 0
      %850 = vmatpush1.bf16.msra.mxu0 0
      %851 = vmatprep.subr.bf16.mxu0 0
      %852 = vmatpush1.bf16.msra.mxu0 0
      %853 = vmatprep.subr.bf16.mxu0 0
      %854 = vmatpush1.bf16.msra.mxu0 0
      %855 = vmatprep.subr.bf16.mxu0 0
      %856 = vmatpush1.bf16.msra.mxu0 0
      %857 = vmatprep.subr.bf16.mxu0 0
      %858 = vmatpush1.bf16.msra.mxu0 0
      %859 = vmatprep.subr.bf16.mxu0 0
      %860 = vmatpush1.bf16.msra.mxu0 0
      %861 = vmatprep.subr.bf16.mxu0 0
      %862 = vmatpush1.bf16.msra.mxu0 0
      %863 = vmatprep.mubr.bf16.mxu0 0
      %864 = vmatmul.mubr.bf16.gmra.mrb[0].mxu0 %v781
      %v865 = vpop.f32.mrb[0].mxu0
      %v866 = vadd.f32 0.0, %v865
      %v867 = vpop.f32.mrb[0].mxu0
      %v868 = vpop.f32.mrb[0].mxu0
      %v869 = vadd.f32 0.0, %v868
      %v870 = vpop.f32.mrb[0].mxu0
      %871 = vmatprep.mubr.bf16.mxu0 0
      %872 = vmatmul.mubr.bf16.gmra.mrb[0].mxu0 %v784
      %v873 = vpop.f32.mrb[0].mxu0
      %v874 = vadd.f32 0.0, %v873
      %v875 = vpop.f32.mrb[0].mxu0
      %v876 = vpop.f32.mrb[0].mxu0
      %v877 = vadd.f32 0.0, %v876
      %v878 = vpop.f32.mrb[0].mxu0
      %879 = vmatprep.mubr.bf16.mxu0 0
      %880 = vmatmul.mubr.bf16.gmra.mrb[0].mxu0 %v787
      %v881 = vpop.f32.mrb[0].mxu0
      %v882 = vadd.f32 0.0, %v881
      %v883 = vpop.f32.mrb[0].mxu0
      %v884 = vpop.f32.mrb[0].mxu0
      %v885 = vadd.f32 0.0, %v884
      %v886 = vpop.f32.mrb[0].mxu0
      %887 = vmatprep.mubr.bf16.mxu0 0
      %888 = vmatmul.mubr.bf16.gmra.mrb[0].mxu0 %v790
      %v889 = vpop.f32.mrb[0].mxu0
      %v890 = vadd.f32 0.0, %v889
      %v891 = vpop.f32.mrb[0].mxu0
      %v892 = vpop.f32.mrb[0].mxu0
      %v893 = vadd.f32 0.0, %v892
      %v894 = vpop.f32.mrb[0].mxu0
      %895 = vmatprep.mubr.bf16.mxu0 0
      %896 = vmatmul.mubr.bf16.gmra.mrb[0].mxu0 %v793
      %v897 = vpop.f32.mrb[0].mxu0
      %v898 = vadd.f32 0.0, %v897
      %v899 = vpop.f32.mrb[0].mxu0
      %v900 = vpop.f32.mrb[0].mxu0
      %v901 = vadd.f32 0.0, %v900
      %v902 = vpop.f32.mrb[0].mxu0
      %903 = vmatprep.mubr.bf16.mxu0 0
      %904 = vmatmul.mubr.bf16.gmra.mrb[0].mxu0 %v796
      %v905 = vpop.f32.mrb[0].mxu0
      %v906 = vadd.f32 0.0, %v905
      %v907 = vpop.f32.mrb[0].mxu0
      %v908 = vpop.f32.mrb[0].mxu0
      %v909 = vadd.f32 0.0, %v908
      %v910 = vpop.f32.mrb[0].mxu0
      %911 = vmatprep.mubr.bf16.mxu0 0
      %912 = vmatmul.mubr.bf16.gmra.mrb[0].mxu0 %v799
      %v913 = vpop.f32.mrb[0].mxu0
      %v914 = vadd.f32 0.0, %v913
      %v915 = vpop.f32.mrb[0].mxu0
      %v916 = vpop.f32.mrb[0].mxu0
      %v917 = vadd.f32 0.0, %v916
      %v918 = vpop.f32.mrb[0].mxu0
      %919 = vmatprep.mubr.bf16.mxu0 0
      %920 = vmatmul.mubr.bf16.gmra.mrb[0].mxu0 %v802
      %v921 = vpop.f32.mrb[0].mxu0
      %v922 = vadd.f32 0.0, %v921
      %v923 = vpop.f32.mrb[0].mxu0
      %v924 = vpop.f32.mrb[0].mxu0
      %v925 = vadd.f32 0.0, %v924
      %v926 = vpop.f32.mrb[0].mxu0
      %927 = vmatprep.mubr.bf16.mxu0 0
      %928 = vmatmul.mubr.bf16.gmra.mrb[0].mxu0 %v805
      %v929 = vpop.f32.mrb[0].mxu0
      %v930 = vadd.f32 0.0, %v929
      %v931 = vpop.f32.mrb[0].mxu0
      %v932 = vpop.f32.mrb[0].mxu0
      %v933 = vadd.f32 0.0, %v932
      %v934 = vpop.f32.mrb[0].mxu0
      %935 = vmatprep.mubr.bf16.mxu0 0
      %936 = vmatmul.mubr.bf16.gmra.mrb[0].mxu0 %v808
      %v937 = vpop.f32.mrb[0].mxu0
      %v938 = vadd.f32 0.0, %v937
      %v939 = vpop.f32.mrb[0].mxu0
      %v940 = vpop.f32.mrb[0].mxu0
      %v941 = vadd.f32 0.0, %v940
      %v942 = vpop.f32.mrb[0].mxu0
      %943 = vmatprep.mubr.bf16.mxu0 0
      %944 = vmatmul.mubr.bf16.gmra.mrb[0].mxu0 %v811
      %v945 = vpop.f32.mrb[0].mxu0
      %v946 = vadd.f32 0.0, %v945
      %v947 = vpop.f32.mrb[0].mxu0
      %v948 = vpop.f32.mrb[0].mxu0
      %v949 = vadd.f32 0.0, %v948
      %v950 = vpop.f32.mrb[0].mxu0
      %951 = vmatprep.mubr.bf16.mxu0 0
      %952 = vmatmul.mubr.bf16.gmra.mrb[0].mxu0 %v814
      %v953 = vpop.f32.mrb[0].mxu0
      %v954 = vadd.f32 0.0, %v953
      %v955 = vpop.f32.mrb[0].mxu0
      %v956 = vpop.f32.mrb[0].mxu0
      %v957 = vadd.f32 0.0, %v956
      %v958 = vpop.f32.mrb[0].mxu0
      %959 = vmatprep.mubr.bf16.mxu0 0
      %960 = vmatmul.mubr.bf16.gmra.mrb[0].mxu0 %v817
      %v961 = vpop.f32.mrb[0].mxu0
      %v962 = vadd.f32 0.0, %v961
      %v963 = vpop.f32.mrb[0].mxu0
      %v964 = vpop.f32.mrb[0].mxu0
      %v965 = vadd.f32 0.0, %v964
      %v966 = vpop.f32.mrb[0].mxu0
      %967 = vmatprep.mubr.bf16.mxu0 0
      %968 = vmatmul.mubr.bf16.gmra.mrb[0].mxu0 %v820
      %v969 = vpop.f32.mrb[0].mxu0
      %v970 = vadd.f32 0.0, %v969
      %v971 = vpop.f32.mrb[0].mxu0
      %v972 = vpop.f32.mrb[0].mxu0
      %v973 = vadd.f32 0.0, %v972
      %v974 = vpop.f32.mrb[0].mxu0
      %975 = vmatprep.mubr.bf16.mxu0 0
      %976 = vmatmul.mubr.bf16.gmra.mrb[0].mxu0 %v823
      %v977 = vpop.f32.mrb[0].mxu0
      %v978 = vadd.f32 0.0, %v977
      %v979 = vpop.f32.mrb[0].mxu0
      %v980 = vpop.f32.mrb[0].mxu0
      %v981 = vadd.f32 0.0, %v980
      %v982 = vpop.f32.mrb[0].mxu0
      %983 = vmatprep.mubr.bf16.mxu0 0
      %984 = vmatmul.mubr.bf16.gmra.mrb[0].mxu0 %v826
      %v985 = vpop.f32.mrb[0].mxu0
      %v986 = vadd.f32 0.0, %v985
      %v987 = vpop.f32.mrb[0].mxu0
      %v988 = vpop.f32.mrb[0].mxu0
      %v989 = vadd.f32 0.0, %v988
      %v990 = vpop.f32.mrb[0].mxu0
      %991 = vdwg.mxu0
      %v992 = vpack.c.bf16 %v543, %v540
      %v993 = vpack.c.bf16 %v551, %v548
      %v994 = vpack.c.bf16 %v559, %v556
      %v995 = vpack.c.bf16 %v567, %v564
      %v996 = vpack.c.bf16 %v575, %v572
      %v997 = vpack.c.bf16 %v583, %v580
      %v998 = vpack.c.bf16 %v591, %v588
      %v999 = vpack.c.bf16 %v599, %v596
      %v1000 = vpack.c.bf16 %v607, %v604
      %v1001 = vpack.c.bf16 %v615, %v612
      %v1002 = vpack.c.bf16 %v623, %v620
      %v1003 = vpack.c.bf16 %v631, %v628
      %v1004 = vpack.c.bf16 %v639, %v636
      %v1005 = vpack.c.bf16 %v647, %v644
      %v1006 = vpack.c.bf16 %v655, %v652
      %v1007 = vpack.c.bf16 %v663, %v660
      %v1024 = vunpack.c.l.b16 %v992
      %v1025 = vunpack.c.h.b16 %v992
      %v1026 = vunpack.c.l.b16 %v993
      %v1027 = vunpack.c.h.b16 %v993
      %v1028 = vunpack.c.l.b16 %v994
      %v1029 = vunpack.c.h.b16 %v994
      %v1030 = vunpack.c.l.b16 %v995
      %v1031 = vunpack.c.h.b16 %v995
      %v1032 = vunpack.c.l.b16 %v996
      %v1033 = vunpack.c.h.b16 %v996
      %v1034 = vunpack.c.l.b16 %v997
      %v1035 = vunpack.c.h.b16 %v997
      %v1036 = vunpack.c.l.b16 %v998
      %v1037 = vunpack.c.h.b16 %v998
      %v1038 = vunpack.c.l.b16 %v999
      %v1039 = vunpack.c.h.b16 %v999
      %v1040 = vunpack.c.l.b16 %v1000
      %v1041 = vunpack.c.h.b16 %v1000
      %v1042 = vunpack.c.l.b16 %v1001
      %v1043 = vunpack.c.h.b16 %v1001
      %v1044 = vunpack.c.l.b16 %v1002
      %v1045 = vunpack.c.h.b16 %v1002
      %v1046 = vunpack.c.l.b16 %v1003
      %v1047 = vunpack.c.h.b16 %v1003
      %v1048 = vunpack.c.l.b16 %v1004
      %v1049 = vunpack.c.h.b16 %v1004
      %v1050 = vunpack.c.l.b16 %v1005
      %v1051 = vunpack.c.h.b16 %v1005
      %v1052 = vunpack.c.l.b16 %v1006
      %v1053 = vunpack.c.h.b16 %v1006
      %v1054 = vunpack.c.l.b16 %v1007
      %v1055 = vunpack.c.h.b16 %v1007
      %v1056 = vpack.c.b16 %v1024, %v1024
      %v1057 = vpack.c.b16 %v1025, %v1025
      %v1058 = vpack.c.b16 %v1026, %v1026
      %v1059 = vpack.c.b16 %v1027, %v1027
      %v1060 = vpack.c.b16 %v1028, %v1028
      %v1061 = vpack.c.b16 %v1029, %v1029
      %v1062 = vpack.c.b16 %v1030, %v1030
      %v1063 = vpack.c.b16 %v1031, %v1031
      %v1064 = vpack.c.b16 %v1032, %v1032
      %v1065 = vpack.c.b16 %v1033, %v1033
      %v1066 = vpack.c.b16 %v1034, %v1034
      %v1067 = vpack.c.b16 %v1035, %v1035
      %v1068 = vpack.c.b16 %v1036, %v1036
      %v1069 = vpack.c.b16 %v1037, %v1037
      %v1070 = vpack.c.b16 %v1038, %v1038
      %v1071 = vpack.c.b16 %v1039, %v1039
      %v1072 = vpack.c.b16 %v1040, %v1040
      %v1073 = vpack.c.b16 %v1041, %v1041
      %v1074 = vpack.c.b16 %v1042, %v1042
      %v1075 = vpack.c.b16 %v1043, %v1043
      %v1076 = vpack.c.b16 %v1044, %v1044
      %v1077 = vpack.c.b16 %v1045, %v1045
      %v1078 = vpack.c.b16 %v1046, %v1046
      %v1079 = vpack.c.b16 %v1047, %v1047
      %v1080 = vpack.c.b16 %v1048, %v1048
      %v1081 = vpack.c.b16 %v1049, %v1049
      %v1082 = vpack.c.b16 %v1050, %v1050
      %v1083 = vpack.c.b16 %v1051, %v1051
      %v1084 = vpack.c.b16 %v1052, %v1052
      %v1085 = vpack.c.b16 %v1053, %v1053
      %v1086 = vpack.c.b16 %v1054, %v1054
      %v1087 = vpack.c.b16 %v1055, %v1055
      %1120 = vst [vmem:[%s310] sm:$0xf] %v1056
      %1121 = vst [vmem:[%s310 + $0x4] sm:$0xf] %v1057
      %1122 = vst [vmem:[%s310 + $0x8] sm:$0xf] %v1058
      %1123 = vst [vmem:[%s310 + $0xc] sm:$0xf] %v1059
      %1124 = vst [vmem:[%s310 + $0x10] sm:$0xf] %v1060
      %1125 = vst [vmem:[%s310 + $0x14] sm:$0xf] %v1061
      %1126 = vst [vmem:[%s310 + $0x18] sm:$0xf] %v1062
      %1127 = vst [vmem:[%s310 + $0x1c] sm:$0xf] %v1063
      %1128 = vst [vmem:[%s310 + $0x20] sm:$0xf] %v1064
      %1129 = vst [vmem:[%s310 + $0x24] sm:$0xf] %v1065
      %1130 = vst [vmem:[%s310 + $0x28] sm:$0xf] %v1066
      %1131 = vst [vmem:[%s310 + $0x2c] sm:$0xf] %v1067
      %1132 = vst [vmem:[%s310 + $0x30] sm:$0xf] %v1068
      %1133 = vst [vmem:[%s310 + $0x34] sm:$0xf] %v1069
      %1134 = vst [vmem:[%s310 + $0x38] sm:$0xf] %v1070
      %1135 = vst [vmem:[%s310 + $0x3c] sm:$0xf] %v1071
      %1136 = vst [vmem:[%s310 + $0x40] sm:$0xf] %v1072
      %1137 = vst [vmem:[%s310 + $0x44] sm:$0xf] %v1073
      %1138 = vst [vmem:[%s310 + $0x48] sm:$0xf] %v1074
      %1139 = vst [vmem:[%s310 + $0x4c] sm:$0xf] %v1075
      %1140 = vst [vmem:[%s310 + $0x50] sm:$0xf] %v1076
      %1141 = vst [vmem:[%s310 + $0x54] sm:$0xf] %v1077
      %1142 = vst [vmem:[%s310 + $0x58] sm:$0xf] %v1078
      %1143 = vst [vmem:[%s310 + $0x5c] sm:$0xf] %v1079
      %1144 = vst [vmem:[%s310 + $0x60] sm:$0xf] %v1080
      %1145 = vst [vmem:[%s310 + $0x64] sm:$0xf] %v1081
      %1146 = vst [vmem:[%s310 + $0x68] sm:$0xf] %v1082
      %1147 = vst [vmem:[%s310 + $0x6c] sm:$0xf] %v1083
      %1148 = vst [vmem:[%s310 + $0x70] sm:$0xf] %v1084
      %1149 = vst [vmem:[%s310 + $0x74] sm:$0xf] %v1085
      %1150 = vst [vmem:[%s310 + $0x78] sm:$0xf] %v1086
      %1151 = vst [vmem:[%s310 + $0x7c] sm:$0xf] %v1087
      %v1152 = vadd.f32 %v540, %v543
      %v1153 = vadd.f32 %v1152, %v548
      %v1154 = vadd.f32 %v1153, %v551
      %v1155 = vadd.f32 %v1154, %v556
      %v1156 = vadd.f32 %v1155, %v559
      %v1157 = vadd.f32 %v1156, %v564
      %v1158 = vadd.f32 %v1157, %v567
      %v1159 = vadd.f32 %v1158, %v572
      %v1160 = vadd.f32 %v1159, %v575
      %v1161 = vadd.f32 %v1160, %v580
      %v1162 = vadd.f32 %v1161, %v583
      %v1163 = vadd.f32 %v1162, %v588
      %v1164 = vadd.f32 %v1163, %v591
      %v1165 = vadd.f32 %v1164, %v596
      %v1166 = vadd.f32 %v1165, %v599
      %v1167 = vadd.f32 %v1166, %v604
      %v1168 = vadd.f32 %v1167, %v607
      %v1169 = vadd.f32 %v1168, %v612
      %v1170 = vadd.f32 %v1169, %v615
      %v1171 = vadd.f32 %v1170, %v620
      %v1172 = vadd.f32 %v1171, %v623
      %v1173 = vadd.f32 %v1172, %v628
      %v1174 = vadd.f32 %v1173, %v631
      %v1175 = vadd.f32 %v1174, %v636
      %v1176 = vadd.f32 %v1175, %v639
      %v1177 = vadd.f32 %v1176, %v644
      %v1178 = vadd.f32 %v1177, %v647
      %v1179 = vadd.f32 %v1178, %v652
      %v1180 = vadd.f32 %v1179, %v655
      %v1181 = vadd.f32 %v1180, %v660
      %v1182 = vadd.f32 %v1181, %v663
      %v1183 = vrot.slane %v1182, 4
      %v1184 = vadd.f32 %v1182, %v1183
      %v1185 = vrot.slane %v1184, 2
      %v1186 = vadd.f32 %v1184, %v1185
      %v1187 = vrot.slane %v1186, 1
      %v1188 = vadd.f32 %v1186, %v1187
      %1189 = vst [vmem:[%s318] sm:$0x1] %v1188
      %v1190 = vmul.f32 %v540, %v540
      %v1191 = vmul.f32 %v543, %v543
      %v1192 = vmul.f32 %v548, %v548
      %v1193 = vmul.f32 %v551, %v551
      %v1194 = vmul.f32 %v556, %v556
      %v1195 = vmul.f32 %v559, %v559
      %v1196 = vmul.f32 %v564, %v564
      %v1197 = vmul.f32 %v567, %v567
      %v1198 = vmul.f32 %v572, %v572
      %v1199 = vmul.f32 %v575, %v575
      %v1200 = vmul.f32 %v580, %v580
      %v1201 = vmul.f32 %v583, %v583
      %v1202 = vmul.f32 %v588, %v588
      %v1203 = vmul.f32 %v591, %v591
      %v1204 = vmul.f32 %v596, %v596
      %v1205 = vmul.f32 %v599, %v599
      %v1206 = vmul.f32 %v604, %v604
      %v1207 = vmul.f32 %v607, %v607
      %v1208 = vmul.f32 %v612, %v612
      %v1209 = vmul.f32 %v615, %v615
      %v1210 = vmul.f32 %v620, %v620
      %v1211 = vmul.f32 %v623, %v623
      %v1212 = vmul.f32 %v628, %v628
      %v1213 = vmul.f32 %v631, %v631
      %v1214 = vmul.f32 %v636, %v636
      %v1215 = vmul.f32 %v639, %v639
      %v1216 = vmul.f32 %v644, %v644
      %v1217 = vmul.f32 %v647, %v647
      %v1218 = vmul.f32 %v652, %v652
      %v1219 = vmul.f32 %v655, %v655
      %v1220 = vmul.f32 %v660, %v660
      %v1221 = vmul.f32 %v663, %v663
      %v1222 = vadd.f32 %v1190, %v1191
      %v1223 = vadd.f32 %v1222, %v1192
      %v1224 = vadd.f32 %v1223, %v1193
      %v1225 = vadd.f32 %v1224, %v1194
      %v1226 = vadd.f32 %v1225, %v1195
      %v1227 = vadd.f32 %v1226, %v1196
      %v1228 = vadd.f32 %v1227, %v1197
      %v1229 = vadd.f32 %v1228, %v1198
      %v1230 = vadd.f32 %v1229, %v1199
      %v1231 = vadd.f32 %v1230, %v1200
      %v1232 = vadd.f32 %v1231, %v1201
      %v1233 = vadd.f32 %v1232, %v1202
      %v1234 = vadd.f32 %v1233, %v1203
      %v1235 = vadd.f32 %v1234, %v1204
      %v1236 = vadd.f32 %v1235, %v1205
      %v1237 = vadd.f32 %v1236, %v1206
      %v1238 = vadd.f32 %v1237, %v1207
      %v1239 = vadd.f32 %v1238, %v1208
      %v1240 = vadd.f32 %v1239, %v1209
      %v1241 = vadd.f32 %v1240, %v1210
      %v1242 = vadd.f32 %v1241, %v1211
      %v1243 = vadd.f32 %v1242, %v1212
      %v1244 = vadd.f32 %v1243, %v1213
      %v1245 = vadd.f32 %v1244, %v1214
      %v1246 = vadd.f32 %v1245, %v1215
      %v1247 = vadd.f32 %v1246, %v1216
      %v1248 = vadd.f32 %v1247, %v1217
      %v1249 = vadd.f32 %v1248, %v1218
      %v1250 = vadd.f32 %v1249, %v1219
      %v1251 = vadd.f32 %v1250, %v1220
      %v1252 = vadd.f32 %v1251, %v1221
      %v1253 = vrot.slane %v1252, 4
      %v1254 = vadd.f32 %v1252, %v1253
      %v1255 = vrot.slane %v1254, 2
      %v1256 = vadd.f32 %v1254, %v1255
      %v1257 = vrot.slane %v1256, 1
      %v1258 = vadd.f32 %v1256, %v1257
      %1259 = vst [vmem:[%s318 + $0x1] sm:$0x1] %v1258
      %v1260 = vadd.f32 %v866, %v869
      %v1261 = vadd.f32 %v1260, %v874
      %v1262 = vadd.f32 %v1261, %v877
      %v1263 = vadd.f32 %v1262, %v882
      %v1264 = vadd.f32 %v1263, %v885
      %v1265 = vadd.f32 %v1264, %v890
      %v1266 = vadd.f32 %v1265, %v893
      %v1267 = vadd.f32 %v1266, %v898
      %v1268 = vadd.f32 %v1267, %v901
      %v1269 = vadd.f32 %v1268, %v906
      %v1270 = vadd.f32 %v1269, %v909
      %v1271 = vadd.f32 %v1270, %v914
      %v1272 = vadd.f32 %v1271, %v917
      %v1273 = vadd.f32 %v1272, %v922
      %v1274 = vadd.f32 %v1273, %v925
      %v1275 = vadd.f32 %v1274, %v930
      %v1276 = vadd.f32 %v1275, %v933
      %v1277 = vadd.f32 %v1276, %v938
      %v1278 = vadd.f32 %v1277, %v941
      %v1279 = vadd.f32 %v1278, %v946
      %v1280 = vadd.f32 %v1279, %v949
      %v1281 = vadd.f32 %v1280, %v954
      %v1282 = vadd.f32 %v1281, %v957
      %v1283 = vadd.f32 %v1282, %v962
      %v1284 = vadd.f32 %v1283, %v965
      %v1285 = vadd.f32 %v1284, %v970
      %v1286 = vadd.f32 %v1285, %v973
      %v1287 = vadd.f32 %v1286, %v978
      %v1288 = vadd.f32 %v1287, %v981
      %v1289 = vadd.f32 %v1288, %v986
      %v1290 = vadd.f32 %v1289, %v989
      %v1291 = vrot.slane %v1290, 4
      %v1292 = vadd.f32 %v1290, %v1291
      %v1293 = vrot.slane %v1292, 2
      %v1294 = vadd.f32 %v1292, %v1293
      %v1295 = vrot.slane %v1294, 1
      %v1296 = vadd.f32 %v1294, %v1295
      %1297 = vst [vmem:[%s318 + $0x2] sm:$0x1] %v1296
      %v1298 = vmul.f32 %v866, %v866
      %v1299 = vmul.f32 %v869, %v869
      %v1300 = vmul.f32 %v874, %v874
      %v1301 = vmul.f32 %v877, %v877
      %v1302 = vmul.f32 %v882, %v882
      %v1303 = vmul.f32 %v885, %v885
      %v1304 = vmul.f32 %v890, %v890
      %v1305 = vmul.f32 %v893, %v893
      %v1306 = vmul.f32 %v898, %v898
      %v1307 = vmul.f32 %v901, %v901
      %v1308 = vmul.f32 %v906, %v906
      %v1309 = vmul.f32 %v909, %v909
      %v1310 = vmul.f32 %v914, %v914
      %v1311 = vmul.f32 %v917, %v917
      %v1312 = vmul.f32 %v922, %v922
      %v1313 = vmul.f32 %v925, %v925
      %v1314 = vmul.f32 %v930, %v930
      %v1315 = vmul.f32 %v933, %v933
      %v1316 = vmul.f32 %v938, %v938
      %v1317 = vmul.f32 %v941, %v941
      %v1318 = vmul.f32 %v946, %v946
      %v1319 = vmul.f32 %v949, %v949
      %v1320 = vmul.f32 %v954, %v954
      %v1321 = vmul.f32 %v957, %v957
      %v1322 = vmul.f32 %v962, %v962
      %v1323 = vmul.f32 %v965, %v965
      %v1324 = vmul.f32 %v970, %v970
      %v1325 = vmul.f32 %v973, %v973
      %v1326 = vmul.f32 %v978, %v978
      %v1327 = vmul.f32 %v981, %v981
      %v1328 = vmul.f32 %v986, %v986
      %v1329 = vmul.f32 %v989, %v989
      %v1330 = vadd.f32 %v1298, %v1299
      %v1331 = vadd.f32 %v1330, %v1300
      %v1332 = vadd.f32 %v1331, %v1301
      %v1333 = vadd.f32 %v1332, %v1302
      %v1334 = vadd.f32 %v1333, %v1303
      %v1335 = vadd.f32 %v1334, %v1304
      %v1336 = vadd.f32 %v1335, %v1305
      %v1337 = vadd.f32 %v1336, %v1306
      %v1338 = vadd.f32 %v1337, %v1307
      %v1339 = vadd.f32 %v1338, %v1308
      %v1340 = vadd.f32 %v1339, %v1309
      %v1341 = vadd.f32 %v1340, %v1310
      %v1342 = vadd.f32 %v1341, %v1311
      %v1343 = vadd.f32 %v1342, %v1312
      %v1344 = vadd.f32 %v1343, %v1313
      %v1345 = vadd.f32 %v1344, %v1314
      %v1346 = vadd.f32 %v1345, %v1315
      %v1347 = vadd.f32 %v1346, %v1316
      %v1348 = vadd.f32 %v1347, %v1317
      %v1349 = vadd.f32 %v1348, %v1318
      %v1350 = vadd.f32 %v1349, %v1319
      %v1351 = vadd.f32 %v1350, %v1320
      %v1352 = vadd.f32 %v1351, %v1321
      %v1353 = vadd.f32 %v1352, %v1322
      %v1354 = vadd.f32 %v1353, %v1323
      %v1355 = vadd.f32 %v1354, %v1324
      %v1356 = vadd.f32 %v1355, %v1325
      %v1357 = vadd.f32 %v1356, %v1326
      %v1358 = vadd.f32 %v1357, %v1327
      %v1359 = vadd.f32 %v1358, %v1328
      %v1360 = vadd.f32 %v1359, %v1329
      %v1361 = vrot.slane %v1360, 4
      %v1362 = vadd.f32 %v1360, %v1361
      %v1363 = vrot.slane %v1362, 2
      %v1364 = vadd.f32 %v1362, %v1363
      %v1365 = vrot.slane %v1364, 1
      %v1366 = vadd.f32 %v1364, %v1365
      %1367 = vst [vmem:[%s318 + $0x3] sm:$0x1] %v1366
      %s1368 = smul.u32 32, %s22
      %p1369 = scmp.lt.s32.totalorder %s21, 1
      %s1370 = scalar_select %p1369, %s21, 1
      %p1371 = scmp.lt.s32.totalorder %s1368, 31
      %s1372 = scalar_select %p1371, %s1368, 31
      %s1373 = smul.addr %s1370, 32
      %s1374 = sadd.s32 %s1372, %s1373
      %s1375 = smul.addr %s1374, 4
      %s1376 = scalar_lea.vmem %s4, %s1375
      %p1377 = scmp.lt.s32.totalorder %s21, 1
      %s1378 = scalar_select %p1377, %s21, 1
      %p1379 = scmp.lt.s32.totalorder %s22, 0
      %s1380 = scalar_select %p1379, %s22, 0
      %s1381 = sadd.s32 %s1380, %s1378
      %s1382 = smul.addr %s1381, 4
      %s1383 = scalar_lea.vmem %s5, %s1382
      // Predicated region
      $region37: #{residual_block_decoder_fwd.3} parent=35 // pred_check
        %p1384 = pneg %p147
      $region38: #{residual_block_decoder_fwd.3} parent=35 // pred_check_branch
        %1386 = sbr.rel (%p1384) target = $region40
      $region39: #{residual_block_decoder_fwd.3} parent=35 // pred_region
        %s1387 = smul.u32 32, %s22
      $region40: #{residual_block_decoder_fwd.3} parent=35 // pred_fallthru
        _
      // Predicated region
      $region41: #{residual_block_decoder_fwd.3} parent=35 // pred_check
        %p1388 = pneg %p175
      $region42: #{residual_block_decoder_fwd.3} parent=35 // pred_check_branch
        %1390 = sbr.rel (%p1388) target = $region44
      $region43: #{residual_block_decoder_fwd.3} parent=35 // pred_region
        _
      $region44: #{residual_block_decoder_fwd.3} parent=35 // pred_fallthru
        _
    $region36: #{residual_block_decoder_fwd.3} parent=5 // pred_fallthru
      _
    %p1391 = scmp.le.s32.totalorder 2, %s12
    // Predicated region
    $region45: #{residual_block_decoder_fwd.3} parent=5 // pred_check
      %p1392 = pneg %p1391
    $region46: #{residual_block_decoder_fwd.3} parent=5 // pred_check_branch
      %1394 = sbr.rel (%p1392) target = $region48
    $region47: #{residual_block_decoder_fwd.3} parent=5 // pred_region
      %s1395 = ssub.s32 %s12, 2
      // Predicated region
      $region49: #{residual_block_decoder_fwd.3} parent=47 // pred_check
        %p1396 = pneg %p153
      $region50: #{residual_block_decoder_fwd.3} parent=47 // pred_check_branch
        %1398 = sbr.rel (%p1396) target = $region52
      $region51: #{residual_block_decoder_fwd.3} parent=47 // pred_region
        %s1399 = smul.u32 32, %s24
        %p1400 = scmp.lt.s32.totalorder %s23, 1
        %s1401 = scalar_select %p1400, %s23, 1
        %p1402 = scmp.lt.s32.totalorder %s1399, 31
        %s1403 = scalar_select %p1402, %s1399, 31
        %s1404 = smul.addr %s1401, 32
        %s1405 = sadd.s32 %s1403, %s1404
        %s1406 = smul.addr %s1405, 4
        %s1407 = scalar_lea.vmem %s4, %s1406
      $region52: #{residual_block_decoder_fwd.3} parent=47 // pred_fallthru
        _
      // Predicated region
      $region53: #{residual_block_decoder_fwd.3} parent=47 // pred_check
        %p1408 = pneg %p181
      $region54: #{residual_block_decoder_fwd.3} parent=47 // pred_check_branch
        %1410 = sbr.rel (%p1408) target = $region56
      $region55: #{residual_block_decoder_fwd.3} parent=47 // pred_region
        %p1411 = scmp.lt.s32.totalorder %s23, 1
        %s1412 = scalar_select %p1411, %s23, 1
        %p1413 = scmp.lt.s32.totalorder %s24, 0
        %s1414 = scalar_select %p1413, %s24, 0
        %s1415 = sadd.s32 %s1414, %s1412
        %s1416 = smul.addr %s1415, 4
        %s1417 = scalar_lea.vmem %s5, %s1416
      $region56: #{residual_block_decoder_fwd.3} parent=47 // pred_fallthru
        _
    $region48: #{residual_block_decoder_fwd.3} parent=5 // pred_fallthru
      _
  $region6: #{residual_block_decoder_fwd.3} parent=0 // loop_footer
    %s16 = sadd.s32 1, %s12
  $region7: #{residual_block_decoder_fwd.3} parent=0 // loop_footer_branch
    %11 = sbr.rel target = $region3
  $region8: #{residual_block_decoder_fwd.3} parent=0 // loop_exit
    _

// kernel: residual_block_decoder_fwd.5
$region0: #{residual_block_decoder_fwd.5}
  #allocation0 [shape = 'u32[]', space=smem, size = 0x4, offset = 0x4, fixed_abs, tag = 'smem constant byte address 0x4 - core index']
  #allocation1 [shape = 'u32[144,128]{1,0:T(1,128)}', space=vmem, size = 0x12000, scoped, tag = 'internal scratch']
  %s0 = inlined_call_operand.vmem [shape: bf16[32,16,128], index: 0, kind: input, shape index: {}]
  %s1 = inlined_call_operand.vmem [shape: bf16[32,16,4], index: 1, kind: input, shape index: {}]
  %s2 = inlined_call_operand.vmem [shape: bf16[4,128], index: 2, kind: input, shape index: {}]
  %s3 = inlined_call_operand.vmem [shape: f32[1,128], index: 3, kind: input, shape index: {}]
  %s4 = inlined_call_operand.vmem [shape: f32[1,128], index: 4, kind: input, shape index: {}]
  %s5 = inlined_call_operand.vmem [shape: f32[1,128], index: 5, kind: input, shape index: {}]
  %s6 = inlined_call_operand.vmem [shape: f32[1,128], index: 6, kind: input, shape index: {}]
  %s7 = inlined_call_operand.vmem [shape: f32[32,128], index: 7, kind: output, shape index: {}]
  %s8 = sld [smem:[#allocation0]]
  $region61: #{residual_block_decoder_fwd.5} parent=0
    _
  %s10 = ssub.s32 1, %s8
  %s11 = scalar_select 0, %s10, %s8
  loop: start=0, step=1, limit=4
  $region2: #{residual_block_decoder_fwd.5} parent=0 // loop_pre_header
    _
  $region3: #{residual_block_decoder_fwd.5} parent=0 // loop_header
    %s13 = sphi 0, %s17
    %p14 = scmp.ge.s32.totalorder %s13, 4
    %s23 = sphi 0, %s25
    %s26 = sphi 0, %s23
    %s27 = sphi 0, %s26
    %s43 = sphi 0, %s27
    %s49 = sphi 0, %s51
    %s52 = sphi 0, %s49
    %s53 = sphi 0, %s52
    %s69 = sphi 0, %s53
    %s73 = sphi 0, %s73
    %s75 = sphi 0, %s73
    %s76 = sphi 0, %s75
    %s90 = sphi 0, %s76
    %s94 = sphi 0, %s94
    %s96 = sphi 0, %s94
    %s97 = sphi 0, %s96
    %s111 = sphi 0, %s97
    %s115 = sphi 0, %s115
    %s117 = sphi 0, %s115
    %s118 = sphi 0, %s117
    %s132 = sphi 0, %s118
    %s136 = sphi 0, %s136
    %s138 = sphi 0, %s136
    %s139 = sphi 0, %s138
    %s153 = sphi 0, %s139
    %s157 = sphi 0, %s157
    %s159 = sphi 0, %s157
    %s160 = sphi 0, %s159
    %s174 = sphi 0, %s160
    %s180 = sphi 0, %s182
    %s183 = sphi 0, %s180
    %s184 = sphi 0, %s183
    %s200 = sphi 0, %s184
  $region4: #{residual_block_decoder_fwd.5} parent=0 // loop_header_branch
    %16 = sbr.rel (%p14) target = $region8
  $region5: #{residual_block_decoder_fwd.5} parent=0 // loop_body
    %s18 = ssub.s32 %s13, 1
    %s19 = ssub.s32 %s13, 2
    %s20 = sadd.s32 %s13, 1
    %s21 = ssub.s32 %s13, %s20
    %p22 = scmp.eq.s32.totalorder %s21, 0
    %s24 = sadd.s32 %s23, 1
    %s25 = scalar_select %p22, %s23, %s24
    %p28 = pneg %p22
    %p29 = scmp.eq.s32.totalorder %s13, 1
    %p30 = por %p28, %p29
    %p31 = scmp.ne.s32.totalorder %s23, %s26
    %p32 = scmp.eq.s32.totalorder %s13, 0
    %p33 = por %p31, %p32
    %p34 = scmp.ne.s32.totalorder %s23, %s26
    %p35 = scmp.eq.s32.totalorder %s18, 1
    %p36 = por %p34, %p35
    %p37 = scmp.ne.s32.totalorder %s26, %s27
    %p38 = scmp.eq.s32.totalorder %s18, 0
    %p39 = por %p37, %p38
    %p40 = scmp.ne.s32.totalorder %s26, %s27
    %p41 = scmp.eq.s32.totalorder %s19, 1
    %p42 = por %p40, %p41
    %p44 = scmp.ne.s32.totalorder %s27, %s43
    %p45 = scmp.eq.s32.totalorder %s19, 0
    %p46 = por %p44, %p45
    %s47 = ssub.s32 %s13, %s20
    %p48 = scmp.eq.s32.totalorder %s47, 0
    %s50 = sadd.s32 %s49, 1
    %s51 = scalar_select %p48, %s49, %s50
    %p54 = pneg %p48
    %p55 = scmp.eq.s32.totalorder %s13, 1
    %p56 = por %p54, %p55
    %p57 = scmp.ne.s32.totalorder %s49, %s52
    %p58 = scmp.eq.s32.totalorder %s13, 0
    %p59 = por %p57, %p58
    %p60 = scmp.ne.s32.totalorder %s49, %s52
    %p61 = scmp.eq.s32.totalorder %s18, 1
    %p62 = por %p60, %p61
    %p63 = scmp.ne.s32.totalorder %s52, %s53
    %p64 = scmp.eq.s32.totalorder %s18, 0
    %p65 = por %p63, %p64
    %p66 = scmp.ne.s32.totalorder %s52, %s53
    %p67 = scmp.eq.s32.totalorder %s19, 1
    %p68 = por %p66, %p67
    %p70 = scmp.ne.s32.totalorder %s53, %s69
    %p71 = scmp.eq.s32.totalorder %s19, 0
    %p72 = por %p70, %p71
    %s74 = sadd.s32 %s73, 1
    %p77 = scmp.eq.s32.totalorder %s13, 1
    %p78 = scmp.ne.s32.totalorder %s73, %s75
    %p79 = scmp.eq.s32.totalorder %s13, 0
    %p80 = por %p78, %p79
    %p81 = scmp.ne.s32.totalorder %s73, %s75
    %p82 = scmp.eq.s32.totalorder %s18, 1
    %p83 = por %p81, %p82
    %p84 = scmp.ne.s32.totalorder %s75, %s76
    %p85 = scmp.eq.s32.totalorder %s18, 0
    %p86 = por %p84, %p85
    %p87 = scmp.ne.s32.totalorder %s75, %s76
    %p88 = scmp.eq.s32.totalorder %s19, 1
    %p89 = por %p87, %p88
    %p91 = scmp.ne.s32.totalorder %s76, %s90
    %p92 = scmp.eq.s32.totalorder %s19, 0
    %p93 = por %p91, %p92
    %s95 = sadd.s32 %s94, 1
    %p98 = scmp.eq.s32.totalorder %s13, 1
    %p99 = scmp.ne.s32.totalorder %s94, %s96
    %p100 = scmp.eq.s32.totalorder %s13, 0
    %p101 = por %p99, %p100
    %p102 = scmp.ne.s32.totalorder %s94, %s96
    %p103 = scmp.eq.s32.totalorder %s18, 1
    %p104 = por %p102, %p103
    %p105 = scmp.ne.s32.totalorder %s96, %s97
    %p106 = scmp.eq.s32.totalorder %s18, 0
    %p107 = por %p105, %p106
    %p108 = scmp.ne.s32.totalorder %s96, %s97
    %p109 = scmp.eq.s32.totalorder %s19, 1
    %p110 = por %p108, %p109
    %p112 = scmp.ne.s32.totalorder %s97, %s111
    %p113 = scmp.eq.s32.totalorder %s19, 0
    %p114 = por %p112, %p113
    %s116 = sadd.s32 %s115, 1
    %p119 = scmp.eq.s32.totalorder %s13, 1
    %p120 = scmp.ne.s32.totalorder %s115, %s117
    %p121 = scmp.eq.s32.totalorder %s13, 0
    %p122 = por %p120, %p121
    %p123 = scmp.ne.s32.totalorder %s115, %s117
    %p124 = scmp.eq.s32.totalorder %s18, 1
    %p125 = por %p123, %p124
    %p126 = scmp.ne.s32.totalorder %s117, %s118
    %p127 = scmp.eq.s32.totalorder %s18, 0
    %p128 = por %p126, %p127
    %p129 = scmp.ne.s32.totalorder %s117, %s118
    %p130 = scmp.eq.s32.totalorder %s19, 1
    %p131 = por %p129, %p130
    %p133 = scmp.ne.s32.totalorder %s118, %s132
    %p134 = scmp.eq.s32.totalorder %s19, 0
    %p135 = por %p133, %p134
    %s137 = sadd.s32 %s136, 1
    %p140 = scmp.eq.s32.totalorder %s13, 1
    %p141 = scmp.ne.s32.totalorder %s136, %s138
    %p142 = scmp.eq.s32.totalorder %s13, 0
    %p143 = por %p141, %p142
    %p144 = scmp.ne.s32.totalorder %s136, %s138
    %p145 = scmp.eq.s32.totalorder %s18, 1
    %p146 = por %p144, %p145
    %p147 = scmp.ne.s32.totalorder %s138, %s139
    %p148 = scmp.eq.s32.totalorder %s18, 0
    %p149 = por %p147, %p148
    %p150 = scmp.ne.s32.totalorder %s138, %s139
    %p151 = scmp.eq.s32.totalorder %s19, 1
    %p152 = por %p150, %p151
    %p154 = scmp.ne.s32.totalorder %s139, %s153
    %p155 = scmp.eq.s32.totalorder %s19, 0
    %p156 = por %p154, %p155
    %s158 = sadd.s32 %s157, 1
    %p161 = scmp.eq.s32.totalorder %s13, 1
    %p162 = scmp.ne.s32.totalorder %s157, %s159
    %p163 = scmp.eq.s32.totalorder %s13, 0
    %p164 = por %p162, %p163
    %p165 = scmp.ne.s32.totalorder %s157, %s159
    %p166 = scmp.eq.s32.totalorder %s18, 1
    %p167 = por %p165, %p166
    %p168 = scmp.ne.s32.totalorder %s159, %s160
    %p169 = scmp.eq.s32.totalorder %s18, 0
    %p170 = por %p168, %p169
    %p171 = scmp.ne.s32.totalorder %s159, %s160
    %p172 = scmp.eq.s32.totalorder %s19, 1
    %p173 = por %p171, %p172
    %p175 = scmp.ne.s32.totalorder %s160, %s174
    %p176 = scmp.eq.s32.totalorder %s19, 0
    %p177 = por %p175, %p176
    %s178 = ssub.s32 %s13, %s20
    %p179 = scmp.eq.s32.totalorder %s178, 0
    %s181 = sadd.s32 %s180, 1
    %s182 = scalar_select %p179, %s180, %s181
    %p185 = pneg %p179
    %p186 = scmp.eq.s32.totalorder %s13, 1
    %p187 = por %p185, %p186
    %p188 = scmp.ne.s32.totalorder %s180, %s183
    %p189 = scmp.eq.s32.totalorder %s13, 0
    %p190 = por %p188, %p189
    %p191 = scmp.ne.s32.totalorder %s180, %s183
    %p192 = scmp.eq.s32.totalorder %s18, 1
    %p193 = por %p191, %p192
    %p194 = scmp.ne.s32.totalorder %s183, %s184
    %p195 = scmp.eq.s32.totalorder %s18, 0
    %p196 = por %p194, %p195
    %p197 = scmp.ne.s32.totalorder %s183, %s184
    %p198 = scmp.eq.s32.totalorder %s19, 1
    %p199 = por %p197, %p198
    %p201 = scmp.ne.s32.totalorder %s184, %s200
    %p202 = scmp.eq.s32.totalorder %s19, 0
    %p203 = por %p201, %p202
    %p204 = scmp.le.s32.totalorder 1, %s13
    %p205 = scmp.lt.s32.totalorder %s13, 3
    %p206 = pnand %p204, %p205
    %p207 = pneg %p206
    // Predicated region
    $region9: #{residual_block_decoder_fwd.5} parent=5 // pred_check
      _
    $region10: #{residual_block_decoder_fwd.5} parent=5 // pred_check_branch
      %209 = sbr.rel (%p206) target = $region12
    $region11: #{residual_block_decoder_fwd.5} parent=5 // pred_region
      %s210 = ssub.s32 %s13, 1
      // Predicated region
      $region13: #{residual_block_decoder_fwd.5} parent=11 // pred_check
        %p211 = pneg %p86
      $region14: #{residual_block_decoder_fwd.5} parent=11 // pred_check_branch
        %213 = sbr.rel (%p211) target = $region16
      $region15: #{residual_block_decoder_fwd.5} parent=11 // pred_region
        _
      $region16: #{residual_block_decoder_fwd.5} parent=11 // pred_fallthru
        _
      // Predicated region
      $region17: #{residual_block_decoder_fwd.5} parent=11 // pred_check
        %p214 = pneg %p107
      $region18: #{residual_block_decoder_fwd.5} parent=11 // pred_check_branch
        %216 = sbr.rel (%p214) target = $region20
      $region19: #{residual_block_decoder_fwd.5} parent=11 // pred_region
        _
      $region20: #{residual_block_decoder_fwd.5} parent=11 // pred_fallthru
        _
      // Predicated region
      $region21: #{residual_block_decoder_fwd.5} parent=11 // pred_check
        %p217 = pneg %p128
      $region22: #{residual_block_decoder_fwd.5} parent=11 // pred_check_branch
        %219 = sbr.rel (%p217) target = $region24
      $region23: #{residual_block_decoder_fwd.5} parent=11 // pred_region
        _
      $region24: #{residual_block_decoder_fwd.5} parent=11 // pred_fallthru
        _
      // Predicated region
      $region25: #{residual_block_decoder_fwd.5} parent=11 // pred_check
        %p220 = pneg %p149
      $region26: #{residual_block_decoder_fwd.5} parent=11 // pred_check_branch
        %222 = sbr.rel (%p220) target = $region28
      $region27: #{residual_block_decoder_fwd.5} parent=11 // pred_region
        _
      $region28: #{residual_block_decoder_fwd.5} parent=11 // pred_fallthru
        _
      // Predicated region
      $region29: #{residual_block_decoder_fwd.5} parent=11 // pred_check
        %p223 = pneg %p170
      $region30: #{residual_block_decoder_fwd.5} parent=11 // pred_check_branch
        %225 = sbr.rel (%p223) target = $region32
      $region31: #{residual_block_decoder_fwd.5} parent=11 // pred_region
        _
      $region32: #{residual_block_decoder_fwd.5} parent=11 // pred_fallthru
        _
    $region12: #{residual_block_decoder_fwd.5} parent=5 // pred_fallthru
      _
    %p226 = scmp.lt.s32.totalorder %s13, 2
    // Predicated region
    $region33: #{residual_block_decoder_fwd.5} parent=5 // pred_check
      %p227 = pneg %p226
    $region34: #{residual_block_decoder_fwd.5} parent=5 // pred_check_branch
      %229 = sbr.rel (%p227) target = $region36
    $region35: #{residual_block_decoder_fwd.5} parent=5 // pred_region
      // Predicated region
      $region37: #{residual_block_decoder_fwd.5} parent=35 // pred_check
        %p230 = pneg %p33
      $region38: #{residual_block_decoder_fwd.5} parent=35 // pred_check_branch
        %232 = sbr.rel (%p230) target = $region40
      $region39: #{residual_block_decoder_fwd.5} parent=35 // pred_region
        %s233 = smul.u32 16, %s13
        %p234 = scmp.lt.s32.totalorder %s233, 31
        %s235 = scalar_select %p234, %s233, 31
        %s236 = smul.addr %s235, 2
        %s237 = smul.addr %s236, 4
        %s238 = scalar_lea.vmem %s0, %s237
        %s239 = smul.u32 16, %s13
      $region40: #{residual_block_decoder_fwd.5} parent=35 // pred_fallthru
        _
      // Predicated region
      $region41: #{residual_block_decoder_fwd.5} parent=35 // pred_check
        %p240 = pneg %p59
      $region42: #{residual_block_decoder_fwd.5} parent=35 // pred_check_branch
        %242 = sbr.rel (%p240) target = $region44
      $region43: #{residual_block_decoder_fwd.5} parent=35 // pred_region
        %s243 = smul.u32 16, %s13
        %p244 = scmp.lt.s32.totalorder %s243, 31
        %s245 = scalar_select %p244, %s243, 31
        %s246 = smul.addr %s245, 2
        %s247 = smul.addr %s246, 4
        %s248 = scalar_lea.vmem %s1, %s247
        %s249 = smul.u32 16, %s13
      $region44: #{residual_block_decoder_fwd.5} parent=35 // pred_fallthru
        _
    $region36: #{residual_block_decoder_fwd.5} parent=5 // pred_fallthru
      _
    %p250 = scmp.le.s32.totalorder 1, %s13
    %p251 = scmp.lt.s32.totalorder %s13, 3
    %p252 = pnand %p250, %p251
    %p253 = pneg %p252
    // Predicated region
    $region45: #{residual_block_decoder_fwd.5} parent=5 // pred_check
      _
    $region46: #{residual_block_decoder_fwd.5} parent=5 // pred_check_branch
      %255 = sbr.rel (%p252) target = $region48
    $region47: #{residual_block_decoder_fwd.5} parent=5 // pred_region
      %s256 = ssub.s32 %s13, 1
      %s257 = smul.u32 16, %s18
      %p258 = scmp.lt.s32.totalorder %s257, 31
      %s259 = scalar_select %p258, %s257, 31
      %s260 = smul.addr %s259, 2
      %s261 = smul.addr %s260, 4
      %s262 = scalar_lea.vmem %s0, %s261
      %p263 = pneg %p39
      %p264 = pneg %p36
      %s265 = smul.u32 16, %s18
      %p266 = scmp.lt.s32.totalorder %s265, 31
      %s267 = scalar_select %p266, %s265, 31
      %s268 = smul.addr %s267, 2
      %s269 = smul.addr %s268, 4
      %s270 = scalar_lea.vmem %s1, %s269
      %p271 = pneg %p65
      %p272 = pneg %p62
      %p273 = pneg %p86
      %p274 = pneg %p83
      %p275 = pneg %p107
      %p276 = pneg %p104
      %p277 = pneg %p128
      %p278 = pneg %p125
      %p279 = pneg %p149
      %p280 = pneg %p146
      %p281 = pneg %p170
      %p282 = pneg %p167
      %p283 = pneg %p196
      %p284 = pneg %p193
      %s285 = smul.u32 2, %s18
      %p286 = scmp.lt.s32.totalorder %s285, 3
      %s287 = scalar_select %p286, %s285, 3
      %s288 = smul.addr %s287, 8
      %s289 = scalar_lea.vmem %s7, %s288
      %s290 = smul.u32 16, %s18
      %p291 = scmp.lt.s32.totalorder %s290, 31
      %s292 = scalar_select %p291, %s290, 31
      %s293 = smul.addr %s292, 2
      %s294 = smul.addr %s293, 4
      %s295 = scalar_lea.vmem %s0, %s294
      %s296 = smul.u32 16, %s18
      %s297 = smul.u32 16, %s18
      %p298 = scmp.lt.s32.totalorder %s297, 31
      %s299 = scalar_select %p298, %s297, 31
      %s300 = smul.addr %s299, 2
      %s301 = smul.addr %s300, 4
      %s302 = scalar_lea.vmem %s1, %s301
      %s303 = smul.u32 16, %s18
      %s304 = smul.u32 2, %s18
      %p305 = scmp.lt.s32.totalorder %s304, 3
      %s306 = scalar_select %p305, %s304, 3
      %s307 = smul.addr %s306, 8
      %s308 = scalar_lea.vmem %s7, %s307
      %s309 = smul.u32 2, %s18
      %v311 = vld [vmem:[%s302] sm:$0xf]
      %v312 = vld [vmem:[%s302 + $0x4] sm:$0xf]
      %v313 = vld [vmem:[%s302 + $0x8] sm:$0xf]
      %v314 = vld [vmem:[%s302 + $0xc] sm:$0xf]
      %v315 = vld [vmem:[%s302 + $0x10] sm:$0xf]
      %v316 = vld [vmem:[%s302 + $0x14] sm:$0xf]
      %v317 = vld [vmem:[%s302 + $0x18] sm:$0xf]
      %v318 = vld [vmem:[%s302 + $0x1c] sm:$0xf]
      %v319 = vld [vmem:[%s302 + $0x20] sm:$0xf]
      %v320 = vld [vmem:[%s302 + $0x24] sm:$0xf]
      %v321 = vld [vmem:[%s302 + $0x28] sm:$0xf]
      %v322 = vld [vmem:[%s302 + $0x2c] sm:$0xf]
      %v323 = vld [vmem:[%s302 + $0x30] sm:$0xf]
      %v324 = vld [vmem:[%s302 + $0x34] sm:$0xf]
      %v325 = vld [vmem:[%s302 + $0x38] sm:$0xf]
      %v326 = vld [vmem:[%s302 + $0x3c] sm:$0xf]
      %v327 = vld [vmem:[%s302 + $0x40] sm:$0xf]
      %v328 = vld [vmem:[%s302 + $0x44] sm:$0xf]
      %v329 = vld [vmem:[%s302 + $0x48] sm:$0xf]
      %v330 = vld [vmem:[%s302 + $0x4c] sm:$0xf]
      %v331 = vld [vmem:[%s302 + $0x50] sm:$0xf]
      %v332 = vld [vmem:[%s302 + $0x54] sm:$0xf]
      %v333 = vld [vmem:[%s302 + $0x58] sm:$0xf]
      %v334 = vld [vmem:[%s302 + $0x5c] sm:$0xf]
      %v335 = vld [vmem:[%s302 + $0x60] sm:$0xf]
      %v336 = vld [vmem:[%s302 + $0x64] sm:$0xf]
      %v337 = vld [vmem:[%s302 + $0x68] sm:$0xf]
      %v338 = vld [vmem:[%s302 + $0x6c] sm:$0xf]
      %v339 = vld [vmem:[%s302 + $0x70] sm:$0xf]
      %v340 = vld [vmem:[%s302 + $0x74] sm:$0xf]
      %v341 = vld [vmem:[%s302 + $0x78] sm:$0xf]
      %v342 = vld [vmem:[%s302 + $0x7c] sm:$0xf]
      %v343 = vld [vmem:[%s2] sm:$0x3]
      %v376 = vunpack.c.l.b16 %v311
      %v377 = vunpack.c.l.b16 %v312
      %v378 = vunpack.c.l.b16 %v313
      %v379 = vunpack.c.l.b16 %v314
      %v380 = vunpack.c.l.b16 %v315
      %v381 = vunpack.c.l.b16 %v316
      %v382 = vunpack.c.l.b16 %v317
      %v383 = vunpack.c.l.b16 %v318
      %v384 = vunpack.c.l.b16 %v319
      %v385 = vunpack.c.l.b16 %v320
      %v386 = vunpack.c.l.b16 %v321
      %v387 = vunpack.c.l.b16 %v322
      %v388 = vunpack.c.l.b16 %v323
      %v389 = vunpack.c.l.b16 %v324
      %v390 = vunpack.c.l.b16 %v325
      %v391 = vunpack.c.l.b16 %v326
      %v392 = vunpack.c.l.b16 %v327
      %v393 = vunpack.c.l.b16 %v328
      %v394 = vunpack.c.l.b16 %v329
      %v395 = vunpack.c.l.b16 %v330
      %v396 = vunpack.c.l.b16 %v331
      %v397 = vunpack.c.l.b16 %v332
      %v398 = vunpack.c.l.b16 %v333
      %v399 = vunpack.c.l.b16 %v334
      %v400 = vunpack.c.l.b16 %v335
      %v401 = vunpack.c.l.b16 %v336
      %v402 = vunpack.c.l.b16 %v337
      %v403 = vunpack.c.l.b16 %v338
      %v404 = vunpack.c.l.b16 %v339
      %v405 = vunpack.c.l.b16 %v340
      %v406 = vunpack.c.l.b16 %v341
      %v407 = vunpack.c.l.b16 %v342
      %v408 = vpack.c.b16 %v377, %v376
      %v409 = vpack.c.b16 %v379, %v378
      %v410 = vpack.c.b16 %v381, %v380
      %v411 = vpack.c.b16 %v383, %v382
      %v412 = vpack.c.b16 %v385, %v384
      %v413 = vpack.c.b16 %v387, %v386
      %v414 = vpack.c.b16 %v389, %v388
      %v415 = vpack.c.b16 %v391, %v390
      %v416 = vpack.c.b16 %v393, %v392
      %v417 = vpack.c.b16 %v395, %v394
      %v418 = vpack.c.b16 %v397, %v396
      %v419 = vpack.c.b16 %v399, %v398
      %v420 = vpack.c.b16 %v401, %v400
      %v421 = vpack.c.b16 %v403, %v402
      %v422 = vpack.c.b16 %v405, %v404
      %v423 = vpack.c.b16 %v407, %v406
      %vm424 = vcmask 31744
      %v426 = vsel %vm424, %v408, 0
      %v429 = vsel %vm424, %v409, 0
      %v432 = vsel %vm424, %v410, 0
      %v435 = vsel %vm424, %v411, 0
      %v438 = vsel %vm424, %v412, 0
      %v441 = vsel %vm424, %v413, 0
      %v444 = vsel %vm424, %v414, 0
      %v447 = vsel %vm424, %v415, 0
      %v450 = vsel %vm424, %v416, 0
      %v453 = vsel %vm424, %v417, 0
      %v456 = vsel %vm424, %v418, 0
      %v459 = vsel %vm424, %v419, 0
      %v462 = vsel %vm424, %v420, 0
      %v465 = vsel %vm424, %v421, 0
      %v468 = vsel %vm424, %v422, 0
      %v471 = vsel %vm424, %v423, 0
      %vm473 = vcmask 1041408
      %v475 = vsel %vm473, %v343, 0
      %477 = vmatprep.subr.bf16.mxu0 0
      %478 = vmatpush1.bf16.msra.mxu0 %v475
      %479 = vmatprep.subr.bf16.mxu0 0
      %480 = vmatpush1.bf16.msra.mxu0 0
      %481 = vmatprep.subr.bf16.mxu0 0
      %482 = vmatpush1.bf16.msra.mxu0 0
      %483 = vmatprep.subr.bf16.mxu0 0
      %484 = vmatpush1.bf16.msra.mxu0 0
      %485 = vmatprep.subr.bf16.mxu0 0
      %486 = vmatpush1.bf16.msra.mxu0 0
      %487 = vmatprep.subr.bf16.mxu0 0
      %488 = vmatpush1.bf16.msra.mxu0 0
      %489 = vmatprep.subr.bf16.mxu0 0
      %490 = vmatpush1.bf16.msra.mxu0 0
      %491 = vmatprep.subr.bf16.mxu0 0
      %492 = vmatpush1.bf16.msra.mxu0 0
      %493 = vmatprep.subr.bf16.mxu0 0
      %494 = vmatpush1.bf16.msra.mxu0 0
      %495 = vmatprep.subr.bf16.mxu0 0
      %496 = vmatpush1.bf16.msra.mxu0 0
      %497 = vmatprep.subr.bf16.mxu0 0
      %498 = vmatpush1.bf16.msra.mxu0 0
      %499 = vmatprep.subr.bf16.mxu0 0
      %500 = vmatpush1.bf16.msra.mxu0 0
      %501 = vmatprep.subr.bf16.mxu0 0
      %502 = vmatpush1.bf16.msra.mxu0 0
      %503 = vmatprep.subr.bf16.mxu0 0
      %504 = vmatpush1.bf16.msra.mxu0 0
      %505 = vmatprep.subr.bf16.mxu0 0
      %506 = vmatpush1.bf16.msra.mxu0 0
      %507 = vmatprep.subr.bf16.mxu0 0
      %508 = vmatpush1.bf16.msra.mxu0 0
      %509 = vmatprep.mubr.bf16.mxu0 0
      %510 = vmatmul.mubr.bf16.gmra.mrb[0].mxu0 %v426
      %v511 = vpop.f32.mrb[0].mxu0
      %v512 = vadd.f32 0.0, %v511
      %v513 = vpop.f32.mrb[0].mxu0
      %v514 = vpop.f32.mrb[0].mxu0
      %v515 = vadd.f32 0.0, %v514
      %v516 = vpop.f32.mrb[0].mxu0
      %517 = vmatprep.mubr.bf16.mxu0 0
      %518 = vmatmul.mubr.bf16.gmra.mrb[0].mxu0 %v429
      %v519 = vpop.f32.mrb[0].mxu0
      %v520 = vadd.f32 0.0, %v519
      %v521 = vpop.f32.mrb[0].mxu0
      %v522 = vpop.f32.mrb[0].mxu0
      %v523 = vadd.f32 0.0, %v522
      %v524 = vpop.f32.mrb[0].mxu0
      %525 = vmatprep.mubr.bf16.mxu0 0
      %526 = vmatmul.mubr.bf16.gmra.mrb[0].mxu0 %v432
      %v527 = vpop.f32.mrb[0].mxu0
      %v528 = vadd.f32 0.0, %v527
      %v529 = vpop.f32.mrb[0].mxu0
      %v530 = vpop.f32.mrb[0].mxu0
      %v531 = vadd.f32 0.0, %v530
      %v532 = vpop.f32.mrb[0].mxu0
      %533 = vmatprep.mubr.bf16.mxu0 0
      %534 = vmatmul.mubr.bf16.gmra.mrb[0].mxu0 %v435
      %v535 = vpop.f32.mrb[0].mxu0
      %v536 = vadd.f32 0.0, %v535
      %v537 = vpop.f32.mrb[0].mxu0
      %v538 = vpop.f32.mrb[0].mxu0
      %v539 = vadd.f32 0.0, %v538
      %v540 = vpop.f32.mrb[0].mxu0
      %541 = vmatprep.mubr.bf16.mxu0 0
      %542 = vmatmul.mubr.bf16.gmra.mrb[0].mxu0 %v438
      %v543 = vpop.f32.mrb[0].mxu0
      %v544 = vadd.f32 0.0, %v543
      %v545 = vpop.f32.mrb[0].mxu0
      %v546 = vpop.f32.mrb[0].mxu0
      %v547 = vadd.f32 0.0, %v546
      %v548 = vpop.f32.mrb[0].mxu0
      %549 = vmatprep.mubr.bf16.mxu0 0
      %550 = vmatmul.mubr.bf16.gmra.mrb[0].mxu0 %v441
      %v551 = vpop.f32.mrb[0].mxu0
      %v552 = vadd.f32 0.0, %v551
      %v553 = vpop.f32.mrb[0].mxu0
      %v554 = vpop.f32.mrb[0].mxu0
      %v555 = vadd.f32 0.0, %v554
      %v556 = vpop.f32.mrb[0].mxu0
      %557 = vmatprep.mubr.bf16.mxu0 0
      %558 = vmatmul.mubr.bf16.gmra.mrb[0].mxu0 %v444
      %v559 = vpop.f32.mrb[0].mxu0
      %v560 = vadd.f32 0.0, %v559
      %v561 = vpop.f32.mrb[0].mxu0
      %v562 = vpop.f32.mrb[0].mxu0
      %v563 = vadd.f32 0.0, %v562
      %v564 = vpop.f32.mrb[0].mxu0
      %565 = vmatprep.mubr.bf16.mxu0 0
      %566 = vmatmul.mubr.bf16.gmra.mrb[0].mxu0 %v447
      %v567 = vpop.f32.mrb[0].mxu0
      %v568 = vadd.f32 0.0, %v567
      %v569 = vpop.f32.mrb[0].mxu0
      %v570 = vpop.f32.mrb[0].mxu0
      %v571 = vadd.f32 0.0, %v570
      %v572 = vpop.f32.mrb[0].mxu0
      %573 = vmatprep.mubr.bf16.mxu0 0
      %574 = vmatmul.mubr.bf16.gmra.mrb[0].mxu0 %v450
      %v575 = vpop.f32.mrb[0].mxu0
      %v576 = vadd.f32 0.0, %v575
      %v577 = vpop.f32.mrb[0].mxu0
      %v578 = vpop.f32.mrb[0].mxu0
      %v579 = vadd.f32 0.0, %v578
      %v580 = vpop.f32.mrb[0].mxu0
      %581 = vmatprep.mubr.bf16.mxu0 0
      %582 = vmatmul.mubr.bf16.gmra.mrb[0].mxu0 %v453
      %v583 = vpop.f32.mrb[0].mxu0
      %v584 = vadd.f32 0.0, %v583
      %v585 = vpop.f32.mrb[0].mxu0
      %v586 = vpop.f32.mrb[0].mxu0
      %v587 = vadd.f32 0.0, %v586
      %v588 = vpop.f32.mrb[0].mxu0
      %589 = vmatprep.mubr.bf16.mxu0 0
      %590 = vmatmul.mubr.bf16.gmra.mrb[0].mxu0 %v456
      %v591 = vpop.f32.mrb[0].mxu0
      %v592 = vadd.f32 0.0, %v591
      %v593 = vpop.f32.mrb[0].mxu0
      %v594 = vpop.f32.mrb[0].mxu0
      %v595 = vadd.f32 0.0, %v594
      %v596 = vpop.f32.mrb[0].mxu0
      %597 = vmatprep.mubr.bf16.mxu0 0
      %598 = vmatmul.mubr.bf16.gmra.mrb[0].mxu0 %v459
      %v599 = vpop.f32.mrb[0].mxu0
      %v600 = vadd.f32 0.0, %v599
      %v601 = vpop.f32.mrb[0].mxu0
      %v602 = vpop.f32.mrb[0].mxu0
      %v603 = vadd.f32 0.0, %v602
      %v604 = vpop.f32.mrb[0].mxu0
      %605 = vmatprep.mubr.bf16.mxu0 0
      %606 = vmatmul.mubr.bf16.gmra.mrb[0].mxu0 %v462
      %v607 = vpop.f32.mrb[0].mxu0
      %v608 = vadd.f32 0.0, %v607
      %v609 = vpop.f32.mrb[0].mxu0
      %v610 = vpop.f32.mrb[0].mxu0
      %v611 = vadd.f32 0.0, %v610
      %v612 = vpop.f32.mrb[0].mxu0
      %613 = vmatprep.mubr.bf16.mxu0 0
      %614 = vmatmul.mubr.bf16.gmra.mrb[0].mxu0 %v465
      %v615 = vpop.f32.mrb[0].mxu0
      %v616 = vadd.f32 0.0, %v615
      %v617 = vpop.f32.mrb[0].mxu0
      %v618 = vpop.f32.mrb[0].mxu0
      %v619 = vadd.f32 0.0, %v618
      %v620 = vpop.f32.mrb[0].mxu0
      %621 = vmatprep.mubr.bf16.mxu0 0
      %622 = vmatmul.mubr.bf16.gmra.mrb[0].mxu0 %v468
      %v623 = vpop.f32.mrb[0].mxu0
      %v624 = vadd.f32 0.0, %v623
      %v625 = vpop.f32.mrb[0].mxu0
      %v626 = vpop.f32.mrb[0].mxu0
      %v627 = vadd.f32 0.0, %v626
      %v628 = vpop.f32.mrb[0].mxu0
      %629 = vmatprep.mubr.bf16.mxu0 0
      %630 = vmatmul.mubr.bf16.gmra.mrb[0].mxu0 %v471
      %v631 = vpop.f32.mrb[0].mxu0
      %v632 = vadd.f32 0.0, %v631
      %v633 = vpop.f32.mrb[0].mxu0
      %v634 = vpop.f32.mrb[0].mxu0
      %v635 = vadd.f32 0.0, %v634
      %v636 = vpop.f32.mrb[0].mxu0
      %637 = vdwg.mxu0
      %v638 = vld [vmem:[%s295] sm:$0xf]
      %v639 = vld [vmem:[%s295 + $0x4] sm:$0xf]
      %v640 = vld [vmem:[%s295 + $0x8] sm:$0xf]
      %v641 = vld [vmem:[%s295 + $0xc] sm:$0xf]
      %v642 = vld [vmem:[%s295 + $0x10] sm:$0xf]
      %v643 = vld [vmem:[%s295 + $0x14] sm:$0xf]
      %v644 = vld [vmem:[%s295 + $0x18] sm:$0xf]
      %v645 = vld [vmem:[%s295 + $0x1c] sm:$0xf]
      %v646 = vld [vmem:[%s295 + $0x20] sm:$0xf]
      %v647 = vld [vmem:[%s295 + $0x24] sm:$0xf]
      %v648 = vld [vmem:[%s295 + $0x28] sm:$0xf]
      %v649 = vld [vmem:[%s295 + $0x2c] sm:$0xf]
      %v650 = vld [vmem:[%s295 + $0x30] sm:$0xf]
      %v651 = vld [vmem:[%s295 + $0x34] sm:$0xf]
      %v652 = vld [vmem:[%s295 + $0x38] sm:$0xf]
      %v653 = vld [vmem:[%s295 + $0x3c] sm:$0xf]
      %v654 = vld [vmem:[%s295 + $0x40] sm:$0xf]
      %v655 = vld [vmem:[%s295 + $0x44] sm:$0xf]
      %v656 = vld [vmem:[%s295 + $0x48] sm:$0xf]
      %v657 = vld [vmem:[%s295 + $0x4c] sm:$0xf]
      %v658 = vld [vmem:[%s295 + $0x50] sm:$0xf]
      %v659 = vld [vmem:[%s295 + $0x54] sm:$0xf]
      %v660 = vld [vmem:[%s295 + $0x58] sm:$0xf]
      %v661 = vld [vmem:[%s295 + $0x5c] sm:$0xf]
      %v662 = vld [vmem:[%s295 + $0x60] sm:$0xf]
      %v663 = vld [vmem:[%s295 + $0x64] sm:$0xf]
      %v664 = vld [vmem:[%s295 + $0x68] sm:$0xf]
      %v665 = vld [vmem:[%s295 + $0x6c] sm:$0xf]
      %v666 = vld [vmem:[%s295 + $0x70] sm:$0xf]
      %v667 = vld [vmem:[%s295 + $0x74] sm:$0xf]
      %v668 = vld [vmem:[%s295 + $0x78] sm:$0xf]
      %v669 = vld [vmem:[%s295 + $0x7c] sm:$0xf]
      %v670 = vunpack.c.l.bf16 %v638
      %v671 = vunpack.c.l.bf16 %v639
      %v672 = vunpack.c.l.bf16 %v640
      %v673 = vunpack.c.l.bf16 %v641
      %v674 = vunpack.c.l.bf16 %v642
      %v675 = vunpack.c.l.bf16 %v643
      %v676 = vunpack.c.l.bf16 %v644
      %v677 = vunpack.c.l.bf16 %v645
      %v678 = vunpack.c.l.bf16 %v646
      %v679 = vunpack.c.l.bf16 %v647
      %v680 = vunpack.c.l.bf16 %v648
      %v681 = vunpack.c.l.bf16 %v649
      %v682 = vunpack.c.l.bf16 %v650
      %v683 = vunpack.c.l.bf16 %v651
      %v684 = vunpack.c.l.bf16 %v652
      %v685 = vunpack.c.l.bf16 %v653
      %v686 = vunpack.c.l.bf16 %v654
      %v687 = vunpack.c.l.bf16 %v655
      %v688 = vunpack.c.l.bf16 %v656
      %v689 = vunpack.c.l.bf16 %v657
      %v690 = vunpack.c.l.bf16 %v658
      %v691 = vunpack.c.l.bf16 %v659
      %v692 = vunpack.c.l.bf16 %v660
      %v693 = vunpack.c.l.bf16 %v661
      %v694 = vunpack.c.l.bf16 %v662
      %v695 = vunpack.c.l.bf16 %v663
      %v696 = vunpack.c.l.bf16 %v664
      %v697 = vunpack.c.l.bf16 %v665
      %v698 = vunpack.c.l.bf16 %v666
      %v699 = vunpack.c.l.bf16 %v667
      %v700 = vunpack.c.l.bf16 %v668
      %v701 = vunpack.c.l.bf16 %v669
      %v702 = vld [vmem:[%s3] sm:$0x1]
      %v704 = vlaneseq
      %v705 = vshrl.u32 %v704, 7
      %v706 = vsub.s32 0, %v705
      %v707 = vrot.slane %v702, %v706
      %v709 = vmul.f32 %v670, %v707
      %v710 = vmul.f32 %v671, %v707
      %v711 = vmul.f32 %v672, %v707
      %v712 = vmul.f32 %v673, %v707
      %v713 = vmul.f32 %v674, %v707
      %v714 = vmul.f32 %v675, %v707
      %v715 = vmul.f32 %v676, %v707
      %v716 = vmul.f32 %v677, %v707
      %v717 = vmul.f32 %v678, %v707
      %v718 = vmul.f32 %v679, %v707
      %v719 = vmul.f32 %v680, %v707
      %v720 = vmul.f32 %v681, %v707
      %v721 = vmul.f32 %v682, %v707
      %v722 = vmul.f32 %v683, %v707
      %v723 = vmul.f32 %v684, %v707
      %v724 = vmul.f32 %v685, %v707
      %v725 = vmul.f32 %v686, %v707
      %v726 = vmul.f32 %v687, %v707
      %v727 = vmul.f32 %v688, %v707
      %v728 = vmul.f32 %v689, %v707
      %v729 = vmul.f32 %v690, %v707
      %v730 = vmul.f32 %v691, %v707
      %v731 = vmul.f32 %v692, %v707
      %v732 = vmul.f32 %v693, %v707
      %v733 = vmul.f32 %v694, %v707
      %v734 = vmul.f32 %v695, %v707
      %v735 = vmul.f32 %v696, %v707
      %v736 = vmul.f32 %v697, %v707
      %v737 = vmul.f32 %v698, %v707
      %v738 = vmul.f32 %v699, %v707
      %v739 = vmul.f32 %v700, %v707
      %v740 = vmul.f32 %v701, %v707
      %v741 = vld [vmem:[%s4] sm:$0x1]
      %v743 = vlaneseq
      %v744 = vshrl.u32 %v743, 7
      %v745 = vsub.s32 0, %v744
      %v746 = vrot.slane %v741, %v745
      %v748 = vadd.f32 %v709, %v746
      %v749 = vadd.f32 %v710, %v746
      %v750 = vadd.f32 %v711, %v746
      %v751 = vadd.f32 %v712, %v746
      %v752 = vadd.f32 %v713, %v746
      %v753 = vadd.f32 %v714, %v746
      %v754 = vadd.f32 %v715, %v746
      %v755 = vadd.f32 %v716, %v746
      %v756 = vadd.f32 %v717, %v746
      %v757 = vadd.f32 %v718, %v746
      %v758 = vadd.f32 %v719, %v746
      %v759 = vadd.f32 %v720, %v746
      %v760 = vadd.f32 %v721, %v746
      %v761 = vadd.f32 %v722, %v746
      %v762 = vadd.f32 %v723, %v746
      %v763 = vadd.f32 %v724, %v746
      %v764 = vadd.f32 %v725, %v746
      %v765 = vadd.f32 %v726, %v746
      %v766 = vadd.f32 %v727, %v746
      %v767 = vadd.f32 %v728, %v746
      %v768 = vadd.f32 %v729, %v746
      %v769 = vadd.f32 %v730, %v746
      %v770 = vadd.f32 %v731, %v746
      %v771 = vadd.f32 %v732, %v746
      %v772 = vadd.f32 %v733, %v746
      %v773 = vadd.f32 %v734, %v746
      %v774 = vadd.f32 %v735, %v746
      %v775 = vadd.f32 %v736, %v746
      %v776 = vadd.f32 %v737, %v746
      %v777 = vadd.f32 %v738, %v746
      %v778 = vadd.f32 %v739, %v746
      %v779 = vadd.f32 %v740, %v746
      %v780 = vld [vmem:[%s5] sm:$0x1]
      %v782 = vlaneseq
      %v783 = vshrl.u32 %v782, 7
      %v784 = vsub.s32 0, %v783
      %v785 = vrot.slane %v780, %v784
      %v787 = vmul.f32 %v512, %v785
      %v788 = vmul.f32 %v515, %v785
      %v789 = vmul.f32 %v520, %v785
      %v790 = vmul.f32 %v523, %v785
      %v791 = vmul.f32 %v528, %v785
      %v792 = vmul.f32 %v531, %v785
      %v793 = vmul.f32 %v536, %v785
      %v794 = vmul.f32 %v539, %v785
      %v795 = vmul.f32 %v544, %v785
      %v796 = vmul.f32 %v547, %v785
      %v797 = vmul.f32 %v552, %v785
      %v798 = vmul.f32 %v555, %v785
      %v799 = vmul.f32 %v560, %v785
      %v800 = vmul.f32 %v563, %v785
      %v801 = vmul.f32 %v568, %v785
      %v802 = vmul.f32 %v571, %v785
      %v803 = vmul.f32 %v576, %v785
      %v804 = vmul.f32 %v579, %v785
      %v805 = vmul.f32 %v584, %v785
      %v806 = vmul.f32 %v587, %v785
      %v807 = vmul.f32 %v592, %v785
      %v808 = vmul.f32 %v595, %v785
      %v809 = vmul.f32 %v600, %v785
      %v810 = vmul.f32 %v603, %v785
      %v811 = vmul.f32 %v608, %v785
      %v812 = vmul.f32 %v611, %v785
      %v813 = vmul.f32 %v616, %v785
      %v814 = vmul.f32 %v619, %v785
      %v815 = vmul.f32 %v624, %v785
      %v816 = vmul.f32 %v627, %v785
      %v817 = vmul.f32 %v632, %v785
      %v818 = vmul.f32 %v635, %v785
      %v819 = vadd.f32 %v748, %v787
      %v820 = vadd.f32 %v749, %v788
      %v821 = vadd.f32 %v750, %v789
      %v822 = vadd.f32 %v751, %v790
      %v823 = vadd.f32 %v752, %v791
      %v824 = vadd.f32 %v753, %v792
      %v825 = vadd.f32 %v754, %v793
      %v826 = vadd.f32 %v755, %v794
      %v827 = vadd.f32 %v756, %v795
      %v828 = vadd.f32 %v757, %v796
      %v829 = vadd.f32 %v758, %v797
      %v830 = vadd.f32 %v759, %v798
      %v831 = vadd.f32 %v760, %v799
      %v832 = vadd.f32 %v761, %v800
      %v833 = vadd.f32 %v762, %v801
      %v834 = vadd.f32 %v763, %v802
      %v835 = vadd.f32 %v764, %v803
      %v836 = vadd.f32 %v765, %v804
      %v837 = vadd.f32 %v766, %v805
      %v838 = vadd.f32 %v767, %v806
      %v839 = vadd.f32 %v768, %v807
      %v840 = vadd.f32 %v769, %v808
      %v841 = vadd.f32 %v770, %v809
      %v842 = vadd.f32 %v771, %v810
      %v843 = vadd.f32 %v772, %v811
      %v844 = vadd.f32 %v773, %v812
      %v845 = vadd.f32 %v774, %v813
      %v846 = vadd.f32 %v775, %v814
      %v847 = vadd.f32 %v776, %v815
      %v848 = vadd.f32 %v777, %v816
      %v849 = vadd.f32 %v778, %v817
      %v850 = vadd.f32 %v779, %v818
      %v851 = vld [vmem:[%s6] sm:$0x1]
      %v853 = vlaneseq
      %v854 = vshrl.u32 %v853, 7
      %v855 = vsub.s32 0, %v854
      %v856 = vrot.slane %v851, %v855
      %v858 = vadd.f32 %v819, %v856
      %v859 = vadd.f32 %v820, %v856
      %v860 = vadd.f32 %v821, %v856
      %v861 = vadd.f32 %v822, %v856
      %v862 = vadd.f32 %v823, %v856
      %v863 = vadd.f32 %v824, %v856
      %v864 = vadd.f32 %v825, %v856
      %v865 = vadd.f32 %v826, %v856
      %v866 = vadd.f32 %v827, %v856
      %v867 = vadd.f32 %v828, %v856
      %v868 = vadd.f32 %v829, %v856
      %v869 = vadd.f32 %v830, %v856
      %v870 = vadd.f32 %v831, %v856
      %v871 = vadd.f32 %v832, %v856
      %v872 = vadd.f32 %v833, %v856
      %v873 = vadd.f32 %v834, %v856
      %v874 = vadd.f32 %v835, %v856
      %v875 = vadd.f32 %v836, %v856
      %v876 = vadd.f32 %v837, %v856
      %v877 = vadd.f32 %v838, %v856
      %v878 = vadd.f32 %v839, %v856
      %v879 = vadd.f32 %v840, %v856
      %v880 = vadd.f32 %v841, %v856
      %v881 = vadd.f32 %v842, %v856
      %v882 = vadd.f32 %v843, %v856
      %v883 = vadd.f32 %v844, %v856
      %v884 = vadd.f32 %v845, %v856
      %v885 = vadd.f32 %v846, %v856
      %v886 = vadd.f32 %v847, %v856
      %v887 = vadd.f32 %v848, %v856
      %v888 = vadd.f32 %v849, %v856
      %v889 = vadd.f32 %v850, %v856
      %v890 = vmax.f32 %v858, 0.0
      %v891 = vmax.f32 %v859, 0.0
      %v892 = vmax.f32 %v860, 0.0
      %v893 = vmax.f32 %v861, 0.0
      %v894 = vmax.f32 %v862, 0.0
      %v895 = vmax.f32 %v863, 0.0
      %v896 = vmax.f32 %v864, 0.0
      %v897 = vmax.f32 %v865, 0.0
      %v898 = vmax.f32 %v866, 0.0
      %v899 = vmax.f32 %v867, 0.0
      %v900 = vmax.f32 %v868, 0.0
      %v901 = vmax.f32 %v869, 0.0
      %v902 = vmax.f32 %v870, 0.0
      %v903 = vmax.f32 %v871, 0.0
      %v904 = vmax.f32 %v872, 0.0
      %v905 = vmax.f32 %v873, 0.0
      %v906 = vmax.f32 %v874, 0.0
      %v907 = vmax.f32 %v875, 0.0
      %v908 = vmax.f32 %v876, 0.0
      %v909 = vmax.f32 %v877, 0.0
      %v910 = vmax.f32 %v878, 0.0
      %v911 = vmax.f32 %v879, 0.0
      %v912 = vmax.f32 %v880, 0.0
      %v913 = vmax.f32 %v881, 0.0
      %v914 = vmax.f32 %v882, 0.0
      %v915 = vmax.f32 %v883, 0.0
      %v916 = vmax.f32 %v884, 0.0
      %v917 = vmax.f32 %v885, 0.0
      %v918 = vmax.f32 %v886, 0.0
      %v919 = vmax.f32 %v887, 0.0
      %v920 = vmax.f32 %v888, 0.0
      %v921 = vmax.f32 %v889, 0.0
      %v938 = vrot.slane %v892, 7
      %vm939 = vcmask 1041409
      %v940 = vsel %vm939, %v938, %v890
      %v941 = vrot.slane %v894, 6
      %vm942 = vcmask 1042434
      %v943 = vsel %vm942, %v941, %v940
      %v944 = vrot.slane %v896, 5
      %vm945 = vcmask 1043459
      %v946 = vsel %vm945, %v944, %v943
      %v947 = vrot.slane %v898, 4
      %vm948 = vcmask 1044484
      %v949 = vsel %vm948, %v947, %v946
      %v950 = vrot.slane %v900, 3
      %vm951 = vcmask 1045509
      %v952 = vsel %vm951, %v950, %v949
      %v953 = vrot.slane %v902, 2
      %vm954 = vcmask 1046534
      %v955 = vsel %vm954, %v953, %v952
      %v956 = vrot.slane %v904, 1
      %vm957 = vcmask 1047559
      %v958 = vsel %vm957, %v956, %v955
      %v959 = vrot.slane %v908, 7
      %v960 = vsel %vm939, %v959, %v906
      %v961 = vrot.slane %v910, 6
      %v962 = vsel %vm942, %v961, %v960
      %v963 = vrot.slane %v912, 5
      %v964 = vsel %vm945, %v963, %v962
      %v965 = vrot.slane %v914, 4
      %v966 = vsel %vm948, %v965, %v964
      %v967 = vrot.slane %v916, 3
      %v968 = vsel %vm951, %v967, %v966
      %v969 = vrot.slane %v918, 2
      %v970 = vsel %vm954, %v969, %v968
      %v971 = vrot.slane %v920, 1
      %v972 = vsel %vm957, %v971, %v970
      %vm975 = vcmask 64512
      %976 = vst.msk [vmem:[%s308] sm:$0xff] %vm975, %v958
      %977 = vst.msk [vmem:[%s308 + $0x8] sm:$0xff] %vm975, %v972
      %v978 = vsel %vm942, %v938, %v890
      %v979 = vsel %vm945, %v941, %v978
      %v980 = vsel %vm948, %v944, %v979
      %v981 = vsel %vm951, %v947, %v980
      %v982 = vsel %vm954, %v950, %v981
      %v983 = vsel %vm957, %v953, %v982
      %v984 = vsel %vm939, %v906, %v956
      %v985 = vsel %vm942, %v959, %v984
      %v986 = vsel %vm945, %v961, %v985
      %v987 = vsel %vm948, %v963, %v986
      %v988 = vsel %vm951, %v965, %v987
      %v989 = vsel %vm954, %v967, %v988
      %v990 = vsel %vm957, %v969, %v989
      %991 = vrot.lane.b32.xlu0 %v983, 8
      %v992 = vpop.permute.xlu0 %991
      %993 = vrot.lane.b32.xlu0 %v990, 8
      %v994 = vpop.permute.xlu0 %993
      %995 = vrot.lane.b32.xlu0 %v971, 8
      %v996 = vpop.permute.xlu0 %995
      %vm1000 = vcmask 130113
      %1001 = vst.msk [vmem:[%s308 - $0x1] sm:$0xfe] %vm1000, %v992
      %vm1002 = vcmask 130112
      %1003 = vst.msk [vmem:[%s308 + $0x7] sm:$0xff] %vm1002, %v994
      %vm1004 = vcmask 122944
      %1005 = vst.msk [vmem:[%s308 + $0xf] sm:$0x1] %vm1004, %v996
      %v1006 = vsel %vm945, %v938, %v890
      %v1007 = vsel %vm948, %v941, %v1006
      %v1008 = vsel %vm951, %v944, %v1007
      %v1009 = vsel %vm954, %v947, %v1008
      %v1010 = vsel %vm957, %v950, %v1009
      %v1011 = vsel %vm939, %v956, %v953
      %v1012 = vsel %vm942, %v906, %v1011
      %v1013 = vsel %vm945, %v959, %v1012
      %v1014 = vsel %vm948, %v961, %v1013
      %v1015 = vsel %vm951, %v963, %v1014
      %v1016 = vsel %vm954, %v965, %v1015
      %v1017 = vsel %vm957, %v967, %v1016
      %v1018 = vsel %vm939, %v971, %v969
      %1019 = vrot.lane.b32.xlu0 %v1010, 16
      %v1020 = vpop.permute.xlu0 %1019
      %1021 = vrot.lane.b32.xlu0 %v1017, 16
      %v1022 = vpop.permute.xlu0 %1021
      %1023 = vrot.lane.b32.xlu0 %v1018, 16
      %v1024 = vpop.permute.xlu0 %1023
      %vm1028 = vcmask 195714
      %1029 = vst.msk [vmem:[%s308 - $0x2] sm:$0xfc] %vm1028, %v1020
      %vm1030 = vcmask 195712
      %1031 = vst.msk [vmem:[%s308 + $0x6] sm:$0xff] %vm1030, %v1022
      %vm1032 = vcmask 189568
      %1033 = vst.msk [vmem:[%s308 + $0xe] sm:$0x3] %vm1032, %v1024
      %v1034 = vsel %vm948, %v938, %v890
      %v1035 = vsel %vm951, %v941, %v1034
      %v1036 = vsel %vm954, %v944, %v1035
      %v1037 = vsel %vm957, %v947, %v1036
      %v1038 = vsel %vm939, %v953, %v950
      %v1039 = vsel %vm942, %v956, %v1038
      %v1040 = vsel %vm945, %v906, %v1039
      %v1041 = vsel %vm948, %v959, %v1040
      %v1042 = vsel %vm951, %v961, %v1041
      %v1043 = vsel %vm954, %v963, %v1042
      %v1044 = vsel %vm957, %v965, %v1043
      %v1045 = vsel %vm939, %v969, %v967
      %v1046 = vsel %vm942, %v971, %v1045
      %1047 = vrot.lane.b32.xlu0 %v1037, 24
      %v1048 = vpop.permute.xlu0 %1047
      %1049 = vrot.lane.b32.xlu0 %v1044, 24
      %v1050 = vpop.permute.xlu0 %1049
      %1051 = vrot.lane.b32.xlu0 %v1046, 24
      %v1052 = vpop.permute.xlu0 %1051
      %vm1056 = vcmask 261315
      %1057 = vst.msk [vmem:[%s308 - $0x3] sm:$0xf8] %vm1056, %v1048
      %vm1058 = vcmask 261312
      %1059 = vst.msk [vmem:[%s308 + $0x5] sm:$0xff] %vm1058, %v1050
      %vm1060 = vcmask 256192
      %1061 = vst.msk [vmem:[%s308 + $0xd] sm:$0x7] %vm1060, %v1052
      %v1062 = vsel %vm951, %v938, %v890
      %v1063 = vsel %vm954, %v941, %v1062
      %v1064 = vsel %vm957, %v944, %v1063
      %v1065 = vsel %vm939, %v950, %v947
      %v1066 = vsel %vm942, %v953, %v1065
      %v1067 = vsel %vm945, %v956, %v1066
      %v1068 = vsel %vm948, %v906, %v1067
      %v1069 = vsel %vm951, %v959, %v1068
      %v1070 = vsel %vm954, %v961, %v1069
      %v1071 = vsel %vm957, %v963, %v1070
      %v1072 = vsel %vm939, %v967, %v965
      %v1073 = vsel %vm942, %v969, %v1072
      %v1074 = vsel %vm945, %v971, %v1073
      %1075 = vrot.lane.b32.xlu0 %v1064, 32
      %v1076 = vpop.permute.xlu0 %1075
      %1077 = vrot.lane.b32.xlu0 %v1071, 32
      %v1078 = vpop.permute.xlu0 %1077
      %1079 = vrot.lane.b32.xlu0 %v1074, 32
      %v1080 = vpop.permute.xlu0 %1079
      %vm1084 = vcmask 326916
      %1085 = vst.msk [vmem:[%s308 - $0x4] sm:$0xf0] %vm1084, %v1076
      %vm1086 = vcmask 326912
      %1087 = vst.msk [vmem:[%s308 + $0x4] sm:$0xff] %vm1086, %v1078
      %vm1088 = vcmask 322816
      %1089 = vst.msk [vmem:[%s308 + $0xc] sm:$0xf] %vm1088, %v1080
      %v1090 = vsel %vm954, %v938, %v890
      %v1091 = vsel %vm957, %v941, %v1090
      %v1092 = vsel %vm939, %v947, %v944
      %v1093 = vsel %vm942, %v950, %v1092
      %v1094 = vsel %vm945, %v953, %v1093
      %v1095 = vsel %vm948, %v956, %v1094
      %v1096 = vsel %vm951, %v906, %v1095
      %v1097 = vsel %vm954, %v959, %v1096
      %v1098 = vsel %vm957, %v961, %v1097
      %v1099 = vsel %vm939, %v965, %v963
      %v1100 = vsel %vm942, %v967, %v1099
      %v1101 = vsel %vm945, %v969, %v1100
      %v1102 = vsel %vm948, %v971, %v1101
      %1103 = vrot.lane.b32.xlu0 %v1091, 40
      %v1104 = vpop.permute.xlu0 %1103
      %1105 = vrot.lane.b32.xlu0 %v1098, 40
      %v1106 = vpop.permute.xlu0 %1105
      %1107 = vrot.lane.b32.xlu0 %v1102, 40
      %v1108 = vpop.permute.xlu0 %1107
      %vm1112 = vcmask 392517
      %1113 = vst.msk [vmem:[%s308 - $0x5] sm:$0xe0] %vm1112, %v1104
      %vm1114 = vcmask 392512
      %1115 = vst.msk [vmem:[%s308 + $0x3] sm:$0xff] %vm1114, %v1106
      %vm1116 = vcmask 389440
      %1117 = vst.msk [vmem:[%s308 + $0xb] sm:$0x1f] %vm1116, %v1108
      %v1118 = vsel %vm957, %v938, %v890
      %v1119 = vsel %vm939, %v944, %v941
      %v1120 = vsel %vm942, %v947, %v1119
      %v1121 = vsel %vm945, %v950, %v1120
      %v1122 = vsel %vm948, %v953, %v1121
      %v1123 = vsel %vm951, %v956, %v1122
      %v1124 = vsel %vm954, %v906, %v1123
      %v1125 = vsel %vm957, %v959, %v1124
      %v1126 = vsel %vm939, %v963, %v961
      %v1127 = vsel %vm942, %v965, %v1126
      %v1128 = vsel %vm945, %v967, %v1127
      %v1129 = vsel %vm948, %v969, %v1128
      %v1130 = vsel %vm951, %v971, %v1129
      %1131 = vrot.lane.b32.xlu0 %v1118, 48
      %v1132 = vpop.permute.xlu0 %1131
      %1133 = vrot.lane.b32.xlu0 %v1125, 48
      %v1134 = vpop.permute.xlu0 %1133
      %1135 = vrot.lane.b32.xlu0 %v1130, 48
      %v1136 = vpop.permute.xlu0 %1135
      %vm1140 = vcmask 458118
      %1141 = vst.msk [vmem:[%s308 - $0x6] sm:$0xc0] %vm1140, %v1132
      %vm1142 = vcmask 458112
      %1143 = vst.msk [vmem:[%s308 + $0x2] sm:$0xff] %vm1142, %v1134
      %vm1144 = vcmask 456064
      %1145 = vst.msk [vmem:[%s308 + $0xa] sm:$0x3f] %vm1144, %v1136
      %v1146 = vsel %vm939, %v941, %v938
      %v1147 = vsel %vm942, %v944, %v1146
      %v1148 = vsel %vm945, %v947, %v1147
      %v1149 = vsel %vm948, %v950, %v1148
      %v1150 = vsel %vm951, %v953, %v1149
      %v1151 = vsel %vm954, %v956, %v1150
      %v1152 = vsel %vm957, %v906, %v1151
      %v1153 = vsel %vm939, %v961, %v959
      %v1154 = vsel %vm942, %v963, %v1153
      %v1155 = vsel %vm945, %v965, %v1154
      %v1156 = vsel %vm948, %v967, %v1155
      %v1157 = vsel %vm951, %v969, %v1156
      %v1158 = vsel %vm954, %v971, %v1157
      %1159 = vrot.lane.b32.xlu0 %v890, 56
      %v1160 = vpop.permute.xlu0 %1159
      %1161 = vrot.lane.b32.xlu0 %v1152, 56
      %v1162 = vpop.permute.xlu0 %1161
      %1163 = vrot.lane.b32.xlu0 %v1158, 56
      %v1164 = vpop.permute.xlu0 %1163
      %vm1168 = vcmask 523719
      %1169 = vst.msk [vmem:[%s308 - $0x7] sm:$0x80] %vm1168, %v1160
      %vm1170 = vcmask 523712
      %1171 = vst.msk [vmem:[%s308 + $0x1] sm:$0xff] %vm1170, %v1162
      %vm1172 = vcmask 522688
      %1173 = vst.msk [vmem:[%s308 + $0x9] sm:$0x7f] %vm1172, %v1164
      %v1190 = vrot.slane %v893, 7
      %v1191 = vsel %vm939, %v1190, %v891
      %v1192 = vrot.slane %v895, 6
      %v1193 = vsel %vm942, %v1192, %v1191
      %v1194 = vrot.slane %v897, 5
      %v1195 = vsel %vm945, %v1194, %v1193
      %v1196 = vrot.slane %v899, 4
      %v1197 = vsel %vm948, %v1196, %v1195
      %v1198 = vrot.slane %v901, 3
      %v1199 = vsel %vm951, %v1198, %v1197
      %v1200 = vrot.slane %v903, 2
      %v1201 = vsel %vm954, %v1200, %v1199
      %v1202 = vrot.slane %v905, 1
      %v1203 = vsel %vm957, %v1202, %v1201
      %v1204 = vrot.slane %v909, 7
      %v1205 = vsel %vm939, %v1204, %v907
      %v1206 = vrot.slane %v911, 6
      %v1207 = vsel %vm942, %v1206, %v1205
      %v1208 = vrot.slane %v913, 5
      %v1209 = vsel %vm945, %v1208, %v1207
      %v1210 = vrot.slane %v915, 4
      %v1211 = vsel %vm948, %v1210, %v1209
      %v1212 = vrot.slane %v917, 3
      %v1213 = vsel %vm951, %v1212, %v1211
      %v1214 = vrot.slane %v919, 2
      %v1215 = vsel %vm954, %v1214, %v1213
      %v1216 = vrot.slane %v921, 1
      %v1217 = vsel %vm957, %v1216, %v1215
      %1218 = vrot.lane.b32.xlu0 %v1203, 64
      %v1219 = vpop.permute.xlu0 %1218
      %1220 = vrot.lane.b32.xlu0 %v1217, 64
      %v1221 = vpop.permute.xlu0 %1220
      %vm1224 = vcmask 589312
      %1225 = vst.msk [vmem:[%s308] sm:$0xff] %vm1224, %v1219
      %1226 = vst.msk [vmem:[%s308 + $0x8] sm:$0xff] %vm1224, %v1221
      %v1227 = vsel %vm942, %v1190, %v891
      %v1228 = vsel %vm945, %v1192, %v1227
      %v1229 = vsel %vm948, %v1194, %v1228
      %v1230 = vsel %vm951, %v1196, %v1229
      %v1231 = vsel %vm954, %v1198, %v1230
      %v1232 = vsel %vm957, %v1200, %v1231
      %v1233 = vsel %vm939, %v907, %v1202
      %v1234 = vsel %vm942, %v1204, %v1233
      %v1235 = vsel %vm945, %v1206, %v1234
      %v1236 = vsel %vm948, %v1208, %v1235
      %v1237 = vsel %vm951, %v1210, %v1236
      %v1238 = vsel %vm954, %v1212, %v1237
      %v1239 = vsel %vm957, %v1214, %v1238
      %1240 = vrot.lane.b32.xlu0 %v1232, 72
      %v1241 = vpop.permute.xlu0 %1240
      %1242 = vrot.lane.b32.xlu0 %v1239, 72
      %v1243 = vpop.permute.xlu0 %1242
      %1244 = vrot.lane.b32.xlu0 %v1216, 72
      %v1245 = vpop.permute.xlu0 %1244
      %vm1249 = vcmask 654913
      %1250 = vst.msk [vmem:[%s308 - $0x1] sm:$0xfe] %vm1249, %v1241
      %vm1251 = vcmask 654912
      %1252 = vst.msk [vmem:[%s308 + $0x7] sm:$0xff] %vm1251, %v1243
      %vm1253 = vcmask 647744
      %1254 = vst.msk [vmem:[%s308 + $0xf] sm:$0x1] %vm1253, %v1245
      %v1255 = vsel %vm945, %v1190, %v891
      %v1256 = vsel %vm948, %v1192, %v1255
      %v1257 = vsel %vm951, %v1194, %v1256
      %v1258 = vsel %vm954, %v1196, %v1257
      %v1259 = vsel %vm957, %v1198, %v1258
      %v1260 = vsel %vm939, %v1202, %v1200
      %v1261 = vsel %vm942, %v907, %v1260
      %v1262 = vsel %vm945, %v1204, %v1261
      %v1263 = vsel %vm948, %v1206, %v1262
      %v1264 = vsel %vm951, %v1208, %v1263
      %v1265 = vsel %vm954, %v1210, %v1264
      %v1266 = vsel %vm957, %v1212, %v1265
      %v1267 = vsel %vm939, %v1216, %v1214
      %1268 = vrot.lane.b32.xlu0 %v1259, 80
      %v1269 = vpop.permute.xlu0 %1268
      %1270 = vrot.lane.b32.xlu0 %v1266, 80
      %v1271 = vpop.permute.xlu0 %1270
      %1272 = vrot.lane.b32.xlu0 %v1267, 80
      %v1273 = vpop.permute.xlu0 %1272
      %vm1277 = vcmask 720514
      %1278 = vst.msk [vmem:[%s308 - $0x2] sm:$0xfc] %vm1277, %v1269
      %vm1279 = vcmask 720512
      %1280 = vst.msk [vmem:[%s308 + $0x6] sm:$0xff] %vm1279, %v1271
      %vm1281 = vcmask 714368
      %1282 = vst.msk [vmem:[%s308 + $0xe] sm:$0x3] %vm1281, %v1273
      %v1283 = vsel %vm948, %v1190, %v891
      %v1284 = vsel %vm951, %v1192, %v1283
      %v1285 = vsel %vm954, %v1194, %v1284
      %v1286 = vsel %vm957, %v1196, %v1285
      %v1287 = vsel %vm939, %v1200, %v1198
      %v1288 = vsel %vm942, %v1202, %v1287
      %v1289 = vsel %vm945, %v907, %v1288
      %v1290 = vsel %vm948, %v1204, %v1289
      %v1291 = vsel %vm951, %v1206, %v1290
      %v1292 = vsel %vm954, %v1208, %v1291
      %v1293 = vsel %vm957, %v1210, %v1292
      %v1294 = vsel %vm939, %v1214, %v1212
      %v1295 = vsel %vm942, %v1216, %v1294
      %1296 = vrot.lane.b32.xlu0 %v1286, 88
      %v1297 = vpop.permute.xlu0 %1296
      %1298 = vrot.lane.b32.xlu0 %v1293, 88
      %v1299 = vpop.permute.xlu0 %1298
      %1300 = vrot.lane.b32.xlu0 %v1295, 88
      %v1301 = vpop.permute.xlu0 %1300
      %vm1305 = vcmask 786115
      %1306 = vst.msk [vmem:[%s308 - $0x3] sm:$0xf8] %vm1305, %v1297
      %vm1307 = vcmask 786112
      %1308 = vst.msk [vmem:[%s308 + $0x5] sm:$0xff] %vm1307, %v1299
      %vm1309 = vcmask 780992
      %1310 = vst.msk [vmem:[%s308 + $0xd] sm:$0x7] %vm1309, %v1301
      %v1311 = vsel %vm951, %v1190, %v891
      %v1312 = vsel %vm954, %v1192, %v1311
      %v1313 = vsel %vm957, %v1194, %v1312
      %v1314 = vsel %vm939, %v1198, %v1196
      %v1315 = vsel %vm942, %v1200, %v1314
      %v1316 = vsel %vm945, %v1202, %v1315
      %v1317 = vsel %vm948, %v907, %v1316
      %v1318 = vsel %vm951, %v1204, %v1317
      %v1319 = vsel %vm954, %v1206, %v1318
      %v1320 = vsel %vm957, %v1208, %v1319
      %v1321 = vsel %vm939, %v1212, %v1210
      %v1322 = vsel %vm942, %v1214, %v1321
      %v1323 = vsel %vm945, %v1216, %v1322
      %1324 = vrot.lane.b32.xlu0 %v1313, 96
      %v1325 = vpop.permute.xlu0 %1324
      %1326 = vrot.lane.b32.xlu0 %v1320, 96
      %v1327 = vpop.permute.xlu0 %1326
      %1328 = vrot.lane.b32.xlu0 %v1323, 96
      %v1329 = vpop.permute.xlu0 %1328
      %vm1333 = vcmask 851716
      %1334 = vst.msk [vmem:[%s308 - $0x4] sm:$0xf0] %vm1333, %v1325
      %vm1335 = vcmask 851712
      %1336 = vst.msk [vmem:[%s308 + $0x4] sm:$0xff] %vm1335, %v1327
      %vm1337 = vcmask 847616
      %1338 = vst.msk [vmem:[%s308 + $0xc] sm:$0xf] %vm1337, %v1329
      %v1339 = vsel %vm954, %v1190, %v891
      %v1340 = vsel %vm957, %v1192, %v1339
      %v1341 = vsel %vm939, %v1196, %v1194
      %v1342 = vsel %vm942, %v1198, %v1341
      %v1343 = vsel %vm945, %v1200, %v1342
      %v1344 = vsel %vm948, %v1202, %v1343
      %v1345 = vsel %vm951, %v907, %v1344
      %v1346 = vsel %vm954, %v1204, %v1345
      %v1347 = vsel %vm957, %v1206, %v1346
      %v1348 = vsel %vm939, %v1210, %v1208
      %v1349 = vsel %vm942, %v1212, %v1348
      %v1350 = vsel %vm945, %v1214, %v1349
      %v1351 = vsel %vm948, %v1216, %v1350
      %1352 = vrot.lane.b32.xlu0 %v1340, 104
      %v1353 = vpop.permute.xlu0 %1352
      %1354 = vrot.lane.b32.xlu0 %v1347, 104
      %v1355 = vpop.permute.xlu0 %1354
      %1356 = vrot.lane.b32.xlu0 %v1351, 104
      %v1357 = vpop.permute.xlu0 %1356
      %vm1361 = vcmask 917317
      %1362 = vst.msk [vmem:[%s308 - $0x5] sm:$0xe0] %vm1361, %v1353
      %vm1363 = vcmask 917312
      %1364 = vst.msk [vmem:[%s308 + $0x3] sm:$0xff] %vm1363, %v1355
      %vm1365 = vcmask 914240
      %1366 = vst.msk [vmem:[%s308 + $0xb] sm:$0x1f] %vm1365, %v1357
      %v1367 = vsel %vm957, %v1190, %v891
      %v1368 = vsel %vm939, %v1194, %v1192
      %v1369 = vsel %vm942, %v1196, %v1368
      %v1370 = vsel %vm945, %v1198, %v1369
      %v1371 = vsel %vm948, %v1200, %v1370
      %v1372 = vsel %vm951, %v1202, %v1371
      %v1373 = vsel %vm954, %v907, %v1372
      %v1374 = vsel %vm957, %v1204, %v1373
      %v1375 = vsel %vm939, %v1208, %v1206
      %v1376 = vsel %vm942, %v1210, %v1375
      %v1377 = vsel %vm945, %v1212, %v1376
      %v1378 = vsel %vm948, %v1214, %v1377
      %v1379 = vsel %vm951, %v1216, %v1378
      %1380 = vrot.lane.b32.xlu0 %v1367, 112
      %v1381 = vpop.permute.xlu0 %1380
      %1382 = vrot.lane.b32.xlu0 %v1374, 112
      %v1383 = vpop.permute.xlu0 %1382
      %1384 = vrot.lane.b32.xlu0 %v1379, 112
      %v1385 = vpop.permute.xlu0 %1384
      %vm1389 = vcmask 982918
      %1390 = vst.msk [vmem:[%s308 - $0x6] sm:$0xc0] %vm1389, %v1381
      %vm1391 = vcmask 982912
      %1392 = vst.msk [vmem:[%s308 + $0x2] sm:$0xff] %vm1391, %v1383
      %vm1393 = vcmask 980864
      %1394 = vst.msk [vmem:[%s308 + $0xa] sm:$0x3f] %vm1393, %v1385
      %v1395 = vsel %vm939, %v1192, %v1190
      %v1396 = vsel %vm942, %v1194, %v1395
      %v1397 = vsel %vm945, %v1196, %v1396
      %v1398 = vsel %vm948, %v1198, %v1397
      %v1399 = vsel %vm951, %v1200, %v1398
      %v1400 = vsel %vm954, %v1202, %v1399
      %v1401 = vsel %vm957, %v907, %v1400
      %v1402 = vsel %vm939, %v1206, %v1204
      %v1403 = vsel %vm942, %v1208, %v1402
      %v1404 = vsel %vm945, %v1210, %v1403
      %v1405 = vsel %vm948, %v1212, %v1404
      %v1406 = vsel %vm951, %v1214, %v1405
      %v1407 = vsel %vm954, %v1216, %v1406
      %1408 = vrot.lane.b32.xlu0 %v891, 120
      %v1409 = vpop.permute.xlu0 %1408
      %1410 = vrot.lane.b32.xlu0 %v1401, 120
      %v1411 = vpop.permute.xlu0 %1410
      %1412 = vrot.lane.b32.xlu0 %v1407, 120
      %v1413 = vpop.permute.xlu0 %1412
      %vm1417 = vcmask 1048519
      %1418 = vst.msk [vmem:[%s308 - $0x7] sm:$0x80] %vm1417, %v1409
      %vm1419 = vcmask 1048512
      %1420 = vst.msk [vmem:[%s308 + $0x1] sm:$0xff] %vm1419, %v1411
      %vm1421 = vcmask 1047488
      %1422 = vst.msk [vmem:[%s308 + $0x9] sm:$0x7f] %vm1421, %v1413
      %s1423 = smul.u32 2, %s18
      %p1424 = scmp.lt.s32.totalorder %s1423, 3
      %s1425 = scalar_select %p1424, %s1423, 3
      %s1426 = smul.addr %s1425, 8
      %s1427 = scalar_lea.vmem %s7, %s1426
      // Predicated region
      $region49: #{residual_block_decoder_fwd.5} parent=47 // pred_check
        %p1428 = pneg %p193
      $region50: #{residual_block_decoder_fwd.5} parent=47 // pred_check_branch
        %1430 = sbr.rel (%p1428) target = $region52
      $region51: #{residual_block_decoder_fwd.5} parent=47 // pred_region
        %s1431 = smul.u32 2, %s18
      $region52: #{residual_block_decoder_fwd.5} parent=47 // pred_fallthru
        _
    $region48: #{residual_block_decoder_fwd.5} parent=5 // pred_fallthru
      _
    %p1432 = scmp.le.s32.totalorder 2, %s13
    // Predicated region
    $region53: #{residual_block_decoder_fwd.5} parent=5 // pred_check
      %p1433 = pneg %p1432
    $region54: #{residual_block_decoder_fwd.5} parent=5 // pred_check_branch
      %1435 = sbr.rel (%p1433) target = $region56
    $region55: #{residual_block_decoder_fwd.5} parent=5 // pred_region
      %s1436 = ssub.s32 %s13, 2
      // Predicated region
      $region57: #{residual_block_decoder_fwd.5} parent=55 // pred_check
        %p1437 = pneg %p199
      $region58: #{residual_block_decoder_fwd.5} parent=55 // pred_check_branch
        %1439 = sbr.rel (%p1437) target = $region60
      $region59: #{residual_block_decoder_fwd.5} parent=55 // pred_region
        %s1440 = smul.u32 2, %s19
        %p1441 = scmp.lt.s32.totalorder %s1440, 3
        %s1442 = scalar_select %p1441, %s1440, 3
        %s1443 = smul.addr %s1442, 8
        %s1444 = scalar_lea.vmem %s7, %s1443
      $region60: #{residual_block_decoder_fwd.5} parent=55 // pred_fallthru
        _
    $region56: #{residual_block_decoder_fwd.5} parent=5 // pred_fallthru
      _
  $region6: #{residual_block_decoder_fwd.5} parent=0 // loop_footer
    %s17 = sadd.s32 1, %s13
  $region7: #{residual_block_decoder_fwd.5} parent=0 // loop_footer_branch
    %12 = sbr.rel target = $region3
  $region8: #{residual_block_decoder_fwd.5} parent=0 // loop_exit
    _

// kernel: residual_block_decoder_fwd.4
$region0: #{residual_block_decoder_fwd.4}
  #allocation0 [shape = 'u32[]', space=smem, size = 0x4, offset = 0x4, fixed_abs, tag = 'smem constant byte address 0x4 - core index']
  #allocation1 [shape = 'u32[144,128]{1,0:T(1,128)}', space=vmem, size = 0x12000, scoped, tag = 'internal scratch']
  #allocation2 [shape = 'bf16[18,24,128]{2,1,0:T(8,128)(2,1)}', space=vmem, size = 0x1b000, scoped, tag = 'scratch operand']
  #allocation3 [shape = 'bf16[256,1152]{1,0:T(16,128)(2,1)}', space=vmem, size = 0x90000, scoped, tag = 'scratch operand']
  %s0 = inlined_call_operand.vmem [shape: bf16[2,256,128], index: 0, kind: input, shape index: {}]
  %s1 = inlined_call_operand.vmem [shape: f32[1,128], index: 1, kind: input, shape index: {}]
  %s2 = inlined_call_operand.vmem [shape: f32[1,128], index: 2, kind: input, shape index: {}]
  %s3 = inlined_call_operand.vmem [shape: bf16[1152,128], index: 3, kind: input, shape index: {}]
  %s4 = inlined_call_operand.vmem [shape: bf16[2,256,128], index: 4, kind: output, shape index: {0}]
  %s5 = inlined_call_operand.vmem [shape: f32[2,2,128], index: 5, kind: output, shape index: {1}]
  %6 = xla_tuple %s4, %s5
  %s7 = sld [smem:[#allocation0]]
  $region57: #{residual_block_decoder_fwd.4} parent=0
    _
  %s9 = ssub.s32 1, %s7
  %s10 = scalar_select 0, %s9, %s7
  loop: start=0, step=1, limit=4
  $region2: #{residual_block_decoder_fwd.4} parent=0 // loop_pre_header
    _
  $region3: #{residual_block_decoder_fwd.4} parent=0 // loop_header
    %s12 = sphi 0, %s16
    %p13 = scmp.ge.s32.totalorder %s12, 4
    %s22 = sphi 0, %s24
    %s25 = sphi 0, %s22
    %s26 = sphi 0, %s25
    %s42 = sphi 0, %s26
    %s46 = sphi 0, %s46
    %s48 = sphi 0, %s46
    %s49 = sphi 0, %s48
    %s63 = sphi 0, %s49
    %s67 = sphi 0, %s67
    %s69 = sphi 0, %s67
    %s70 = sphi 0, %s69
    %s84 = sphi 0, %s70
    %s88 = sphi 0, %s88
    %s90 = sphi 0, %s88
    %s91 = sphi 0, %s90
    %s105 = sphi 0, %s91
    %s111 = sphi 0, %s113
    %s114 = sphi 0, %s111
    %s115 = sphi 0, %s114
    %s131 = sphi 0, %s115
    %s137 = sphi 0, %s139
    %s140 = sphi 0, %s137
    %s141 = sphi 0, %s140
    %s157 = sphi 0, %s141
  $region4: #{residual_block_decoder_fwd.4} parent=0 // loop_header_branch
    %15 = sbr.rel (%p13) target = $region8
  $region5: #{residual_block_decoder_fwd.4} parent=0 // loop_body
    %s17 = ssub.s32 %s12, 1
    %s18 = ssub.s32 %s12, 2
    %s19 = sadd.s32 %s12, 1
    %s20 = ssub.s32 %s12, %s19
    %p21 = scmp.eq.s32.totalorder %s20, 0
    %s23 = sadd.s32 %s22, 1
    %s24 = scalar_select %p21, %s22, %s23
    %p27 = pneg %p21
    %p28 = scmp.eq.s32.totalorder %s12, 1
    %p29 = por %p27, %p28
    %p30 = scmp.ne.s32.totalorder %s22, %s25
    %p31 = scmp.eq.s32.totalorder %s12, 0
    %p32 = por %p30, %p31
    %p33 = scmp.ne.s32.totalorder %s22, %s25
    %p34 = scmp.eq.s32.totalorder %s17, 1
    %p35 = por %p33, %p34
    %p36 = scmp.ne.s32.totalorder %s25, %s26
    %p37 = scmp.eq.s32.totalorder %s17, 0
    %p38 = por %p36, %p37
    %p39 = scmp.ne.s32.totalorder %s25, %s26
    %p40 = scmp.eq.s32.totalorder %s18, 1
    %p41 = por %p39, %p40
    %p43 = scmp.ne.s32.totalorder %s26, %s42
    %p44 = scmp.eq.s32.totalorder %s18, 0
    %p45 = por %p43, %p44
    %s47 = sadd.s32 %s46, 1
    %p50 = scmp.eq.s32.totalorder %s12, 1
    %p51 = scmp.ne.s32.totalorder %s46, %s48
    %p52 = scmp.eq.s32.totalorder %s12, 0
    %p53 = por %p51, %p52
    %p54 = scmp.ne.s32.totalorder %s46, %s48
    %p55 = scmp.eq.s32.totalorder %s17, 1
    %p56 = por %p54, %p55
    %p57 = scmp.ne.s32.totalorder %s48, %s49
    %p58 = scmp.eq.s32.totalorder %s17, 0
    %p59 = por %p57, %p58
    %p60 = scmp.ne.s32.totalorder %s48, %s49
    %p61 = scmp.eq.s32.totalorder %s18, 1
    %p62 = por %p60, %p61
    %p64 = scmp.ne.s32.totalorder %s49, %s63
    %p65 = scmp.eq.s32.totalorder %s18, 0
    %p66 = por %p64, %p65
    %s68 = sadd.s32 %s67, 1
    %p71 = scmp.eq.s32.totalorder %s12, 1
    %p72 = scmp.ne.s32.totalorder %s67, %s69
    %p73 = scmp.eq.s32.totalorder %s12, 0
    %p74 = por %p72, %p73
    %p75 = scmp.ne.s32.totalorder %s67, %s69
    %p76 = scmp.eq.s32.totalorder %s17, 1
    %p77 = por %p75, %p76
    %p78 = scmp.ne.s32.totalorder %s69, %s70
    %p79 = scmp.eq.s32.totalorder %s17, 0
    %p80 = por %p78, %p79
    %p81 = scmp.ne.s32.totalorder %s69, %s70
    %p82 = scmp.eq.s32.totalorder %s18, 1
    %p83 = por %p81, %p82
    %p85 = scmp.ne.s32.totalorder %s70, %s84
    %p86 = scmp.eq.s32.totalorder %s18, 0
    %p87 = por %p85, %p86
    %s89 = sadd.s32 %s88, 1
    %p92 = scmp.eq.s32.totalorder %s12, 1
    %p93 = scmp.ne.s32.totalorder %s88, %s90
    %p94 = scmp.eq.s32.totalorder %s12, 0
    %p95 = por %p93, %p94
    %p96 = scmp.ne.s32.totalorder %s88, %s90
    %p97 = scmp.eq.s32.totalorder %s17, 1
    %p98 = por %p96, %p97
    %p99 = scmp.ne.s32.totalorder %s90, %s91
    %p100 = scmp.eq.s32.totalorder %s17, 0
    %p101 = por %p99, %p100
    %p102 = scmp.ne.s32.totalorder %s90, %s91
    %p103 = scmp.eq.s32.totalorder %s18, 1
    %p104 = por %p102, %p103
    %p106 = scmp.ne.s32.totalorder %s91, %s105
    %p107 = scmp.eq.s32.totalorder %s18, 0
    %p108 = por %p106, %p107
    %s109 = ssub.s32 %s12, %s19
    %p110 = scmp.eq.s32.totalorder %s109, 0
    %s112 = sadd.s32 %s111, 1
    %s113 = scalar_select %p110, %s111, %s112
    %p116 = pneg %p110
    %p117 = scmp.eq.s32.totalorder %s12, 1
    %p118 = por %p116, %p117
    %p119 = scmp.ne.s32.totalorder %s111, %s114
    %p120 = scmp.eq.s32.totalorder %s12, 0
    %p121 = por %p119, %p120
    %p122 = scmp.ne.s32.totalorder %s111, %s114
    %p123 = scmp.eq.s32.totalorder %s17, 1
    %p124 = por %p122, %p123
    %p125 = scmp.ne.s32.totalorder %s114, %s115
    %p126 = scmp.eq.s32.totalorder %s17, 0
    %p127 = por %p125, %p126
    %p128 = scmp.ne.s32.totalorder %s114, %s115
    %p129 = scmp.eq.s32.totalorder %s18, 1
    %p130 = por %p128, %p129
    %p132 = scmp.ne.s32.totalorder %s115, %s131
    %p133 = scmp.eq.s32.totalorder %s18, 0
    %p134 = por %p132, %p133
    %s135 = ssub.s32 %s12, %s19
    %p136 = scmp.eq.s32.totalorder %s135, 0
    %s138 = sadd.s32 %s137, 1
    %s139 = scalar_select %p136, %s137, %s138
    %p142 = pneg %p136
    %p143 = scmp.eq.s32.totalorder %s12, 1
    %p144 = por %p142, %p143
    %p145 = scmp.ne.s32.totalorder %s137, %s140
    %p146 = scmp.eq.s32.totalorder %s12, 0
    %p147 = por %p145, %p146
    %p148 = scmp.ne.s32.totalorder %s137, %s140
    %p149 = scmp.eq.s32.totalorder %s17, 1
    %p150 = por %p148, %p149
    %p151 = scmp.ne.s32.totalorder %s140, %s141
    %p152 = scmp.eq.s32.totalorder %s17, 0
    %p153 = por %p151, %p152
    %p154 = scmp.ne.s32.totalorder %s140, %s141
    %p155 = scmp.eq.s32.totalorder %s18, 1
    %p156 = por %p154, %p155
    %p158 = scmp.ne.s32.totalorder %s141, %s157
    %p159 = scmp.eq.s32.totalorder %s18, 0
    %p160 = por %p158, %p159
    %p161 = scmp.le.s32.totalorder 1, %s12
    %p162 = scmp.lt.s32.totalorder %s12, 3
    %p163 = pnand %p161, %p162
    %p164 = pneg %p163
    // Predicated region
    $region9: #{residual_block_decoder_fwd.4} parent=5 // pred_check
      _
    $region10: #{residual_block_decoder_fwd.4} parent=5 // pred_check_branch
      %166 = sbr.rel (%p163) target = $region12
    $region11: #{residual_block_decoder_fwd.4} parent=5 // pred_region
      %s167 = ssub.s32 %s12, 1
      // Predicated region
      $region13: #{residual_block_decoder_fwd.4} parent=11 // pred_check
        %p168 = pneg %p59
      $region14: #{residual_block_decoder_fwd.4} parent=11 // pred_check_branch
        %170 = sbr.rel (%p168) target = $region16
      $region15: #{residual_block_decoder_fwd.4} parent=11 // pred_region
        _
      $region16: #{residual_block_decoder_fwd.4} parent=11 // pred_fallthru
        _
      // Predicated region
      $region17: #{residual_block_decoder_fwd.4} parent=11 // pred_check
        %p171 = pneg %p80
      $region18: #{residual_block_decoder_fwd.4} parent=11 // pred_check_branch
        %173 = sbr.rel (%p171) target = $region20
      $region19: #{residual_block_decoder_fwd.4} parent=11 // pred_region
        _
      $region20: #{residual_block_decoder_fwd.4} parent=11 // pred_fallthru
        _
      // Predicated region
      $region21: #{residual_block_decoder_fwd.4} parent=11 // pred_check
        %p174 = pneg %p101
      $region22: #{residual_block_decoder_fwd.4} parent=11 // pred_check_branch
        %176 = sbr.rel (%p174) target = $region24
      $region23: #{residual_block_decoder_fwd.4} parent=11 // pred_region
        _
      $region24: #{residual_block_decoder_fwd.4} parent=11 // pred_fallthru
        _
    $region12: #{residual_block_decoder_fwd.4} parent=5 // pred_fallthru
      _
    %p177 = scmp.lt.s32.totalorder %s12, 2
    // Predicated region
    $region25: #{residual_block_decoder_fwd.4} parent=5 // pred_check
      %p178 = pneg %p177
    $region26: #{residual_block_decoder_fwd.4} parent=5 // pred_check_branch
      %180 = sbr.rel (%p178) target = $region28
    $region27: #{residual_block_decoder_fwd.4} parent=5 // pred_region
      // Predicated region
      $region29: #{residual_block_decoder_fwd.4} parent=27 // pred_check
        %p181 = pneg %p32
      $region30: #{residual_block_decoder_fwd.4} parent=27 // pred_check_branch
        %183 = sbr.rel (%p181) target = $region32
      $region31: #{residual_block_decoder_fwd.4} parent=27 // pred_region
        %p184 = scmp.lt.s32.totalorder %s12, 1
        %s185 = scalar_select %p184, %s12, 1
        %s186 = smul.addr %s185, 32
        %s187 = smul.addr %s186, 4
        %s188 = scalar_lea.vmem %s0, %s187
      $region32: #{residual_block_decoder_fwd.4} parent=27 // pred_fallthru
        _
    $region28: #{residual_block_decoder_fwd.4} parent=5 // pred_fallthru
      _
    %p189 = scmp.le.s32.totalorder 1, %s12
    %p190 = scmp.lt.s32.totalorder %s12, 3
    %p191 = pnand %p189, %p190
    %p192 = pneg %p191
    // Predicated region
    $region33: #{residual_block_decoder_fwd.4} parent=5 // pred_check
      _
    $region34: #{residual_block_decoder_fwd.4} parent=5 // pred_check_branch
      %194 = sbr.rel (%p191) target = $region36
    $region35: #{residual_block_decoder_fwd.4} parent=5 // pred_region
      %s195 = ssub.s32 %s12, 1
      %p196 = scmp.lt.s32.totalorder %s17, 1
      %s197 = scalar_select %p196, %s17, 1
      %s198 = smul.addr %s197, 32
      %s199 = smul.addr %s198, 4
      %s200 = scalar_lea.vmem %s0, %s199
      %p201 = pneg %p38
      %p202 = pneg %p35
      %p203 = pneg %p59
      %p204 = pneg %p56
      %p205 = pneg %p80
      %p206 = pneg %p77
      %p207 = pneg %p101
      %p208 = pneg %p98
      %p209 = pneg %p127
      %p210 = pneg %p124
      %p211 = scmp.lt.s32.totalorder %s17, 1
      %s212 = scalar_select %p211, %s17, 1
      %s213 = smul.addr %s212, 32
      %s214 = smul.addr %s213, 4
      %s215 = scalar_lea.vmem %s4, %s214
      %p216 = pneg %p153
      %p217 = pneg %p150
      %p218 = scmp.lt.s32.totalorder %s17, 1
      %s219 = scalar_select %p218, %s17, 1
      %s220 = smul.addr %s219, 2
      %s221 = scalar_lea.vmem %s5, %s220
      %p222 = scmp.lt.s32.totalorder %s17, 1
      %s223 = scalar_select %p222, %s17, 1
      %s224 = smul.addr %s223, 32
      %s225 = smul.addr %s224, 4
      %s226 = scalar_lea.vmem %s0, %s225
      %p227 = scmp.lt.s32.totalorder %s17, 1
      %s228 = scalar_select %p227, %s17, 1
      %s229 = smul.addr %s228, 32
      %s230 = smul.addr %s229, 4
      %s231 = scalar_lea.vmem %s4, %s230
      %p232 = scmp.lt.s32.totalorder %s17, 1
      %s233 = scalar_select %p232, %s17, 1
      %s234 = smul.addr %s233, 2
      %s235 = scalar_lea.vmem %s5, %s234
      %v237 = vld [vmem:[%s226] sm:$0xf]
      %v238 = vld [vmem:[%s226 + $0x4] sm:$0xf]
      %v239 = vld [vmem:[%s226 + $0x8] sm:$0xf]
      %v240 = vld [vmem:[%s226 + $0xc] sm:$0xf]
      %v241 = vld [vmem:[%s226 + $0x10] sm:$0xf]
      %v242 = vld [vmem:[%s226 + $0x14] sm:$0xf]
      %v243 = vld [vmem:[%s226 + $0x18] sm:$0xf]
      %v244 = vld [vmem:[%s226 + $0x1c] sm:$0xf]
      %v245 = vld [vmem:[%s226 + $0x20] sm:$0xf]
      %v246 = vld [vmem:[%s226 + $0x24] sm:$0xf]
      %v247 = vld [vmem:[%s226 + $0x28] sm:$0xf]
      %v248 = vld [vmem:[%s226 + $0x2c] sm:$0xf]
      %v249 = vld [vmem:[%s226 + $0x30] sm:$0xf]
      %v250 = vld [vmem:[%s226 + $0x34] sm:$0xf]
      %v251 = vld [vmem:[%s226 + $0x38] sm:$0xf]
      %v252 = vld [vmem:[%s226 + $0x3c] sm:$0xf]
      %v253 = vld [vmem:[%s226 + $0x40] sm:$0xf]
      %v254 = vld [vmem:[%s226 + $0x44] sm:$0xf]
      %v255 = vld [vmem:[%s226 + $0x48] sm:$0xf]
      %v256 = vld [vmem:[%s226 + $0x4c] sm:$0xf]
      %v257 = vld [vmem:[%s226 + $0x50] sm:$0xf]
      %v258 = vld [vmem:[%s226 + $0x54] sm:$0xf]
      %v259 = vld [vmem:[%s226 + $0x58] sm:$0xf]
      %v260 = vld [vmem:[%s226 + $0x5c] sm:$0xf]
      %v261 = vld [vmem:[%s226 + $0x60] sm:$0xf]
      %v262 = vld [vmem:[%s226 + $0x64] sm:$0xf]
      %v263 = vld [vmem:[%s226 + $0x68] sm:$0xf]
      %v264 = vld [vmem:[%s226 + $0x6c] sm:$0xf]
      %v265 = vld [vmem:[%s226 + $0x70] sm:$0xf]
      %v266 = vld [vmem:[%s226 + $0x74] sm:$0xf]
      %v267 = vld [vmem:[%s226 + $0x78] sm:$0xf]
      %v268 = vld [vmem:[%s226 + $0x7c] sm:$0xf]
      %v269 = vunpack.c.l.bf16 %v237
      %v270 = vunpack.c.l.bf16 %v238
      %v271 = vunpack.c.l.bf16 %v239
      %v272 = vunpack.c.l.bf16 %v240
      %v273 = vunpack.c.l.bf16 %v241
      %v274 = vunpack.c.l.bf16 %v242
      %v275 = vunpack.c.l.bf16 %v243
      %v276 = vunpack.c.l.bf16 %v244
      %v277 = vunpack.c.l.bf16 %v245
      %v278 = vunpack.c.l.bf16 %v246
      %v279 = vunpack.c.l.bf16 %v247
      %v280 = vunpack.c.l.bf16 %v248
      %v281 = vunpack.c.l.bf16 %v249
      %v282 = vunpack.c.l.bf16 %v250
      %v283 = vunpack.c.l.bf16 %v251
      %v284 = vunpack.c.l.bf16 %v252
      %v285 = vunpack.c.l.bf16 %v253
      %v286 = vunpack.c.l.bf16 %v254
      %v287 = vunpack.c.l.bf16 %v255
      %v288 = vunpack.c.l.bf16 %v256
      %v289 = vunpack.c.l.bf16 %v257
      %v290 = vunpack.c.l.bf16 %v258
      %v291 = vunpack.c.l.bf16 %v259
      %v292 = vunpack.c.l.bf16 %v260
      %v293 = vunpack.c.l.bf16 %v261
      %v294 = vunpack.c.l.bf16 %v262
      %v295 = vunpack.c.l.bf16 %v263
      %v296 = vunpack.c.l.bf16 %v264
      %v297 = vunpack.c.l.bf16 %v265
      %v298 = vunpack.c.l.bf16 %v266
      %v299 = vunpack.c.l.bf16 %v267
      %v300 = vunpack.c.l.bf16 %v268
      %v301 = vld [vmem:[%s1] sm:$0x1]
      %v303 = vlaneseq
      %v304 = vshrl.u32 %v303, 7
      %v305 = vsub.s32 0, %v304
      %v306 = vrot.slane %v301, %v305
      %v308 = vmul.f32 %v269, %v306
      %v309 = vmul.f32 %v270, %v306
      %v310 = vmul.f32 %v271, %v306
      %v311 = vmul.f32 %v272, %v306
      %v312 = vmul.f32 %v273, %v306
      %v313 = vmul.f32 %v274, %v306
      %v314 = vmul.f32 %v275, %v306
      %v315 = vmul.f32 %v276, %v306
      %v316 = vmul.f32 %v277, %v306
      %v317 = vmul.f32 %v278, %v306
      %v318 = vmul.f32 %v279, %v306
      %v319 = vmul.f32 %v280, %v306
      %v320 = vmul.f32 %v281, %v306
      %v321 = vmul.f32 %v282, %v306
      %v322 = vmul.f32 %v283, %v306
      %v323 = vmul.f32 %v284, %v306
      %v324 = vmul.f32 %v285, %v306
      %v325 = vmul.f32 %v286, %v306
      %v326 = vmul.f32 %v287, %v306
      %v327 = vmul.f32 %v288, %v306
      %v328 = vmul.f32 %v289, %v306
      %v329 = vmul.f32 %v290, %v306
      %v330 = vmul.f32 %v291, %v306
      %v331 = vmul.f32 %v292, %v306
      %v332 = vmul.f32 %v293, %v306
      %v333 = vmul.f32 %v294, %v306
      %v334 = vmul.f32 %v295, %v306
      %v335 = vmul.f32 %v296, %v306
      %v336 = vmul.f32 %v297, %v306
      %v337 = vmul.f32 %v298, %v306
      %v338 = vmul.f32 %v299, %v306
      %v339 = vmul.f32 %v300, %v306
      %v340 = vld [vmem:[%s2] sm:$0x1]
      %v342 = vlaneseq
      %v343 = vshrl.u32 %v342, 7
      %v344 = vsub.s32 0, %v343
      %v345 = vrot.slane %v340, %v344
      %v347 = vadd.f32 %v308, %v345
      %v348 = vadd.f32 %v309, %v345
      %v349 = vadd.f32 %v310, %v345
      %v350 = vadd.f32 %v311, %v345
      %v351 = vadd.f32 %v312, %v345
      %v352 = vadd.f32 %v313, %v345
      %v353 = vadd.f32 %v314, %v345
      %v354 = vadd.f32 %v315, %v345
      %v355 = vadd.f32 %v316, %v345
      %v356 = vadd.f32 %v317, %v345
      %v357 = vadd.f32 %v318, %v345
      %v358 = vadd.f32 %v319, %v345
      %v359 = vadd.f32 %v320, %v345
      %v360 = vadd.f32 %v321, %v345
      %v361 = vadd.f32 %v322, %v345
      %v362 = vadd.f32 %v323, %v345
      %v363 = vadd.f32 %v324, %v345
      %v364 = vadd.f32 %v325, %v345
      %v365 = vadd.f32 %v326, %v345
      %v366 = vadd.f32 %v327, %v345
      %v367 = vadd.f32 %v328, %v345
      %v368 = vadd.f32 %v329, %v345
      %v369 = vadd.f32 %v330, %v345
      %v370 = vadd.f32 %v331, %v345
      %v371 = vadd.f32 %v332, %v345
      %v372 = vadd.f32 %v333, %v345
      %v373 = vadd.f32 %v334, %v345
      %v374 = vadd.f32 %v335, %v345
      %v375 = vadd.f32 %v336, %v345
      %v376 = vadd.f32 %v337, %v345
      %v377 = vadd.f32 %v338, %v345
      %v378 = vadd.f32 %v339, %v345
      %v379 = vmax.f32 %v347, 0.0
      %v380 = vmax.f32 %v348, 0.0
      %v381 = vmax.f32 %v349, 0.0
      %v382 = vmax.f32 %v350, 0.0
      %v383 = vmax.f32 %v351, 0.0
      %v384 = vmax.f32 %v352, 0.0
      %v385 = vmax.f32 %v353, 0.0
      %v386 = vmax.f32 %v354, 0.0
      %v387 = vmax.f32 %v355, 0.0
      %v388 = vmax.f32 %v356, 0.0
      %v389 = vmax.f32 %v357, 0.0
      %v390 = vmax.f32 %v358, 0.0
      %v391 = vmax.f32 %v359, 0.0
      %v392 = vmax.f32 %v360, 0.0
      %v393 = vmax.f32 %v361, 0.0
      %v394 = vmax.f32 %v362, 0.0
      %v395 = vmax.f32 %v363, 0.0
      %v396 = vmax.f32 %v364, 0.0
      %v397 = vmax.f32 %v365, 0.0
      %v398 = vmax.f32 %v366, 0.0
      %v399 = vmax.f32 %v367, 0.0
      %v400 = vmax.f32 %v368, 0.0
      %v401 = vmax.f32 %v369, 0.0
      %v402 = vmax.f32 %v370, 0.0
      %v403 = vmax.f32 %v371, 0.0
      %v404 = vmax.f32 %v372, 0.0
      %v405 = vmax.f32 %v373, 0.0
      %v406 = vmax.f32 %v374, 0.0
      %v407 = vmax.f32 %v375, 0.0
      %v408 = vmax.f32 %v376, 0.0
      %v409 = vmax.f32 %v377, 0.0
      %v410 = vmax.f32 %v378, 0.0
      %411 = vst [vmem:[#allocation2] sm:$0xf] 0
      %412 = vst [vmem:[#allocation2 + $0x4] sm:$0xf] 0
      %413 = vst [vmem:[#allocation2 + $0x8] sm:$0xf] 0
      %s414 = scalar_lea.vmem [#allocation2], 204
      %415 = vst [vmem:[%s414] sm:$0xf] 0
      %416 = vst [vmem:[%s414 + $0x4] sm:$0xf] 0
      %417 = vst [vmem:[%s414 + $0x8] sm:$0xf] 0
      %s418 = scalar_lea.vmem [#allocation2], 12
      %vm419 = vcmask 1040384
      %vm420 = vsmask.f32 256
      %vm421 = vmand %vm419, %vm420
      %v422 = vld [vmem:[%s418] sm:$0x1]
      %v423 = vsel %vm421, 0, %v422
      %424 = vst [vmem:[%s418] sm:$0x1] %v423
      %v425 = vld [vmem:[%s418 + $0xc] sm:$0x1]
      %v426 = vsel %vm421, 0, %v425
      %427 = vst [vmem:[%s418 + $0xc] sm:$0x1] %v426
      %v428 = vld [vmem:[%s418 + $0x18] sm:$0x1]
      %v429 = vsel %vm421, 0, %v428
      %430 = vst [vmem:[%s418 + $0x18] sm:$0x1] %v429
      %v431 = vld [vmem:[%s418 + $0x24] sm:$0x1]
      %v432 = vsel %vm421, 0, %v431
      %433 = vst [vmem:[%s418 + $0x24] sm:$0x1] %v432
      %v434 = vld [vmem:[%s418 + $0x30] sm:$0x1]
      %v435 = vsel %vm421, 0, %v434
      %436 = vst [vmem:[%s418 + $0x30] sm:$0x1] %v435
      %v437 = vld [vmem:[%s418 + $0x3c] sm:$0x1]
      %v438 = vsel %vm421, 0, %v437
      %439 = vst [vmem:[%s418 + $0x3c] sm:$0x1] %v438
      %v440 = vld [vmem:[%s418 + $0x48] sm:$0x1]
      %v441 = vsel %vm421, 0, %v440
      %442 = vst [vmem:[%s418 + $0x48] sm:$0x1] %v441
      %v443 = vld [vmem:[%s418 + $0x54] sm:$0x1]
      %v444 = vsel %vm421, 0, %v443
      %445 = vst [vmem:[%s418 + $0x54] sm:$0x1] %v444
      %v446 = vld [vmem:[%s418 + $0x60] sm:$0x1]
      %v447 = vsel %vm421, 0, %v446
      %448 = vst [vmem:[%s418 + $0x60] sm:$0x1] %v447
      %v449 = vld [vmem:[%s418 + $0x6c] sm:$0x1]
      %v450 = vsel %vm421, 0, %v449
      %451 = vst [vmem:[%s418 + $0x6c] sm:$0x1] %v450
      %v452 = vld [vmem:[%s418 + $0x78] sm:$0x1]
      %v453 = vsel %vm421, 0, %v452
      %454 = vst [vmem:[%s418 + $0x78] sm:$0x1] %v453
      %v455 = vld [vmem:[%s418 + $0x84] sm:$0x1]
      %v456 = vsel %vm421, 0, %v455
      %457 = vst [vmem:[%s418 + $0x84] sm:$0x1] %v456
      %v458 = vld [vmem:[%s418 + $0x90] sm:$0x1]
      %v459 = vsel %vm421, 0, %v458
      %460 = vst [vmem:[%s418 + $0x90] sm:$0x1] %v459
      %v461 = vld [vmem:[%s418 + $0x9c] sm:$0x1]
      %v462 = vsel %vm421, 0, %v461
      %463 = vst [vmem:[%s418 + $0x9c] sm:$0x1] %v462
      %v464 = vld [vmem:[%s418 + $0xa8] sm:$0x1]
      %v465 = vsel %vm421, 0, %v464
      %466 = vst [vmem:[%s418 + $0xa8] sm:$0x1] %v465
      %v467 = vld [vmem:[%s418 + $0xb4] sm:$0x1]
      %v468 = vsel %vm421, 0, %v467
      %469 = vst [vmem:[%s418 + $0xb4] sm:$0x1] %v468
      %vm470 = vsmask.f32 7938
      %vm471 = vmand %vm419, %vm470
      %v472 = vld [vmem:[%s418 + $0x8] sm:$0x1]
      %v473 = vsel %vm471, 0, %v472
      %474 = vst [vmem:[%s418 + $0x8] sm:$0x1] %v473
      %v475 = vld [vmem:[%s418 + $0x14] sm:$0x1]
      %v476 = vsel %vm471, 0, %v475
      %477 = vst [vmem:[%s418 + $0x14] sm:$0x1] %v476
      %v478 = vld [vmem:[%s418 + $0x20] sm:$0x1]
      %v479 = vsel %vm471, 0, %v478
      %480 = vst [vmem:[%s418 + $0x20] sm:$0x1] %v479
      %v481 = vld [vmem:[%s418 + $0x2c] sm:$0x1]
      %v482 = vsel %vm471, 0, %v481
      %483 = vst [vmem:[%s418 + $0x2c] sm:$0x1] %v482
      %v484 = vld [vmem:[%s418 + $0x38] sm:$0x1]
      %v485 = vsel %vm471, 0, %v484
      %486 = vst [vmem:[%s418 + $0x38] sm:$0x1] %v485
      %v487 = vld [vmem:[%s418 + $0x44] sm:$0x1]
      %v488 = vsel %vm471, 0, %v487
      %489 = vst [vmem:[%s418 + $0x44] sm:$0x1] %v488
      %v490 = vld [vmem:[%s418 + $0x50] sm:$0x1]
      %v491 = vsel %vm471, 0, %v490
      %492 = vst [vmem:[%s418 + $0x50] sm:$0x1] %v491
      %v493 = vld [vmem:[%s418 + $0x5c] sm:$0x1]
      %v494 = vsel %vm471, 0, %v493
      %495 = vst [vmem:[%s418 + $0x5c] sm:$0x1] %v494
      %v496 = vld [vmem:[%s418 + $0x68] sm:$0x1]
      %v497 = vsel %vm471, 0, %v496
      %498 = vst [vmem:[%s418 + $0x68] sm:$0x1] %v497
      %v499 = vld [vmem:[%s418 + $0x74] sm:$0x1]
      %v500 = vsel %vm471, 0, %v499
      %501 = vst [vmem:[%s418 + $0x74] sm:$0x1] %v500
      %v502 = vld [vmem:[%s418 + $0x80] sm:$0x1]
      %v503 = vsel %vm471, 0, %v502
      %504 = vst [vmem:[%s418 + $0x80] sm:$0x1] %v503
      %v505 = vld [vmem:[%s418 + $0x8c] sm:$0x1]
      %v506 = vsel %vm471, 0, %v505
      %507 = vst [vmem:[%s418 + $0x8c] sm:$0x1] %v506
      %v508 = vld [vmem:[%s418 + $0x98] sm:$0x1]
      %v509 = vsel %vm471, 0, %v508
      %510 = vst [vmem:[%s418 + $0x98] sm:$0x1] %v509
      %v511 = vld [vmem:[%s418 + $0xa4] sm:$0x1]
      %v512 = vsel %vm471, 0, %v511
      %513 = vst [vmem:[%s418 + $0xa4] sm:$0x1] %v512
      %v514 = vld [vmem:[%s418 + $0xb0] sm:$0x1]
      %v515 = vsel %vm471, 0, %v514
      %516 = vst [vmem:[%s418 + $0xb0] sm:$0x1] %v515
      %v517 = vld [vmem:[%s418 + $0xbc] sm:$0x1]
      %v518 = vsel %vm471, 0, %v517
      %519 = vst [vmem:[%s418 + $0xbc] sm:$0x1] %v518
      %v520 = vpack.c.bf16 %v380, %v379
      %v521 = vpack.c.bf16 %v382, %v381
      %v522 = vpack.c.bf16 %v384, %v383
      %v523 = vpack.c.bf16 %v386, %v385
      %v524 = vpack.c.bf16 %v388, %v387
      %v525 = vpack.c.bf16 %v390, %v389
      %v526 = vpack.c.bf16 %v392, %v391
      %v527 = vpack.c.bf16 %v394, %v393
      %v528 = vpack.c.bf16 %v396, %v395
      %v529 = vpack.c.bf16 %v398, %v397
      %v530 = vpack.c.bf16 %v400, %v399
      %v531 = vpack.c.bf16 %v402, %v401
      %v532 = vpack.c.bf16 %v404, %v403
      %v533 = vpack.c.bf16 %v406, %v405
      %v534 = vpack.c.bf16 %v408, %v407
      %v535 = vpack.c.bf16 %v410, %v409
      %v552 = vunpack.c.l.b16 %v520
      %v553 = vunpack.c.h.b16 %v520
      %v554 = vunpack.c.l.b16 %v521
      %v555 = vunpack.c.h.b16 %v521
      %v556 = vunpack.c.l.b16 %v522
      %v557 = vunpack.c.h.b16 %v522
      %v558 = vunpack.c.l.b16 %v523
      %v559 = vunpack.c.h.b16 %v523
      %v560 = vunpack.c.l.b16 %v524
      %v561 = vunpack.c.h.b16 %v524
      %v562 = vunpack.c.l.b16 %v525
      %v563 = vunpack.c.h.b16 %v525
      %v564 = vunpack.c.l.b16 %v526
      %v565 = vunpack.c.h.b16 %v526
      %v566 = vunpack.c.l.b16 %v527
      %v567 = vunpack.c.h.b16 %v527
      %v568 = vunpack.c.l.b16 %v528
      %v569 = vunpack.c.h.b16 %v528
      %v570 = vunpack.c.l.b16 %v529
      %v571 = vunpack.c.h.b16 %v529
      %v572 = vunpack.c.l.b16 %v530
      %v573 = vunpack.c.h.b16 %v530
      %v574 = vunpack.c.l.b16 %v531
      %v575 = vunpack.c.h.b16 %v531
      %v576 = vunpack.c.l.b16 %v532
      %v577 = vunpack.c.h.b16 %v532
      %v578 = vunpack.c.l.b16 %v533
      %v579 = vunpack.c.h.b16 %v533
      %v580 = vunpack.c.l.b16 %v534
      %v581 = vunpack.c.h.b16 %v534
      %v582 = vunpack.c.l.b16 %v535
      %v583 = vunpack.c.h.b16 %v535
      %v584 = vpack.c.b16 %v552, %v552
      %v585 = vpack.c.b16 %v553, %v553
      %v586 = vpack.c.b16 %v554, %v554
      %v587 = vpack.c.b16 %v555, %v555
      %v588 = vpack.c.b16 %v556, %v556
      %v589 = vpack.c.b16 %v557, %v557
      %v590 = vpack.c.b16 %v558, %v558
      %v591 = vpack.c.b16 %v559, %v559
      %v592 = vpack.c.b16 %v560, %v560
      %v593 = vpack.c.b16 %v561, %v561
      %v594 = vpack.c.b16 %v562, %v562
      %v595 = vpack.c.b16 %v563, %v563
      %v596 = vpack.c.b16 %v564, %v564
      %v597 = vpack.c.b16 %v565, %v565
      %v598 = vpack.c.b16 %v566, %v566
      %v599 = vpack.c.b16 %v567, %v567
      %v600 = vpack.c.b16 %v568, %v568
      %v601 = vpack.c.b16 %v569, %v569
      %v602 = vpack.c.b16 %v570, %v570
      %v603 = vpack.c.b16 %v571, %v571
      %v604 = vpack.c.b16 %v572, %v572
      %v605 = vpack.c.b16 %v573, %v573
      %v606 = vpack.c.b16 %v574, %v574
      %v607 = vpack.c.b16 %v575, %v575
      %v608 = vpack.c.b16 %v576, %v576
      %v609 = vpack.c.b16 %v577, %v577
      %v610 = vpack.c.b16 %v578, %v578
      %v611 = vpack.c.b16 %v579, %v579
      %v612 = vpack.c.b16 %v580, %v580
      %v613 = vpack.c.b16 %v581, %v581
      %v614 = vpack.c.b16 %v582, %v582
      %v615 = vpack.c.b16 %v583, %v583
      %vm616 = vsmask.f32 4368
      %vm617 = vmor %vm420, %vm616
      %v619 = vshrl.u32 %v584, 16
      %v621 = vrot.slane %v619, 7
      %v622 = vshll.u32 %v584, 16
      %v624 = vor.u32 %v621, %v622
      %v625 = vrot.slane %v621, 4
      %v627 = vshrl.u32 %v585, 16
      %v629 = vrot.slane %v627, 7
      %v630 = vshll.u32 %v585, 16
      %v632 = vor.u32 %v629, %v630
      %v633 = vsel %vm617, %v625, %v632
      %v634 = vrot.slane %v629, 4
      %v636 = vshrl.u32 %v586, 16
      %v638 = vrot.slane %v636, 7
      %v639 = vshll.u32 %v586, 16
      %v641 = vor.u32 %v638, %v639
      %v642 = vrot.slane %v638, 4
      %v644 = vshrl.u32 %v587, 16
      %v646 = vrot.slane %v644, 7
      %v647 = vshll.u32 %v587, 16
      %v649 = vor.u32 %v646, %v647
      %v650 = vsel %vm617, %v642, %v649
      %v651 = vrot.slane %v646, 4
      %v653 = vshrl.u32 %v588, 16
      %v655 = vrot.slane %v653, 7
      %v656 = vshll.u32 %v588, 16
      %v658 = vor.u32 %v655, %v656
      %v659 = vrot.slane %v655, 4
      %v661 = vshrl.u32 %v589, 16
      %v663 = vrot.slane %v661, 7
      %v664 = vshll.u32 %v589, 16
      %v666 = vor.u32 %v663, %v664
      %v667 = vsel %vm617, %v659, %v666
      %v668 = vrot.slane %v663, 4
      %v670 = vshrl.u32 %v590, 16
      %v672 = vrot.slane %v670, 7
      %v673 = vshll.u32 %v590, 16
      %v675 = vor.u32 %v672, %v673
      %v676 = vrot.slane %v672, 4
      %v678 = vshrl.u32 %v591, 16
      %v680 = vrot.slane %v678, 7
      %v681 = vshll.u32 %v591, 16
      %v683 = vor.u32 %v680, %v681
      %v684 = vsel %vm617, %v676, %v683
      %v685 = vrot.slane %v680, 4
      %v687 = vshrl.u32 %v592, 16
      %v689 = vrot.slane %v687, 7
      %v690 = vshll.u32 %v592, 16
      %v692 = vor.u32 %v689, %v690
      %v693 = vrot.slane %v689, 4
      %v695 = vshrl.u32 %v593, 16
      %v697 = vrot.slane %v695, 7
      %v698 = vshll.u32 %v593, 16
      %v700 = vor.u32 %v697, %v698
      %v701 = vsel %vm617, %v693, %v700
      %v702 = vrot.slane %v697, 4
      %v704 = vshrl.u32 %v594, 16
      %v706 = vrot.slane %v704, 7
      %v707 = vshll.u32 %v594, 16
      %v709 = vor.u32 %v706, %v707
      %v710 = vrot.slane %v706, 4
      %v712 = vshrl.u32 %v595, 16
      %v714 = vrot.slane %v712, 7
      %v715 = vshll.u32 %v595, 16
      %v717 = vor.u32 %v714, %v715
      %v718 = vsel %vm617, %v710, %v717
      %v719 = vrot.slane %v714, 4
      %v721 = vshrl.u32 %v596, 16
      %v723 = vrot.slane %v721, 7
      %v724 = vshll.u32 %v596, 16
      %v726 = vor.u32 %v723, %v724
      %v727 = vrot.slane %v723, 4
      %v729 = vshrl.u32 %v597, 16
      %v731 = vrot.slane %v729, 7
      %v732 = vshll.u32 %v597, 16
      %v734 = vor.u32 %v731, %v732
      %v735 = vsel %vm617, %v727, %v734
      %v736 = vrot.slane %v731, 4
      %v738 = vshrl.u32 %v598, 16
      %v740 = vrot.slane %v738, 7
      %v741 = vshll.u32 %v598, 16
      %v743 = vor.u32 %v740, %v741
      %v744 = vrot.slane %v740, 4
      %v746 = vshrl.u32 %v599, 16
      %v748 = vrot.slane %v746, 7
      %v749 = vshll.u32 %v599, 16
      %v751 = vor.u32 %v748, %v749
      %v752 = vsel %vm617, %v744, %v751
      %v753 = vrot.slane %v748, 4
      %v755 = vshrl.u32 %v600, 16
      %v757 = vrot.slane %v755, 7
      %v758 = vshll.u32 %v600, 16
      %v760 = vor.u32 %v757, %v758
      %v761 = vrot.slane %v757, 4
      %v763 = vshrl.u32 %v601, 16
      %v765 = vrot.slane %v763, 7
      %v766 = vshll.u32 %v601, 16
      %v768 = vor.u32 %v765, %v766
      %v769 = vsel %vm617, %v761, %v768
      %v770 = vrot.slane %v765, 4
      %v772 = vshrl.u32 %v602, 16
      %v774 = vrot.slane %v772, 7
      %v775 = vshll.u32 %v602, 16
      %v777 = vor.u32 %v774, %v775
      %v778 = vrot.slane %v774, 4
      %v780 = vshrl.u32 %v603, 16
      %v782 = vrot.slane %v780, 7
      %v783 = vshll.u32 %v603, 16
      %v785 = vor.u32 %v782, %v783
      %v786 = vsel %vm617, %v778, %v785
      %v787 = vrot.slane %v782, 4
      %v789 = vshrl.u32 %v604, 16
      %v791 = vrot.slane %v789, 7
      %v792 = vshll.u32 %v604, 16
      %v794 = vor.u32 %v791, %v792
      %v795 = vrot.slane %v791, 4
      %v797 = vshrl.u32 %v605, 16
      %v799 = vrot.slane %v797, 7
      %v800 = vshll.u32 %v605, 16
      %v802 = vor.u32 %v799, %v800
      %v803 = vsel %vm617, %v795, %v802
      %v804 = vrot.slane %v799, 4
      %v806 = vshrl.u32 %v606, 16
      %v808 = vrot.slane %v806, 7
      %v809 = vshll.u32 %v606, 16
      %v811 = vor.u32 %v808, %v809
      %v812 = vrot.slane %v808, 4
      %v814 = vshrl.u32 %v607, 16
      %v816 = vrot.slane %v814, 7
      %v817 = vshll.u32 %v607, 16
      %v819 = vor.u32 %v816, %v817
      %v820 = vsel %vm617, %v812, %v819
      %v821 = vrot.slane %v816, 4
      %v823 = vshrl.u32 %v608, 16
      %v825 = vrot.slane %v823, 7
      %v826 = vshll.u32 %v608, 16
      %v828 = vor.u32 %v825, %v826
      %v829 = vrot.slane %v825, 4
      %v831 = vshrl.u32 %v609, 16
      %v833 = vrot.slane %v831, 7
      %v834 = vshll.u32 %v609, 16
      %v836 = vor.u32 %v833, %v834
      %v837 = vsel %vm617, %v829, %v836
      %v838 = vrot.slane %v833, 4
      %v840 = vshrl.u32 %v610, 16
      %v842 = vrot.slane %v840, 7
      %v843 = vshll.u32 %v610, 16
      %v845 = vor.u32 %v842, %v843
      %v846 = vrot.slane %v842, 4
      %v848 = vshrl.u32 %v611, 16
      %v850 = vrot.slane %v848, 7
      %v851 = vshll.u32 %v611, 16
      %v853 = vor.u32 %v850, %v851
      %v854 = vsel %vm617, %v846, %v853
      %v855 = vrot.slane %v850, 4
      %v857 = vshrl.u32 %v612, 16
      %v859 = vrot.slane %v857, 7
      %v860 = vshll.u32 %v612, 16
      %v862 = vor.u32 %v859, %v860
      %v863 = vrot.slane %v859, 4
      %v865 = vshrl.u32 %v613, 16
      %v867 = vrot.slane %v865, 7
      %v868 = vshll.u32 %v613, 16
      %v870 = vor.u32 %v867, %v868
      %v871 = vsel %vm617, %v863, %v870
      %v872 = vrot.slane %v867, 4
      %v874 = vshrl.u32 %v614, 16
      %v876 = vrot.slane %v874, 7
      %v877 = vshll.u32 %v614, 16
      %v879 = vor.u32 %v876, %v877
      %v880 = vrot.slane %v876, 4
      %v882 = vshrl.u32 %v615, 16
      %v884 = vrot.slane %v882, 7
      %v885 = vshll.u32 %v615, 16
      %v887 = vor.u32 %v884, %v885
      %v888 = vsel %vm617, %v880, %v887
      %v889 = vrot.slane %v884, 4
      %vm938 = vcmask 1043456
      %vm939 = vmand %vm938, %vm470
      %v940 = vld [vmem:[%s418] sm:$0xf]
      %v941 = vsel %vm939, %v624, %v940
      %942 = vst [vmem:[%s418] sm:$0xf] %v941
      %943 = vst [vmem:[%s418 + $0x4] sm:$0xf] %v633
      %v944 = vld [vmem:[%s418 + $0x8] sm:$0x1]
      %v945 = vsel %vm421, %v634, %v944
      %946 = vst [vmem:[%s418 + $0x8] sm:$0x1] %v945
      %v947 = vld [vmem:[%s418 + $0xc] sm:$0xf]
      %v948 = vsel %vm939, %v641, %v947
      %949 = vst [vmem:[%s418 + $0xc] sm:$0xf] %v948
      %950 = vst [vmem:[%s418 + $0x10] sm:$0xf] %v650
      %v951 = vld [vmem:[%s418 + $0x14] sm:$0x1]
      %v952 = vsel %vm421, %v651, %v951
      %953 = vst [vmem:[%s418 + $0x14] sm:$0x1] %v952
      %v954 = vld [vmem:[%s418 + $0x18] sm:$0xf]
      %v955 = vsel %vm939, %v658, %v954
      %956 = vst [vmem:[%s418 + $0x18] sm:$0xf] %v955
      %957 = vst [vmem:[%s418 + $0x1c] sm:$0xf] %v667
      %v958 = vld [vmem:[%s418 + $0x20] sm:$0x1]
      %v959 = vsel %vm421, %v668, %v958
      %960 = vst [vmem:[%s418 + $0x20] sm:$0x1] %v959
      %v961 = vld [vmem:[%s418 + $0x24] sm:$0xf]
      %v962 = vsel %vm939, %v675, %v961
      %963 = vst [vmem:[%s418 + $0x24] sm:$0xf] %v962
      %964 = vst [vmem:[%s418 + $0x28] sm:$0xf] %v684
      %v965 = vld [vmem:[%s418 + $0x2c] sm:$0x1]
      %v966 = vsel %vm421, %v685, %v965
      %967 = vst [vmem:[%s418 + $0x2c] sm:$0x1] %v966
      %v968 = vld [vmem:[%s418 + $0x30] sm:$0xf]
      %v969 = vsel %vm939, %v692, %v968
      %970 = vst [vmem:[%s418 + $0x30] sm:$0xf] %v969
      %971 = vst [vmem:[%s418 + $0x34] sm:$0xf] %v701
      %v972 = vld [vmem:[%s418 + $0x38] sm:$0x1]
      %v973 = vsel %vm421, %v702, %v972
      %974 = vst [vmem:[%s418 + $0x38] sm:$0x1] %v973
      %v975 = vld [vmem:[%s418 + $0x3c] sm:$0xf]
      %v976 = vsel %vm939, %v709, %v975
      %977 = vst [vmem:[%s418 + $0x3c] sm:$0xf] %v976
      %978 = vst [vmem:[%s418 + $0x40] sm:$0xf] %v718
      %v979 = vld [vmem:[%s418 + $0x44] sm:$0x1]
      %v980 = vsel %vm421, %v719, %v979
      %981 = vst [vmem:[%s418 + $0x44] sm:$0x1] %v980
      %v982 = vld [vmem:[%s418 + $0x48] sm:$0xf]
      %v983 = vsel %vm939, %v726, %v982
      %984 = vst [vmem:[%s418 + $0x48] sm:$0xf] %v983
      %985 = vst [vmem:[%s418 + $0x4c] sm:$0xf] %v735
      %v986 = vld [vmem:[%s418 + $0x50] sm:$0x1]
      %v987 = vsel %vm421, %v736, %v986
      %988 = vst [vmem:[%s418 + $0x50] sm:$0x1] %v987
      %v989 = vld [vmem:[%s418 + $0x54] sm:$0xf]
      %v990 = vsel %vm939, %v743, %v989
      %991 = vst [vmem:[%s418 + $0x54] sm:$0xf] %v990
      %992 = vst [vmem:[%s418 + $0x58] sm:$0xf] %v752
      %v993 = vld [vmem:[%s418 + $0x5c] sm:$0x1]
      %v994 = vsel %vm421, %v753, %v993
      %995 = vst [vmem:[%s418 + $0x5c] sm:$0x1] %v994
      %v996 = vld [vmem:[%s418 + $0x60] sm:$0xf]
      %v997 = vsel %vm939, %v760, %v996
      %998 = vst [vmem:[%s418 + $0x60] sm:$0xf] %v997
      %999 = vst [vmem:[%s418 + $0x64] sm:$0xf] %v769
      %v1000 = vld [vmem:[%s418 + $0x68] sm:$0x1]
      %v1001 = vsel %vm421, %v770, %v1000
      %1002 = vst [vmem:[%s418 + $0x68] sm:$0x1] %v1001
      %v1003 = vld [vmem:[%s418 + $0x6c] sm:$0xf]
      %v1004 = vsel %vm939, %v777, %v1003
      %1005 = vst [vmem:[%s418 + $0x6c] sm:$0xf] %v1004
      %1006 = vst [vmem:[%s418 + $0x70] sm:$0xf] %v786
      %v1007 = vld [vmem:[%s418 + $0x74] sm:$0x1]
      %v1008 = vsel %vm421, %v787, %v1007
      %1009 = vst [vmem:[%s418 + $0x74] sm:$0x1] %v1008
      %v1010 = vld [vmem:[%s418 + $0x78] sm:$0xf]
      %v1011 = vsel %vm939, %v794, %v1010
      %1012 = vst [vmem:[%s418 + $0x78] sm:$0xf] %v1011
      %1013 = vst [vmem:[%s418 + $0x7c] sm:$0xf] %v803
      %v1014 = vld [vmem:[%s418 + $0x80] sm:$0x1]
      %v1015 = vsel %vm421, %v804, %v1014
      %1016 = vst [vmem:[%s418 + $0x80] sm:$0x1] %v1015
      %v1017 = vld [vmem:[%s418 + $0x84] sm:$0xf]
      %v1018 = vsel %vm939, %v811, %v1017
      %1019 = vst [vmem:[%s418 + $0x84] sm:$0xf] %v1018
      %1020 = vst [vmem:[%s418 + $0x88] sm:$0xf] %v820
      %v1021 = vld [vmem:[%s418 + $0x8c] sm:$0x1]
      %v1022 = vsel %vm421, %v821, %v1021
      %1023 = vst [vmem:[%s418 + $0x8c] sm:$0x1] %v1022
      %v1024 = vld [vmem:[%s418 + $0x90] sm:$0xf]
      %v1025 = vsel %vm939, %v828, %v1024
      %1026 = vst [vmem:[%s418 + $0x90] sm:$0xf] %v1025
      %1027 = vst [vmem:[%s418 + $0x94] sm:$0xf] %v837
      %v1028 = vld [vmem:[%s418 + $0x98] sm:$0x1]
      %v1029 = vsel %vm421, %v838, %v1028
      %1030 = vst [vmem:[%s418 + $0x98] sm:$0x1] %v1029
      %v1031 = vld [vmem:[%s418 + $0x9c] sm:$0xf]
      %v1032 = vsel %vm939, %v845, %v1031
      %1033 = vst [vmem:[%s418 + $0x9c] sm:$0xf] %v1032
      %1034 = vst [vmem:[%s418 + $0xa0] sm:$0xf] %v854
      %v1035 = vld [vmem:[%s418 + $0xa4] sm:$0x1]
      %v1036 = vsel %vm421, %v855, %v1035
      %1037 = vst [vmem:[%s418 + $0xa4] sm:$0x1] %v1036
      %v1038 = vld [vmem:[%s418 + $0xa8] sm:$0xf]
      %v1039 = vsel %vm939, %v862, %v1038
      %1040 = vst [vmem:[%s418 + $0xa8] sm:$0xf] %v1039
      %1041 = vst [vmem:[%s418 + $0xac] sm:$0xf] %v871
      %v1042 = vld [vmem:[%s418 + $0xb0] sm:$0x1]
      %v1043 = vsel %vm421, %v872, %v1042
      %1044 = vst [vmem:[%s418 + $0xb0] sm:$0x1] %v1043
      %v1045 = vld [vmem:[%s418 + $0xb4] sm:$0xf]
      %v1046 = vsel %vm939, %v879, %v1045
      %1047 = vst [vmem:[%s418 + $0xb4] sm:$0xf] %v1046
      %1048 = vst [vmem:[%s418 + $0xb8] sm:$0xf] %v888
      %v1049 = vld [vmem:[%s418 + $0xbc] sm:$0x1]
      %v1050 = vsel %vm421, %v889, %v1049
      %1051 = vst [vmem:[%s418 + $0xbc] sm:$0x1] %v1050
      %v1052 = vld [vmem:[#allocation2] sm:$0xf]
      %v1053 = vld [vmem:[#allocation2 + $0x4] sm:$0xf]
      %v1054 = vld [vmem:[#allocation2 + $0xc] sm:$0xf]
      %v1055 = vld [vmem:[#allocation2 + $0x10] sm:$0xf]
      %v1056 = vld [vmem:[#allocation2 + $0x18] sm:$0xf]
      %v1057 = vld [vmem:[#allocation2 + $0x1c] sm:$0xf]
      %v1058 = vld [vmem:[#allocation2 + $0x24] sm:$0xf]
      %v1059 = vld [vmem:[#allocation2 + $0x28] sm:$0xf]
      %v1060 = vld [vmem:[#allocation2 + $0x30] sm:$0xf]
      %v1061 = vld [vmem:[#allocation2 + $0x34] sm:$0xf]
      %v1062 = vld [vmem:[#allocation2 + $0x3c] sm:$0xf]
      %v1063 = vld [vmem:[#allocation2 + $0x40] sm:$0xf]
      %v1064 = vld [vmem:[#allocation2 + $0x48] sm:$0xf]
      %v1065 = vld [vmem:[#allocation2 + $0x4c] sm:$0xf]
      %v1066 = vld [vmem:[#allocation2 + $0x54] sm:$0xf]
      %v1067 = vld [vmem:[#allocation2 + $0x58] sm:$0xf]
      %v1068 = vld [vmem:[#allocation2 + $0x60] sm:$0xf]
      %v1069 = vld [vmem:[#allocation2 + $0x64] sm:$0xf]
      %v1070 = vld [vmem:[#allocation2 + $0x6c] sm:$0xf]
      %v1071 = vld [vmem:[#allocation2 + $0x70] sm:$0xf]
      %v1072 = vld [vmem:[#allocation2 + $0x78] sm:$0xf]
      %v1073 = vld [vmem:[#allocation2 + $0x7c] sm:$0xf]
      %v1074 = vld [vmem:[#allocation2 + $0x84] sm:$0xf]
      %v1075 = vld [vmem:[#allocation2 + $0x88] sm:$0xf]
      %v1076 = vld [vmem:[#allocation2 + $0x90] sm:$0xf]
      %v1077 = vld [vmem:[#allocation2 + $0x94] sm:$0xf]
      %v1078 = vld [vmem:[#allocation2 + $0x9c] sm:$0xf]
      %v1079 = vld [vmem:[#allocation2 + $0xa0] sm:$0xf]
      %v1080 = vld [vmem:[#allocation2 + $0xa8] sm:$0xf]
      %v1081 = vld [vmem:[#allocation2 + $0xac] sm:$0xf]
      %v1082 = vld [vmem:[#allocation2 + $0xb4] sm:$0xf]
      %v1083 = vld [vmem:[#allocation2 + $0xb8] sm:$0xf]
      %v1116 = vunpack.c.l.b16 %v1052
      %v1117 = vunpack.c.l.b16 %v1053
      %v1118 = vunpack.c.l.b16 %v1054
      %v1119 = vunpack.c.l.b16 %v1055
      %v1120 = vunpack.c.l.b16 %v1056
      %v1121 = vunpack.c.l.b16 %v1057
      %v1122 = vunpack.c.l.b16 %v1058
      %v1123 = vunpack.c.l.b16 %v1059
      %v1124 = vunpack.c.l.b16 %v1060
      %v1125 = vunpack.c.l.b16 %v1061
      %v1126 = vunpack.c.l.b16 %v1062
      %v1127 = vunpack.c.l.b16 %v1063
      %v1128 = vunpack.c.l.b16 %v1064
      %v1129 = vunpack.c.l.b16 %v1065
      %v1130 = vunpack.c.l.b16 %v1066
      %v1131 = vunpack.c.l.b16 %v1067
      %v1132 = vunpack.c.l.b16 %v1068
      %v1133 = vunpack.c.l.b16 %v1069
      %v1134 = vunpack.c.l.b16 %v1070
      %v1135 = vunpack.c.l.b16 %v1071
      %v1136 = vunpack.c.l.b16 %v1072
      %v1137 = vunpack.c.l.b16 %v1073
      %v1138 = vunpack.c.l.b16 %v1074
      %v1139 = vunpack.c.l.b16 %v1075
      %v1140 = vunpack.c.l.b16 %v1076
      %v1141 = vunpack.c.l.b16 %v1077
      %v1142 = vunpack.c.l.b16 %v1078
      %v1143 = vunpack.c.l.b16 %v1079
      %v1144 = vunpack.c.l.b16 %v1080
      %v1145 = vunpack.c.l.b16 %v1081
      %v1146 = vunpack.c.l.b16 %v1082
      %v1147 = vunpack.c.l.b16 %v1083
      %v1148 = vpack.c.b16 %v1117, %v1116
      %v1149 = vpack.c.b16 %v1119, %v1118
      %v1150 = vpack.c.b16 %v1121, %v1120
      %v1151 = vpack.c.b16 %v1123, %v1122
      %v1152 = vpack.c.b16 %v1125, %v1124
      %v1153 = vpack.c.b16 %v1127, %v1126
      %v1154 = vpack.c.b16 %v1129, %v1128
      %v1155 = vpack.c.b16 %v1131, %v1130
      %v1156 = vpack.c.b16 %v1133, %v1132
      %v1157 = vpack.c.b16 %v1135, %v1134
      %v1158 = vpack.c.b16 %v1137, %v1136
      %v1159 = vpack.c.b16 %v1139, %v1138
      %v1160 = vpack.c.b16 %v1141, %v1140
      %v1161 = vpack.c.b16 %v1143, %v1142
      %v1162 = vpack.c.b16 %v1145, %v1144
      %v1163 = vpack.c.b16 %v1147, %v1146
      %1180 = vst [vmem:[#allocation3] sm:$0xff] %v1148
      %1181 = vst [vmem:[#allocation3 + $0x48] sm:$0xff] %v1149
      %1182 = vst [vmem:[#allocation3 + $0x90] sm:$0xff] %v1150
      %1183 = vst [vmem:[#allocation3 + $0xd8] sm:$0xff] %v1151
      %1184 = vst [vmem:[#allocation3 + $0x120] sm:$0xff] %v1152
      %1185 = vst [vmem:[#allocation3 + $0x168] sm:$0xff] %v1153
      %1186 = vst [vmem:[#allocation3 + $0x1b0] sm:$0xff] %v1154
      %1187 = vst [vmem:[#allocation3 + $0x1f8] sm:$0xff] %v1155
      %1188 = vst [vmem:[#allocation3 + $0x240] sm:$0xff] %v1156
      %1189 = vst [vmem:[#allocation3 + $0x288] sm:$0xff] %v1157
      %1190 = vst [vmem:[#allocation3 + $0x2d0] sm:$0xff] %v1158
      %1191 = vst [vmem:[#allocation3 + $0x318] sm:$0xff] %v1159
      %1192 = vst [vmem:[#allocation3 + $0x360] sm:$0xff] %v1160
      %1193 = vst [vmem:[#allocation3 + $0x3a8] sm:$0xff] %v1161
      %1194 = vst [vmem:[#allocation3 + $0x3f0] sm:$0xff] %v1162
      %1195 = vst [vmem:[#allocation3 + $0x438] sm:$0xff] %v1163
      %v1196 = vld [vmem:[#allocation2] sm:$0xf]
      %v1197 = vld [vmem:[#allocation2 + $0x4] sm:$0xf]
      %v1198 = vld [vmem:[#allocation2 + $0x8] sm:$0x1]
      %v1199 = vld [vmem:[#allocation2 + $0xc] sm:$0xf]
      %v1200 = vld [vmem:[#allocation2 + $0x10] sm:$0xf]
      %v1201 = vld [vmem:[#allocation2 + $0x14] sm:$0x1]
      %v1202 = vld [vmem:[#allocation2 + $0x18] sm:$0xf]
      %v1203 = vld [vmem:[#allocation2 + $0x1c] sm:$0xf]
      %v1204 = vld [vmem:[#allocation2 + $0x20] sm:$0x1]
      %v1205 = vld [vmem:[#allocation2 + $0x24] sm:$0xf]
      %v1206 = vld [vmem:[#allocation2 + $0x28] sm:$0xf]
      %v1207 = vld [vmem:[#allocation2 + $0x2c] sm:$0x1]
      %v1208 = vld [vmem:[#allocation2 + $0x30] sm:$0xf]
      %v1209 = vld [vmem:[#allocation2 + $0x34] sm:$0xf]
      %v1210 = vld [vmem:[#allocation2 + $0x38] sm:$0x1]
      %v1211 = vld [vmem:[#allocation2 + $0x3c] sm:$0xf]
      %v1212 = vld [vmem:[#allocation2 + $0x40] sm:$0xf]
      %v1213 = vld [vmem:[#allocation2 + $0x44] sm:$0x1]
      %v1214 = vld [vmem:[#allocation2 + $0x48] sm:$0xf]
      %v1215 = vld [vmem:[#allocation2 + $0x4c] sm:$0xf]
      %v1216 = vld [vmem:[#allocation2 + $0x50] sm:$0x1]
      %v1217 = vld [vmem:[#allocation2 + $0x54] sm:$0xf]
      %v1218 = vld [vmem:[#allocation2 + $0x58] sm:$0xf]
      %v1219 = vld [vmem:[#allocation2 + $0x5c] sm:$0x1]
      %v1220 = vld [vmem:[#allocation2 + $0x60] sm:$0xf]
      %v1221 = vld [vmem:[#allocation2 + $0x64] sm:$0xf]
      %v1222 = vld [vmem:[#allocation2 + $0x68] sm:$0x1]
      %v1223 = vld [vmem:[#allocation2 + $0x6c] sm:$0xf]
      %v1224 = vld [vmem:[#allocation2 + $0x70] sm:$0xf]
      %v1225 = vld [vmem:[#allocation2 + $0x74] sm:$0x1]
      %v1226 = vld [vmem:[#allocation2 + $0x78] sm:$0xf]
      %v1227 = vld [vmem:[#allocation2 + $0x7c] sm:$0xf]
      %v1228 = vld [vmem:[#allocation2 + $0x80] sm:$0x1]
      %v1229 = vld [vmem:[#allocation2 + $0x84] sm:$0xf]
      %v1230 = vld [vmem:[#allocation2 + $0x88] sm:$0xf]
      %v1231 = vld [vmem:[#allocation2 + $0x8c] sm:$0x1]
      %v1232 = vld [vmem:[#allocation2 + $0x90] sm:$0xf]
      %v1233 = vld [vmem:[#allocation2 + $0x94] sm:$0xf]
      %v1234 = vld [vmem:[#allocation2 + $0x98] sm:$0x1]
      %v1235 = vld [vmem:[#allocation2 + $0x9c] sm:$0xf]
      %v1236 = vld [vmem:[#allocation2 + $0xa0] sm:$0xf]
      %v1237 = vld [vmem:[#allocation2 + $0xa4] sm:$0x1]
      %v1238 = vld [vmem:[#allocation2 + $0xa8] sm:$0xf]
      %v1239 = vld [vmem:[#allocation2 + $0xac] sm:$0xf]
      %v1240 = vld [vmem:[#allocation2 + $0xb0] sm:$0x1]
      %v1241 = vld [vmem:[#allocation2 + $0xb4] sm:$0xf]
      %v1242 = vld [vmem:[#allocation2 + $0xb8] sm:$0xf]
      %v1243 = vld [vmem:[#allocation2 + $0xbc] sm:$0x1]
      %vm1244 = vsmask.f32 3328
      %vm1245 = vsmask.f32 7440
      %vm1246 = vmor %vm1244, %vm1245
      %v1248 = vshrl.u32 %v1196, 16
      %v1250 = vrot.slane %v1248, 4
      %v1251 = vshll.u32 %v1196, 16
      %v1253 = vrot.slane %v1251, 5
      %v1254 = vor.u32 %v1250, %v1253
      %v1255 = vrot.slane %v1254, 4
      %v1257 = vshll.u32 %v1197, 16
      %v1259 = vrot.slane %v1257, 5
      %v1260 = vsel %vm1246, %v1255, %v1259
      %v1261 = vshrl.u32 %v1197, 16
      %v1263 = vrot.slane %v1261, 4
      %v1264 = vor.u32 %v1263, %v1259
      %v1265 = vrot.slane %v1264, 4
      %v1267 = vshll.u32 %v1198, 16
      %v1269 = vrot.slane %v1267, 5
      %v1270 = vsel %vm1246, %v1265, %v1269
      %v1272 = vshrl.u32 %v1199, 16
      %v1274 = vrot.slane %v1272, 4
      %v1275 = vshll.u32 %v1199, 16
      %v1277 = vrot.slane %v1275, 5
      %v1278 = vor.u32 %v1274, %v1277
      %v1279 = vrot.slane %v1278, 4
      %v1281 = vshll.u32 %v1200, 16
      %v1283 = vrot.slane %v1281, 5
      %v1284 = vsel %vm1246, %v1279, %v1283
      %v1285 = vshrl.u32 %v1200, 16
      %v1287 = vrot.slane %v1285, 4
      %v1288 = vor.u32 %v1287, %v1283
      %v1289 = vrot.slane %v1288, 4
      %v1291 = vshll.u32 %v1201, 16
      %v1293 = vrot.slane %v1291, 5
      %v1294 = vsel %vm1246, %v1289, %v1293
      %v1296 = vshrl.u32 %v1202, 16
      %v1298 = vrot.slane %v1296, 4
      %v1299 = vshll.u32 %v1202, 16
      %v1301 = vrot.slane %v1299, 5
      %v1302 = vor.u32 %v1298, %v1301
      %v1303 = vrot.slane %v1302, 4
      %v1305 = vshll.u32 %v1203, 16
      %v1307 = vrot.slane %v1305, 5
      %v1308 = vsel %vm1246, %v1303, %v1307
      %v1309 = vshrl.u32 %v1203, 16
      %v1311 = vrot.slane %v1309, 4
      %v1312 = vor.u32 %v1311, %v1307
      %v1313 = vrot.slane %v1312, 4
      %v1315 = vshll.u32 %v1204, 16
      %v1317 = vrot.slane %v1315, 5
      %v1318 = vsel %vm1246, %v1313, %v1317
      %v1320 = vshrl.u32 %v1205, 16
      %v1322 = vrot.slane %v1320, 4
      %v1323 = vshll.u32 %v1205, 16
      %v1325 = vrot.slane %v1323, 5
      %v1326 = vor.u32 %v1322, %v1325
      %v1327 = vrot.slane %v1326, 4
      %v1329 = vshll.u32 %v1206, 16
      %v1331 = vrot.slane %v1329, 5
      %v1332 = vsel %vm1246, %v1327, %v1331
      %v1333 = vshrl.u32 %v1206, 16
      %v1335 = vrot.slane %v1333, 4
      %v1336 = vor.u32 %v1335, %v1331
      %v1337 = vrot.slane %v1336, 4
      %v1339 = vshll.u32 %v1207, 16
      %v1341 = vrot.slane %v1339, 5
      %v1342 = vsel %vm1246, %v1337, %v1341
      %v1344 = vshrl.u32 %v1208, 16
      %v1346 = vrot.slane %v1344, 4
      %v1347 = vshll.u32 %v1208, 16
      %v1349 = vrot.slane %v1347, 5
      %v1350 = vor.u32 %v1346, %v1349
      %v1351 = vrot.slane %v1350, 4
      %v1353 = vshll.u32 %v1209, 16
      %v1355 = vrot.slane %v1353, 5
      %v1356 = vsel %vm1246, %v1351, %v1355
      %v1357 = vshrl.u32 %v1209, 16
      %v1359 = vrot.slane %v1357, 4
      %v1360 = vor.u32 %v1359, %v1355
      %v1361 = vrot.slane %v1360, 4
      %v1363 = vshll.u32 %v1210, 16
      %v1365 = vrot.slane %v1363, 5
      %v1366 = vsel %vm1246, %v1361, %v1365
      %v1368 = vshrl.u32 %v1211, 16
      %v1370 = vrot.slane %v1368, 4
      %v1371 = vshll.u32 %v1211, 16
      %v1373 = vrot.slane %v1371, 5
      %v1374 = vor.u32 %v1370, %v1373
      %v1375 = vrot.slane %v1374, 4
      %v1377 = vshll.u32 %v1212, 16
      %v1379 = vrot.slane %v1377, 5
      %v1380 = vsel %vm1246, %v1375, %v1379
      %v1381 = vshrl.u32 %v1212, 16
      %v1383 = vrot.slane %v1381, 4
      %v1384 = vor.u32 %v1383, %v1379
      %v1385 = vrot.slane %v1384, 4
      %v1387 = vshll.u32 %v1213, 16
      %v1389 = vrot.slane %v1387, 5
      %v1390 = vsel %vm1246, %v1385, %v1389
      %v1392 = vshrl.u32 %v1214, 16
      %v1394 = vrot.slane %v1392, 4
      %v1395 = vshll.u32 %v1214, 16
      %v1397 = vrot.slane %v1395, 5
      %v1398 = vor.u32 %v1394, %v1397
      %v1399 = vrot.slane %v1398, 4
      %v1401 = vshll.u32 %v1215, 16
      %v1403 = vrot.slane %v1401, 5
      %v1404 = vsel %vm1246, %v1399, %v1403
      %v1405 = vshrl.u32 %v1215, 16
      %v1407 = vrot.slane %v1405, 4
      %v1408 = vor.u32 %v1407, %v1403
      %v1409 = vrot.slane %v1408, 4
      %v1411 = vshll.u32 %v1216, 16
      %v1413 = vrot.slane %v1411, 5
      %v1414 = vsel %vm1246, %v1409, %v1413
      %v1416 = vshrl.u32 %v1217, 16
      %v1418 = vrot.slane %v1416, 4
      %v1419 = vshll.u32 %v1217, 16
      %v1421 = vrot.slane %v1419, 5
      %v1422 = vor.u32 %v1418, %v1421
      %v1423 = vrot.slane %v1422, 4
      %v1425 = vshll.u32 %v1218, 16
      %v1427 = vrot.slane %v1425, 5
      %v1428 = vsel %vm1246, %v1423, %v1427
      %v1429 = vshrl.u32 %v1218, 16
      %v1431 = vrot.slane %v1429, 4
      %v1432 = vor.u32 %v1431, %v1427
      %v1433 = vrot.slane %v1432, 4
      %v1435 = vshll.u32 %v1219, 16
      %v1437 = vrot.slane %v1435, 5
      %v1438 = vsel %vm1246, %v1433, %v1437
      %v1440 = vshrl.u32 %v1220, 16
      %v1442 = vrot.slane %v1440, 4
      %v1443 = vshll.u32 %v1220, 16
      %v1445 = vrot.slane %v1443, 5
      %v1446 = vor.u32 %v1442, %v1445
      %v1447 = vrot.slane %v1446, 4
      %v1449 = vshll.u32 %v1221, 16
      %v1451 = vrot.slane %v1449, 5
      %v1452 = vsel %vm1246, %v1447, %v1451
      %v1453 = vshrl.u32 %v1221, 16
      %v1455 = vrot.slane %v1453, 4
      %v1456 = vor.u32 %v1455, %v1451
      %v1457 = vrot.slane %v1456, 4
      %v1459 = vshll.u32 %v1222, 16
      %v1461 = vrot.slane %v1459, 5
      %v1462 = vsel %vm1246, %v1457, %v1461
      %v1464 = vshrl.u32 %v1223, 16
      %v1466 = vrot.slane %v1464, 4
      %v1467 = vshll.u32 %v1223, 16
      %v1469 = vrot.slane %v1467, 5
      %v1470 = vor.u32 %v1466, %v1469
      %v1471 = vrot.slane %v1470, 4
      %v1473 = vshll.u32 %v1224, 16
      %v1475 = vrot.slane %v1473, 5
      %v1476 = vsel %vm1246, %v1471, %v1475
      %v1477 = vshrl.u32 %v1224, 16
      %v1479 = vrot.slane %v1477, 4
      %v1480 = vor.u32 %v1479, %v1475
      %v1481 = vrot.slane %v1480, 4
      %v1483 = vshll.u32 %v1225, 16
      %v1485 = vrot.slane %v1483, 5
      %v1486 = vsel %vm1246, %v1481, %v1485
      %v1488 = vshrl.u32 %v1226, 16
      %v1490 = vrot.slane %v1488, 4
      %v1491 = vshll.u32 %v1226, 16
      %v1493 = vrot.slane %v1491, 5
      %v1494 = vor.u32 %v1490, %v1493
      %v1495 = vrot.slane %v1494, 4
      %v1497 = vshll.u32 %v1227, 16
      %v1499 = vrot.slane %v1497, 5
      %v1500 = vsel %vm1246, %v1495, %v1499
      %v1501 = vshrl.u32 %v1227, 16
      %v1503 = vrot.slane %v1501, 4
      %v1504 = vor.u32 %v1503, %v1499
      %v1505 = vrot.slane %v1504, 4
      %v1507 = vshll.u32 %v1228, 16
      %v1509 = vrot.slane %v1507, 5
      %v1510 = vsel %vm1246, %v1505, %v1509
      %v1512 = vshrl.u32 %v1229, 16
      %v1514 = vrot.slane %v1512, 4
      %v1515 = vshll.u32 %v1229, 16
      %v1517 = vrot.slane %v1515, 5
      %v1518 = vor.u32 %v1514, %v1517
      %v1519 = vrot.slane %v1518, 4
      %v1521 = vshll.u32 %v1230, 16
      %v1523 = vrot.slane %v1521, 5
      %v1524 = vsel %vm1246, %v1519, %v1523
      %v1525 = vshrl.u32 %v1230, 16
      %v1527 = vrot.slane %v1525, 4
      %v1528 = vor.u32 %v1527, %v1523
      %v1529 = vrot.slane %v1528, 4
      %v1531 = vshll.u32 %v1231, 16
      %v1533 = vrot.slane %v1531, 5
      %v1534 = vsel %vm1246, %v1529, %v1533
      %v1536 = vshrl.u32 %v1232, 16
      %v1538 = vrot.slane %v1536, 4
      %v1539 = vshll.u32 %v1232, 16
      %v1541 = vrot.slane %v1539, 5
      %v1542 = vor.u32 %v1538, %v1541
      %v1543 = vrot.slane %v1542, 4
      %v1545 = vshll.u32 %v1233, 16
      %v1547 = vrot.slane %v1545, 5
      %v1548 = vsel %vm1246, %v1543, %v1547
      %v1549 = vshrl.u32 %v1233, 16
      %v1551 = vrot.slane %v1549, 4
      %v1552 = vor.u32 %v1551, %v1547
      %v1553 = vrot.slane %v1552, 4
      %v1555 = vshll.u32 %v1234, 16
      %v1557 = vrot.slane %v1555, 5
      %v1558 = vsel %vm1246, %v1553, %v1557
      %v1560 = vshrl.u32 %v1235, 16
      %v1562 = vrot.slane %v1560, 4
      %v1563 = vshll.u32 %v1235, 16
      %v1565 = vrot.slane %v1563, 5
      %v1566 = vor.u32 %v1562, %v1565
      %v1567 = vrot.slane %v1566, 4
      %v1569 = vshll.u32 %v1236, 16
      %v1571 = vrot.slane %v1569, 5
      %v1572 = vsel %vm1246, %v1567, %v1571
      %v1573 = vshrl.u32 %v1236, 16
      %v1575 = vrot.slane %v1573, 4
      %v1576 = vor.u32 %v1575, %v1571
      %v1577 = vrot.slane %v1576, 4
      %v1579 = vshll.u32 %v1237, 16
      %v1581 = vrot.slane %v1579, 5
      %v1582 = vsel %vm1246, %v1577, %v1581
      %v1584 = vshrl.u32 %v1238, 16
      %v1586 = vrot.slane %v1584, 4
      %v1587 = vshll.u32 %v1238, 16
      %v1589 = vrot.slane %v1587, 5
      %v1590 = vor.u32 %v1586, %v1589
      %v1591 = vrot.slane %v1590, 4
      %v1593 = vshll.u32 %v1239, 16
      %v1595 = vrot.slane %v1593, 5
      %v1596 = vsel %vm1246, %v1591, %v1595
      %v1597 = vshrl.u32 %v1239, 16
      %v1599 = vrot.slane %v1597, 4
      %v1600 = vor.u32 %v1599, %v1595
      %v1601 = vrot.slane %v1600, 4
      %v1603 = vshll.u32 %v1240, 16
      %v1605 = vrot.slane %v1603, 5
      %v1606 = vsel %vm1246, %v1601, %v1605
      %v1608 = vshrl.u32 %v1241, 16
      %v1610 = vrot.slane %v1608, 4
      %v1611 = vshll.u32 %v1241, 16
      %v1613 = vrot.slane %v1611, 5
      %v1614 = vor.u32 %v1610, %v1613
      %v1615 = vrot.slane %v1614, 4
      %v1617 = vshll.u32 %v1242, 16
      %v1619 = vrot.slane %v1617, 5
      %v1620 = vsel %vm1246, %v1615, %v1619
      %v1621 = vshrl.u32 %v1242, 16
      %v1623 = vrot.slane %v1621, 4
      %v1624 = vor.u32 %v1623, %v1619
      %v1625 = vrot.slane %v1624, 4
      %v1627 = vshll.u32 %v1243, 16
      %v1629 = vrot.slane %v1627, 5
      %v1630 = vsel %vm1246, %v1625, %v1629
      %v1631 = vunpack.c.l.b16 %v1260
      %v1632 = vunpack.c.l.b16 %v1270
      %v1633 = vunpack.c.l.b16 %v1284
      %v1634 = vunpack.c.l.b16 %v1294
      %v1635 = vunpack.c.l.b16 %v1308
      %v1636 = vunpack.c.l.b16 %v1318
      %v1637 = vunpack.c.l.b16 %v1332
      %v1638 = vunpack.c.l.b16 %v1342
      %v1639 = vunpack.c.l.b16 %v1356
      %v1640 = vunpack.c.l.b16 %v1366
      %v1641 = vunpack.c.l.b16 %v1380
      %v1642 = vunpack.c.l.b16 %v1390
      %v1643 = vunpack.c.l.b16 %v1404
      %v1644 = vunpack.c.l.b16 %v1414
      %v1645 = vunpack.c.l.b16 %v1428
      %v1646 = vunpack.c.l.b16 %v1438
      %v1647 = vunpack.c.l.b16 %v1452
      %v1648 = vunpack.c.l.b16 %v1462
      %v1649 = vunpack.c.l.b16 %v1476
      %v1650 = vunpack.c.l.b16 %v1486
      %v1651 = vunpack.c.l.b16 %v1500
      %v1652 = vunpack.c.l.b16 %v1510
      %v1653 = vunpack.c.l.b16 %v1524
      %v1654 = vunpack.c.l.b16 %v1534
      %v1655 = vunpack.c.l.b16 %v1548
      %v1656 = vunpack.c.l.b16 %v1558
      %v1657 = vunpack.c.l.b16 %v1572
      %v1658 = vunpack.c.l.b16 %v1582
      %v1659 = vunpack.c.l.b16 %v1596
      %v1660 = vunpack.c.l.b16 %v1606
      %v1661 = vunpack.c.l.b16 %v1620
      %v1662 = vunpack.c.l.b16 %v1630
      %v1663 = vpack.c.b16 %v1632, %v1631
      %v1664 = vpack.c.b16 %v1634, %v1633
      %v1665 = vpack.c.b16 %v1636, %v1635
      %v1666 = vpack.c.b16 %v1638, %v1637
      %v1667 = vpack.c.b16 %v1640, %v1639
      %v1668 = vpack.c.b16 %v1642, %v1641
      %v1669 = vpack.c.b16 %v1644, %v1643
      %v1670 = vpack.c.b16 %v1646, %v1645
      %v1671 = vpack.c.b16 %v1648, %v1647
      %v1672 = vpack.c.b16 %v1650, %v1649
      %v1673 = vpack.c.b16 %v1652, %v1651
      %v1674 = vpack.c.b16 %v1654, %v1653
      %v1675 = vpack.c.b16 %v1656, %v1655
      %v1676 = vpack.c.b16 %v1658, %v1657
      %v1677 = vpack.c.b16 %v1660, %v1659
      %v1678 = vpack.c.b16 %v1662, %v1661
      %1695 = vst [vmem:[#allocation3 + $0x8] sm:$0xff] %v1663
      %1696 = vst [vmem:[#allocation3 + $0x50] sm:$0xff] %v1664
      %1697 = vst [vmem:[#allocation3 + $0x98] sm:$0xff] %v1665
      %1698 = vst [vmem:[#allocation3 + $0xe0] sm:$0xff] %v1666
      %1699 = vst [vmem:[#allocation3 + $0x128] sm:$0xff] %v1667
      %1700 = vst [vmem:[#allocation3 + $0x170] sm:$0xff] %v1668
      %1701 = vst [vmem:[#allocation3 + $0x1b8] sm:$0xff] %v1669
      %1702 = vst [vmem:[#allocation3 + $0x200] sm:$0xff] %v1670
      %1703 = vst [vmem:[#allocation3 + $0x248] sm:$0xff] %v1671
      %1704 = vst [vmem:[#allocation3 + $0x290] sm:$0xff] %v1672
      %1705 = vst [vmem:[#allocation3 + $0x2d8] sm:$0xff] %v1673
      %1706 = vst [vmem:[#allocation3 + $0x320] sm:$0xff] %v1674
      %1707 = vst [vmem:[#allocation3 + $0x368] sm:$0xff] %v1675
      %1708 = vst [vmem:[#allocation3 + $0x3b0] sm:$0xff] %v1676
      %1709 = vst [vmem:[#allocation3 + $0x3f8] sm:$0xff] %v1677
      %1710 = vst [vmem:[#allocation3 + $0x440] sm:$0xff] %v1678
      %v1711 = vld [vmem:[#allocation2] sm:$0xe]
      %v1712 = vld [vmem:[#allocation2 + $0x4] sm:$0xf]
      %v1713 = vld [vmem:[#allocation2 + $0x8] sm:$0x1]
      %v1714 = vld [vmem:[#allocation2 + $0xc] sm:$0xe]
      %v1715 = vld [vmem:[#allocation2 + $0x10] sm:$0xf]
      %v1716 = vld [vmem:[#allocation2 + $0x14] sm:$0x1]
      %v1717 = vld [vmem:[#allocation2 + $0x18] sm:$0xe]
      %v1718 = vld [vmem:[#allocation2 + $0x1c] sm:$0xf]
      %v1719 = vld [vmem:[#allocation2 + $0x20] sm:$0x1]
      %v1720 = vld [vmem:[#allocation2 + $0x24] sm:$0xe]
      %v1721 = vld [vmem:[#allocation2 + $0x28] sm:$0xf]
      %v1722 = vld [vmem:[#allocation2 + $0x2c] sm:$0x1]
      %v1723 = vld [vmem:[#allocation2 + $0x30] sm:$0xe]
      %v1724 = vld [vmem:[#allocation2 + $0x34] sm:$0xf]
      %v1725 = vld [vmem:[#allocation2 + $0x38] sm:$0x1]
      %v1726 = vld [vmem:[#allocation2 + $0x3c] sm:$0xe]
      %v1727 = vld [vmem:[#allocation2 + $0x40] sm:$0xf]
      %v1728 = vld [vmem:[#allocation2 + $0x44] sm:$0x1]
      %v1729 = vld [vmem:[#allocation2 + $0x48] sm:$0xe]
      %v1730 = vld [vmem:[#allocation2 + $0x4c] sm:$0xf]
      %v1731 = vld [vmem:[#allocation2 + $0x50] sm:$0x1]
      %v1732 = vld [vmem:[#allocation2 + $0x54] sm:$0xe]
      %v1733 = vld [vmem:[#allocation2 + $0x58] sm:$0xf]
      %v1734 = vld [vmem:[#allocation2 + $0x5c] sm:$0x1]
      %v1735 = vld [vmem:[#allocation2 + $0x60] sm:$0xe]
      %v1736 = vld [vmem:[#allocation2 + $0x64] sm:$0xf]
      %v1737 = vld [vmem:[#allocation2 + $0x68] sm:$0x1]
      %v1738 = vld [vmem:[#allocation2 + $0x6c] sm:$0xe]
      %v1739 = vld [vmem:[#allocation2 + $0x70] sm:$0xf]
      %v1740 = vld [vmem:[#allocation2 + $0x74] sm:$0x1]
      %v1741 = vld [vmem:[#allocation2 + $0x78] sm:$0xe]
      %v1742 = vld [vmem:[#allocation2 + $0x7c] sm:$0xf]
      %v1743 = vld [vmem:[#allocation2 + $0x80] sm:$0x1]
      %v1744 = vld [vmem:[#allocation2 + $0x84] sm:$0xe]
      %v1745 = vld [vmem:[#allocation2 + $0x88] sm:$0xf]
      %v1746 = vld [vmem:[#allocation2 + $0x8c] sm:$0x1]
      %v1747 = vld [vmem:[#allocation2 + $0x90] sm:$0xe]
      %v1748 = vld [vmem:[#allocation2 + $0x94] sm:$0xf]
      %v1749 = vld [vmem:[#allocation2 + $0x98] sm:$0x1]
      %v1750 = vld [vmem:[#allocation2 + $0x9c] sm:$0xe]
      %v1751 = vld [vmem:[#allocation2 + $0xa0] sm:$0xf]
      %v1752 = vld [vmem:[#allocation2 + $0xa4] sm:$0x1]
      %v1753 = vld [vmem:[#allocation2 + $0xa8] sm:$0xe]
      %v1754 = vld [vmem:[#allocation2 + $0xac] sm:$0xf]
      %v1755 = vld [vmem:[#allocation2 + $0xb0] sm:$0x1]
      %v1756 = vld [vmem:[#allocation2 + $0xb4] sm:$0xe]
      %v1757 = vld [vmem:[#allocation2 + $0xb8] sm:$0xf]
      %v1758 = vld [vmem:[#allocation2 + $0xbc] sm:$0x1]
      %vm1807 = vcmask 1042432
      %vm1808 = vcmask 1046532
      %vm1809 = vmor %vm1807, %vm1808
      %v1810 = vrot.slane %v1711, 5
      %v1811 = vrot.slane %v1810, 4
      %v1812 = vrot.slane %v1712, 5
      %v1813 = vsel %vm1809, %v1811, %v1812
      %v1814 = vrot.slane %v1812, 4
      %v1815 = vrot.slane %v1713, 5
      %v1816 = vsel %vm1809, %v1814, %v1815
      %v1817 = vrot.slane %v1714, 5
      %v1818 = vrot.slane %v1817, 4
      %v1819 = vrot.slane %v1715, 5
      %v1820 = vsel %vm1809, %v1818, %v1819
      %v1821 = vrot.slane %v1819, 4
      %v1822 = vrot.slane %v1716, 5
      %v1823 = vsel %vm1809, %v1821, %v1822
      %v1824 = vrot.slane %v1717, 5
      %v1825 = vrot.slane %v1824, 4
      %v1826 = vrot.slane %v1718, 5
      %v1827 = vsel %vm1809, %v1825, %v1826
      %v1828 = vrot.slane %v1826, 4
      %v1829 = vrot.slane %v1719, 5
      %v1830 = vsel %vm1809, %v1828, %v1829
      %v1831 = vrot.slane %v1720, 5
      %v1832 = vrot.slane %v1831, 4
      %v1833 = vrot.slane %v1721, 5
      %v1834 = vsel %vm1809, %v1832, %v1833
      %v1835 = vrot.slane %v1833, 4
      %v1836 = vrot.slane %v1722, 5
      %v1837 = vsel %vm1809, %v1835, %v1836
      %v1838 = vrot.slane %v1723, 5
      %v1839 = vrot.slane %v1838, 4
      %v1840 = vrot.slane %v1724, 5
      %v1841 = vsel %vm1809, %v1839, %v1840
      %v1842 = vrot.slane %v1840, 4
      %v1843 = vrot.slane %v1725, 5
      %v1844 = vsel %vm1809, %v1842, %v1843
      %v1845 = vrot.slane %v1726, 5
      %v1846 = vrot.slane %v1845, 4
      %v1847 = vrot.slane %v1727, 5
      %v1848 = vsel %vm1809, %v1846, %v1847
      %v1849 = vrot.slane %v1847, 4
      %v1850 = vrot.slane %v1728, 5
      %v1851 = vsel %vm1809, %v1849, %v1850
      %v1852 = vrot.slane %v1729, 5
      %v1853 = vrot.slane %v1852, 4
      %v1854 = vrot.slane %v1730, 5
      %v1855 = vsel %vm1809, %v1853, %v1854
      %v1856 = vrot.slane %v1854, 4
      %v1857 = vrot.slane %v1731, 5
      %v1858 = vsel %vm1809, %v1856, %v1857
      %v1859 = vrot.slane %v1732, 5
      %v1860 = vrot.slane %v1859, 4
      %v1861 = vrot.slane %v1733, 5
      %v1862 = vsel %vm1809, %v1860, %v1861
      %v1863 = vrot.slane %v1861, 4
      %v1864 = vrot.slane %v1734, 5
      %v1865 = vsel %vm1809, %v1863, %v1864
      %v1866 = vrot.slane %v1735, 5
      %v1867 = vrot.slane %v1866, 4
      %v1868 = vrot.slane %v1736, 5
      %v1869 = vsel %vm1809, %v1867, %v1868
      %v1870 = vrot.slane %v1868, 4
      %v1871 = vrot.slane %v1737, 5
      %v1872 = vsel %vm1809, %v1870, %v1871
      %v1873 = vrot.slane %v1738, 5
      %v1874 = vrot.slane %v1873, 4
      %v1875 = vrot.slane %v1739, 5
      %v1876 = vsel %vm1809, %v1874, %v1875
      %v1877 = vrot.slane %v1875, 4
      %v1878 = vrot.slane %v1740, 5
      %v1879 = vsel %vm1809, %v1877, %v1878
      %v1880 = vrot.slane %v1741, 5
      %v1881 = vrot.slane %v1880, 4
      %v1882 = vrot.slane %v1742, 5
      %v1883 = vsel %vm1809, %v1881, %v1882
      %v1884 = vrot.slane %v1882, 4
      %v1885 = vrot.slane %v1743, 5
      %v1886 = vsel %vm1809, %v1884, %v1885
      %v1887 = vrot.slane %v1744, 5
      %v1888 = vrot.slane %v1887, 4
      %v1889 = vrot.slane %v1745, 5
      %v1890 = vsel %vm1809, %v1888, %v1889
      %v1891 = vrot.slane %v1889, 4
      %v1892 = vrot.slane %v1746, 5
      %v1893 = vsel %vm1809, %v1891, %v1892
      %v1894 = vrot.slane %v1747, 5
      %v1895 = vrot.slane %v1894, 4
      %v1896 = vrot.slane %v1748, 5
      %v1897 = vsel %vm1809, %v1895, %v1896
      %v1898 = vrot.slane %v1896, 4
      %v1899 = vrot.slane %v1749, 5
      %v1900 = vsel %vm1809, %v1898, %v1899
      %v1901 = vrot.slane %v1750, 5
      %v1902 = vrot.slane %v1901, 4
      %v1903 = vrot.slane %v1751, 5
      %v1904 = vsel %vm1809, %v1902, %v1903
      %v1905 = vrot.slane %v1903, 4
      %v1906 = vrot.slane %v1752, 5
      %v1907 = vsel %vm1809, %v1905, %v1906
      %v1908 = vrot.slane %v1753, 5
      %v1909 = vrot.slane %v1908, 4
      %v1910 = vrot.slane %v1754, 5
      %v1911 = vsel %vm1809, %v1909, %v1910
      %v1912 = vrot.slane %v1910, 4
      %v1913 = vrot.slane %v1755, 5
      %v1914 = vsel %vm1809, %v1912, %v1913
      %v1915 = vrot.slane %v1756, 5
      %v1916 = vrot.slane %v1915, 4
      %v1917 = vrot.slane %v1757, 5
      %v1918 = vsel %vm1809, %v1916, %v1917
      %v1919 = vrot.slane %v1917, 4
      %v1920 = vrot.slane %v1758, 5
      %v1921 = vsel %vm1809, %v1919, %v1920
      %v1922 = vunpack.c.l.b16 %v1813
      %v1923 = vunpack.c.l.b16 %v1816
      %v1924 = vunpack.c.l.b16 %v1820
      %v1925 = vunpack.c.l.b16 %v1823
      %v1926 = vunpack.c.l.b16 %v1827
      %v1927 = vunpack.c.l.b16 %v1830
      %v1928 = vunpack.c.l.b16 %v1834
      %v1929 = vunpack.c.l.b16 %v1837
      %v1930 = vunpack.c.l.b16 %v1841
      %v1931 = vunpack.c.l.b16 %v1844
      %v1932 = vunpack.c.l.b16 %v1848
      %v1933 = vunpack.c.l.b16 %v1851
      %v1934 = vunpack.c.l.b16 %v1855
      %v1935 = vunpack.c.l.b16 %v1858
      %v1936 = vunpack.c.l.b16 %v1862
      %v1937 = vunpack.c.l.b16 %v1865
      %v1938 = vunpack.c.l.b16 %v1869
      %v1939 = vunpack.c.l.b16 %v1872
      %v1940 = vunpack.c.l.b16 %v1876
      %v1941 = vunpack.c.l.b16 %v1879
      %v1942 = vunpack.c.l.b16 %v1883
      %v1943 = vunpack.c.l.b16 %v1886
      %v1944 = vunpack.c.l.b16 %v1890
      %v1945 = vunpack.c.l.b16 %v1893
      %v1946 = vunpack.c.l.b16 %v1897
      %v1947 = vunpack.c.l.b16 %v1900
      %v1948 = vunpack.c.l.b16 %v1904
      %v1949 = vunpack.c.l.b16 %v1907
      %v1950 = vunpack.c.l.b16 %v1911
      %v1951 = vunpack.c.l.b16 %v1914
      %v1952 = vunpack.c.l.b16 %v1918
      %v1953 = vunpack.c.l.b16 %v1921
      %v1954 = vpack.c.b16 %v1923, %v1922
      %v1955 = vpack.c.b16 %v1925, %v1924
      %v1956 = vpack.c.b16 %v1927, %v1926
      %v1957 = vpack.c.b16 %v1929, %v1928
      %v1958 = vpack.c.b16 %v1931, %v1930
      %v1959 = vpack.c.b16 %v1933, %v1932
      %v1960 = vpack.c.b16 %v1935, %v1934
      %v1961 = vpack.c.b16 %v1937, %v1936
      %v1962 = vpack.c.b16 %v1939, %v1938
      %v1963 = vpack.c.b16 %v1941, %v1940
      %v1964 = vpack.c.b16 %v1943, %v1942
      %v1965 = vpack.c.b16 %v1945, %v1944
      %v1966 = vpack.c.b16 %v1947, %v1946
      %v1967 = vpack.c.b16 %v1949, %v1948
      %v1968 = vpack.c.b16 %v1951, %v1950
      %v1969 = vpack.c.b16 %v1953, %v1952
      %1986 = vst [vmem:[#allocation3 + $0x10] sm:$0xff] %v1954
      %1987 = vst [vmem:[#allocation3 + $0x58] sm:$0xff] %v1955
      %1988 = vst [vmem:[#allocation3 + $0xa0] sm:$0xff] %v1956
      %1989 = vst [vmem:[#allocation3 + $0xe8] sm:$0xff] %v1957
      %1990 = vst [vmem:[#allocation3 + $0x130] sm:$0xff] %v1958
      %1991 = vst [vmem:[#allocation3 + $0x178] sm:$0xff] %v1959
      %1992 = vst [vmem:[#allocation3 + $0x1c0] sm:$0xff] %v1960
      %1993 = vst [vmem:[#allocation3 + $0x208] sm:$0xff] %v1961
      %1994 = vst [vmem:[#allocation3 + $0x250] sm:$0xff] %v1962
      %1995 = vst [vmem:[#allocation3 + $0x298] sm:$0xff] %v1963
      %1996 = vst [vmem:[#allocation3 + $0x2e0] sm:$0xff] %v1964
      %1997 = vst [vmem:[#allocation3 + $0x328] sm:$0xff] %v1965
      %1998 = vst [vmem:[#allocation3 + $0x370] sm:$0xff] %v1966
      %1999 = vst [vmem:[#allocation3 + $0x3b8] sm:$0xff] %v1967
      %2000 = vst [vmem:[#allocation3 + $0x400] sm:$0xff] %v1968
      %2001 = vst [vmem:[#allocation3 + $0x448] sm:$0xff] %v1969
      %v2002 = vld [vmem:[%s418] sm:$0xf]
      %v2003 = vld [vmem:[%s418 + $0x4] sm:$0xf]
      %v2004 = vld [vmem:[%s418 + $0xc] sm:$0xf]
      %v2005 = vld [vmem:[%s418 + $0x10] sm:$0xf]
      %v2006 = vld [vmem:[%s418 + $0x18] sm:$0xf]
      %v2007 = vld [vmem:[%s418 + $0x1c] sm:$0xf]
      %v2008 = vld [vmem:[%s418 + $0x24] sm:$0xf]
      %v2009 = vld [vmem:[%s418 + $0x28] sm:$0xf]
      %v2010 = vld [vmem:[%s418 + $0x30] sm:$0xf]
      %v2011 = vld [vmem:[%s418 + $0x34] sm:$0xf]
      %v2012 = vld [vmem:[%s418 + $0x3c] sm:$0xf]
      %v2013 = vld [vmem:[%s418 + $0x40] sm:$0xf]
      %v2014 = vld [vmem:[%s418 + $0x48] sm:$0xf]
      %v2015 = vld [vmem:[%s418 + $0x4c] sm:$0xf]
      %v2016 = vld [vmem:[%s418 + $0x54] sm:$0xf]
      %v2017 = vld [vmem:[%s418 + $0x58] sm:$0xf]
      %v2018 = vld [vmem:[%s418 + $0x60] sm:$0xf]
      %v2019 = vld [vmem:[%s418 + $0x64] sm:$0xf]
      %v2020 = vld [vmem:[%s418 + $0x6c] sm:$0xf]
      %v2021 = vld [vmem:[%s418 + $0x70] sm:$0xf]
      %v2022 = vld [vmem:[%s418 + $0x78] sm:$0xf]
      %v2023 = vld [vmem:[%s418 + $0x7c] sm:$0xf]
      %v2024 = vld [vmem:[%s418 + $0x84] sm:$0xf]
      %v2025 = vld [vmem:[%s418 + $0x88] sm:$0xf]
      %v2026 = vld [vmem:[%s418 + $0x90] sm:$0xf]
      %v2027 = vld [vmem:[%s418 + $0x94] sm:$0xf]
      %v2028 = vld [vmem:[%s418 + $0x9c] sm:$0xf]
      %v2029 = vld [vmem:[%s418 + $0xa0] sm:$0xf]
      %v2030 = vld [vmem:[%s418 + $0xa8] sm:$0xf]
      %v2031 = vld [vmem:[%s418 + $0xac] sm:$0xf]
      %v2032 = vld [vmem:[%s418 + $0xb4] sm:$0xf]
      %v2033 = vld [vmem:[%s418 + $0xb8] sm:$0xf]
      %v2066 = vunpack.c.l.b16 %v2002
      %v2067 = vunpack.c.l.b16 %v2003
      %v2068 = vunpack.c.l.b16 %v2004
      %v2069 = vunpack.c.l.b16 %v2005
      %v2070 = vunpack.c.l.b16 %v2006
      %v2071 = vunpack.c.l.b16 %v2007
      %v2072 = vunpack.c.l.b16 %v2008
      %v2073 = vunpack.c.l.b16 %v2009
      %v2074 = vunpack.c.l.b16 %v2010
      %v2075 = vunpack.c.l.b16 %v2011
      %v2076 = vunpack.c.l.b16 %v2012
      %v2077 = vunpack.c.l.b16 %v2013
      %v2078 = vunpack.c.l.b16 %v2014
      %v2079 = vunpack.c.l.b16 %v2015
      %v2080 = vunpack.c.l.b16 %v2016
      %v2081 = vunpack.c.l.b16 %v2017
      %v2082 = vunpack.c.l.b16 %v2018
      %v2083 = vunpack.c.l.b16 %v2019
      %v2084 = vunpack.c.l.b16 %v2020
      %v2085 = vunpack.c.l.b16 %v2021
      %v2086 = vunpack.c.l.b16 %v2022
      %v2087 = vunpack.c.l.b16 %v2023
      %v2088 = vunpack.c.l.b16 %v2024
      %v2089 = vunpack.c.l.b16 %v2025
      %v2090 = vunpack.c.l.b16 %v2026
      %v2091 = vunpack.c.l.b16 %v2027
      %v2092 = vunpack.c.l.b16 %v2028
      %v2093 = vunpack.c.l.b16 %v2029
      %v2094 = vunpack.c.l.b16 %v2030
      %v2095 = vunpack.c.l.b16 %v2031
      %v2096 = vunpack.c.l.b16 %v2032
      %v2097 = vunpack.c.l.b16 %v2033
      %v2098 = vpack.c.b16 %v2067, %v2066
      %v2099 = vpack.c.b16 %v2069, %v2068
      %v2100 = vpack.c.b16 %v2071, %v2070
      %v2101 = vpack.c.b16 %v2073, %v2072
      %v2102 = vpack.c.b16 %v2075, %v2074
      %v2103 = vpack.c.b16 %v2077, %v2076
      %v2104 = vpack.c.b16 %v2079, %v2078
      %v2105 = vpack.c.b16 %v2081, %v2080
      %v2106 = vpack.c.b16 %v2083, %v2082
      %v2107 = vpack.c.b16 %v2085, %v2084
      %v2108 = vpack.c.b16 %v2087, %v2086
      %v2109 = vpack.c.b16 %v2089, %v2088
      %v2110 = vpack.c.b16 %v2091, %v2090
      %v2111 = vpack.c.b16 %v2093, %v2092
      %v2112 = vpack.c.b16 %v2095, %v2094
      %v2113 = vpack.c.b16 %v2097, %v2096
      %2130 = vst [vmem:[#allocation3 + $0x18] sm:$0xff] %v2098
      %2131 = vst [vmem:[#allocation3 + $0x60] sm:$0xff] %v2099
      %2132 = vst [vmem:[#allocation3 + $0xa8] sm:$0xff] %v2100
      %2133 = vst [vmem:[#allocation3 + $0xf0] sm:$0xff] %v2101
      %2134 = vst [vmem:[#allocation3 + $0x138] sm:$0xff] %v2102
      %2135 = vst [vmem:[#allocation3 + $0x180] sm:$0xff] %v2103
      %2136 = vst [vmem:[#allocation3 + $0x1c8] sm:$0xff] %v2104
      %2137 = vst [vmem:[#allocation3 + $0x210] sm:$0xff] %v2105
      %2138 = vst [vmem:[#allocation3 + $0x258] sm:$0xff] %v2106
      %2139 = vst [vmem:[#allocation3 + $0x2a0] sm:$0xff] %v2107
      %2140 = vst [vmem:[#allocation3 + $0x2e8] sm:$0xff] %v2108
      %2141 = vst [vmem:[#allocation3 + $0x330] sm:$0xff] %v2109
      %2142 = vst [vmem:[#allocation3 + $0x378] sm:$0xff] %v2110
      %2143 = vst [vmem:[#allocation3 + $0x3c0] sm:$0xff] %v2111
      %2144 = vst [vmem:[#allocation3 + $0x408] sm:$0xff] %v2112
      %2145 = vst [vmem:[#allocation3 + $0x450] sm:$0xff] %v2113
      %v2146 = vld [vmem:[%s418] sm:$0xf]
      %v2147 = vld [vmem:[%s418 + $0x4] sm:$0xf]
      %v2148 = vld [vmem:[%s418 + $0x8] sm:$0x1]
      %v2149 = vld [vmem:[%s418 + $0xc] sm:$0xf]
      %v2150 = vld [vmem:[%s418 + $0x10] sm:$0xf]
      %v2151 = vld [vmem:[%s418 + $0x14] sm:$0x1]
      %v2152 = vld [vmem:[%s418 + $0x18] sm:$0xf]
      %v2153 = vld [vmem:[%s418 + $0x1c] sm:$0xf]
      %v2154 = vld [vmem:[%s418 + $0x20] sm:$0x1]
      %v2155 = vld [vmem:[%s418 + $0x24] sm:$0xf]
      %v2156 = vld [vmem:[%s418 + $0x28] sm:$0xf]
      %v2157 = vld [vmem:[%s418 + $0x2c] sm:$0x1]
      %v2158 = vld [vmem:[%s418 + $0x30] sm:$0xf]
      %v2159 = vld [vmem:[%s418 + $0x34] sm:$0xf]
      %v2160 = vld [vmem:[%s418 + $0x38] sm:$0x1]
      %v2161 = vld [vmem:[%s418 + $0x3c] sm:$0xf]
      %v2162 = vld [vmem:[%s418 + $0x40] sm:$0xf]
      %v2163 = vld [vmem:[%s418 + $0x44] sm:$0x1]
      %v2164 = vld [vmem:[%s418 + $0x48] sm:$0xf]
      %v2165 = vld [vmem:[%s418 + $0x4c] sm:$0xf]
      %v2166 = vld [vmem:[%s418 + $0x50] sm:$0x1]
      %v2167 = vld [vmem:[%s418 + $0x54] sm:$0xf]
      %v2168 = vld [vmem:[%s418 + $0x58] sm:$0xf]
      %v2169 = vld [vmem:[%s418 + $0x5c] sm:$0x1]
      %v2170 = vld [vmem:[%s418 + $0x60] sm:$0xf]
      %v2171 = vld [vmem:[%s418 + $0x64] sm:$0xf]
      %v2172 = vld [vmem:[%s418 + $0x68] sm:$0x1]
      %v2173 = vld [vmem:[%s418 + $0x6c] sm:$0xf]
      %v2174 = vld [vmem:[%s418 + $0x70] sm:$0xf]
      %v2175 = vld [vmem:[%s418 + $0x74] sm:$0x1]
      %v2176 = vld [vmem:[%s418 + $0x78] sm:$0xf]
      %v2177 = vld [vmem:[%s418 + $0x7c] sm:$0xf]
      %v2178 = vld [vmem:[%s418 + $0x80] sm:$0x1]
      %v2179 = vld [vmem:[%s418 + $0x84] sm:$0xf]
      %v2180 = vld [vmem:[%s418 + $0x88] sm:$0xf]
      %v2181 = vld [vmem:[%s418 + $0x8c] sm:$0x1]
      %v2182 = vld [vmem:[%s418 + $0x90] sm:$0xf]
      %v2183 = vld [vmem:[%s418 + $0x94] sm:$0xf]
      %v2184 = vld [vmem:[%s418 + $0x98] sm:$0x1]
      %v2185 = vld [vmem:[%s418 + $0x9c] sm:$0xf]
      %v2186 = vld [vmem:[%s418 + $0xa0] sm:$0xf]
      %v2187 = vld [vmem:[%s418 + $0xa4] sm:$0x1]
      %v2188 = vld [vmem:[%s418 + $0xa8] sm:$0xf]
      %v2189 = vld [vmem:[%s418 + $0xac] sm:$0xf]
      %v2190 = vld [vmem:[%s418 + $0xb0] sm:$0x1]
      %v2191 = vld [vmem:[%s418 + $0xb4] sm:$0xf]
      %v2192 = vld [vmem:[%s418 + $0xb8] sm:$0xf]
      %v2193 = vld [vmem:[%s418 + $0xbc] sm:$0x1]
      %v2195 = vshrl.u32 %v2146, 16
      %v2197 = vrot.slane %v2195, 4
      %v2198 = vshll.u32 %v2146, 16
      %v2200 = vrot.slane %v2198, 5
      %v2201 = vor.u32 %v2197, %v2200
      %v2202 = vrot.slane %v2201, 4
      %v2204 = vshll.u32 %v2147, 16
      %v2206 = vrot.slane %v2204, 5
      %v2207 = vsel %vm1246, %v2202, %v2206
      %v2208 = vshrl.u32 %v2147, 16
      %v2210 = vrot.slane %v2208, 4
      %v2211 = vor.u32 %v2210, %v2206
      %v2212 = vrot.slane %v2211, 4
      %v2214 = vshll.u32 %v2148, 16
      %v2216 = vrot.slane %v2214, 5
      %v2217 = vsel %vm1246, %v2212, %v2216
      %v2219 = vshrl.u32 %v2149, 16
      %v2221 = vrot.slane %v2219, 4
      %v2222 = vshll.u32 %v2149, 16
      %v2224 = vrot.slane %v2222, 5
      %v2225 = vor.u32 %v2221, %v2224
      %v2226 = vrot.slane %v2225, 4
      %v2228 = vshll.u32 %v2150, 16
      %v2230 = vrot.slane %v2228, 5
      %v2231 = vsel %vm1246, %v2226, %v2230
      %v2232 = vshrl.u32 %v2150, 16
      %v2234 = vrot.slane %v2232, 4
      %v2235 = vor.u32 %v2234, %v2230
      %v2236 = vrot.slane %v2235, 4
      %v2238 = vshll.u32 %v2151, 16
      %v2240 = vrot.slane %v2238, 5
      %v2241 = vsel %vm1246, %v2236, %v2240
      %v2243 = vshrl.u32 %v2152, 16
      %v2245 = vrot.slane %v2243, 4
      %v2246 = vshll.u32 %v2152, 16
      %v2248 = vrot.slane %v2246, 5
      %v2249 = vor.u32 %v2245, %v2248
      %v2250 = vrot.slane %v2249, 4
      %v2252 = vshll.u32 %v2153, 16
      %v2254 = vrot.slane %v2252, 5
      %v2255 = vsel %vm1246, %v2250, %v2254
      %v2256 = vshrl.u32 %v2153, 16
      %v2258 = vrot.slane %v2256, 4
      %v2259 = vor.u32 %v2258, %v2254
      %v2260 = vrot.slane %v2259, 4
      %v2262 = vshll.u32 %v2154, 16
      %v2264 = vrot.slane %v2262, 5
      %v2265 = vsel %vm1246, %v2260, %v2264
      %v2267 = vshrl.u32 %v2155, 16
      %v2269 = vrot.slane %v2267, 4
      %v2270 = vshll.u32 %v2155, 16
      %v2272 = vrot.slane %v2270, 5
      %v2273 = vor.u32 %v2269, %v2272
      %v2274 = vrot.slane %v2273, 4
      %v2276 = vshll.u32 %v2156, 16
      %v2278 = vrot.slane %v2276, 5
      %v2279 = vsel %vm1246, %v2274, %v2278
      %v2280 = vshrl.u32 %v2156, 16
      %v2282 = vrot.slane %v2280, 4
      %v2283 = vor.u32 %v2282, %v2278
      %v2284 = vrot.slane %v2283, 4
      %v2286 = vshll.u32 %v2157, 16
      %v2288 = vrot.slane %v2286, 5
      %v2289 = vsel %vm1246, %v2284, %v2288
      %v2291 = vshrl.u32 %v2158, 16
      %v2293 = vrot.slane %v2291, 4
      %v2294 = vshll.u32 %v2158, 16
      %v2296 = vrot.slane %v2294, 5
      %v2297 = vor.u32 %v2293, %v2296
      %v2298 = vrot.slane %v2297, 4
      %v2300 = vshll.u32 %v2159, 16
      %v2302 = vrot.slane %v2300, 5
      %v2303 = vsel %vm1246, %v2298, %v2302
      %v2304 = vshrl.u32 %v2159, 16
      %v2306 = vrot.slane %v2304, 4
      %v2307 = vor.u32 %v2306, %v2302
      %v2308 = vrot.slane %v2307, 4
      %v2310 = vshll.u32 %v2160, 16
      %v2312 = vrot.slane %v2310, 5
      %v2313 = vsel %vm1246, %v2308, %v2312
      %v2315 = vshrl.u32 %v2161, 16
      %v2317 = vrot.slane %v2315, 4
      %v2318 = vshll.u32 %v2161, 16
      %v2320 = vrot.slane %v2318, 5
      %v2321 = vor.u32 %v2317, %v2320
      %v2322 = vrot.slane %v2321, 4
      %v2324 = vshll.u32 %v2162, 16
      %v2326 = vrot.slane %v2324, 5
      %v2327 = vsel %vm1246, %v2322, %v2326
      %v2328 = vshrl.u32 %v2162, 16
      %v2330 = vrot.slane %v2328, 4
      %v2331 = vor.u32 %v2330, %v2326
      %v2332 = vrot.slane %v2331, 4
      %v2334 = vshll.u32 %v2163, 16
      %v2336 = vrot.slane %v2334, 5
      %v2337 = vsel %vm1246, %v2332, %v2336
      %v2339 = vshrl.u32 %v2164, 16
      %v2341 = vrot.slane %v2339, 4
      %v2342 = vshll.u32 %v2164, 16
      %v2344 = vrot.slane %v2342, 5
      %v2345 = vor.u32 %v2341, %v2344
      %v2346 = vrot.slane %v2345, 4
      %v2348 = vshll.u32 %v2165, 16
      %v2350 = vrot.slane %v2348, 5
      %v2351 = vsel %vm1246, %v2346, %v2350
      %v2352 = vshrl.u32 %v2165, 16
      %v2354 = vrot.slane %v2352, 4
      %v2355 = vor.u32 %v2354, %v2350
      %v2356 = vrot.slane %v2355, 4
      %v2358 = vshll.u32 %v2166, 16
      %v2360 = vrot.slane %v2358, 5
      %v2361 = vsel %vm1246, %v2356, %v2360
      %v2363 = vshrl.u32 %v2167, 16
      %v2365 = vrot.slane %v2363, 4
      %v2366 = vshll.u32 %v2167, 16
      %v2368 = vrot.slane %v2366, 5
      %v2369 = vor.u32 %v2365, %v2368
      %v2370 = vrot.slane %v2369, 4
      %v2372 = vshll.u32 %v2168, 16
      %v2374 = vrot.slane %v2372, 5
      %v2375 = vsel %vm1246, %v2370, %v2374
      %v2376 = vshrl.u32 %v2168, 16
      %v2378 = vrot.slane %v2376, 4
      %v2379 = vor.u32 %v2378, %v2374
      %v2380 = vrot.slane %v2379, 4
      %v2382 = vshll.u32 %v2169, 16
      %v2384 = vrot.slane %v2382, 5
      %v2385 = vsel %vm1246, %v2380, %v2384
      %v2387 = vshrl.u32 %v2170, 16
      %v2389 = vrot.slane %v2387, 4
      %v2390 = vshll.u32 %v2170, 16
      %v2392 = vrot.slane %v2390, 5
      %v2393 = vor.u32 %v2389, %v2392
      %v2394 = vrot.slane %v2393, 4
      %v2396 = vshll.u32 %v2171, 16
      %v2398 = vrot.slane %v2396, 5
      %v2399 = vsel %vm1246, %v2394, %v2398
      %v2400 = vshrl.u32 %v2171, 16
      %v2402 = vrot.slane %v2400, 4
      %v2403 = vor.u32 %v2402, %v2398
      %v2404 = vrot.slane %v2403, 4
      %v2406 = vshll.u32 %v2172, 16
      %v2408 = vrot.slane %v2406, 5
      %v2409 = vsel %vm1246, %v2404, %v2408
      %v2411 = vshrl.u32 %v2173, 16
      %v2413 = vrot.slane %v2411, 4
      %v2414 = vshll.u32 %v2173, 16
      %v2416 = vrot.slane %v2414, 5
      %v2417 = vor.u32 %v2413, %v2416
      %v2418 = vrot.slane %v2417, 4
      %v2420 = vshll.u32 %v2174, 16
      %v2422 = vrot.slane %v2420, 5
      %v2423 = vsel %vm1246, %v2418, %v2422
      %v2424 = vshrl.u32 %v2174, 16
      %v2426 = vrot.slane %v2424, 4
      %v2427 = vor.u32 %v2426, %v2422
      %v2428 = vrot.slane %v2427, 4
      %v2430 = vshll.u32 %v2175, 16
      %v2432 = vrot.slane %v2430, 5
      %v2433 = vsel %vm1246, %v2428, %v2432
      %v2435 = vshrl.u32 %v2176, 16
      %v2437 = vrot.slane %v2435, 4
      %v2438 = vshll.u32 %v2176, 16
      %v2440 = vrot.slane %v2438, 5
      %v2441 = vor.u32 %v2437, %v2440
      %v2442 = vrot.slane %v2441, 4
      %v2444 = vshll.u32 %v2177, 16
      %v2446 = vrot.slane %v2444, 5
      %v2447 = vsel %vm1246, %v2442, %v2446
      %v2448 = vshrl.u32 %v2177, 16
      %v2450 = vrot.slane %v2448, 4
      %v2451 = vor.u32 %v2450, %v2446
      %v2452 = vrot.slane %v2451, 4
      %v2454 = vshll.u32 %v2178, 16
      %v2456 = vrot.slane %v2454, 5
      %v2457 = vsel %vm1246, %v2452, %v2456
      %v2459 = vshrl.u32 %v2179, 16
      %v2461 = vrot.slane %v2459, 4
      %v2462 = vshll.u32 %v2179, 16
      %v2464 = vrot.slane %v2462, 5
      %v2465 = vor.u32 %v2461, %v2464
      %v2466 = vrot.slane %v2465, 4
      %v2468 = vshll.u32 %v2180, 16
      %v2470 = vrot.slane %v2468, 5
      %v2471 = vsel %vm1246, %v2466, %v2470
      %v2472 = vshrl.u32 %v2180, 16
      %v2474 = vrot.slane %v2472, 4
      %v2475 = vor.u32 %v2474, %v2470
      %v2476 = vrot.slane %v2475, 4
      %v2478 = vshll.u32 %v2181, 16
      %v2480 = vrot.slane %v2478, 5
      %v2481 = vsel %vm1246, %v2476, %v2480
      %v2483 = vshrl.u32 %v2182, 16
      %v2485 = vrot.slane %v2483, 4
      %v2486 = vshll.u32 %v2182, 16
      %v2488 = vrot.slane %v2486, 5
      %v2489 = vor.u32 %v2485, %v2488
      %v2490 = vrot.slane %v2489, 4
      %v2492 = vshll.u32 %v2183, 16
      %v2494 = vrot.slane %v2492, 5
      %v2495 = vsel %vm1246, %v2490, %v2494
      %v2496 = vshrl.u32 %v2183, 16
      %v2498 = vrot.slane %v2496, 4
      %v2499 = vor.u32 %v2498, %v2494
      %v2500 = vrot.slane %v2499, 4
      %v2502 = vshll.u32 %v2184, 16
      %v2504 = vrot.slane %v2502, 5
      %v2505 = vsel %vm1246, %v2500, %v2504
      %v2507 = vshrl.u32 %v2185, 16
      %v2509 = vrot.slane %v2507, 4
      %v2510 = vshll.u32 %v2185, 16
      %v2512 = vrot.slane %v2510, 5
      %v2513 = vor.u32 %v2509, %v2512
      %v2514 = vrot.slane %v2513, 4
      %v2516 = vshll.u32 %v2186, 16
      %v2518 = vrot.slane %v2516, 5
      %v2519 = vsel %vm1246, %v2514, %v2518
      %v2520 = vshrl.u32 %v2186, 16
      %v2522 = vrot.slane %v2520, 4
      %v2523 = vor.u32 %v2522, %v2518
      %v2524 = vrot.slane %v2523, 4
      %v2526 = vshll.u32 %v2187, 16
      %v2528 = vrot.slane %v2526, 5
      %v2529 = vsel %vm1246, %v2524, %v2528
      %v2531 = vshrl.u32 %v2188, 16
      %v2533 = vrot.slane %v2531, 4
      %v2534 = vshll.u32 %v2188, 16
      %v2536 = vrot.slane %v2534, 5
      %v2537 = vor.u32 %v2533, %v2536
      %v2538 = vrot.slane %v2537, 4
      %v2540 = vshll.u32 %v2189, 16
      %v2542 = vrot.slane %v2540, 5
      %v2543 = vsel %vm1246, %v2538, %v2542
      %v2544 = vshrl.u32 %v2189, 16
      %v2546 = vrot.slane %v2544, 4
      %v2547 = vor.u32 %v2546, %v2542
      %v2548 = vrot.slane %v2547, 4
      %v2550 = vshll.u32 %v2190, 16
      %v2552 = vrot.slane %v2550, 5
      %v2553 = vsel %vm1246, %v2548, %v2552
      %v2555 = vshrl.u32 %v2191, 16
      %v2557 = vrot.slane %v2555, 4
      %v2558 = vshll.u32 %v2191, 16
      %v2560 = vrot.slane %v2558, 5
      %v2561 = vor.u32 %v2557, %v2560
      %v2562 = vrot.slane %v2561, 4
      %v2564 = vshll.u32 %v2192, 16
      %v2566 = vrot.slane %v2564, 5
      %v2567 = vsel %vm1246, %v2562, %v2566
      %v2568 = vshrl.u32 %v2192, 16
      %v2570 = vrot.slane %v2568, 4
      %v2571 = vor.u32 %v2570, %v2566
      %v2572 = vrot.slane %v2571, 4
      %v2574 = vshll.u32 %v2193, 16
      %v2576 = vrot.slane %v2574, 5
      %v2577 = vsel %vm1246, %v2572, %v2576
      %v2578 = vunpack.c.l.b16 %v2207
      %v2579 = vunpack.c.l.b16 %v2217
      %v2580 = vunpack.c.l.b16 %v2231
      %v2581 = vunpack.c.l.b16 %v2241
      %v2582 = vunpack.c.l.b16 %v2255
      %v2583 = vunpack.c.l.b16 %v2265
      %v2584 = vunpack.c.l.b16 %v2279
      %v2585 = vunpack.c.l.b16 %v2289
      %v2586 = vunpack.c.l.b16 %v2303
      %v2587 = vunpack.c.l.b16 %v2313
      %v2588 = vunpack.c.l.b16 %v2327
      %v2589 = vunpack.c.l.b16 %v2337
      %v2590 = vunpack.c.l.b16 %v2351
      %v2591 = vunpack.c.l.b16 %v2361
      %v2592 = vunpack.c.l.b16 %v2375
      %v2593 = vunpack.c.l.b16 %v2385
      %v2594 = vunpack.c.l.b16 %v2399
      %v2595 = vunpack.c.l.b16 %v2409
      %v2596 = vunpack.c.l.b16 %v2423
      %v2597 = vunpack.c.l.b16 %v2433
      %v2598 = vunpack.c.l.b16 %v2447
      %v2599 = vunpack.c.l.b16 %v2457
      %v2600 = vunpack.c.l.b16 %v2471
      %v2601 = vunpack.c.l.b16 %v2481
      %v2602 = vunpack.c.l.b16 %v2495
      %v2603 = vunpack.c.l.b16 %v2505
      %v2604 = vunpack.c.l.b16 %v2519
      %v2605 = vunpack.c.l.b16 %v2529
      %v2606 = vunpack.c.l.b16 %v2543
      %v2607 = vunpack.c.l.b16 %v2553
      %v2608 = vunpack.c.l.b16 %v2567
      %v2609 = vunpack.c.l.b16 %v2577
      %v2610 = vpack.c.b16 %v2579, %v2578
      %v2611 = vpack.c.b16 %v2581, %v2580
      %v2612 = vpack.c.b16 %v2583, %v2582
      %v2613 = vpack.c.b16 %v2585, %v2584
      %v2614 = vpack.c.b16 %v2587, %v2586
      %v2615 = vpack.c.b16 %v2589, %v2588
      %v2616 = vpack.c.b16 %v2591, %v2590
      %v2617 = vpack.c.b16 %v2593, %v2592
      %v2618 = vpack.c.b16 %v2595, %v2594
      %v2619 = vpack.c.b16 %v2597, %v2596
      %v2620 = vpack.c.b16 %v2599, %v2598
      %v2621 = vpack.c.b16 %v2601, %v2600
      %v2622 = vpack.c.b16 %v2603, %v2602
      %v2623 = vpack.c.b16 %v2605, %v2604
      %v2624 = vpack.c.b16 %v2607, %v2606
      %v2625 = vpack.c.b16 %v2609, %v2608
      %2642 = vst [vmem:[#allocation3 + $0x20] sm:$0xff] %v2610
      %2643 = vst [vmem:[#allocation3 + $0x68] sm:$0xff] %v2611
      %2644 = vst [vmem:[#allocation3 + $0xb0] sm:$0xff] %v2612
      %2645 = vst [vmem:[#allocation3 + $0xf8] sm:$0xff] %v2613
      %2646 = vst [vmem:[#allocation3 + $0x140] sm:$0xff] %v2614
      %2647 = vst [vmem:[#allocation3 + $0x188] sm:$0xff] %v2615
      %2648 = vst [vmem:[#allocation3 + $0x1d0] sm:$0xff] %v2616
      %2649 = vst [vmem:[#allocation3 + $0x218] sm:$0xff] %v2617
      %2650 = vst [vmem:[#allocation3 + $0x260] sm:$0xff] %v2618
      %2651 = vst [vmem:[#allocation3 + $0x2a8] sm:$0xff] %v2619
      %2652 = vst [vmem:[#allocation3 + $0x2f0] sm:$0xff] %v2620
      %2653 = vst [vmem:[#allocation3 + $0x338] sm:$0xff] %v2621
      %2654 = vst [vmem:[#allocation3 + $0x380] sm:$0xff] %v2622
      %2655 = vst [vmem:[#allocation3 + $0x3c8] sm:$0xff] %v2623
      %2656 = vst [vmem:[#allocation3 + $0x410] sm:$0xff] %v2624
      %2657 = vst [vmem:[#allocation3 + $0x458] sm:$0xff] %v2625
      %v2658 = vld [vmem:[%s418] sm:$0xe]
      %v2659 = vld [vmem:[%s418 + $0x4] sm:$0xf]
      %v2660 = vld [vmem:[%s418 + $0x8] sm:$0x1]
      %v2661 = vld [vmem:[%s418 + $0xc] sm:$0xe]
      %v2662 = vld [vmem:[%s418 + $0x10] sm:$0xf]
      %v2663 = vld [vmem:[%s418 + $0x14] sm:$0x1]
      %v2664 = vld [vmem:[%s418 + $0x18] sm:$0xe]
      %v2665 = vld [vmem:[%s418 + $0x1c] sm:$0xf]
      %v2666 = vld [vmem:[%s418 + $0x20] sm:$0x1]
      %v2667 = vld [vmem:[%s418 + $0x24] sm:$0xe]
      %v2668 = vld [vmem:[%s418 + $0x28] sm:$0xf]
      %v2669 = vld [vmem:[%s418 + $0x2c] sm:$0x1]
      %v2670 = vld [vmem:[%s418 + $0x30] sm:$0xe]
      %v2671 = vld [vmem:[%s418 + $0x34] sm:$0xf]
      %v2672 = vld [vmem:[%s418 + $0x38] sm:$0x1]
      %v2673 = vld [vmem:[%s418 + $0x3c] sm:$0xe]
      %v2674 = vld [vmem:[%s418 + $0x40] sm:$0xf]
      %v2675 = vld [vmem:[%s418 + $0x44] sm:$0x1]
      %v2676 = vld [vmem:[%s418 + $0x48] sm:$0xe]
      %v2677 = vld [vmem:[%s418 + $0x4c] sm:$0xf]
      %v2678 = vld [vmem:[%s418 + $0x50] sm:$0x1]
      %v2679 = vld [vmem:[%s418 + $0x54] sm:$0xe]
      %v2680 = vld [vmem:[%s418 + $0x58] sm:$0xf]
      %v2681 = vld [vmem:[%s418 + $0x5c] sm:$0x1]
      %v2682 = vld [vmem:[%s418 + $0x60] sm:$0xe]
      %v2683 = vld [vmem:[%s418 + $0x64] sm:$0xf]
      %v2684 = vld [vmem:[%s418 + $0x68] sm:$0x1]
      %v2685 = vld [vmem:[%s418 + $0x6c] sm:$0xe]
      %v2686 = vld [vmem:[%s418 + $0x70] sm:$0xf]
      %v2687 = vld [vmem:[%s418 + $0x74] sm:$0x1]
      %v2688 = vld [vmem:[%s418 + $0x78] sm:$0xe]
      %v2689 = vld [vmem:[%s418 + $0x7c] sm:$0xf]
      %v2690 = vld [vmem:[%s418 + $0x80] sm:$0x1]
      %v2691 = vld [vmem:[%s418 + $0x84] sm:$0xe]
      %v2692 = vld [vmem:[%s418 + $0x88] sm:$0xf]
      %v2693 = vld [vmem:[%s418 + $0x8c] sm:$0x1]
      %v2694 = vld [vmem:[%s418 + $0x90] sm:$0xe]
      %v2695 = vld [vmem:[%s418 + $0x94] sm:$0xf]
      %v2696 = vld [vmem:[%s418 + $0x98] sm:$0x1]
      %v2697 = vld [vmem:[%s418 + $0x9c] sm:$0xe]
      %v2698 = vld [vmem:[%s418 + $0xa0] sm:$0xf]
      %v2699 = vld [vmem:[%s418 + $0xa4] sm:$0x1]
      %v2700 = vld [vmem:[%s418 + $0xa8] sm:$0xe]
      %v2701 = vld [vmem:[%s418 + $0xac] sm:$0xf]
      %v2702 = vld [vmem:[%s418 + $0xb0] sm:$0x1]
      %v2703 = vld [vmem:[%s418 + $0xb4] sm:$0xe]
      %v2704 = vld [vmem:[%s418 + $0xb8] sm:$0xf]
      %v2705 = vld [vmem:[%s418 + $0xbc] sm:$0x1]
      %v2754 = vrot.slane %v2658, 5
      %v2755 = vrot.slane %v2754, 4
      %v2756 = vrot.slane %v2659, 5
      %v2757 = vsel %vm1809, %v2755, %v2756
      %v2758 = vrot.slane %v2756, 4
      %v2759 = vrot.slane %v2660, 5
      %v2760 = vsel %vm1809, %v2758, %v2759
      %v2761 = vrot.slane %v2661, 5
      %v2762 = vrot.slane %v2761, 4
      %v2763 = vrot.slane %v2662, 5
      %v2764 = vsel %vm1809, %v2762, %v2763
      %v2765 = vrot.slane %v2763, 4
      %v2766 = vrot.slane %v2663, 5
      %v2767 = vsel %vm1809, %v2765, %v2766
      %v2768 = vrot.slane %v2664, 5
      %v2769 = vrot.slane %v2768, 4
      %v2770 = vrot.slane %v2665, 5
      %v2771 = vsel %vm1809, %v2769, %v2770
      %v2772 = vrot.slane %v2770, 4
      %v2773 = vrot.slane %v2666, 5
      %v2774 = vsel %vm1809, %v2772, %v2773
      %v2775 = vrot.slane %v2667, 5
      %v2776 = vrot.slane %v2775, 4
      %v2777 = vrot.slane %v2668, 5
      %v2778 = vsel %vm1809, %v2776, %v2777
      %v2779 = vrot.slane %v2777, 4
      %v2780 = vrot.slane %v2669, 5
      %v2781 = vsel %vm1809, %v2779, %v2780
      %v2782 = vrot.slane %v2670, 5
      %v2783 = vrot.slane %v2782, 4
      %v2784 = vrot.slane %v2671, 5
      %v2785 = vsel %vm1809, %v2783, %v2784
      %v2786 = vrot.slane %v2784, 4
      %v2787 = vrot.slane %v2672, 5
      %v2788 = vsel %vm1809, %v2786, %v2787
      %v2789 = vrot.slane %v2673, 5
      %v2790 = vrot.slane %v2789, 4
      %v2791 = vrot.slane %v2674, 5
      %v2792 = vsel %vm1809, %v2790, %v2791
      %v2793 = vrot.slane %v2791, 4
      %v2794 = vrot.slane %v2675, 5
      %v2795 = vsel %vm1809, %v2793, %v2794
      %v2796 = vrot.slane %v2676, 5
      %v2797 = vrot.slane %v2796, 4
      %v2798 = vrot.slane %v2677, 5
      %v2799 = vsel %vm1809, %v2797, %v2798
      %v2800 = vrot.slane %v2798, 4
      %v2801 = vrot.slane %v2678, 5
      %v2802 = vsel %vm1809, %v2800, %v2801
      %v2803 = vrot.slane %v2679, 5
      %v2804 = vrot.slane %v2803, 4
      %v2805 = vrot.slane %v2680, 5
      %v2806 = vsel %vm1809, %v2804, %v2805
      %v2807 = vrot.slane %v2805, 4
      %v2808 = vrot.slane %v2681, 5
      %v2809 = vsel %vm1809, %v2807, %v2808
      %v2810 = vrot.slane %v2682, 5
      %v2811 = vrot.slane %v2810, 4
      %v2812 = vrot.slane %v2683, 5
      %v2813 = vsel %vm1809, %v2811, %v2812
      %v2814 = vrot.slane %v2812, 4
      %v2815 = vrot.slane %v2684, 5
      %v2816 = vsel %vm1809, %v2814, %v2815
      %v2817 = vrot.slane %v2685, 5
      %v2818 = vrot.slane %v2817, 4
      %v2819 = vrot.slane %v2686, 5
      %v2820 = vsel %vm1809, %v2818, %v2819
      %v2821 = vrot.slane %v2819, 4
      %v2822 = vrot.slane %v2687, 5
      %v2823 = vsel %vm1809, %v2821, %v2822
      %v2824 = vrot.slane %v2688, 5
      %v2825 = vrot.slane %v2824, 4
      %v2826 = vrot.slane %v2689, 5
      %v2827 = vsel %vm1809, %v2825, %v2826
      %v2828 = vrot.slane %v2826, 4
      %v2829 = vrot.slane %v2690, 5
      %v2830 = vsel %vm1809, %v2828, %v2829
      %v2831 = vrot.slane %v2691, 5
      %v2832 = vrot.slane %v2831, 4
      %v2833 = vrot.slane %v2692, 5
      %v2834 = vsel %vm1809, %v2832, %v2833
      %v2835 = vrot.slane %v2833, 4
      %v2836 = vrot.slane %v2693, 5
      %v2837 = vsel %vm1809, %v2835, %v2836
      %v2838 = vrot.slane %v2694, 5
      %v2839 = vrot.slane %v2838, 4
      %v2840 = vrot.slane %v2695, 5
      %v2841 = vsel %vm1809, %v2839, %v2840
      %v2842 = vrot.slane %v2840, 4
      %v2843 = vrot.slane %v2696, 5
      %v2844 = vsel %vm1809, %v2842, %v2843
      %v2845 = vrot.slane %v2697, 5
      %v2846 = vrot.slane %v2845, 4
      %v2847 = vrot.slane %v2698, 5
      %v2848 = vsel %vm1809, %v2846, %v2847
      %v2849 = vrot.slane %v2847, 4
      %v2850 = vrot.slane %v2699, 5
      %v2851 = vsel %vm1809, %v2849, %v2850
      %v2852 = vrot.slane %v2700, 5
      %v2853 = vrot.slane %v2852, 4
      %v2854 = vrot.slane %v2701, 5
      %v2855 = vsel %vm1809, %v2853, %v2854
      %v2856 = vrot.slane %v2854, 4
      %v2857 = vrot.slane %v2702, 5
      %v2858 = vsel %vm1809, %v2856, %v2857
      %v2859 = vrot.slane %v2703, 5
      %v2860 = vrot.slane %v2859, 4
      %v2861 = vrot.slane %v2704, 5
      %v2862 = vsel %vm1809, %v2860, %v2861
      %v2863 = vrot.slane %v2861, 4
      %v2864 = vrot.slane %v2705, 5
      %v2865 = vsel %vm1809, %v2863, %v2864
      %v2866 = vunpack.c.l.b16 %v2757
      %v2867 = vunpack.c.l.b16 %v2760
      %v2868 = vunpack.c.l.b16 %v2764
      %v2869 = vunpack.c.l.b16 %v2767
      %v2870 = vunpack.c.l.b16 %v2771
      %v2871 = vunpack.c.l.b16 %v2774
      %v2872 = vunpack.c.l.b16 %v2778
      %v2873 = vunpack.c.l.b16 %v2781
      %v2874 = vunpack.c.l.b16 %v2785
      %v2875 = vunpack.c.l.b16 %v2788
      %v2876 = vunpack.c.l.b16 %v2792
      %v2877 = vunpack.c.l.b16 %v2795
      %v2878 = vunpack.c.l.b16 %v2799
      %v2879 = vunpack.c.l.b16 %v2802
      %v2880 = vunpack.c.l.b16 %v2806
      %v2881 = vunpack.c.l.b16 %v2809
      %v2882 = vunpack.c.l.b16 %v2813
      %v2883 = vunpack.c.l.b16 %v2816
      %v2884 = vunpack.c.l.b16 %v2820
      %v2885 = vunpack.c.l.b16 %v2823
      %v2886 = vunpack.c.l.b16 %v2827
      %v2887 = vunpack.c.l.b16 %v2830
      %v2888 = vunpack.c.l.b16 %v2834
      %v2889 = vunpack.c.l.b16 %v2837
      %v2890 = vunpack.c.l.b16 %v2841
      %v2891 = vunpack.c.l.b16 %v2844
      %v2892 = vunpack.c.l.b16 %v2848
      %v2893 = vunpack.c.l.b16 %v2851
      %v2894 = vunpack.c.l.b16 %v2855
      %v2895 = vunpack.c.l.b16 %v2858
      %v2896 = vunpack.c.l.b16 %v2862
      %v2897 = vunpack.c.l.b16 %v2865
      %v2898 = vpack.c.b16 %v2867, %v2866
      %v2899 = vpack.c.b16 %v2869, %v2868
      %v2900 = vpack.c.b16 %v2871, %v2870
      %v2901 = vpack.c.b16 %v2873, %v2872
      %v2902 = vpack.c.b16 %v2875, %v2874
      %v2903 = vpack.c.b16 %v2877, %v2876
      %v2904 = vpack.c.b16 %v2879, %v2878
      %v2905 = vpack.c.b16 %v2881, %v2880
      %v2906 = vpack.c.b16 %v2883, %v2882
      %v2907 = vpack.c.b16 %v2885, %v2884
      %v2908 = vpack.c.b16 %v2887, %v2886
      %v2909 = vpack.c.b16 %v2889, %v2888
      %v2910 = vpack.c.b16 %v2891, %v2890
      %v2911 = vpack.c.b16 %v2893, %v2892
      %v2912 = vpack.c.b16 %v2895, %v2894
      %v2913 = vpack.c.b16 %v2897, %v2896
      %2930 = vst [vmem:[#allocation3 + $0x28] sm:$0xff] %v2898
      %2931 = vst [vmem:[#allocation3 + $0x70] sm:$0xff] %v2899
      %2932 = vst [vmem:[#allocation3 + $0xb8] sm:$0xff] %v2900
      %2933 = vst [vmem:[#allocation3 + $0x100] sm:$0xff] %v2901
      %2934 = vst [vmem:[#allocation3 + $0x148] sm:$0xff] %v2902
      %2935 = vst [vmem:[#allocation3 + $0x190] sm:$0xff] %v2903
      %2936 = vst [vmem:[#allocation3 + $0x1d8] sm:$0xff] %v2904
      %2937 = vst [vmem:[#allocation3 + $0x220] sm:$0xff] %v2905
      %2938 = vst [vmem:[#allocation3 + $0x268] sm:$0xff] %v2906
      %2939 = vst [vmem:[#allocation3 + $0x2b0] sm:$0xff] %v2907
      %2940 = vst [vmem:[#allocation3 + $0x2f8] sm:$0xff] %v2908
      %2941 = vst [vmem:[#allocation3 + $0x340] sm:$0xff] %v2909
      %2942 = vst [vmem:[#allocation3 + $0x388] sm:$0xff] %v2910
      %2943 = vst [vmem:[#allocation3 + $0x3d0] sm:$0xff] %v2911
      %2944 = vst [vmem:[#allocation3 + $0x418] sm:$0xff] %v2912
      %2945 = vst [vmem:[#allocation3 + $0x460] sm:$0xff] %v2913
      %s2946 = scalar_lea.vmem [#allocation2], 24
      %v2947 = vld [vmem:[%s2946] sm:$0xf]
      %v2948 = vld [vmem:[%s2946 + $0x4] sm:$0xf]
      %v2949 = vld [vmem:[%s2946 + $0xc] sm:$0xf]
      %v2950 = vld [vmem:[%s2946 + $0x10] sm:$0xf]
      %v2951 = vld [vmem:[%s2946 + $0x18] sm:$0xf]
      %v2952 = vld [vmem:[%s2946 + $0x1c] sm:$0xf]
      %v2953 = vld [vmem:[%s2946 + $0x24] sm:$0xf]
      %v2954 = vld [vmem:[%s2946 + $0x28] sm:$0xf]
      %v2955 = vld [vmem:[%s2946 + $0x30] sm:$0xf]
      %v2956 = vld [vmem:[%s2946 + $0x34] sm:$0xf]
      %v2957 = vld [vmem:[%s2946 + $0x3c] sm:$0xf]
      %v2958 = vld [vmem:[%s2946 + $0x40] sm:$0xf]
      %v2959 = vld [vmem:[%s2946 + $0x48] sm:$0xf]
      %v2960 = vld [vmem:[%s2946 + $0x4c] sm:$0xf]
      %v2961 = vld [vmem:[%s2946 + $0x54] sm:$0xf]
      %v2962 = vld [vmem:[%s2946 + $0x58] sm:$0xf]
      %v2963 = vld [vmem:[%s2946 + $0x60] sm:$0xf]
      %v2964 = vld [vmem:[%s2946 + $0x64] sm:$0xf]
      %v2965 = vld [vmem:[%s2946 + $0x6c] sm:$0xf]
      %v2966 = vld [vmem:[%s2946 + $0x70] sm:$0xf]
      %v2967 = vld [vmem:[%s2946 + $0x78] sm:$0xf]
      %v2968 = vld [vmem:[%s2946 + $0x7c] sm:$0xf]
      %v2969 = vld [vmem:[%s2946 + $0x84] sm:$0xf]
      %v2970 = vld [vmem:[%s2946 + $0x88] sm:$0xf]
      %v2971 = vld [vmem:[%s2946 + $0x90] sm:$0xf]
      %v2972 = vld [vmem:[%s2946 + $0x94] sm:$0xf]
      %v2973 = vld [vmem:[%s2946 + $0x9c] sm:$0xf]
      %v2974 = vld [vmem:[%s2946 + $0xa0] sm:$0xf]
      %v2975 = vld [vmem:[%s2946 + $0xa8] sm:$0xf]
      %v2976 = vld [vmem:[%s2946 + $0xac] sm:$0xf]
      %v2977 = vld [vmem:[%s2946 + $0xb4] sm:$0xf]
      %v2978 = vld [vmem:[%s2946 + $0xb8] sm:$0xf]
      %v3011 = vunpack.c.l.b16 %v2947
      %v3012 = vunpack.c.l.b16 %v2948
      %v3013 = vunpack.c.l.b16 %v2949
      %v3014 = vunpack.c.l.b16 %v2950
      %v3015 = vunpack.c.l.b16 %v2951
      %v3016 = vunpack.c.l.b16 %v2952
      %v3017 = vunpack.c.l.b16 %v2953
      %v3018 = vunpack.c.l.b16 %v2954
      %v3019 = vunpack.c.l.b16 %v2955
      %v3020 = vunpack.c.l.b16 %v2956
      %v3021 = vunpack.c.l.b16 %v2957
      %v3022 = vunpack.c.l.b16 %v2958
      %v3023 = vunpack.c.l.b16 %v2959
      %v3024 = vunpack.c.l.b16 %v2960
      %v3025 = vunpack.c.l.b16 %v2961
      %v3026 = vunpack.c.l.b16 %v2962
      %v3027 = vunpack.c.l.b16 %v2963
      %v3028 = vunpack.c.l.b16 %v2964
      %v3029 = vunpack.c.l.b16 %v2965
      %v3030 = vunpack.c.l.b16 %v2966
      %v3031 = vunpack.c.l.b16 %v2967
      %v3032 = vunpack.c.l.b16 %v2968
      %v3033 = vunpack.c.l.b16 %v2969
      %v3034 = vunpack.c.l.b16 %v2970
      %v3035 = vunpack.c.l.b16 %v2971
      %v3036 = vunpack.c.l.b16 %v2972
      %v3037 = vunpack.c.l.b16 %v2973
      %v3038 = vunpack.c.l.b16 %v2974
      %v3039 = vunpack.c.l.b16 %v2975
      %v3040 = vunpack.c.l.b16 %v2976
      %v3041 = vunpack.c.l.b16 %v2977
      %v3042 = vunpack.c.l.b16 %v2978
      %v3043 = vpack.c.b16 %v3012, %v3011
      %v3044 = vpack.c.b16 %v3014, %v3013
      %v3045 = vpack.c.b16 %v3016, %v3015
      %v3046 = vpack.c.b16 %v3018, %v3017
      %v3047 = vpack.c.b16 %v3020, %v3019
      %v3048 = vpack.c.b16 %v3022, %v3021
      %v3049 = vpack.c.b16 %v3024, %v3023
      %v3050 = vpack.c.b16 %v3026, %v3025
      %v3051 = vpack.c.b16 %v3028, %v3027
      %v3052 = vpack.c.b16 %v3030, %v3029
      %v3053 = vpack.c.b16 %v3032, %v3031
      %v3054 = vpack.c.b16 %v3034, %v3033
      %v3055 = vpack.c.b16 %v3036, %v3035
      %v3056 = vpack.c.b16 %v3038, %v3037
      %v3057 = vpack.c.b16 %v3040, %v3039
      %v3058 = vpack.c.b16 %v3042, %v3041
      %3075 = vst [vmem:[#allocation3 + $0x30] sm:$0xff] %v3043
      %3076 = vst [vmem:[#allocation3 + $0x78] sm:$0xff] %v3044
      %3077 = vst [vmem:[#allocation3 + $0xc0] sm:$0xff] %v3045
      %3078 = vst [vmem:[#allocation3 + $0x108] sm:$0xff] %v3046
      %3079 = vst [vmem:[#allocation3 + $0x150] sm:$0xff] %v3047
      %3080 = vst [vmem:[#allocation3 + $0x198] sm:$0xff] %v3048
      %3081 = vst [vmem:[#allocation3 + $0x1e0] sm:$0xff] %v3049
      %3082 = vst [vmem:[#allocation3 + $0x228] sm:$0xff] %v3050
      %3083 = vst [vmem:[#allocation3 + $0x270] sm:$0xff] %v3051
      %3084 = vst [vmem:[#allocation3 + $0x2b8] sm:$0xff] %v3052
      %3085 = vst [vmem:[#allocation3 + $0x300] sm:$0xff] %v3053
      %3086 = vst [vmem:[#allocation3 + $0x348] sm:$0xff] %v3054
      %3087 = vst [vmem:[#allocation3 + $0x390] sm:$0xff] %v3055
      %3088 = vst [vmem:[#allocation3 + $0x3d8] sm:$0xff] %v3056
      %3089 = vst [vmem:[#allocation3 + $0x420] sm:$0xff] %v3057
      %3090 = vst [vmem:[#allocation3 + $0x468] sm:$0xff] %v3058
      %v3091 = vld [vmem:[%s2946] sm:$0xf]
      %v3092 = vld [vmem:[%s2946 + $0x4] sm:$0xf]
      %v3093 = vld [vmem:[%s2946 + $0x8] sm:$0x1]
      %v3094 = vld [vmem:[%s2946 + $0xc] sm:$0xf]
      %v3095 = vld [vmem:[%s2946 + $0x10] sm:$0xf]
      %v3096 = vld [vmem:[%s2946 + $0x14] sm:$0x1]
      %v3097 = vld [vmem:[%s2946 + $0x18] sm:$0xf]
      %v3098 = vld [vmem:[%s2946 + $0x1c] sm:$0xf]
      %v3099 = vld [vmem:[%s2946 + $0x20] sm:$0x1]
      %v3100 = vld [vmem:[%s2946 + $0x24] sm:$0xf]
      %v3101 = vld [vmem:[%s2946 + $0x28] sm:$0xf]
      %v3102 = vld [vmem:[%s2946 + $0x2c] sm:$0x1]
      %v3103 = vld [vmem:[%s2946 + $0x30] sm:$0xf]
      %v3104 = vld [vmem:[%s2946 + $0x34] sm:$0xf]
      %v3105 = vld [vmem:[%s2946 + $0x38] sm:$0x1]
      %v3106 = vld [vmem:[%s2946 + $0x3c] sm:$0xf]
      %v3107 = vld [vmem:[%s2946 + $0x40] sm:$0xf]
      %v3108 = vld [vmem:[%s2946 + $0x44] sm:$0x1]
      %v3109 = vld [vmem:[%s2946 + $0x48] sm:$0xf]
      %v3110 = vld [vmem:[%s2946 + $0x4c] sm:$0xf]
      %v3111 = vld [vmem:[%s2946 + $0x50] sm:$0x1]
      %v3112 = vld [vmem:[%s2946 + $0x54] sm:$0xf]
      %v3113 = vld [vmem:[%s2946 + $0x58] sm:$0xf]
      %v3114 = vld [vmem:[%s2946 + $0x5c] sm:$0x1]
      %v3115 = vld [vmem:[%s2946 + $0x60] sm:$0xf]
      %v3116 = vld [vmem:[%s2946 + $0x64] sm:$0xf]
      %v3117 = vld [vmem:[%s2946 + $0x68] sm:$0x1]
      %v3118 = vld [vmem:[%s2946 + $0x6c] sm:$0xf]
      %v3119 = vld [vmem:[%s2946 + $0x70] sm:$0xf]
      %v3120 = vld [vmem:[%s2946 + $0x74] sm:$0x1]
      %v3121 = vld [vmem:[%s2946 + $0x78] sm:$0xf]
      %v3122 = vld [vmem:[%s2946 + $0x7c] sm:$0xf]
      %v3123 = vld [vmem:[%s2946 + $0x80] sm:$0x1]
      %v3124 = vld [vmem:[%s2946 + $0x84] sm:$0xf]
      %v3125 = vld [vmem:[%s2946 + $0x88] sm:$0xf]
      %v3126 = vld [vmem:[%s2946 + $0x8c] sm:$0x1]
      %v3127 = vld [vmem:[%s2946 + $0x90] sm:$0xf]
      %v3128 = vld [vmem:[%s2946 + $0x94] sm:$0xf]
      %v3129 = vld [vmem:[%s2946 + $0x98] sm:$0x1]
      %v3130 = vld [vmem:[%s2946 + $0x9c] sm:$0xf]
      %v3131 = vld [vmem:[%s2946 + $0xa0] sm:$0xf]
      %v3132 = vld [vmem:[%s2946 + $0xa4] sm:$0x1]
      %v3133 = vld [vmem:[%s2946 + $0xa8] sm:$0xf]
      %v3134 = vld [vmem:[%s2946 + $0xac] sm:$0xf]
      %v3135 = vld [vmem:[%s2946 + $0xb0] sm:$0x1]
      %v3136 = vld [vmem:[%s2946 + $0xb4] sm:$0xf]
      %v3137 = vld [vmem:[%s2946 + $0xb8] sm:$0xf]
      %v3138 = vld [vmem:[%s2946 + $0xbc] sm:$0x1]
      %v3140 = vshrl.u32 %v3091, 16
      %v3142 = vrot.slane %v3140, 4
      %v3143 = vshll.u32 %v3091, 16
      %v3145 = vrot.slane %v3143, 5
      %v3146 = vor.u32 %v3142, %v3145
      %v3147 = vrot.slane %v3146, 4
      %v3149 = vshll.u32 %v3092, 16
      %v3151 = vrot.slane %v3149, 5
      %v3152 = vsel %vm1246, %v3147, %v3151
      %v3153 = vshrl.u32 %v3092, 16
      %v3155 = vrot.slane %v3153, 4
      %v3156 = vor.u32 %v3155, %v3151
      %v3157 = vrot.slane %v3156, 4
      %v3159 = vshll.u32 %v3093, 16
      %v3161 = vrot.slane %v3159, 5
      %v3162 = vsel %vm1246, %v3157, %v3161
      %v3164 = vshrl.u32 %v3094, 16
      %v3166 = vrot.slane %v3164, 4
      %v3167 = vshll.u32 %v3094, 16
      %v3169 = vrot.slane %v3167, 5
      %v3170 = vor.u32 %v3166, %v3169
      %v3171 = vrot.slane %v3170, 4
      %v3173 = vshll.u32 %v3095, 16
      %v3175 = vrot.slane %v3173, 5
      %v3176 = vsel %vm1246, %v3171, %v3175
      %v3177 = vshrl.u32 %v3095, 16
      %v3179 = vrot.slane %v3177, 4
      %v3180 = vor.u32 %v3179, %v3175
      %v3181 = vrot.slane %v3180, 4
      %v3183 = vshll.u32 %v3096, 16
      %v3185 = vrot.slane %v3183, 5
      %v3186 = vsel %vm1246, %v3181, %v3185
      %v3188 = vshrl.u32 %v3097, 16
      %v3190 = vrot.slane %v3188, 4
      %v3191 = vshll.u32 %v3097, 16
      %v3193 = vrot.slane %v3191, 5
      %v3194 = vor.u32 %v3190, %v3193
      %v3195 = vrot.slane %v3194, 4
      %v3197 = vshll.u32 %v3098, 16
      %v3199 = vrot.slane %v3197, 5
      %v3200 = vsel %vm1246, %v3195, %v3199
      %v3201 = vshrl.u32 %v3098, 16
      %v3203 = vrot.slane %v3201, 4
      %v3204 = vor.u32 %v3203, %v3199
      %v3205 = vrot.slane %v3204, 4
      %v3207 = vshll.u32 %v3099, 16
      %v3209 = vrot.slane %v3207, 5
      %v3210 = vsel %vm1246, %v3205, %v3209
      %v3212 = vshrl.u32 %v3100, 16
      %v3214 = vrot.slane %v3212, 4
      %v3215 = vshll.u32 %v3100, 16
      %v3217 = vrot.slane %v3215, 5
      %v3218 = vor.u32 %v3214, %v3217
      %v3219 = vrot.slane %v3218, 4
      %v3221 = vshll.u32 %v3101, 16
      %v3223 = vrot.slane %v3221, 5
      %v3224 = vsel %vm1246, %v3219, %v3223
      %v3225 = vshrl.u32 %v3101, 16
      %v3227 = vrot.slane %v3225, 4
      %v3228 = vor.u32 %v3227, %v3223
      %v3229 = vrot.slane %v3228, 4
      %v3231 = vshll.u32 %v3102, 16
      %v3233 = vrot.slane %v3231, 5
      %v3234 = vsel %vm1246, %v3229, %v3233
      %v3236 = vshrl.u32 %v3103, 16
      %v3238 = vrot.slane %v3236, 4
      %v3239 = vshll.u32 %v3103, 16
      %v3241 = vrot.slane %v3239, 5
      %v3242 = vor.u32 %v3238, %v3241
      %v3243 = vrot.slane %v3242, 4
      %v3245 = vshll.u32 %v3104, 16
      %v3247 = vrot.slane %v3245, 5
      %v3248 = vsel %vm1246, %v3243, %v3247
      %v3249 = vshrl.u32 %v3104, 16
      %v3251 = vrot.slane %v3249, 4
      %v3252 = vor.u32 %v3251, %v3247
      %v3253 = vrot.slane %v3252, 4
      %v3255 = vshll.u32 %v3105, 16
      %v3257 = vrot.slane %v3255, 5
      %v3258 = vsel %vm1246, %v3253, %v3257
      %v3260 = vshrl.u32 %v3106, 16
      %v3262 = vrot.slane %v3260, 4
      %v3263 = vshll.u32 %v3106, 16
      %v3265 = vrot.slane %v3263, 5
      %v3266 = vor.u32 %v3262, %v3265
      %v3267 = vrot.slane %v3266, 4
      %v3269 = vshll.u32 %v3107, 16
      %v3271 = vrot.slane %v3269, 5
      %v3272 = vsel %vm1246, %v3267, %v3271
      %v3273 = vshrl.u32 %v3107, 16
      %v3275 = vrot.slane %v3273, 4
      %v3276 = vor.u32 %v3275, %v3271
      %v3277 = vrot.slane %v3276, 4
      %v3279 = vshll.u32 %v3108, 16
      %v3281 = vrot.slane %v3279, 5
      %v3282 = vsel %vm1246, %v3277, %v3281
      %v3284 = vshrl.u32 %v3109, 16
      %v3286 = vrot.slane %v3284, 4
      %v3287 = vshll.u32 %v3109, 16
      %v3289 = vrot.slane %v3287, 5
      %v3290 = vor.u32 %v3286, %v3289
      %v3291 = vrot.slane %v3290, 4
      %v3293 = vshll.u32 %v3110, 16
      %v3295 = vrot.slane %v3293, 5
      %v3296 = vsel %vm1246, %v3291, %v3295
      %v3297 = vshrl.u32 %v3110, 16
      %v3299 = vrot.slane %v3297, 4
      %v3300 = vor.u32 %v3299, %v3295
      %v3301 = vrot.slane %v3300, 4
      %v3303 = vshll.u32 %v3111, 16
      %v3305 = vrot.slane %v3303, 5
      %v3306 = vsel %vm1246, %v3301, %v3305
      %v3308 = vshrl.u32 %v3112, 16
      %v3310 = vrot.slane %v3308, 4
      %v3311 = vshll.u32 %v3112, 16
      %v3313 = vrot.slane %v3311, 5
      %v3314 = vor.u32 %v3310, %v3313
      %v3315 = vrot.slane %v3314, 4
      %v3317 = vshll.u32 %v3113, 16
      %v3319 = vrot.slane %v3317, 5
      %v3320 = vsel %vm1246, %v3315, %v3319
      %v3321 = vshrl.u32 %v3113, 16
      %v3323 = vrot.slane %v3321, 4
      %v3324 = vor.u32 %v3323, %v3319
      %v3325 = vrot.slane %v3324, 4
      %v3327 = vshll.u32 %v3114, 16
      %v3329 = vrot.slane %v3327, 5
      %v3330 = vsel %vm1246, %v3325, %v3329
      %v3332 = vshrl.u32 %v3115, 16
      %v3334 = vrot.slane %v3332, 4
      %v3335 = vshll.u32 %v3115, 16
      %v3337 = vrot.slane %v3335, 5
      %v3338 = vor.u32 %v3334, %v3337
      %v3339 = vrot.slane %v3338, 4
      %v3341 = vshll.u32 %v3116, 16
      %v3343 = vrot.slane %v3341, 5
      %v3344 = vsel %vm1246, %v3339, %v3343
      %v3345 = vshrl.u32 %v3116, 16
      %v3347 = vrot.slane %v3345, 4
      %v3348 = vor.u32 %v3347, %v3343
      %v3349 = vrot.slane %v3348, 4
      %v3351 = vshll.u32 %v3117, 16
      %v3353 = vrot.slane %v3351, 5
      %v3354 = vsel %vm1246, %v3349, %v3353
      %v3356 = vshrl.u32 %v3118, 16
      %v3358 = vrot.slane %v3356, 4
      %v3359 = vshll.u32 %v3118, 16
      %v3361 = vrot.slane %v3359, 5
      %v3362 = vor.u32 %v3358, %v3361
      %v3363 = vrot.slane %v3362, 4
      %v3365 = vshll.u32 %v3119, 16
      %v3367 = vrot.slane %v3365, 5
      %v3368 = vsel %vm1246, %v3363, %v3367
      %v3369 = vshrl.u32 %v3119, 16
      %v3371 = vrot.slane %v3369, 4
      %v3372 = vor.u32 %v3371, %v3367
      %v3373 = vrot.slane %v3372, 4
      %v3375 = vshll.u32 %v3120, 16
      %v3377 = vrot.slane %v3375, 5
      %v3378 = vsel %vm1246, %v3373, %v3377
      %v3380 = vshrl.u32 %v3121, 16
      %v3382 = vrot.slane %v3380, 4
      %v3383 = vshll.u32 %v3121, 16
      %v3385 = vrot.slane %v3383, 5
      %v3386 = vor.u32 %v3382, %v3385
      %v3387 = vrot.slane %v3386, 4
      %v3389 = vshll.u32 %v3122, 16
      %v3391 = vrot.slane %v3389, 5
      %v3392 = vsel %vm1246, %v3387, %v3391
      %v3393 = vshrl.u32 %v3122, 16
      %v3395 = vrot.slane %v3393, 4
      %v3396 = vor.u32 %v3395, %v3391
      %v3397 = vrot.slane %v3396, 4
      %v3399 = vshll.u32 %v3123, 16
      %v3401 = vrot.slane %v3399, 5
      %v3402 = vsel %vm1246, %v3397, %v3401
      %v3404 = vshrl.u32 %v3124, 16
      %v3406 = vrot.slane %v3404, 4
      %v3407 = vshll.u32 %v3124, 16
      %v3409 = vrot.slane %v3407, 5
      %v3410 = vor.u32 %v3406, %v3409
      %v3411 = vrot.slane %v3410, 4
      %v3413 = vshll.u32 %v3125, 16
      %v3415 = vrot.slane %v3413, 5
      %v3416 = vsel %vm1246, %v3411, %v3415
      %v3417 = vshrl.u32 %v3125, 16
      %v3419 = vrot.slane %v3417, 4
      %v3420 = vor.u32 %v3419, %v3415
      %v3421 = vrot.slane %v3420, 4
      %v3423 = vshll.u32 %v3126, 16
      %v3425 = vrot.slane %v3423, 5
      %v3426 = vsel %vm1246, %v3421, %v3425
      %v3428 = vshrl.u32 %v3127, 16
      %v3430 = vrot.slane %v3428, 4
      %v3431 = vshll.u32 %v3127, 16
      %v3433 = vrot.slane %v3431, 5
      %v3434 = vor.u32 %v3430, %v3433
      %v3435 = vrot.slane %v3434, 4
      %v3437 = vshll.u32 %v3128, 16
      %v3439 = vrot.slane %v3437, 5
      %v3440 = vsel %vm1246, %v3435, %v3439
      %v3441 = vshrl.u32 %v3128, 16
      %v3443 = vrot.slane %v3441, 4
      %v3444 = vor.u32 %v3443, %v3439
      %v3445 = vrot.slane %v3444, 4
      %v3447 = vshll.u32 %v3129, 16
      %v3449 = vrot.slane %v3447, 5
      %v3450 = vsel %vm1246, %v3445, %v3449
      %v3452 = vshrl.u32 %v3130, 16
      %v3454 = vrot.slane %v3452, 4
      %v3455 = vshll.u32 %v3130, 16
      %v3457 = vrot.slane %v3455, 5
      %v3458 = vor.u32 %v3454, %v3457
      %v3459 = vrot.slane %v3458, 4
      %v3461 = vshll.u32 %v3131, 16
      %v3463 = vrot.slane %v3461, 5
      %v3464 = vsel %vm1246, %v3459, %v3463
      %v3465 = vshrl.u32 %v3131, 16
      %v3467 = vrot.slane %v3465, 4
      %v3468 = vor.u32 %v3467, %v3463
      %v3469 = vrot.slane %v3468, 4
      %v3471 = vshll.u32 %v3132, 16
      %v3473 = vrot.slane %v3471, 5
      %v3474 = vsel %vm1246, %v3469, %v3473
      %v3476 = vshrl.u32 %v3133, 16
      %v3478 = vrot.slane %v3476, 4
      %v3479 = vshll.u32 %v3133, 16
      %v3481 = vrot.slane %v3479, 5
      %v3482 = vor.u32 %v3478, %v3481
      %v3483 = vrot.slane %v3482, 4
      %v3485 = vshll.u32 %v3134, 16
      %v3487 = vrot.slane %v3485, 5
      %v3488 = vsel %vm1246, %v3483, %v3487
      %v3489 = vshrl.u32 %v3134, 16
      %v3491 = vrot.slane %v3489, 4
      %v3492 = vor.u32 %v3491, %v3487
      %v3493 = vrot.slane %v3492, 4
      %v3495 = vshll.u32 %v3135, 16
      %v3497 = vrot.slane %v3495, 5
      %v3498 = vsel %vm1246, %v3493, %v3497
      %v3500 = vshrl.u32 %v3136, 16
      %v3502 = vrot.slane %v3500, 4
      %v3503 = vshll.u32 %v3136, 16
      %v3505 = vrot.slane %v3503, 5
      %v3506 = vor.u32 %v3502, %v3505
      %v3507 = vrot.slane %v3506, 4
      %v3509 = vshll.u32 %v3137, 16
      %v3511 = vrot.slane %v3509, 5
      %v3512 = vsel %vm1246, %v3507, %v3511
      %v3513 = vshrl.u32 %v3137, 16
      %v3515 = vrot.slane %v3513, 4
      %v3516 = vor.u32 %v3515, %v3511
      %v3517 = vrot.slane %v3516, 4
      %v3519 = vshll.u32 %v3138, 16
      %v3521 = vrot.slane %v3519, 5
      %v3522 = vsel %vm1246, %v3517, %v3521
      %v3523 = vunpack.c.l.b16 %v3152
      %v3524 = vunpack.c.l.b16 %v3162
      %v3525 = vunpack.c.l.b16 %v3176
      %v3526 = vunpack.c.l.b16 %v3186
      %v3527 = vunpack.c.l.b16 %v3200
      %v3528 = vunpack.c.l.b16 %v3210
      %v3529 = vunpack.c.l.b16 %v3224
      %v3530 = vunpack.c.l.b16 %v3234
      %v3531 = vunpack.c.l.b16 %v3248
      %v3532 = vunpack.c.l.b16 %v3258
      %v3533 = vunpack.c.l.b16 %v3272
      %v3534 = vunpack.c.l.b16 %v3282
      %v3535 = vunpack.c.l.b16 %v3296
      %v3536 = vunpack.c.l.b16 %v3306
      %v3537 = vunpack.c.l.b16 %v3320
      %v3538 = vunpack.c.l.b16 %v3330
      %v3539 = vunpack.c.l.b16 %v3344
      %v3540 = vunpack.c.l.b16 %v3354
      %v3541 = vunpack.c.l.b16 %v3368
      %v3542 = vunpack.c.l.b16 %v3378
      %v3543 = vunpack.c.l.b16 %v3392
      %v3544 = vunpack.c.l.b16 %v3402
      %v3545 = vunpack.c.l.b16 %v3416
      %v3546 = vunpack.c.l.b16 %v3426
      %v3547 = vunpack.c.l.b16 %v3440
      %v3548 = vunpack.c.l.b16 %v3450
      %v3549 = vunpack.c.l.b16 %v3464
      %v3550 = vunpack.c.l.b16 %v3474
      %v3551 = vunpack.c.l.b16 %v3488
      %v3552 = vunpack.c.l.b16 %v3498
      %v3553 = vunpack.c.l.b16 %v3512
      %v3554 = vunpack.c.l.b16 %v3522
      %v3555 = vpack.c.b16 %v3524, %v3523
      %v3556 = vpack.c.b16 %v3526, %v3525
      %v3557 = vpack.c.b16 %v3528, %v3527
      %v3558 = vpack.c.b16 %v3530, %v3529
      %v3559 = vpack.c.b16 %v3532, %v3531
      %v3560 = vpack.c.b16 %v3534, %v3533
      %v3561 = vpack.c.b16 %v3536, %v3535
      %v3562 = vpack.c.b16 %v3538, %v3537
      %v3563 = vpack.c.b16 %v3540, %v3539
      %v3564 = vpack.c.b16 %v3542, %v3541
      %v3565 = vpack.c.b16 %v3544, %v3543
      %v3566 = vpack.c.b16 %v3546, %v3545
      %v3567 = vpack.c.b16 %v3548, %v3547
      %v3568 = vpack.c.b16 %v3550, %v3549
      %v3569 = vpack.c.b16 %v3552, %v3551
      %v3570 = vpack.c.b16 %v3554, %v3553
      %3587 = vst [vmem:[#allocation3 + $0x38] sm:$0xff] %v3555
      %3588 = vst [vmem:[#allocation3 + $0x80] sm:$0xff] %v3556
      %3589 = vst [vmem:[#allocation3 + $0xc8] sm:$0xff] %v3557
      %3590 = vst [vmem:[#allocation3 + $0x110] sm:$0xff] %v3558
      %3591 = vst [vmem:[#allocation3 + $0x158] sm:$0xff] %v3559
      %3592 = vst [vmem:[#allocation3 + $0x1a0] sm:$0xff] %v3560
      %3593 = vst [vmem:[#allocation3 + $0x1e8] sm:$0xff] %v3561
      %3594 = vst [vmem:[#allocation3 + $0x230] sm:$0xff] %v3562
      %3595 = vst [vmem:[#allocation3 + $0x278] sm:$0xff] %v3563
      %3596 = vst [vmem:[#allocation3 + $0x2c0] sm:$0xff] %v3564
      %3597 = vst [vmem:[#allocation3 + $0x308] sm:$0xff] %v3565
      %3598 = vst [vmem:[#allocation3 + $0x350] sm:$0xff] %v3566
      %3599 = vst [vmem:[#allocation3 + $0x398] sm:$0xff] %v3567
      %3600 = vst [vmem:[#allocation3 + $0x3e0] sm:$0xff] %v3568
      %3601 = vst [vmem:[#allocation3 + $0x428] sm:$0xff] %v3569
      %3602 = vst [vmem:[#allocation3 + $0x470] sm:$0xff] %v3570
      %v3603 = vld [vmem:[%s2946] sm:$0xe]
      %v3604 = vld [vmem:[%s2946 + $0x4] sm:$0xf]
      %v3605 = vld [vmem:[%s2946 + $0x8] sm:$0x1]
      %v3606 = vld [vmem:[%s2946 + $0xc] sm:$0xe]
      %v3607 = vld [vmem:[%s2946 + $0x10] sm:$0xf]
      %v3608 = vld [vmem:[%s2946 + $0x14] sm:$0x1]
      %v3609 = vld [vmem:[%s2946 + $0x18] sm:$0xe]
      %v3610 = vld [vmem:[%s2946 + $0x1c] sm:$0xf]
      %v3611 = vld [vmem:[%s2946 + $0x20] sm:$0x1]
      %v3612 = vld [vmem:[%s2946 + $0x24] sm:$0xe]
      %v3613 = vld [vmem:[%s2946 + $0x28] sm:$0xf]
      %v3614 = vld [vmem:[%s2946 + $0x2c] sm:$0x1]
      %v3615 = vld [vmem:[%s2946 + $0x30] sm:$0xe]
      %v3616 = vld [vmem:[%s2946 + $0x34] sm:$0xf]
      %v3617 = vld [vmem:[%s2946 + $0x38] sm:$0x1]
      %v3618 = vld [vmem:[%s2946 + $0x3c] sm:$0xe]
      %v3619 = vld [vmem:[%s2946 + $0x40] sm:$0xf]
      %v3620 = vld [vmem:[%s2946 + $0x44] sm:$0x1]
      %v3621 = vld [vmem:[%s2946 + $0x48] sm:$0xe]
      %v3622 = vld [vmem:[%s2946 + $0x4c] sm:$0xf]
      %v3623 = vld [vmem:[%s2946 + $0x50] sm:$0x1]
      %v3624 = vld [vmem:[%s2946 + $0x54] sm:$0xe]
      %v3625 = vld [vmem:[%s2946 + $0x58] sm:$0xf]
      %v3626 = vld [vmem:[%s2946 + $0x5c] sm:$0x1]
      %v3627 = vld [vmem:[%s2946 + $0x60] sm:$0xe]
      %v3628 = vld [vmem:[%s2946 + $0x64] sm:$0xf]
      %v3629 = vld [vmem:[%s2946 + $0x68] sm:$0x1]
      %v3630 = vld [vmem:[%s2946 + $0x6c] sm:$0xe]
      %v3631 = vld [vmem:[%s2946 + $0x70] sm:$0xf]
      %v3632 = vld [vmem:[%s2946 + $0x74] sm:$0x1]
      %v3633 = vld [vmem:[%s2946 + $0x78] sm:$0xe]
      %v3634 = vld [vmem:[%s2946 + $0x7c] sm:$0xf]
      %v3635 = vld [vmem:[%s2946 + $0x80] sm:$0x1]
      %v3636 = vld [vmem:[%s2946 + $0x84] sm:$0xe]
      %v3637 = vld [vmem:[%s2946 + $0x88] sm:$0xf]
      %v3638 = vld [vmem:[%s2946 + $0x8c] sm:$0x1]
      %v3639 = vld [vmem:[%s2946 + $0x90] sm:$0xe]
      %v3640 = vld [vmem:[%s2946 + $0x94] sm:$0xf]
      %v3641 = vld [vmem:[%s2946 + $0x98] sm:$0x1]
      %v3642 = vld [vmem:[%s2946 + $0x9c] sm:$0xe]
      %v3643 = vld [vmem:[%s2946 + $0xa0] sm:$0xf]
      %v3644 = vld [vmem:[%s2946 + $0xa4] sm:$0x1]
      %v3645 = vld [vmem:[%s2946 + $0xa8] sm:$0xe]
      %v3646 = vld [vmem:[%s2946 + $0xac] sm:$0xf]
      %v3647 = vld [vmem:[%s2946 + $0xb0] sm:$0x1]
      %v3648 = vld [vmem:[%s2946 + $0xb4] sm:$0xe]
      %v3649 = vld [vmem:[%s2946 + $0xb8] sm:$0xf]
      %v3650 = vld [vmem:[%s2946 + $0xbc] sm:$0x1]
      %v3699 = vrot.slane %v3603, 5
      %v3700 = vrot.slane %v3699, 4
      %v3701 = vrot.slane %v3604, 5
      %v3702 = vsel %vm1809, %v3700, %v3701
      %v3703 = vrot.slane %v3701, 4
      %v3704 = vrot.slane %v3605, 5
      %v3705 = vsel %vm1809, %v3703, %v3704
      %v3706 = vrot.slane %v3606, 5
      %v3707 = vrot.slane %v3706, 4
      %v3708 = vrot.slane %v3607, 5
      %v3709 = vsel %vm1809, %v3707, %v3708
      %v3710 = vrot.slane %v3708, 4
      %v3711 = vrot.slane %v3608, 5
      %v3712 = vsel %vm1809, %v3710, %v3711
      %v3713 = vrot.slane %v3609, 5
      %v3714 = vrot.slane %v3713, 4
      %v3715 = vrot.slane %v3610, 5
      %v3716 = vsel %vm1809, %v3714, %v3715
      %v3717 = vrot.slane %v3715, 4
      %v3718 = vrot.slane %v3611, 5
      %v3719 = vsel %vm1809, %v3717, %v3718
      %v3720 = vrot.slane %v3612, 5
      %v3721 = vrot.slane %v3720, 4
      %v3722 = vrot.slane %v3613, 5
      %v3723 = vsel %vm1809, %v3721, %v3722
      %v3724 = vrot.slane %v3722, 4
      %v3725 = vrot.slane %v3614, 5
      %v3726 = vsel %vm1809, %v3724, %v3725
      %v3727 = vrot.slane %v3615, 5
      %v3728 = vrot.slane %v3727, 4
      %v3729 = vrot.slane %v3616, 5
      %v3730 = vsel %vm1809, %v3728, %v3729
      %v3731 = vrot.slane %v3729, 4
      %v3732 = vrot.slane %v3617, 5
      %v3733 = vsel %vm1809, %v3731, %v3732
      %v3734 = vrot.slane %v3618, 5
      %v3735 = vrot.slane %v3734, 4
      %v3736 = vrot.slane %v3619, 5
      %v3737 = vsel %vm1809, %v3735, %v3736
      %v3738 = vrot.slane %v3736, 4
      %v3739 = vrot.slane %v3620, 5
      %v3740 = vsel %vm1809, %v3738, %v3739
      %v3741 = vrot.slane %v3621, 5
      %v3742 = vrot.slane %v3741, 4
      %v3743 = vrot.slane %v3622, 5
      %v3744 = vsel %vm1809, %v3742, %v3743
      %v3745 = vrot.slane %v3743, 4
      %v3746 = vrot.slane %v3623, 5
      %v3747 = vsel %vm1809, %v3745, %v3746
      %v3748 = vrot.slane %v3624, 5
      %v3749 = vrot.slane %v3748, 4
      %v3750 = vrot.slane %v3625, 5
      %v3751 = vsel %vm1809, %v3749, %v3750
      %v3752 = vrot.slane %v3750, 4
      %v3753 = vrot.slane %v3626, 5
      %v3754 = vsel %vm1809, %v3752, %v3753
      %v3755 = vrot.slane %v3627, 5
      %v3756 = vrot.slane %v3755, 4
      %v3757 = vrot.slane %v3628, 5
      %v3758 = vsel %vm1809, %v3756, %v3757
      %v3759 = vrot.slane %v3757, 4
      %v3760 = vrot.slane %v3629, 5
      %v3761 = vsel %vm1809, %v3759, %v3760
      %v3762 = vrot.slane %v3630, 5
      %v3763 = vrot.slane %v3762, 4
      %v3764 = vrot.slane %v3631, 5
      %v3765 = vsel %vm1809, %v3763, %v3764
      %v3766 = vrot.slane %v3764, 4
      %v3767 = vrot.slane %v3632, 5
      %v3768 = vsel %vm1809, %v3766, %v3767
      %v3769 = vrot.slane %v3633, 5
      %v3770 = vrot.slane %v3769, 4
      %v3771 = vrot.slane %v3634, 5
      %v3772 = vsel %vm1809, %v3770, %v3771
      %v3773 = vrot.slane %v3771, 4
      %v3774 = vrot.slane %v3635, 5
      %v3775 = vsel %vm1809, %v3773, %v3774
      %v3776 = vrot.slane %v3636, 5
      %v3777 = vrot.slane %v3776, 4
      %v3778 = vrot.slane %v3637, 5
      %v3779 = vsel %vm1809, %v3777, %v3778
      %v3780 = vrot.slane %v3778, 4
      %v3781 = vrot.slane %v3638, 5
      %v3782 = vsel %vm1809, %v3780, %v3781
      %v3783 = vrot.slane %v3639, 5
      %v3784 = vrot.slane %v3783, 4
      %v3785 = vrot.slane %v3640, 5
      %v3786 = vsel %vm1809, %v3784, %v3785
      %v3787 = vrot.slane %v3785, 4
      %v3788 = vrot.slane %v3641, 5
      %v3789 = vsel %vm1809, %v3787, %v3788
      %v3790 = vrot.slane %v3642, 5
      %v3791 = vrot.slane %v3790, 4
      %v3792 = vrot.slane %v3643, 5
      %v3793 = vsel %vm1809, %v3791, %v3792
      %v3794 = vrot.slane %v3792, 4
      %v3795 = vrot.slane %v3644, 5
      %v3796 = vsel %vm1809, %v3794, %v3795
      %v3797 = vrot.slane %v3645, 5
      %v3798 = vrot.slane %v3797, 4
      %v3799 = vrot.slane %v3646, 5
      %v3800 = vsel %vm1809, %v3798, %v3799
      %v3801 = vrot.slane %v3799, 4
      %v3802 = vrot.slane %v3647, 5
      %v3803 = vsel %vm1809, %v3801, %v3802
      %v3804 = vrot.slane %v3648, 5
      %v3805 = vrot.slane %v3804, 4
      %v3806 = vrot.slane %v3649, 5
      %v3807 = vsel %vm1809, %v3805, %v3806
      %v3808 = vrot.slane %v3806, 4
      %v3809 = vrot.slane %v3650, 5
      %v3810 = vsel %vm1809, %v3808, %v3809
      %v3811 = vunpack.c.l.b16 %v3702
      %v3812 = vunpack.c.l.b16 %v3705
      %v3813 = vunpack.c.l.b16 %v3709
      %v3814 = vunpack.c.l.b16 %v3712
      %v3815 = vunpack.c.l.b16 %v3716
      %v3816 = vunpack.c.l.b16 %v3719
      %v3817 = vunpack.c.l.b16 %v3723
      %v3818 = vunpack.c.l.b16 %v3726
      %v3819 = vunpack.c.l.b16 %v3730
      %v3820 = vunpack.c.l.b16 %v3733
      %v3821 = vunpack.c.l.b16 %v3737
      %v3822 = vunpack.c.l.b16 %v3740
      %v3823 = vunpack.c.l.b16 %v3744
      %v3824 = vunpack.c.l.b16 %v3747
      %v3825 = vunpack.c.l.b16 %v3751
      %v3826 = vunpack.c.l.b16 %v3754
      %v3827 = vunpack.c.l.b16 %v3758
      %v3828 = vunpack.c.l.b16 %v3761
      %v3829 = vunpack.c.l.b16 %v3765
      %v3830 = vunpack.c.l.b16 %v3768
      %v3831 = vunpack.c.l.b16 %v3772
      %v3832 = vunpack.c.l.b16 %v3775
      %v3833 = vunpack.c.l.b16 %v3779
      %v3834 = vunpack.c.l.b16 %v3782
      %v3835 = vunpack.c.l.b16 %v3786
      %v3836 = vunpack.c.l.b16 %v3789
      %v3837 = vunpack.c.l.b16 %v3793
      %v3838 = vunpack.c.l.b16 %v3796
      %v3839 = vunpack.c.l.b16 %v3800
      %v3840 = vunpack.c.l.b16 %v3803
      %v3841 = vunpack.c.l.b16 %v3807
      %v3842 = vunpack.c.l.b16 %v3810
      %v3843 = vpack.c.b16 %v3812, %v3811
      %v3844 = vpack.c.b16 %v3814, %v3813
      %v3845 = vpack.c.b16 %v3816, %v3815
      %v3846 = vpack.c.b16 %v3818, %v3817
      %v3847 = vpack.c.b16 %v3820, %v3819
      %v3848 = vpack.c.b16 %v3822, %v3821
      %v3849 = vpack.c.b16 %v3824, %v3823
      %v3850 = vpack.c.b16 %v3826, %v3825
      %v3851 = vpack.c.b16 %v3828, %v3827
      %v3852 = vpack.c.b16 %v3830, %v3829
      %v3853 = vpack.c.b16 %v3832, %v3831
      %v3854 = vpack.c.b16 %v3834, %v3833
      %v3855 = vpack.c.b16 %v3836, %v3835
      %v3856 = vpack.c.b16 %v3838, %v3837
      %v3857 = vpack.c.b16 %v3840, %v3839
      %v3858 = vpack.c.b16 %v3842, %v3841
      %3875 = vst [vmem:[#allocation3 + $0x40] sm:$0xff] %v3843
      %3876 = vst [vmem:[#allocation3 + $0x88] sm:$0xff] %v3844
      %3877 = vst [vmem:[#allocation3 + $0xd0] sm:$0xff] %v3845
      %3878 = vst [vmem:[#allocation3 + $0x118] sm:$0xff] %v3846
      %3879 = vst [vmem:[#allocation3 + $0x160] sm:$0xff] %v3847
      %3880 = vst [vmem:[#allocation3 + $0x1a8] sm:$0xff] %v3848
      %3881 = vst [vmem:[#allocation3 + $0x1f0] sm:$0xff] %v3849
      %3882 = vst [vmem:[#allocation3 + $0x238] sm:$0xff] %v3850
      %3883 = vst [vmem:[#allocation3 + $0x280] sm:$0xff] %v3851
      %3884 = vst [vmem:[#allocation3 + $0x2c8] sm:$0xff] %v3852
      %3885 = vst [vmem:[#allocation3 + $0x310] sm:$0xff] %v3853
      %3886 = vst [vmem:[#allocation3 + $0x358] sm:$0xff] %v3854
      %3887 = vst [vmem:[#allocation3 + $0x3a0] sm:$0xff] %v3855
      %3888 = vst [vmem:[#allocation3 + $0x3e8] sm:$0xff] %v3856
      %3889 = vst [vmem:[#allocation3 + $0x430] sm:$0xff] %v3857
      %3890 = vst [vmem:[#allocation3 + $0x478] sm:$0xff] %v3858
      %v3891 = vld [vmem:[#allocation3] sm:$0xff]
      %v3892 = vld [vmem:[#allocation3 + $0x8] sm:$0xff]
      %v3893 = vld [vmem:[#allocation3 + $0x10] sm:$0xff]
      %v3894 = vld [vmem:[#allocation3 + $0x18] sm:$0xff]
      %v3895 = vld [vmem:[#allocation3 + $0x20] sm:$0xff]
      %v3896 = vld [vmem:[#allocation3 + $0x28] sm:$0xff]
      %v3897 = vld [vmem:[#allocation3 + $0x30] sm:$0xff]
      %v3898 = vld [vmem:[#allocation3 + $0x38] sm:$0xff]
      %v3899 = vld [vmem:[#allocation3 + $0x40] sm:$0xff]
      %v3900 = vld [vmem:[#allocation3 + $0x48] sm:$0xff]
      %v3901 = vld [vmem:[#allocation3 + $0x50] sm:$0xff]
      %v3902 = vld [vmem:[#allocation3 + $0x58] sm:$0xff]
      %v3903 = vld [vmem:[#allocation3 + $0x60] sm:$0xff]
      %v3904 = vld [vmem:[#allocation3 + $0x68] sm:$0xff]
      %v3905 = vld [vmem:[#allocation3 + $0x70] sm:$0xff]
      %v3906 = vld [vmem:[#allocation3 + $0x78] sm:$0xff]
      %v3907 = vld [vmem:[#allocation3 + $0x80] sm:$0xff]
      %v3908 = vld [vmem:[#allocation3 + $0x88] sm:$0xff]
      %v3909 = vld [vmem:[#allocation3 + $0x90] sm:$0xff]
      %v3910 = vld [vmem:[#allocation3 + $0x98] sm:$0xff]
      %v3911 = vld [vmem:[#allocation3 + $0xa0] sm:$0xff]
      %v3912 = vld [vmem:[#allocation3 + $0xa8] sm:$0xff]
      %v3913 = vld [vmem:[#allocation3 + $0xb0] sm:$0xff]
      %v3914 = vld [vmem:[#allocation3 + $0xb8] sm:$0xff]
      %v3915 = vld [vmem:[#allocation3 + $0xc0] sm:$0xff]
      %v3916 = vld [vmem:[#allocation3 + $0xc8] sm:$0xff]
      %v3917 = vld [vmem:[#allocation3 + $0xd0] sm:$0xff]
      %v3918 = vld [vmem:[#allocation3 + $0xd8] sm:$0xff]
      %v3919 = vld [vmem:[#allocation3 + $0xe0] sm:$0xff]
      %v3920 = vld [vmem:[#allocation3 + $0xe8] sm:$0xff]
      %v3921 = vld [vmem:[#allocation3 + $0xf0] sm:$0xff]
      %v3922 = vld [vmem:[#allocation3 + $0xf8] sm:$0xff]
      %v3923 = vld [vmem:[#allocation3 + $0x100] sm:$0xff]
      %v3924 = vld [vmem:[#allocation3 + $0x108] sm:$0xff]
      %v3925 = vld [vmem:[#allocation3 + $0x110] sm:$0xff]
      %v3926 = vld [vmem:[#allocation3 + $0x118] sm:$0xff]
      %v3927 = vld [vmem:[#allocation3 + $0x120] sm:$0xff]
      %v3928 = vld [vmem:[#allocation3 + $0x128] sm:$0xff]
      %v3929 = vld [vmem:[#allocation3 + $0x130] sm:$0xff]
      %v3930 = vld [vmem:[#allocation3 + $0x138] sm:$0xff]
      %v3931 = vld [vmem:[#allocation3 + $0x140] sm:$0xff]
      %v3932 = vld [vmem:[#allocation3 + $0x148] sm:$0xff]
      %v3933 = vld [vmem:[#allocation3 + $0x150] sm:$0xff]
      %v3934 = vld [vmem:[#allocation3 + $0x158] sm:$0xff]
      %v3935 = vld [vmem:[#allocation3 + $0x160] sm:$0xff]
      %v3936 = vld [vmem:[#allocation3 + $0x168] sm:$0xff]
      %v3937 = vld [vmem:[#allocation3 + $0x170] sm:$0xff]
      %v3938 = vld [vmem:[#allocation3 + $0x178] sm:$0xff]
      %v3939 = vld [vmem:[#allocation3 + $0x180] sm:$0xff]
      %v3940 = vld [vmem:[#allocation3 + $0x188] sm:$0xff]
      %v3941 = vld [vmem:[#allocation3 + $0x190] sm:$0xff]
      %v3942 = vld [vmem:[#allocation3 + $0x198] sm:$0xff]
      %v3943 = vld [vmem:[#allocation3 + $0x1a0] sm:$0xff]
      %v3944 = vld [vmem:[#allocation3 + $0x1a8] sm:$0xff]
      %v3945 = vld [vmem:[#allocation3 + $0x1b0] sm:$0xff]
      %v3946 = vld [vmem:[#allocation3 + $0x1b8] sm:$0xff]
      %v3947 = vld [vmem:[#allocation3 + $0x1c0] sm:$0xff]
      %v3948 = vld [vmem:[#allocation3 + $0x1c8] sm:$0xff]
      %v3949 = vld [vmem:[#allocation3 + $0x1d0] sm:$0xff]
      %v3950 = vld [vmem:[#allocation3 + $0x1d8] sm:$0xff]
      %v3951 = vld [vmem:[#allocation3 + $0x1e0] sm:$0xff]
      %v3952 = vld [vmem:[#allocation3 + $0x1e8] sm:$0xff]
      %v3953 = vld [vmem:[#allocation3 + $0x1f0] sm:$0xff]
      %v3954 = vld [vmem:[#allocation3 + $0x1f8] sm:$0xff]
      %v3955 = vld [vmem:[#allocation3 + $0x200] sm:$0xff]
      %v3956 = vld [vmem:[#allocation3 + $0x208] sm:$0xff]
      %v3957 = vld [vmem:[#allocation3 + $0x210] sm:$0xff]
      %v3958 = vld [vmem:[#allocation3 + $0x218] sm:$0xff]
      %v3959 = vld [vmem:[#allocation3 + $0x220] sm:$0xff]
      %v3960 = vld [vmem:[#allocation3 + $0x228] sm:$0xff]
      %v3961 = vld [vmem:[#allocation3 + $0x230] sm:$0xff]
      %v3962 = vld [vmem:[#allocation3 + $0x238] sm:$0xff]
      %v3963 = vld [vmem:[#allocation3 + $0x240] sm:$0xff]
      %v3964 = vld [vmem:[#allocation3 + $0x248] sm:$0xff]
      %v3965 = vld [vmem:[#allocation3 + $0x250] sm:$0xff]
      %v3966 = vld [vmem:[#allocation3 + $0x258] sm:$0xff]
      %v3967 = vld [vmem:[#allocation3 + $0x260] sm:$0xff]
      %v3968 = vld [vmem:[#allocation3 + $0x268] sm:$0xff]
      %v3969 = vld [vmem:[#allocation3 + $0x270] sm:$0xff]
      %v3970 = vld [vmem:[#allocation3 + $0x278] sm:$0xff]
      %v3971 = vld [vmem:[#allocation3 + $0x280] sm:$0xff]
      %v3972 = vld [vmem:[#allocation3 + $0x288] sm:$0xff]
      %v3973 = vld [vmem:[#allocation3 + $0x290] sm:$0xff]
      %v3974 = vld [vmem:[#allocation3 + $0x298] sm:$0xff]
      %v3975 = vld [vmem:[#allocation3 + $0x2a0] sm:$0xff]
      %v3976 = vld [vmem:[#allocation3 + $0x2a8] sm:$0xff]
      %v3977 = vld [vmem:[#allocation3 + $0x2b0] sm:$0xff]
      %v3978 = vld [vmem:[#allocation3 + $0x2b8] sm:$0xff]
      %v3979 = vld [vmem:[#allocation3 + $0x2c0] sm:$0xff]
      %v3980 = vld [vmem:[#allocation3 + $0x2c8] sm:$0xff]
      %v3981 = vld [vmem:[#allocation3 + $0x2d0] sm:$0xff]
      %v3982 = vld [vmem:[#allocation3 + $0x2d8] sm:$0xff]
      %v3983 = vld [vmem:[#allocation3 + $0x2e0] sm:$0xff]
      %v3984 = vld [vmem:[#allocation3 + $0x2e8] sm:$0xff]
      %v3985 = vld [vmem:[#allocation3 + $0x2f0] sm:$0xff]
      %v3986 = vld [vmem:[#allocation3 + $0x2f8] sm:$0xff]
      %v3987 = vld [vmem:[#allocation3 + $0x300] sm:$0xff]
      %v3988 = vld [vmem:[#allocation3 + $0x308] sm:$0xff]
      %v3989 = vld [vmem:[#allocation3 + $0x310] sm:$0xff]
      %v3990 = vld [vmem:[#allocation3 + $0x318] sm:$0xff]
      %v3991 = vld [vmem:[#allocation3 + $0x320] sm:$0xff]
      %v3992 = vld [vmem:[#allocation3 + $0x328] sm:$0xff]
      %v3993 = vld [vmem:[#allocation3 + $0x330] sm:$0xff]
      %v3994 = vld [vmem:[#allocation3 + $0x338] sm:$0xff]
      %v3995 = vld [vmem:[#allocation3 + $0x340] sm:$0xff]
      %v3996 = vld [vmem:[#allocation3 + $0x348] sm:$0xff]
      %v3997 = vld [vmem:[#allocation3 + $0x350] sm:$0xff]
      %v3998 = vld [vmem:[#allocation3 + $0x358] sm:$0xff]
      %v3999 = vld [vmem:[#allocation3 + $0x360] sm:$0xff]
      %v4000 = vld [vmem:[#allocation3 + $0x368] sm:$0xff]
      %v4001 = vld [vmem:[#allocation3 + $0x370] sm:$0xff]
      %v4002 = vld [vmem:[#allocation3 + $0x378] sm:$0xff]
      %v4003 = vld [vmem:[#allocation3 + $0x380] sm:$0xff]
      %v4004 = vld [vmem:[#allocation3 + $0x388] sm:$0xff]
      %v4005 = vld [vmem:[#allocation3 + $0x390] sm:$0xff]
      %v4006 = vld [vmem:[#allocation3 + $0x398] sm:$0xff]
      %v4007 = vld [vmem:[#allocation3 + $0x3a0] sm:$0xff]
      %v4008 = vld [vmem:[#allocation3 + $0x3a8] sm:$0xff]
      %v4009 = vld [vmem:[#allocation3 + $0x3b0] sm:$0xff]
      %v4010 = vld [vmem:[#allocation3 + $0x3b8] sm:$0xff]
      %v4011 = vld [vmem:[#allocation3 + $0x3c0] sm:$0xff]
      %v4012 = vld [vmem:[#allocation3 + $0x3c8] sm:$0xff]
      %v4013 = vld [vmem:[#allocation3 + $0x3d0] sm:$0xff]
      %v4014 = vld [vmem:[#allocation3 + $0x3d8] sm:$0xff]
      %v4015 = vld [vmem:[#allocation3 + $0x3e0] sm:$0xff]
      %v4016 = vld [vmem:[#allocation3 + $0x3e8] sm:$0xff]
      %v4017 = vld [vmem:[#allocation3 + $0x3f0] sm:$0xff]
      %v4018 = vld [vmem:[#allocation3 + $0x3f8] sm:$0xff]
      %v4019 = vld [vmem:[#allocation3 + $0x400] sm:$0xff]
      %v4020 = vld [vmem:[#allocation3 + $0x408] sm:$0xff]
      %v4021 = vld [vmem:[#allocation3 + $0x410] sm:$0xff]
      %v4022 = vld [vmem:[#allocation3 + $0x418] sm:$0xff]
      %v4023 = vld [vmem:[#allocation3 + $0x420] sm:$0xff]
      %v4024 = vld [vmem:[#allocation3 + $0x428] sm:$0xff]
      %v4025 = vld [vmem:[#allocation3 + $0x430] sm:$0xff]
      %v4026 = vld [vmem:[#allocation3 + $0x438] sm:$0xff]
      %v4027 = vld [vmem:[#allocation3 + $0x440] sm:$0xff]
      %v4028 = vld [vmem:[#allocation3 + $0x448] sm:$0xff]
      %v4029 = vld [vmem:[#allocation3 + $0x450] sm:$0xff]
      %v4030 = vld [vmem:[#allocation3 + $0x458] sm:$0xff]
      %v4031 = vld [vmem:[#allocation3 + $0x460] sm:$0xff]
      %v4032 = vld [vmem:[#allocation3 + $0x468] sm:$0xff]
      %v4033 = vld [vmem:[#allocation3 + $0x470] sm:$0xff]
      %v4034 = vld [vmem:[#allocation3 + $0x478] sm:$0xff]
      %v4035 = vld [vmem:[%s3] sm:$0xf]
      %v4036 = vld [vmem:[%s3 + $0x4] sm:$0xf]
      %v4037 = vld [vmem:[%s3 + $0x8] sm:$0xf]
      %v4038 = vld [vmem:[%s3 + $0xc] sm:$0xf]
      %v4039 = vld [vmem:[%s3 + $0x10] sm:$0xf]
      %v4040 = vld [vmem:[%s3 + $0x14] sm:$0xf]
      %v4041 = vld [vmem:[%s3 + $0x18] sm:$0xf]
      %v4042 = vld [vmem:[%s3 + $0x1c] sm:$0xf]
      %v4043 = vld [vmem:[%s3 + $0x20] sm:$0xf]
      %v4044 = vld [vmem:[%s3 + $0x24] sm:$0xf]
      %v4045 = vld [vmem:[%s3 + $0x28] sm:$0xf]
      %v4046 = vld [vmem:[%s3 + $0x2c] sm:$0xf]
      %v4047 = vld [vmem:[%s3 + $0x30] sm:$0xf]
      %v4048 = vld [vmem:[%s3 + $0x34] sm:$0xf]
      %v4049 = vld [vmem:[%s3 + $0x38] sm:$0xf]
      %v4050 = vld [vmem:[%s3 + $0x3c] sm:$0xf]
      %v4051 = vld [vmem:[%s3 + $0x40] sm:$0xf]
      %v4052 = vld [vmem:[%s3 + $0x44] sm:$0xf]
      %v4053 = vld [vmem:[%s3 + $0x48] sm:$0xf]
      %v4054 = vld [vmem:[%s3 + $0x4c] sm:$0xf]
      %v4055 = vld [vmem:[%s3 + $0x50] sm:$0xf]
      %v4056 = vld [vmem:[%s3 + $0x54] sm:$0xf]
      %v4057 = vld [vmem:[%s3 + $0x58] sm:$0xf]
      %v4058 = vld [vmem:[%s3 + $0x5c] sm:$0xf]
      %v4059 = vld [vmem:[%s3 + $0x60] sm:$0xf]
      %v4060 = vld [vmem:[%s3 + $0x64] sm:$0xf]
      %v4061 = vld [vmem:[%s3 + $0x68] sm:$0xf]
      %v4062 = vld [vmem:[%s3 + $0x6c] sm:$0xf]
      %v4063 = vld [vmem:[%s3 + $0x70] sm:$0xf]
      %v4064 = vld [vmem:[%s3 + $0x74] sm:$0xf]
      %v4065 = vld [vmem:[%s3 + $0x78] sm:$0xf]
      %v4066 = vld [vmem:[%s3 + $0x7c] sm:$0xf]
      %v4067 = vld [vmem:[%s3 + $0x80] sm:$0xf]
      %v4068 = vld [vmem:[%s3 + $0x84] sm:$0xf]
      %v4069 = vld [vmem:[%s3 + $0x88] sm:$0xf]
      %v4070 = vld [vmem:[%s3 + $0x8c] sm:$0xf]
      %v4071 = vld [vmem:[%s3 + $0x90] sm:$0xf]
      %v4072 = vld [vmem:[%s3 + $0x94] sm:$0xf]
      %v4073 = vld [vmem:[%s3 + $0x98] sm:$0xf]
      %v4074 = vld [vmem:[%s3 + $0x9c] sm:$0xf]
      %v4075 = vld [vmem:[%s3 + $0xa0] sm:$0xf]
      %v4076 = vld [vmem:[%s3 + $0xa4] sm:$0xf]
      %v4077 = vld [vmem:[%s3 + $0xa8] sm:$0xf]
      %v4078 = vld [vmem:[%s3 + $0xac] sm:$0xf]
      %v4079 = vld [vmem:[%s3 + $0xb0] sm:$0xf]
      %v4080 = vld [vmem:[%s3 + $0xb4] sm:$0xf]
      %v4081 = vld [vmem:[%s3 + $0xb8] sm:$0xf]
      %v4082 = vld [vmem:[%s3 + $0xbc] sm:$0xf]
      %v4083 = vld [vmem:[%s3 + $0xc0] sm:$0xf]
      %v4084 = vld [vmem:[%s3 + $0xc4] sm:$0xf]
      %v4085 = vld [vmem:[%s3 + $0xc8] sm:$0xf]
      %v4086 = vld [vmem:[%s3 + $0xcc] sm:$0xf]
      %v4087 = vld [vmem:[%s3 + $0xd0] sm:$0xf]
      %v4088 = vld [vmem:[%s3 + $0xd4] sm:$0xf]
      %v4089 = vld [vmem:[%s3 + $0xd8] sm:$0xf]
      %v4090 = vld [vmem:[%s3 + $0xdc] sm:$0xf]
      %v4091 = vld [vmem:[%s3 + $0xe0] sm:$0xf]
      %v4092 = vld [vmem:[%s3 + $0xe4] sm:$0xf]
      %v4093 = vld [vmem:[%s3 + $0xe8] sm:$0xf]
      %v4094 = vld [vmem:[%s3 + $0xec] sm:$0xf]
      %v4095 = vld [vmem:[%s3 + $0xf0] sm:$0xf]
      %v4096 = vld [vmem:[%s3 + $0xf4] sm:$0xf]
      %v4097 = vld [vmem:[%s3 + $0xf8] sm:$0xf]
      %v4098 = vld [vmem:[%s3 + $0xfc] sm:$0xf]
      %v4099 = vld [vmem:[%s3 + $0x100] sm:$0xf]
      %v4100 = vld [vmem:[%s3 + $0x104] sm:$0xf]
      %v4101 = vld [vmem:[%s3 + $0x108] sm:$0xf]
      %v4102 = vld [vmem:[%s3 + $0x10c] sm:$0xf]
      %v4103 = vld [vmem:[%s3 + $0x110] sm:$0xf]
      %v4104 = vld [vmem:[%s3 + $0x114] sm:$0xf]
      %v4105 = vld [vmem:[%s3 + $0x118] sm:$0xf]
      %v4106 = vld [vmem:[%s3 + $0x11c] sm:$0xf]
      %v4107 = vld [vmem:[%s3 + $0x120] sm:$0xf]
      %v4108 = vld [vmem:[%s3 + $0x124] sm:$0xf]
      %v4109 = vld [vmem:[%s3 + $0x128] sm:$0xf]
      %v4110 = vld [vmem:[%s3 + $0x12c] sm:$0xf]
      %v4111 = vld [vmem:[%s3 + $0x130] sm:$0xf]
      %v4112 = vld [vmem:[%s3 + $0x134] sm:$0xf]
      %v4113 = vld [vmem:[%s3 + $0x138] sm:$0xf]
      %v4114 = vld [vmem:[%s3 + $0x13c] sm:$0xf]
      %v4115 = vld [vmem:[%s3 + $0x140] sm:$0xf]
      %v4116 = vld [vmem:[%s3 + $0x144] sm:$0xf]
      %v4117 = vld [vmem:[%s3 + $0x148] sm:$0xf]
      %v4118 = vld [vmem:[%s3 + $0x14c] sm:$0xf]
      %v4119 = vld [vmem:[%s3 + $0x150] sm:$0xf]
      %v4120 = vld [vmem:[%s3 + $0x154] sm:$0xf]
      %v4121 = vld [vmem:[%s3 + $0x158] sm:$0xf]
      %v4122 = vld [vmem:[%s3 + $0x15c] sm:$0xf]
      %v4123 = vld [vmem:[%s3 + $0x160] sm:$0xf]
      %v4124 = vld [vmem:[%s3 + $0x164] sm:$0xf]
      %v4125 = vld [vmem:[%s3 + $0x168] sm:$0xf]
      %v4126 = vld [vmem:[%s3 + $0x16c] sm:$0xf]
      %v4127 = vld [vmem:[%s3 + $0x170] sm:$0xf]
      %v4128 = vld [vmem:[%s3 + $0x174] sm:$0xf]
      %v4129 = vld [vmem:[%s3 + $0x178] sm:$0xf]
      %v4130 = vld [vmem:[%s3 + $0x17c] sm:$0xf]
      %v4131 = vld [vmem:[%s3 + $0x180] sm:$0xf]
      %v4132 = vld [vmem:[%s3 + $0x184] sm:$0xf]
      %v4133 = vld [vmem:[%s3 + $0x188] sm:$0xf]
      %v4134 = vld [vmem:[%s3 + $0x18c] sm:$0xf]
      %v4135 = vld [vmem:[%s3 + $0x190] sm:$0xf]
      %v4136 = vld [vmem:[%s3 + $0x194] sm:$0xf]
      %v4137 = vld [vmem:[%s3 + $0x198] sm:$0xf]
      %v4138 = vld [vmem:[%s3 + $0x19c] sm:$0xf]
      %v4139 = vld [vmem:[%s3 + $0x1a0] sm:$0xf]
      %v4140 = vld [vmem:[%s3 + $0x1a4] sm:$0xf]
      %v4141 = vld [vmem:[%s3 + $0x1a8] sm:$0xf]
      %v4142 = vld [vmem:[%s3 + $0x1ac] sm:$0xf]
      %v4143 = vld [vmem:[%s3 + $0x1b0] sm:$0xf]
      %v4144 = vld [vmem:[%s3 + $0x1b4] sm:$0xf]
      %v4145 = vld [vmem:[%s3 + $0x1b8] sm:$0xf]
      %v4146 = vld [vmem:[%s3 + $0x1bc] sm:$0xf]
      %v4147 = vld [vmem:[%s3 + $0x1c0] sm:$0xf]
      %v4148 = vld [vmem:[%s3 + $0x1c4] sm:$0xf]
      %v4149 = vld [vmem:[%s3 + $0x1c8] sm:$0xf]
      %v4150 = vld [vmem:[%s3 + $0x1cc] sm:$0xf]
      %v4151 = vld [vmem:[%s3 + $0x1d0] sm:$0xf]
      %v4152 = vld [vmem:[%s3 + $0x1d4] sm:$0xf]
      %v4153 = vld [vmem:[%s3 + $0x1d8] sm:$0xf]
      %v4154 = vld [vmem:[%s3 + $0x1dc] sm:$0xf]
      %v4155 = vld [vmem:[%s3 + $0x1e0] sm:$0xf]
      %v4156 = vld [vmem:[%s3 + $0x1e4] sm:$0xf]
      %v4157 = vld [vmem:[%s3 + $0x1e8] sm:$0xf]
      %v4158 = vld [vmem:[%s3 + $0x1ec] sm:$0xf]
      %v4159 = vld [vmem:[%s3 + $0x1f0] sm:$0xf]
      %v4160 = vld [vmem:[%s3 + $0x1f4] sm:$0xf]
      %v4161 = vld [vmem:[%s3 + $0x1f8] sm:$0xf]
      %v4162 = vld [vmem:[%s3 + $0x1fc] sm:$0xf]
      %v4163 = vld [vmem:[%s3 + $0x200] sm:$0xf]
      %v4164 = vld [vmem:[%s3 + $0x204] sm:$0xf]
      %v4165 = vld [vmem:[%s3 + $0x208] sm:$0xf]
      %v4166 = vld [vmem:[%s3 + $0x20c] sm:$0xf]
      %v4167 = vld [vmem:[%s3 + $0x210] sm:$0xf]
      %v4168 = vld [vmem:[%s3 + $0x214] sm:$0xf]
      %v4169 = vld [vmem:[%s3 + $0x218] sm:$0xf]
      %v4170 = vld [vmem:[%s3 + $0x21c] sm:$0xf]
      %v4171 = vld [vmem:[%s3 + $0x220] sm:$0xf]
      %v4172 = vld [vmem:[%s3 + $0x224] sm:$0xf]
      %v4173 = vld [vmem:[%s3 + $0x228] sm:$0xf]
      %v4174 = vld [vmem:[%s3 + $0x22c] sm:$0xf]
      %v4175 = vld [vmem:[%s3 + $0x230] sm:$0xf]
      %v4176 = vld [vmem:[%s3 + $0x234] sm:$0xf]
      %v4177 = vld [vmem:[%s3 + $0x238] sm:$0xf]
      %v4178 = vld [vmem:[%s3 + $0x23c] sm:$0xf]
      %v4323 = vunpack.c.l.b16 %v4035
      %v4324 = vunpack.c.l.b16 %v4036
      %v4325 = vunpack.c.l.b16 %v4037
      %v4326 = vunpack.c.l.b16 %v4038
      %v4327 = vunpack.c.l.b16 %v4039
      %v4328 = vunpack.c.l.b16 %v4040
      %v4329 = vunpack.c.l.b16 %v4041
      %v4330 = vunpack.c.l.b16 %v4042
      %v4331 = vunpack.c.l.b16 %v4043
      %v4332 = vunpack.c.l.b16 %v4044
      %v4333 = vunpack.c.l.b16 %v4045
      %v4334 = vunpack.c.l.b16 %v4046
      %v4335 = vunpack.c.l.b16 %v4047
      %v4336 = vunpack.c.l.b16 %v4048
      %v4337 = vunpack.c.l.b16 %v4049
      %v4338 = vunpack.c.l.b16 %v4050
      %v4339 = vunpack.c.l.b16 %v4051
      %v4340 = vunpack.c.l.b16 %v4052
      %v4341 = vunpack.c.l.b16 %v4053
      %v4342 = vunpack.c.l.b16 %v4054
      %v4343 = vunpack.c.l.b16 %v4055
      %v4344 = vunpack.c.l.b16 %v4056
      %v4345 = vunpack.c.l.b16 %v4057
      %v4346 = vunpack.c.l.b16 %v4058
      %v4347 = vunpack.c.l.b16 %v4059
      %v4348 = vunpack.c.l.b16 %v4060
      %v4349 = vunpack.c.l.b16 %v4061
      %v4350 = vunpack.c.l.b16 %v4062
      %v4351 = vunpack.c.l.b16 %v4063
      %v4352 = vunpack.c.l.b16 %v4064
      %v4353 = vunpack.c.l.b16 %v4065
      %v4354 = vunpack.c.l.b16 %v4066
      %v4355 = vunpack.c.l.b16 %v4067
      %v4356 = vunpack.c.l.b16 %v4068
      %v4357 = vunpack.c.l.b16 %v4069
      %v4358 = vunpack.c.l.b16 %v4070
      %v4359 = vunpack.c.l.b16 %v4071
      %v4360 = vunpack.c.l.b16 %v4072
      %v4361 = vunpack.c.l.b16 %v4073
      %v4362 = vunpack.c.l.b16 %v4074
      %v4363 = vunpack.c.l.b16 %v4075
      %v4364 = vunpack.c.l.b16 %v4076
      %v4365 = vunpack.c.l.b16 %v4077
      %v4366 = vunpack.c.l.b16 %v4078
      %v4367 = vunpack.c.l.b16 %v4079
      %v4368 = vunpack.c.l.b16 %v4080
      %v4369 = vunpack.c.l.b16 %v4081
      %v4370 = vunpack.c.l.b16 %v4082
      %v4371 = vunpack.c.l.b16 %v4083
      %v4372 = vunpack.c.l.b16 %v4084
      %v4373 = vunpack.c.l.b16 %v4085
      %v4374 = vunpack.c.l.b16 %v4086
      %v4375 = vunpack.c.l.b16 %v4087
      %v4376 = vunpack.c.l.b16 %v4088
      %v4377 = vunpack.c.l.b16 %v4089
      %v4378 = vunpack.c.l.b16 %v4090
      %v4379 = vunpack.c.l.b16 %v4091
      %v4380 = vunpack.c.l.b16 %v4092
      %v4381 = vunpack.c.l.b16 %v4093
      %v4382 = vunpack.c.l.b16 %v4094
      %v4383 = vunpack.c.l.b16 %v4095
      %v4384 = vunpack.c.l.b16 %v4096
      %v4385 = vunpack.c.l.b16 %v4097
      %v4386 = vunpack.c.l.b16 %v4098
      %v4387 = vunpack.c.l.b16 %v4099
      %v4388 = vunpack.c.l.b16 %v4100
      %v4389 = vunpack.c.l.b16 %v4101
      %v4390 = vunpack.c.l.b16 %v4102
      %v4391 = vunpack.c.l.b16 %v4103
      %v4392 = vunpack.c.l.b16 %v4104
      %v4393 = vunpack.c.l.b16 %v4105
      %v4394 = vunpack.c.l.b16 %v4106
      %v4395 = vunpack.c.l.b16 %v4107
      %v4396 = vunpack.c.l.b16 %v4108
      %v4397 = vunpack.c.l.b16 %v4109
      %v4398 = vunpack.c.l.b16 %v4110
      %v4399 = vunpack.c.l.b16 %v4111
      %v4400 = vunpack.c.l.b16 %v4112
      %v4401 = vunpack.c.l.b16 %v4113
      %v4402 = vunpack.c.l.b16 %v4114
      %v4403 = vunpack.c.l.b16 %v4115
      %v4404 = vunpack.c.l.b16 %v4116
      %v4405 = vunpack.c.l.b16 %v4117
      %v4406 = vunpack.c.l.b16 %v4118
      %v4407 = vunpack.c.l.b16 %v4119
      %v4408 = vunpack.c.l.b16 %v4120
      %v4409 = vunpack.c.l.b16 %v4121
      %v4410 = vunpack.c.l.b16 %v4122
      %v4411 = vunpack.c.l.b16 %v4123
      %v4412 = vunpack.c.l.b16 %v4124
      %v4413 = vunpack.c.l.b16 %v4125
      %v4414 = vunpack.c.l.b16 %v4126
      %v4415 = vunpack.c.l.b16 %v4127
      %v4416 = vunpack.c.l.b16 %v4128
      %v4417 = vunpack.c.l.b16 %v4129
      %v4418 = vunpack.c.l.b16 %v4130
      %v4419 = vunpack.c.l.b16 %v4131
      %v4420 = vunpack.c.l.b16 %v4132
      %v4421 = vunpack.c.l.b16 %v4133
      %v4422 = vunpack.c.l.b16 %v4134
      %v4423 = vunpack.c.l.b16 %v4135
      %v4424 = vunpack.c.l.b16 %v4136
      %v4425 = vunpack.c.l.b16 %v4137
      %v4426 = vunpack.c.l.b16 %v4138
      %v4427 = vunpack.c.l.b16 %v4139
      %v4428 = vunpack.c.l.b16 %v4140
      %v4429 = vunpack.c.l.b16 %v4141
      %v4430 = vunpack.c.l.b16 %v4142
      %v4431 = vunpack.c.l.b16 %v4143
      %v4432 = vunpack.c.l.b16 %v4144
      %v4433 = vunpack.c.l.b16 %v4145
      %v4434 = vunpack.c.l.b16 %v4146
      %v4435 = vunpack.c.l.b16 %v4147
      %v4436 = vunpack.c.l.b16 %v4148
      %v4437 = vunpack.c.l.b16 %v4149
      %v4438 = vunpack.c.l.b16 %v4150
      %v4439 = vunpack.c.l.b16 %v4151
      %v4440 = vunpack.c.l.b16 %v4152
      %v4441 = vunpack.c.l.b16 %v4153
      %v4442 = vunpack.c.l.b16 %v4154
      %v4443 = vunpack.c.l.b16 %v4155
      %v4444 = vunpack.c.l.b16 %v4156
      %v4445 = vunpack.c.l.b16 %v4157
      %v4446 = vunpack.c.l.b16 %v4158
      %v4447 = vunpack.c.l.b16 %v4159
      %v4448 = vunpack.c.l.b16 %v4160
      %v4449 = vunpack.c.l.b16 %v4161
      %v4450 = vunpack.c.l.b16 %v4162
      %v4451 = vunpack.c.l.b16 %v4163
      %v4452 = vunpack.c.l.b16 %v4164
      %v4453 = vunpack.c.l.b16 %v4165
      %v4454 = vunpack.c.l.b16 %v4166
      %v4455 = vunpack.c.l.b16 %v4167
      %v4456 = vunpack.c.l.b16 %v4168
      %v4457 = vunpack.c.l.b16 %v4169
      %v4458 = vunpack.c.l.b16 %v4170
      %v4459 = vunpack.c.l.b16 %v4171
      %v4460 = vunpack.c.l.b16 %v4172
      %v4461 = vunpack.c.l.b16 %v4173
      %v4462 = vunpack.c.l.b16 %v4174
      %v4463 = vunpack.c.l.b16 %v4175
      %v4464 = vunpack.c.l.b16 %v4176
      %v4465 = vunpack.c.l.b16 %v4177
      %v4466 = vunpack.c.l.b16 %v4178
      %v4467 = vpack.c.b16 %v4324, %v4323
      %v4468 = vpack.c.b16 %v4326, %v4325
      %v4469 = vpack.c.b16 %v4328, %v4327
      %v4470 = vpack.c.b16 %v4330, %v4329
      %v4471 = vpack.c.b16 %v4332, %v4331
      %v4472 = vpack.c.b16 %v4334, %v4333
      %v4473 = vpack.c.b16 %v4336, %v4335
      %v4474 = vpack.c.b16 %v4338, %v4337
      %v4475 = vpack.c.b16 %v4340, %v4339
      %v4476 = vpack.c.b16 %v4342, %v4341
      %v4477 = vpack.c.b16 %v4344, %v4343
      %v4478 = vpack.c.b16 %v4346, %v4345
      %v4479 = vpack.c.b16 %v4348, %v4347
      %v4480 = vpack.c.b16 %v4350, %v4349
      %v4481 = vpack.c.b16 %v4352, %v4351
      %v4482 = vpack.c.b16 %v4354, %v4353
      %v4483 = vpack.c.b16 %v4356, %v4355
      %v4484 = vpack.c.b16 %v4358, %v4357
      %v4485 = vpack.c.b16 %v4360, %v4359
      %v4486 = vpack.c.b16 %v4362, %v4361
      %v4487 = vpack.c.b16 %v4364, %v4363
      %v4488 = vpack.c.b16 %v4366, %v4365
      %v4489 = vpack.c.b16 %v4368, %v4367
      %v4490 = vpack.c.b16 %v4370, %v4369
      %v4491 = vpack.c.b16 %v4372, %v4371
      %v4492 = vpack.c.b16 %v4374, %v4373
      %v4493 = vpack.c.b16 %v4376, %v4375
      %v4494 = vpack.c.b16 %v4378, %v4377
      %v4495 = vpack.c.b16 %v4380, %v4379
      %v4496 = vpack.c.b16 %v4382, %v4381
      %v4497 = vpack.c.b16 %v4384, %v4383
      %v4498 = vpack.c.b16 %v4386, %v4385
      %v4499 = vpack.c.b16 %v4388, %v4387
      %v4500 = vpack.c.b16 %v4390, %v4389
      %v4501 = vpack.c.b16 %v4392, %v4391
      %v4502 = vpack.c.b16 %v4394, %v4393
      %v4503 = vpack.c.b16 %v4396, %v4395
      %v4504 = vpack.c.b16 %v4398, %v4397
      %v4505 = vpack.c.b16 %v4400, %v4399
      %v4506 = vpack.c.b16 %v4402, %v4401
      %v4507 = vpack.c.b16 %v4404, %v4403
      %v4508 = vpack.c.b16 %v4406, %v4405
      %v4509 = vpack.c.b16 %v4408, %v4407
      %v4510 = vpack.c.b16 %v4410, %v4409
      %v4511 = vpack.c.b16 %v4412, %v4411
      %v4512 = vpack.c.b16 %v4414, %v4413
      %v4513 = vpack.c.b16 %v4416, %v4415
      %v4514 = vpack.c.b16 %v4418, %v4417
      %v4515 = vpack.c.b16 %v4420, %v4419
      %v4516 = vpack.c.b16 %v4422, %v4421
      %v4517 = vpack.c.b16 %v4424, %v4423
      %v4518 = vpack.c.b16 %v4426, %v4425
      %v4519 = vpack.c.b16 %v4428, %v4427
      %v4520 = vpack.c.b16 %v4430, %v4429
      %v4521 = vpack.c.b16 %v4432, %v4431
      %v4522 = vpack.c.b16 %v4434, %v4433
      %v4523 = vpack.c.b16 %v4436, %v4435
      %v4524 = vpack.c.b16 %v4438, %v4437
      %v4525 = vpack.c.b16 %v4440, %v4439
      %v4526 = vpack.c.b16 %v4442, %v4441
      %v4527 = vpack.c.b16 %v4444, %v4443
      %v4528 = vpack.c.b16 %v4446, %v4445
      %v4529 = vpack.c.b16 %v4448, %v4447
      %v4530 = vpack.c.b16 %v4450, %v4449
      %v4531 = vpack.c.b16 %v4452, %v4451
      %v4532 = vpack.c.b16 %v4454, %v4453
      %v4533 = vpack.c.b16 %v4456, %v4455
      %v4534 = vpack.c.b16 %v4458, %v4457
      %v4535 = vpack.c.b16 %v4460, %v4459
      %v4536 = vpack.c.b16 %v4462, %v4461
      %v4537 = vpack.c.b16 %v4464, %v4463
      %v4538 = vpack.c.b16 %v4466, %v4465
      %4611 = vmatprep.subr.bf16.mxu0 0
      %4612 = vmatpush1.bf16.msra.mxu0 %v4467
      %4613 = vmatprep.subr.bf16.mxu0 0
      %4614 = vmatpush1.bf16.msra.mxu0 %v4468
      %4615 = vmatprep.subr.bf16.mxu0 0
      %4616 = vmatpush1.bf16.msra.mxu0 %v4469
      %4617 = vmatprep.subr.bf16.mxu0 0
      %4618 = vmatpush1.bf16.msra.mxu0 %v4470
      %4619 = vmatprep.subr.bf16.mxu0 0
      %4620 = vmatpush1.bf16.msra.mxu0 %v4471
      %4621 = vmatprep.subr.bf16.mxu0 0
      %4622 = vmatpush1.bf16.msra.mxu0 %v4472
      %4623 = vmatprep.subr.bf16.mxu0 0
      %4624 = vmatpush1.bf16.msra.mxu0 %v4473
      %4625 = vmatprep.subr.bf16.mxu0 0
      %4626 = vmatpush1.bf16.msra.mxu0 %v4474
      %4627 = vmatprep.subr.bf16.mxu0 0
      %4628 = vmatpush1.bf16.msra.mxu0 %v4475
      %4629 = vmatprep.subr.bf16.mxu0 0
      %4630 = vmatpush1.bf16.msra.mxu0 %v4476
      %4631 = vmatprep.subr.bf16.mxu0 0
      %4632 = vmatpush1.bf16.msra.mxu0 %v4477
      %4633 = vmatprep.subr.bf16.mxu0 0
      %4634 = vmatpush1.bf16.msra.mxu0 %v4478
      %4635 = vmatprep.subr.bf16.mxu0 0
      %4636 = vmatpush1.bf16.msra.mxu0 %v4479
      %4637 = vmatprep.subr.bf16.mxu0 0
      %4638 = vmatpush1.bf16.msra.mxu0 %v4480
      %4639 = vmatprep.subr.bf16.mxu0 0
      %4640 = vmatpush1.bf16.msra.mxu0 %v4481
      %4641 = vmatprep.subr.bf16.mxu0 0
      %4642 = vmatpush1.bf16.msra.mxu0 %v4482
      %4643 = vmatprep.mubr.bf16.mxu0 %v3892
      %4644 = vmatmul.mubr.bf16.gmra.mrb[0].mxu0 %v3891
      %v4645 = vpop.f32.mrb[0].mxu0
      %v4646 = vadd.f32 0.0, %v4645
      %v4647 = vpop.f32.mrb[0].mxu0
      %v4648 = vpop.f32.mrb[0].mxu0
      %v4649 = vadd.f32 0.0, %v4648
      %v4650 = vpop.f32.mrb[0].mxu0
      %4651 = vmatprep.mubr.bf16.mxu0 %v3901
      %4652 = vmatmul.mubr.bf16.gmra.mrb[0].mxu0 %v3900
      %v4653 = vpop.f32.mrb[0].mxu0
      %v4654 = vadd.f32 0.0, %v4653
      %v4655 = vpop.f32.mrb[0].mxu0
      %v4656 = vpop.f32.mrb[0].mxu0
      %v4657 = vadd.f32 0.0, %v4656
      %v4658 = vpop.f32.mrb[0].mxu0
      %4659 = vmatprep.mubr.bf16.mxu0 %v3910
      %4660 = vmatmul.mubr.bf16.gmra.mrb[0].mxu0 %v3909
      %v4661 = vpop.f32.mrb[0].mxu0
      %v4662 = vadd.f32 0.0, %v4661
      %v4663 = vpop.f32.mrb[0].mxu0
      %v4664 = vpop.f32.mrb[0].mxu0
      %v4665 = vadd.f32 0.0, %v4664
      %v4666 = vpop.f32.mrb[0].mxu0
      %4667 = vmatprep.mubr.bf16.mxu0 %v3919
      %4668 = vmatmul.mubr.bf16.gmra.mrb[0].mxu0 %v3918
      %v4669 = vpop.f32.mrb[0].mxu0
      %v4670 = vadd.f32 0.0, %v4669
      %v4671 = vpop.f32.mrb[0].mxu0
      %v4672 = vpop.f32.mrb[0].mxu0
      %v4673 = vadd.f32 0.0, %v4672
      %v4674 = vpop.f32.mrb[0].mxu0
      %4675 = vmatprep.mubr.bf16.mxu0 %v3928
      %4676 = vmatmul.mubr.bf16.gmra.mrb[0].mxu0 %v3927
      %v4677 = vpop.f32.mrb[0].mxu0
      %v4678 = vadd.f32 0.0, %v4677
      %v4679 = vpop.f32.mrb[0].mxu0
      %v4680 = vpop.f32.mrb[0].mxu0
      %v4681 = vadd.f32 0.0, %v4680
      %v4682 = vpop.f32.mrb[0].mxu0
      %4683 = vmatprep.mubr.bf16.mxu0 %v3937
      %4684 = vmatmul.mubr.bf16.gmra.mrb[0].mxu0 %v3936
      %v4685 = vpop.f32.mrb[0].mxu0
      %v4686 = vadd.f32 0.0, %v4685
      %v4687 = vpop.f32.mrb[0].mxu0
      %v4688 = vpop.f32.mrb[0].mxu0
      %v4689 = vadd.f32 0.0, %v4688
      %v4690 = vpop.f32.mrb[0].mxu0
      %4691 = vmatprep.mubr.bf16.mxu0 %v3946
      %4692 = vmatmul.mubr.bf16.gmra.mrb[0].mxu0 %v3945
      %v4693 = vpop.f32.mrb[0].mxu0
      %v4694 = vadd.f32 0.0, %v4693
      %v4695 = vpop.f32.mrb[0].mxu0
      %v4696 = vpop.f32.mrb[0].mxu0
      %v4697 = vadd.f32 0.0, %v4696
      %v4698 = vpop.f32.mrb[0].mxu0
      %4699 = vmatprep.mubr.bf16.mxu0 %v3955
      %4700 = vmatmul.mubr.bf16.gmra.mrb[0].mxu0 %v3954
      %v4701 = vpop.f32.mrb[0].mxu0
      %v4702 = vadd.f32 0.0, %v4701
      %v4703 = vpop.f32.mrb[0].mxu0
      %v4704 = vpop.f32.mrb[0].mxu0
      %v4705 = vadd.f32 0.0, %v4704
      %v4706 = vpop.f32.mrb[0].mxu0
      %4707 = vmatprep.mubr.bf16.mxu0 %v3964
      %4708 = vmatmul.mubr.bf16.gmra.mrb[0].mxu0 %v3963
      %v4709 = vpop.f32.mrb[0].mxu0
      %v4710 = vadd.f32 0.0, %v4709
      %v4711 = vpop.f32.mrb[0].mxu0
      %v4712 = vpop.f32.mrb[0].mxu0
      %v4713 = vadd.f32 0.0, %v4712
      %v4714 = vpop.f32.mrb[0].mxu0
      %4715 = vmatprep.mubr.bf16.mxu0 %v3973
      %4716 = vmatmul.mubr.bf16.gmra.mrb[0].mxu0 %v3972
      %v4717 = vpop.f32.mrb[0].mxu0
      %v4718 = vadd.f32 0.0, %v4717
      %v4719 = vpop.f32.mrb[0].mxu0
      %v4720 = vpop.f32.mrb[0].mxu0
      %v4721 = vadd.f32 0.0, %v4720
      %v4722 = vpop.f32.mrb[0].mxu0
      %4723 = vmatprep.mubr.bf16.mxu0 %v3982
      %4724 = vmatmul.mubr.bf16.gmra.mrb[0].mxu0 %v3981
      %v4725 = vpop.f32.mrb[0].mxu0
      %v4726 = vadd.f32 0.0, %v4725
      %v4727 = vpop.f32.mrb[0].mxu0
      %v4728 = vpop.f32.mrb[0].mxu0
      %v4729 = vadd.f32 0.0, %v4728
      %v4730 = vpop.f32.mrb[0].mxu0
      %4731 = vmatprep.mubr.bf16.mxu0 %v3991
      %4732 = vmatmul.mubr.bf16.gmra.mrb[0].mxu0 %v3990
      %v4733 = vpop.f32.mrb[0].mxu0
      %v4734 = vadd.f32 0.0, %v4733
      %v4735 = vpop.f32.mrb[0].mxu0
      %v4736 = vpop.f32.mrb[0].mxu0
      %v4737 = vadd.f32 0.0, %v4736
      %v4738 = vpop.f32.mrb[0].mxu0
      %4739 = vmatprep.mubr.bf16.mxu0 %v4000
      %4740 = vmatmul.mubr.bf16.gmra.mrb[0].mxu0 %v3999
      %v4741 = vpop.f32.mrb[0].mxu0
      %v4742 = vadd.f32 0.0, %v4741
      %v4743 = vpop.f32.mrb[0].mxu0
      %v4744 = vpop.f32.mrb[0].mxu0
      %v4745 = vadd.f32 0.0, %v4744
      %v4746 = vpop.f32.mrb[0].mxu0
      %4747 = vmatprep.mubr.bf16.mxu0 %v4009
      %4748 = vmatmul.mubr.bf16.gmra.mrb[0].mxu0 %v4008
      %v4749 = vpop.f32.mrb[0].mxu0
      %v4750 = vadd.f32 0.0, %v4749
      %v4751 = vpop.f32.mrb[0].mxu0
      %v4752 = vpop.f32.mrb[0].mxu0
      %v4753 = vadd.f32 0.0, %v4752
      %v4754 = vpop.f32.mrb[0].mxu0
      %4755 = vmatprep.mubr.bf16.mxu0 %v4018
      %4756 = vmatmul.mubr.bf16.gmra.mrb[0].mxu0 %v4017
      %v4757 = vpop.f32.mrb[0].mxu0
      %v4758 = vadd.f32 0.0, %v4757
      %v4759 = vpop.f32.mrb[0].mxu0
      %v4760 = vpop.f32.mrb[0].mxu0
      %v4761 = vadd.f32 0.0, %v4760
      %v4762 = vpop.f32.mrb[0].mxu0
      %4763 = vmatprep.mubr.bf16.mxu0 %v4027
      %4764 = vmatmul.mubr.bf16.gmra.mrb[0].mxu0 %v4026
      %v4765 = vpop.f32.mrb[0].mxu0
      %v4766 = vadd.f32 0.0, %v4765
      %v4767 = vpop.f32.mrb[0].mxu0
      %v4768 = vpop.f32.mrb[0].mxu0
      %v4769 = vadd.f32 0.0, %v4768
      %v4770 = vpop.f32.mrb[0].mxu0
      %4771 = vdwg.mxu0
      %4772 = vmatprep.subr.bf16.mxu0 0
      %4773 = vmatpush1.bf16.msra.mxu0 %v4483
      %4774 = vmatprep.subr.bf16.mxu0 0
      %4775 = vmatpush1.bf16.msra.mxu0 %v4484
      %4776 = vmatprep.subr.bf16.mxu0 0
      %4777 = vmatpush1.bf16.msra.mxu0 %v4485
      %4778 = vmatprep.subr.bf16.mxu0 0
      %4779 = vmatpush1.bf16.msra.mxu0 %v4486
      %4780 = vmatprep.subr.bf16.mxu0 0
      %4781 = vmatpush1.bf16.msra.mxu0 %v4487
      %4782 = vmatprep.subr.bf16.mxu0 0
      %4783 = vmatpush1.bf16.msra.mxu0 %v4488
      %4784 = vmatprep.subr.bf16.mxu0 0
      %4785 = vmatpush1.bf16.msra.mxu0 %v4489
      %4786 = vmatprep.subr.bf16.mxu0 0
      %4787 = vmatpush1.bf16.msra.mxu0 %v4490
      %4788 = vmatprep.subr.bf16.mxu0 0
      %4789 = vmatpush1.bf16.msra.mxu0 %v4491
      %4790 = vmatprep.subr.bf16.mxu0 0
      %4791 = vmatpush1.bf16.msra.mxu0 %v4492
      %4792 = vmatprep.subr.bf16.mxu0 0
      %4793 = vmatpush1.bf16.msra.mxu0 %v4493
      %4794 = vmatprep.subr.bf16.mxu0 0
      %4795 = vmatpush1.bf16.msra.mxu0 %v4494
      %4796 = vmatprep.subr.bf16.mxu0 0
      %4797 = vmatpush1.bf16.msra.mxu0 %v4495
      %4798 = vmatprep.subr.bf16.mxu0 0
      %4799 = vmatpush1.bf16.msra.mxu0 %v4496
      %4800 = vmatprep.subr.bf16.mxu0 0
      %4801 = vmatpush1.bf16.msra.mxu0 %v4497
      %4802 = vmatprep.subr.bf16.mxu0 0
      %4803 = vmatpush1.bf16.msra.mxu0 %v4498
      %4804 = vmatprep.mubr.bf16.mxu0 %v3894
      %4805 = vmatmul.mubr.bf16.gmra.mrb[0].mxu0 %v3893
      %v4806 = vpop.f32.mrb[0].mxu0
      %v4807 = vadd.f32 %v4646, %v4806
      %v4808 = vpop.f32.mrb[0].mxu0
      %v4809 = vpop.f32.mrb[0].mxu0
      %v4810 = vadd.f32 %v4649, %v4809
      %v4811 = vpop.f32.mrb[0].mxu0
      %4812 = vmatprep.mubr.bf16.mxu0 %v3903
      %4813 = vmatmul.mubr.bf16.gmra.mrb[0].mxu0 %v3902
      %v4814 = vpop.f32.mrb[0].mxu0
      %v4815 = vadd.f32 %v4654, %v4814
      %v4816 = vpop.f32.mrb[0].mxu0
      %v4817 = vpop.f32.mrb[0].mxu0
      %v4818 = vadd.f32 %v4657, %v4817
      %v4819 = vpop.f32.mrb[0].mxu0
      %4820 = vmatprep.mubr.bf16.mxu0 %v3912
      %4821 = vmatmul.mubr.bf16.gmra.mrb[0].mxu0 %v3911
      %v4822 = vpop.f32.mrb[0].mxu0
      %v4823 = vadd.f32 %v4662, %v4822
      %v4824 = vpop.f32.mrb[0].mxu0
      %v4825 = vpop.f32.mrb[0].mxu0
      %v4826 = vadd.f32 %v4665, %v4825
      %v4827 = vpop.f32.mrb[0].mxu0
      %4828 = vmatprep.mubr.bf16.mxu0 %v3921
      %4829 = vmatmul.mubr.bf16.gmra.mrb[0].mxu0 %v3920
      %v4830 = vpop.f32.mrb[0].mxu0
      %v4831 = vadd.f32 %v4670, %v4830
      %v4832 = vpop.f32.mrb[0].mxu0
      %v4833 = vpop.f32.mrb[0].mxu0
      %v4834 = vadd.f32 %v4673, %v4833
      %v4835 = vpop.f32.mrb[0].mxu0
      %4836 = vmatprep.mubr.bf16.mxu0 %v3930
      %4837 = vmatmul.mubr.bf16.gmra.mrb[0].mxu0 %v3929
      %v4838 = vpop.f32.mrb[0].mxu0
      %v4839 = vadd.f32 %v4678, %v4838
      %v4840 = vpop.f32.mrb[0].mxu0
      %v4841 = vpop.f32.mrb[0].mxu0
      %v4842 = vadd.f32 %v4681, %v4841
      %v4843 = vpop.f32.mrb[0].mxu0
      %4844 = vmatprep.mubr.bf16.mxu0 %v3939
      %4845 = vmatmul.mubr.bf16.gmra.mrb[0].mxu0 %v3938
      %v4846 = vpop.f32.mrb[0].mxu0
      %v4847 = vadd.f32 %v4686, %v4846
      %v4848 = vpop.f32.mrb[0].mxu0
      %v4849 = vpop.f32.mrb[0].mxu0
      %v4850 = vadd.f32 %v4689, %v4849
      %v4851 = vpop.f32.mrb[0].mxu0
      %4852 = vmatprep.mubr.bf16.mxu0 %v3948
      %4853 = vmatmul.mubr.bf16.gmra.mrb[0].mxu0 %v3947
      %v4854 = vpop.f32.mrb[0].mxu0
      %v4855 = vadd.f32 %v4694, %v4854
      %v4856 = vpop.f32.mrb[0].mxu0
      %v4857 = vpop.f32.mrb[0].mxu0
      %v4858 = vadd.f32 %v4697, %v4857
      %v4859 = vpop.f32.mrb[0].mxu0
      %4860 = vmatprep.mubr.bf16.mxu0 %v3957
      %4861 = vmatmul.mubr.bf16.gmra.mrb[0].mxu0 %v3956
      %v4862 = vpop.f32.mrb[0].mxu0
      %v4863 = vadd.f32 %v4702, %v4862
      %v4864 = vpop.f32.mrb[0].mxu0
      %v4865 = vpop.f32.mrb[0].mxu0
      %v4866 = vadd.f32 %v4705, %v4865
      %v4867 = vpop.f32.mrb[0].mxu0
      %4868 = vmatprep.mubr.bf16.mxu0 %v3966
      %4869 = vmatmul.mubr.bf16.gmra.mrb[0].mxu0 %v3965
      %v4870 = vpop.f32.mrb[0].mxu0
      %v4871 = vadd.f32 %v4710, %v4870
      %v4872 = vpop.f32.mrb[0].mxu0
      %v4873 = vpop.f32.mrb[0].mxu0
      %v4874 = vadd.f32 %v4713, %v4873
      %v4875 = vpop.f32.mrb[0].mxu0
      %4876 = vmatprep.mubr.bf16.mxu0 %v3975
      %4877 = vmatmul.mubr.bf16.gmra.mrb[0].mxu0 %v3974
      %v4878 = vpop.f32.mrb[0].mxu0
      %v4879 = vadd.f32 %v4718, %v4878
      %v4880 = vpop.f32.mrb[0].mxu0
      %v4881 = vpop.f32.mrb[0].mxu0
      %v4882 = vadd.f32 %v4721, %v4881
      %v4883 = vpop.f32.mrb[0].mxu0
      %4884 = vmatprep.mubr.bf16.mxu0 %v3984
      %4885 = vmatmul.mubr.bf16.gmra.mrb[0].mxu0 %v3983
      %v4886 = vpop.f32.mrb[0].mxu0
      %v4887 = vadd.f32 %v4726, %v4886
      %v4888 = vpop.f32.mrb[0].mxu0
      %v4889 = vpop.f32.mrb[0].mxu0
      %v4890 = vadd.f32 %v4729, %v4889
      %v4891 = vpop.f32.mrb[0].mxu0
      %4892 = vmatprep.mubr.bf16.mxu0 %v3993
      %4893 = vmatmul.mubr.bf16.gmra.mrb[0].mxu0 %v3992
      %v4894 = vpop.f32.mrb[0].mxu0
      %v4895 = vadd.f32 %v4734, %v4894
      %v4896 = vpop.f32.mrb[0].mxu0
      %v4897 = vpop.f32.mrb[0].mxu0
      %v4898 = vadd.f32 %v4737, %v4897
      %v4899 = vpop.f32.mrb[0].mxu0
      %4900 = vmatprep.mubr.bf16.mxu0 %v4002
      %4901 = vmatmul.mubr.bf16.gmra.mrb[0].mxu0 %v4001
      %v4902 = vpop.f32.mrb[0].mxu0
      %v4903 = vadd.f32 %v4742, %v4902
      %v4904 = vpop.f32.mrb[0].mxu0
      %v4905 = vpop.f32.mrb[0].mxu0
      %v4906 = vadd.f32 %v4745, %v4905
      %v4907 = vpop.f32.mrb[0].mxu0
      %4908 = vmatprep.mubr.bf16.mxu0 %v4011
      %4909 = vmatmul.mubr.bf16.gmra.mrb[0].mxu0 %v4010
      %v4910 = vpop.f32.mrb[0].mxu0
      %v4911 = vadd.f32 %v4750, %v4910
      %v4912 = vpop.f32.mrb[0].mxu0
      %v4913 = vpop.f32.mrb[0].mxu0
      %v4914 = vadd.f32 %v4753, %v4913
      %v4915 = vpop.f32.mrb[0].mxu0
      %4916 = vmatprep.mubr.bf16.mxu0 %v4020
      %4917 = vmatmul.mubr.bf16.gmra.mrb[0].mxu0 %v4019
      %v4918 = vpop.f32.mrb[0].mxu0
      %v4919 = vadd.f32 %v4758, %v4918
      %v4920 = vpop.f32.mrb[0].mxu0
      %v4921 = vpop.f32.mrb[0].mxu0
      %v4922 = vadd.f32 %v4761, %v4921
      %v4923 = vpop.f32.mrb[0].mxu0
      %4924 = vmatprep.mubr.bf16.mxu0 %v4029
      %4925 = vmatmul.mubr.bf16.gmra.mrb[0].mxu0 %v4028
      %v4926 = vpop.f32.mrb[0].mxu0
      %v4927 = vadd.f32 %v4766, %v4926
      %v4928 = vpop.f32.mrb[0].mxu0
      %v4929 = vpop.f32.mrb[0].mxu0
      %v4930 = vadd.f32 %v4769, %v4929
      %v4931 = vpop.f32.mrb[0].mxu0
      %4932 = vdwg.mxu0
      %4933 = vmatprep.subr.bf16.mxu0 0
      %4934 = vmatpush1.bf16.msra.mxu0 %v4499
      %4935 = vmatprep.subr.bf16.mxu0 0
      %4936 = vmatpush1.bf16.msra.mxu0 %v4500
      %4937 = vmatprep.subr.bf16.mxu0 0
      %4938 = vmatpush1.bf16.msra.mxu0 %v4501
      %4939 = vmatprep.subr.bf16.mxu0 0
      %4940 = vmatpush1.bf16.msra.mxu0 %v4502
      %4941 = vmatprep.subr.bf16.mxu0 0
      %4942 = vmatpush1.bf16.msra.mxu0 %v4503
      %4943 = vmatprep.subr.bf16.mxu0 0
      %4944 = vmatpush1.bf16.msra.mxu0 %v4504
      %4945 = vmatprep.subr.bf16.mxu0 0
      %4946 = vmatpush1.bf16.msra.mxu0 %v4505
      %4947 = vmatprep.subr.bf16.mxu0 0
      %4948 = vmatpush1.bf16.msra.mxu0 %v4506
      %4949 = vmatprep.subr.bf16.mxu0 0
      %4950 = vmatpush1.bf16.msra.mxu0 %v4507
      %4951 = vmatprep.subr.bf16.mxu0 0
      %4952 = vmatpush1.bf16.msra.mxu0 %v4508
      %4953 = vmatprep.subr.bf16.mxu0 0
      %4954 = vmatpush1.bf16.msra.mxu0 %v4509
      %4955 = vmatprep.subr.bf16.mxu0 0
      %4956 = vmatpush1.bf16.msra.mxu0 %v4510
      %4957 = vmatprep.subr.bf16.mxu0 0
      %4958 = vmatpush1.bf16.msra.mxu0 %v4511
      %4959 = vmatprep.subr.bf16.mxu0 0
      %4960 = vmatpush1.bf16.msra.mxu0 %v4512
      %4961 = vmatprep.subr.bf16.mxu0 0
      %4962 = vmatpush1.bf16.msra.mxu0 %v4513
      %4963 = vmatprep.subr.bf16.mxu0 0
      %4964 = vmatpush1.bf16.msra.mxu0 %v4514
      %4965 = vmatprep.mubr.bf16.mxu0 %v3896
      %4966 = vmatmul.mubr.bf16.gmra.mrb[0].mxu0 %v3895
      %v4967 = vpop.f32.mrb[0].mxu0
      %v4968 = vadd.f32 %v4807, %v4967
      %v4969 = vpop.f32.mrb[0].mxu0
      %v4970 = vpop.f32.mrb[0].mxu0
      %v4971 = vadd.f32 %v4810, %v4970
      %v4972 = vpop.f32.mrb[0].mxu0
      %4973 = vmatprep.mubr.bf16.mxu0 %v3905
      %4974 = vmatmul.mubr.bf16.gmra.mrb[0].mxu0 %v3904
      %v4975 = vpop.f32.mrb[0].mxu0
      %v4976 = vadd.f32 %v4815, %v4975
      %v4977 = vpop.f32.mrb[0].mxu0
      %v4978 = vpop.f32.mrb[0].mxu0
      %v4979 = vadd.f32 %v4818, %v4978
      %v4980 = vpop.f32.mrb[0].mxu0
      %4981 = vmatprep.mubr.bf16.mxu0 %v3914
      %4982 = vmatmul.mubr.bf16.gmra.mrb[0].mxu0 %v3913
      %v4983 = vpop.f32.mrb[0].mxu0
      %v4984 = vadd.f32 %v4823, %v4983
      %v4985 = vpop.f32.mrb[0].mxu0
      %v4986 = vpop.f32.mrb[0].mxu0
      %v4987 = vadd.f32 %v4826, %v4986
      %v4988 = vpop.f32.mrb[0].mxu0
      %4989 = vmatprep.mubr.bf16.mxu0 %v3923
      %4990 = vmatmul.mubr.bf16.gmra.mrb[0].mxu0 %v3922
      %v4991 = vpop.f32.mrb[0].mxu0
      %v4992 = vadd.f32 %v4831, %v4991
      %v4993 = vpop.f32.mrb[0].mxu0
      %v4994 = vpop.f32.mrb[0].mxu0
      %v4995 = vadd.f32 %v4834, %v4994
      %v4996 = vpop.f32.mrb[0].mxu0
      %4997 = vmatprep.mubr.bf16.mxu0 %v3932
      %4998 = vmatmul.mubr.bf16.gmra.mrb[0].mxu0 %v3931
      %v4999 = vpop.f32.mrb[0].mxu0
      %v5000 = vadd.f32 %v4839, %v4999
      %v5001 = vpop.f32.mrb[0].mxu0
      %v5002 = vpop.f32.mrb[0].mxu0
      %v5003 = vadd.f32 %v4842, %v5002
      %v5004 = vpop.f32.mrb[0].mxu0
      %5005 = vmatprep.mubr.bf16.mxu0 %v3941
      %5006 = vmatmul.mubr.bf16.gmra.mrb[0].mxu0 %v3940
      %v5007 = vpop.f32.mrb[0].mxu0
      %v5008 = vadd.f32 %v4847, %v5007
      %v5009 = vpop.f32.mrb[0].mxu0
      %v5010 = vpop.f32.mrb[0].mxu0
      %v5011 = vadd.f32 %v4850, %v5010
      %v5012 = vpop.f32.mrb[0].mxu0
      %5013 = vmatprep.mubr.bf16.mxu0 %v3950
      %5014 = vmatmul.mubr.bf16.gmra.mrb[0].mxu0 %v3949
      %v5015 = vpop.f32.mrb[0].mxu0
      %v5016 = vadd.f32 %v4855, %v5015
      %v5017 = vpop.f32.mrb[0].mxu0
      %v5018 = vpop.f32.mrb[0].mxu0
      %v5019 = vadd.f32 %v4858, %v5018
      %v5020 = vpop.f32.mrb[0].mxu0
      %5021 = vmatprep.mubr.bf16.mxu0 %v3959
      %5022 = vmatmul.mubr.bf16.gmra.mrb[0].mxu0 %v3958
      %v5023 = vpop.f32.mrb[0].mxu0
      %v5024 = vadd.f32 %v4863, %v5023
      %v5025 = vpop.f32.mrb[0].mxu0
      %v5026 = vpop.f32.mrb[0].mxu0
      %v5027 = vadd.f32 %v4866, %v5026
      %v5028 = vpop.f32.mrb[0].mxu0
      %5029 = vmatprep.mubr.bf16.mxu0 %v3968
      %5030 = vmatmul.mubr.bf16.gmra.mrb[0].mxu0 %v3967
      %v5031 = vpop.f32.mrb[0].mxu0
      %v5032 = vadd.f32 %v4871, %v5031
      %v5033 = vpop.f32.mrb[0].mxu0
      %v5034 = vpop.f32.mrb[0].mxu0
      %v5035 = vadd.f32 %v4874, %v5034
      %v5036 = vpop.f32.mrb[0].mxu0
      %5037 = vmatprep.mubr.bf16.mxu0 %v3977
      %5038 = vmatmul.mubr.bf16.gmra.mrb[0].mxu0 %v3976
      %v5039 = vpop.f32.mrb[0].mxu0
      %v5040 = vadd.f32 %v4879, %v5039
      %v5041 = vpop.f32.mrb[0].mxu0
      %v5042 = vpop.f32.mrb[0].mxu0
      %v5043 = vadd.f32 %v4882, %v5042
      %v5044 = vpop.f32.mrb[0].mxu0
      %5045 = vmatprep.mubr.bf16.mxu0 %v3986
      %5046 = vmatmul.mubr.bf16.gmra.mrb[0].mxu0 %v3985
      %v5047 = vpop.f32.mrb[0].mxu0
      %v5048 = vadd.f32 %v4887, %v5047
      %v5049 = vpop.f32.mrb[0].mxu0
      %v5050 = vpop.f32.mrb[0].mxu0
      %v5051 = vadd.f32 %v4890, %v5050
      %v5052 = vpop.f32.mrb[0].mxu0
      %5053 = vmatprep.mubr.bf16.mxu0 %v3995
      %5054 = vmatmul.mubr.bf16.gmra.mrb[0].mxu0 %v3994
      %v5055 = vpop.f32.mrb[0].mxu0
      %v5056 = vadd.f32 %v4895, %v5055
      %v5057 = vpop.f32.mrb[0].mxu0
      %v5058 = vpop.f32.mrb[0].mxu0
      %v5059 = vadd.f32 %v4898, %v5058
      %v5060 = vpop.f32.mrb[0].mxu0
      %5061 = vmatprep.mubr.bf16.mxu0 %v4004
      %5062 = vmatmul.mubr.bf16.gmra.mrb[0].mxu0 %v4003
      %v5063 = vpop.f32.mrb[0].mxu0
      %v5064 = vadd.f32 %v4903, %v5063
      %v5065 = vpop.f32.mrb[0].mxu0
      %v5066 = vpop.f32.mrb[0].mxu0
      %v5067 = vadd.f32 %v4906, %v5066
      %v5068 = vpop.f32.mrb[0].mxu0
      %5069 = vmatprep.mubr.bf16.mxu0 %v4013
      %5070 = vmatmul.mubr.bf16.gmra.mrb[0].mxu0 %v4012
      %v5071 = vpop.f32.mrb[0].mxu0
      %v5072 = vadd.f32 %v4911, %v5071
      %v5073 = vpop.f32.mrb[0].mxu0
      %v5074 = vpop.f32.mrb[0].mxu0
      %v5075 = vadd.f32 %v4914, %v5074
      %v5076 = vpop.f32.mrb[0].mxu0
      %5077 = vmatprep.mubr.bf16.mxu0 %v4022
      %5078 = vmatmul.mubr.bf16.gmra.mrb[0].mxu0 %v4021
      %v5079 = vpop.f32.mrb[0].mxu0
      %v5080 = vadd.f32 %v4919, %v5079
      %v5081 = vpop.f32.mrb[0].mxu0
      %v5082 = vpop.f32.mrb[0].mxu0
      %v5083 = vadd.f32 %v4922, %v5082
      %v5084 = vpop.f32.mrb[0].mxu0
      %5085 = vmatprep.mubr.bf16.mxu0 %v4031
      %5086 = vmatmul.mubr.bf16.gmra.mrb[0].mxu0 %v4030
      %v5087 = vpop.f32.mrb[0].mxu0
      %v5088 = vadd.f32 %v4927, %v5087
      %v5089 = vpop.f32.mrb[0].mxu0
      %v5090 = vpop.f32.mrb[0].mxu0
      %v5091 = vadd.f32 %v4930, %v5090
      %v5092 = vpop.f32.mrb[0].mxu0
      %5093 = vdwg.mxu0
      %5094 = vmatprep.subr.bf16.mxu0 0
      %5095 = vmatpush1.bf16.msra.mxu0 %v4515
      %5096 = vmatprep.subr.bf16.mxu0 0
      %5097 = vmatpush1.bf16.msra.mxu0 %v4516
      %5098 = vmatprep.subr.bf16.mxu0 0
      %5099 = vmatpush1.bf16.msra.mxu0 %v4517
      %5100 = vmatprep.subr.bf16.mxu0 0
      %5101 = vmatpush1.bf16.msra.mxu0 %v4518
      %5102 = vmatprep.subr.bf16.mxu0 0
      %5103 = vmatpush1.bf16.msra.mxu0 %v4519
      %5104 = vmatprep.subr.bf16.mxu0 0
      %5105 = vmatpush1.bf16.msra.mxu0 %v4520
      %5106 = vmatprep.subr.bf16.mxu0 0
      %5107 = vmatpush1.bf16.msra.mxu0 %v4521
      %5108 = vmatprep.subr.bf16.mxu0 0
      %5109 = vmatpush1.bf16.msra.mxu0 %v4522
      %5110 = vmatprep.subr.bf16.mxu0 0
      %5111 = vmatpush1.bf16.msra.mxu0 %v4523
      %5112 = vmatprep.subr.bf16.mxu0 0
      %5113 = vmatpush1.bf16.msra.mxu0 %v4524
      %5114 = vmatprep.subr.bf16.mxu0 0
      %5115 = vmatpush1.bf16.msra.mxu0 %v4525
      %5116 = vmatprep.subr.bf16.mxu0 0
      %5117 = vmatpush1.bf16.msra.mxu0 %v4526
      %5118 = vmatprep.subr.bf16.mxu0 0
      %5119 = vmatpush1.bf16.msra.mxu0 %v4527
      %5120 = vmatprep.subr.bf16.mxu0 0
      %5121 = vmatpush1.bf16.msra.mxu0 %v4528
      %5122 = vmatprep.subr.bf16.mxu0 0
      %5123 = vmatpush1.bf16.msra.mxu0 %v4529
      %5124 = vmatprep.subr.bf16.mxu0 0
      %5125 = vmatpush1.bf16.msra.mxu0 %v4530
      %5126 = vmatprep.mubr.bf16.mxu0 %v3898
      %5127 = vmatmul.mubr.bf16.gmra.mrb[0].mxu0 %v3897
      %v5128 = vpop.f32.mrb[0].mxu0
      %v5129 = vadd.f32 %v4968, %v5128
      %v5130 = vpop.f32.mrb[0].mxu0
      %v5131 = vpop.f32.mrb[0].mxu0
      %v5132 = vadd.f32 %v4971, %v5131
      %v5133 = vpop.f32.mrb[0].mxu0
      %5134 = vmatprep.mubr.bf16.mxu0 %v3907
      %5135 = vmatmul.mubr.bf16.gmra.mrb[0].mxu0 %v3906
      %v5136 = vpop.f32.mrb[0].mxu0
      %v5137 = vadd.f32 %v4976, %v5136
      %v5138 = vpop.f32.mrb[0].mxu0
      %v5139 = vpop.f32.mrb[0].mxu0
      %v5140 = vadd.f32 %v4979, %v5139
      %v5141 = vpop.f32.mrb[0].mxu0
      %5142 = vmatprep.mubr.bf16.mxu0 %v3916
      %5143 = vmatmul.mubr.bf16.gmra.mrb[0].mxu0 %v3915
      %v5144 = vpop.f32.mrb[0].mxu0
      %v5145 = vadd.f32 %v4984, %v5144
      %v5146 = vpop.f32.mrb[0].mxu0
      %v5147 = vpop.f32.mrb[0].mxu0
      %v5148 = vadd.f32 %v4987, %v5147
      %v5149 = vpop.f32.mrb[0].mxu0
      %5150 = vmatprep.mubr.bf16.mxu0 %v3925
      %5151 = vmatmul.mubr.bf16.gmra.mrb[0].mxu0 %v3924
      %v5152 = vpop.f32.mrb[0].mxu0
      %v5153 = vadd.f32 %v4992, %v5152
      %v5154 = vpop.f32.mrb[0].mxu0
      %v5155 = vpop.f32.mrb[0].mxu0
      %v5156 = vadd.f32 %v4995, %v5155
      %v5157 = vpop.f32.mrb[0].mxu0
      %5158 = vmatprep.mubr.bf16.mxu0 %v3934
      %5159 = vmatmul.mubr.bf16.gmra.mrb[0].mxu0 %v3933
      %v5160 = vpop.f32.mrb[0].mxu0
      %v5161 = vadd.f32 %v5000, %v5160
      %v5162 = vpop.f32.mrb[0].mxu0
      %v5163 = vpop.f32.mrb[0].mxu0
      %v5164 = vadd.f32 %v5003, %v5163
      %v5165 = vpop.f32.mrb[0].mxu0
      %5166 = vmatprep.mubr.bf16.mxu0 %v3943
      %5167 = vmatmul.mubr.bf16.gmra.mrb[0].mxu0 %v3942
      %v5168 = vpop.f32.mrb[0].mxu0
      %v5169 = vadd.f32 %v5008, %v5168
      %v5170 = vpop.f32.mrb[0].mxu0
      %v5171 = vpop.f32.mrb[0].mxu0
      %v5172 = vadd.f32 %v5011, %v5171
      %v5173 = vpop.f32.mrb[0].mxu0
      %5174 = vmatprep.mubr.bf16.mxu0 %v3952
      %5175 = vmatmul.mubr.bf16.gmra.mrb[0].mxu0 %v3951
      %v5176 = vpop.f32.mrb[0].mxu0
      %v5177 = vadd.f32 %v5016, %v5176
      %v5178 = vpop.f32.mrb[0].mxu0
      %v5179 = vpop.f32.mrb[0].mxu0
      %v5180 = vadd.f32 %v5019, %v5179
      %v5181 = vpop.f32.mrb[0].mxu0
      %5182 = vmatprep.mubr.bf16.mxu0 %v3961
      %5183 = vmatmul.mubr.bf16.gmra.mrb[0].mxu0 %v3960
      %v5184 = vpop.f32.mrb[0].mxu0
      %v5185 = vadd.f32 %v5024, %v5184
      %v5186 = vpop.f32.mrb[0].mxu0
      %v5187 = vpop.f32.mrb[0].mxu0
      %v5188 = vadd.f32 %v5027, %v5187
      %v5189 = vpop.f32.mrb[0].mxu0
      %5190 = vmatprep.mubr.bf16.mxu0 %v3970
      %5191 = vmatmul.mubr.bf16.gmra.mrb[0].mxu0 %v3969
      %v5192 = vpop.f32.mrb[0].mxu0
      %v5193 = vadd.f32 %v5032, %v5192
      %v5194 = vpop.f32.mrb[0].mxu0
      %v5195 = vpop.f32.mrb[0].mxu0
      %v5196 = vadd.f32 %v5035, %v5195
      %v5197 = vpop.f32.mrb[0].mxu0
      %5198 = vmatprep.mubr.bf16.mxu0 %v3979
      %5199 = vmatmul.mubr.bf16.gmra.mrb[0].mxu0 %v3978
      %v5200 = vpop.f32.mrb[0].mxu0
      %v5201 = vadd.f32 %v5040, %v5200
      %v5202 = vpop.f32.mrb[0].mxu0
      %v5203 = vpop.f32.mrb[0].mxu0
      %v5204 = vadd.f32 %v5043, %v5203
      %v5205 = vpop.f32.mrb[0].mxu0
      %5206 = vmatprep.mubr.bf16.mxu0 %v3988
      %5207 = vmatmul.mubr.bf16.gmra.mrb[0].mxu0 %v3987
      %v5208 = vpop.f32.mrb[0].mxu0
      %v5209 = vadd.f32 %v5048, %v5208
      %v5210 = vpop.f32.mrb[0].mxu0
      %v5211 = vpop.f32.mrb[0].mxu0
      %v5212 = vadd.f32 %v5051, %v5211
      %v5213 = vpop.f32.mrb[0].mxu0
      %5214 = vmatprep.mubr.bf16.mxu0 %v3997
      %5215 = vmatmul.mubr.bf16.gmra.mrb[0].mxu0 %v3996
      %v5216 = vpop.f32.mrb[0].mxu0
      %v5217 = vadd.f32 %v5056, %v5216
      %v5218 = vpop.f32.mrb[0].mxu0
      %v5219 = vpop.f32.mrb[0].mxu0
      %v5220 = vadd.f32 %v5059, %v5219
      %v5221 = vpop.f32.mrb[0].mxu0
      %5222 = vmatprep.mubr.bf16.mxu0 %v4006
      %5223 = vmatmul.mubr.bf16.gmra.mrb[0].mxu0 %v4005
      %v5224 = vpop.f32.mrb[0].mxu0
      %v5225 = vadd.f32 %v5064, %v5224
      %v5226 = vpop.f32.mrb[0].mxu0
      %v5227 = vpop.f32.mrb[0].mxu0
      %v5228 = vadd.f32 %v5067, %v5227
      %v5229 = vpop.f32.mrb[0].mxu0
      %5230 = vmatprep.mubr.bf16.mxu0 %v4015
      %5231 = vmatmul.mubr.bf16.gmra.mrb[0].mxu0 %v4014
      %v5232 = vpop.f32.mrb[0].mxu0
      %v5233 = vadd.f32 %v5072, %v5232
      %v5234 = vpop.f32.mrb[0].mxu0
      %v5235 = vpop.f32.mrb[0].mxu0
      %v5236 = vadd.f32 %v5075, %v5235
      %v5237 = vpop.f32.mrb[0].mxu0
      %5238 = vmatprep.mubr.bf16.mxu0 %v4024
      %5239 = vmatmul.mubr.bf16.gmra.mrb[0].mxu0 %v4023
      %v5240 = vpop.f32.mrb[0].mxu0
      %v5241 = vadd.f32 %v5080, %v5240
      %v5242 = vpop.f32.mrb[0].mxu0
      %v5243 = vpop.f32.mrb[0].mxu0
      %v5244 = vadd.f32 %v5083, %v5243
      %v5245 = vpop.f32.mrb[0].mxu0
      %5246 = vmatprep.mubr.bf16.mxu0 %v4033
      %5247 = vmatmul.mubr.bf16.gmra.mrb[0].mxu0 %v4032
      %v5248 = vpop.f32.mrb[0].mxu0
      %v5249 = vadd.f32 %v5088, %v5248
      %v5250 = vpop.f32.mrb[0].mxu0
      %v5251 = vpop.f32.mrb[0].mxu0
      %v5252 = vadd.f32 %v5091, %v5251
      %v5253 = vpop.f32.mrb[0].mxu0
      %5254 = vdwg.mxu0
      %5255 = vmatprep.subr.bf16.mxu0 0
      %5256 = vmatpush1.bf16.msra.mxu0 %v4531
      %5257 = vmatprep.subr.bf16.mxu0 0
      %5258 = vmatpush1.bf16.msra.mxu0 %v4532
      %5259 = vmatprep.subr.bf16.mxu0 0
      %5260 = vmatpush1.bf16.msra.mxu0 %v4533
      %5261 = vmatprep.subr.bf16.mxu0 0
      %5262 = vmatpush1.bf16.msra.mxu0 %v4534
      %5263 = vmatprep.subr.bf16.mxu0 0
      %5264 = vmatpush1.bf16.msra.mxu0 %v4535
      %5265 = vmatprep.subr.bf16.mxu0 0
      %5266 = vmatpush1.bf16.msra.mxu0 %v4536
      %5267 = vmatprep.subr.bf16.mxu0 0
      %5268 = vmatpush1.bf16.msra.mxu0 %v4537
      %5269 = vmatprep.subr.bf16.mxu0 0
      %5270 = vmatpush1.bf16.msra.mxu0 %v4538
      %5271 = vmatprep.subr.bf16.mxu0 0
      %5272 = vmatpush1.bf16.msra.mxu0 0
      %5273 = vmatprep.subr.bf16.mxu0 0
      %5274 = vmatpush1.bf16.msra.mxu0 0
      %5275 = vmatprep.subr.bf16.mxu0 0
      %5276 = vmatpush1.bf16.msra.mxu0 0
      %5277 = vmatprep.subr.bf16.mxu0 0
      %5278 = vmatpush1.bf16.msra.mxu0 0
      %5279 = vmatprep.subr.bf16.mxu0 0
      %5280 = vmatpush1.bf16.msra.mxu0 0
      %5281 = vmatprep.subr.bf16.mxu0 0
      %5282 = vmatpush1.bf16.msra.mxu0 0
      %5283 = vmatprep.subr.bf16.mxu0 0
      %5284 = vmatpush1.bf16.msra.mxu0 0
      %5285 = vmatprep.subr.bf16.mxu0 0
      %5286 = vmatpush1.bf16.msra.mxu0 0
      %5287 = vmatprep.mubr.bf16.mxu0 0
      %5288 = vmatmul.mubr.bf16.gmra.mrb[0].mxu0 %v3899
      %v5289 = vpop.f32.mrb[0].mxu0
      %v5290 = vadd.f32 %v5129, %v5289
      %v5291 = vpop.f32.mrb[0].mxu0
      %v5292 = vpop.f32.mrb[0].mxu0
      %v5293 = vadd.f32 %v5132, %v5292
      %v5294 = vpop.f32.mrb[0].mxu0
      %5295 = vmatprep.mubr.bf16.mxu0 0
      %5296 = vmatmul.mubr.bf16.gmra.mrb[0].mxu0 %v3908
      %v5297 = vpop.f32.mrb[0].mxu0
      %v5298 = vadd.f32 %v5137, %v5297
      %v5299 = vpop.f32.mrb[0].mxu0
      %v5300 = vpop.f32.mrb[0].mxu0
      %v5301 = vadd.f32 %v5140, %v5300
      %v5302 = vpop.f32.mrb[0].mxu0
      %5303 = vmatprep.mubr.bf16.mxu0 0
      %5304 = vmatmul.mubr.bf16.gmra.mrb[0].mxu0 %v3917
      %v5305 = vpop.f32.mrb[0].mxu0
      %v5306 = vadd.f32 %v5145, %v5305
      %v5307 = vpop.f32.mrb[0].mxu0
      %v5308 = vpop.f32.mrb[0].mxu0
      %v5309 = vadd.f32 %v5148, %v5308
      %v5310 = vpop.f32.mrb[0].mxu0
      %5311 = vmatprep.mubr.bf16.mxu0 0
      %5312 = vmatmul.mubr.bf16.gmra.mrb[0].mxu0 %v3926
      %v5313 = vpop.f32.mrb[0].mxu0
      %v5314 = vadd.f32 %v5153, %v5313
      %v5315 = vpop.f32.mrb[0].mxu0
      %v5316 = vpop.f32.mrb[0].mxu0
      %v5317 = vadd.f32 %v5156, %v5316
      %v5318 = vpop.f32.mrb[0].mxu0
      %5319 = vmatprep.mubr.bf16.mxu0 0
      %5320 = vmatmul.mubr.bf16.gmra.mrb[0].mxu0 %v3935
      %v5321 = vpop.f32.mrb[0].mxu0
      %v5322 = vadd.f32 %v5161, %v5321
      %v5323 = vpop.f32.mrb[0].mxu0
      %v5324 = vpop.f32.mrb[0].mxu0
      %v5325 = vadd.f32 %v5164, %v5324
      %v5326 = vpop.f32.mrb[0].mxu0
      %5327 = vmatprep.mubr.bf16.mxu0 0
      %5328 = vmatmul.mubr.bf16.gmra.mrb[0].mxu0 %v3944
      %v5329 = vpop.f32.mrb[0].mxu0
      %v5330 = vadd.f32 %v5169, %v5329
      %v5331 = vpop.f32.mrb[0].mxu0
      %v5332 = vpop.f32.mrb[0].mxu0
      %v5333 = vadd.f32 %v5172, %v5332
      %v5334 = vpop.f32.mrb[0].mxu0
      %5335 = vmatprep.mubr.bf16.mxu0 0
      %5336 = vmatmul.mubr.bf16.gmra.mrb[0].mxu0 %v3953
      %v5337 = vpop.f32.mrb[0].mxu0
      %v5338 = vadd.f32 %v5177, %v5337
      %v5339 = vpop.f32.mrb[0].mxu0
      %v5340 = vpop.f32.mrb[0].mxu0
      %v5341 = vadd.f32 %v5180, %v5340
      %v5342 = vpop.f32.mrb[0].mxu0
      %5343 = vmatprep.mubr.bf16.mxu0 0
      %5344 = vmatmul.mubr.bf16.gmra.mrb[0].mxu0 %v3962
      %v5345 = vpop.f32.mrb[0].mxu0
      %v5346 = vadd.f32 %v5185, %v5345
      %v5347 = vpop.f32.mrb[0].mxu0
      %v5348 = vpop.f32.mrb[0].mxu0
      %v5349 = vadd.f32 %v5188, %v5348
      %v5350 = vpop.f32.mrb[0].mxu0
      %5351 = vmatprep.mubr.bf16.mxu0 0
      %5352 = vmatmul.mubr.bf16.gmra.mrb[0].mxu0 %v3971
      %v5353 = vpop.f32.mrb[0].mxu0
      %v5354 = vadd.f32 %v5193, %v5353
      %v5355 = vpop.f32.mrb[0].mxu0
      %v5356 = vpop.f32.mrb[0].mxu0
      %v5357 = vadd.f32 %v5196, %v5356
      %v5358 = vpop.f32.mrb[0].mxu0
      %5359 = vmatprep.mubr.bf16.mxu0 0
      %5360 = vmatmul.mubr.bf16.gmra.mrb[0].mxu0 %v3980
      %v5361 = vpop.f32.mrb[0].mxu0
      %v5362 = vadd.f32 %v5201, %v5361
      %v5363 = vpop.f32.mrb[0].mxu0
      %v5364 = vpop.f32.mrb[0].mxu0
      %v5365 = vadd.f32 %v5204, %v5364
      %v5366 = vpop.f32.mrb[0].mxu0
      %5367 = vmatprep.mubr.bf16.mxu0 0
      %5368 = vmatmul.mubr.bf16.gmra.mrb[0].mxu0 %v3989
      %v5369 = vpop.f32.mrb[0].mxu0
      %v5370 = vadd.f32 %v5209, %v5369
      %v5371 = vpop.f32.mrb[0].mxu0
      %v5372 = vpop.f32.mrb[0].mxu0
      %v5373 = vadd.f32 %v5212, %v5372
      %v5374 = vpop.f32.mrb[0].mxu0
      %5375 = vmatprep.mubr.bf16.mxu0 0
      %5376 = vmatmul.mubr.bf16.gmra.mrb[0].mxu0 %v3998
      %v5377 = vpop.f32.mrb[0].mxu0
      %v5378 = vadd.f32 %v5217, %v5377
      %v5379 = vpop.f32.mrb[0].mxu0
      %v5380 = vpop.f32.mrb[0].mxu0
      %v5381 = vadd.f32 %v5220, %v5380
      %v5382 = vpop.f32.mrb[0].mxu0
      %5383 = vmatprep.mubr.bf16.mxu0 0
      %5384 = vmatmul.mubr.bf16.gmra.mrb[0].mxu0 %v4007
      %v5385 = vpop.f32.mrb[0].mxu0
      %v5386 = vadd.f32 %v5225, %v5385
      %v5387 = vpop.f32.mrb[0].mxu0
      %v5388 = vpop.f32.mrb[0].mxu0
      %v5389 = vadd.f32 %v5228, %v5388
      %v5390 = vpop.f32.mrb[0].mxu0
      %5391 = vmatprep.mubr.bf16.mxu0 0
      %5392 = vmatmul.mubr.bf16.gmra.mrb[0].mxu0 %v4016
      %v5393 = vpop.f32.mrb[0].mxu0
      %v5394 = vadd.f32 %v5233, %v5393
      %v5395 = vpop.f32.mrb[0].mxu0
      %v5396 = vpop.f32.mrb[0].mxu0
      %v5397 = vadd.f32 %v5236, %v5396
      %v5398 = vpop.f32.mrb[0].mxu0
      %5399 = vmatprep.mubr.bf16.mxu0 0
      %5400 = vmatmul.mubr.bf16.gmra.mrb[0].mxu0 %v4025
      %v5401 = vpop.f32.mrb[0].mxu0
      %v5402 = vadd.f32 %v5241, %v5401
      %v5403 = vpop.f32.mrb[0].mxu0
      %v5404 = vpop.f32.mrb[0].mxu0
      %v5405 = vadd.f32 %v5244, %v5404
      %v5406 = vpop.f32.mrb[0].mxu0
      %5407 = vmatprep.mubr.bf16.mxu0 0
      %5408 = vmatmul.mubr.bf16.gmra.mrb[0].mxu0 %v4034
      %v5409 = vpop.f32.mrb[0].mxu0
      %v5410 = vadd.f32 %v5249, %v5409
      %v5411 = vpop.f32.mrb[0].mxu0
      %v5412 = vpop.f32.mrb[0].mxu0
      %v5413 = vadd.f32 %v5252, %v5412
      %v5414 = vpop.f32.mrb[0].mxu0
      %5415 = vdwg.mxu0
      %v5416 = vpack.c.bf16 %v5293, %v5290
      %v5417 = vpack.c.bf16 %v5301, %v5298
      %v5418 = vpack.c.bf16 %v5309, %v5306
      %v5419 = vpack.c.bf16 %v5317, %v5314
      %v5420 = vpack.c.bf16 %v5325, %v5322
      %v5421 = vpack.c.bf16 %v5333, %v5330
      %v5422 = vpack.c.bf16 %v5341, %v5338
      %v5423 = vpack.c.bf16 %v5349, %v5346
      %v5424 = vpack.c.bf16 %v5357, %v5354
      %v5425 = vpack.c.bf16 %v5365, %v5362
      %v5426 = vpack.c.bf16 %v5373, %v5370
      %v5427 = vpack.c.bf16 %v5381, %v5378
      %v5428 = vpack.c.bf16 %v5389, %v5386
      %v5429 = vpack.c.bf16 %v5397, %v5394
      %v5430 = vpack.c.bf16 %v5405, %v5402
      %v5431 = vpack.c.bf16 %v5413, %v5410
      %v5448 = vunpack.c.l.b16 %v5416
      %v5449 = vunpack.c.h.b16 %v5416
      %v5450 = vunpack.c.l.b16 %v5417
      %v5451 = vunpack.c.h.b16 %v5417
      %v5452 = vunpack.c.l.b16 %v5418
      %v5453 = vunpack.c.h.b16 %v5418
      %v5454 = vunpack.c.l.b16 %v5419
      %v5455 = vunpack.c.h.b16 %v5419
      %v5456 = vunpack.c.l.b16 %v5420
      %v5457 = vunpack.c.h.b16 %v5420
      %v5458 = vunpack.c.l.b16 %v5421
      %v5459 = vunpack.c.h.b16 %v5421
      %v5460 = vunpack.c.l.b16 %v5422
      %v5461 = vunpack.c.h.b16 %v5422
      %v5462 = vunpack.c.l.b16 %v5423
      %v5463 = vunpack.c.h.b16 %v5423
      %v5464 = vunpack.c.l.b16 %v5424
      %v5465 = vunpack.c.h.b16 %v5424
      %v5466 = vunpack.c.l.b16 %v5425
      %v5467 = vunpack.c.h.b16 %v5425
      %v5468 = vunpack.c.l.b16 %v5426
      %v5469 = vunpack.c.h.b16 %v5426
      %v5470 = vunpack.c.l.b16 %v5427
      %v5471 = vunpack.c.h.b16 %v5427
      %v5472 = vunpack.c.l.b16 %v5428
      %v5473 = vunpack.c.h.b16 %v5428
      %v5474 = vunpack.c.l.b16 %v5429
      %v5475 = vunpack.c.h.b16 %v5429
      %v5476 = vunpack.c.l.b16 %v5430
      %v5477 = vunpack.c.h.b16 %v5430
      %v5478 = vunpack.c.l.b16 %v5431
      %v5479 = vunpack.c.h.b16 %v5431
      %v5480 = vpack.c.b16 %v5448, %v5448
      %v5481 = vpack.c.b16 %v5449, %v5449
      %v5482 = vpack.c.b16 %v5450, %v5450
      %v5483 = vpack.c.b16 %v5451, %v5451
      %v5484 = vpack.c.b16 %v5452, %v5452
      %v5485 = vpack.c.b16 %v5453, %v5453
      %v5486 = vpack.c.b16 %v5454, %v5454
      %v5487 = vpack.c.b16 %v5455, %v5455
      %v5488 = vpack.c.b16 %v5456, %v5456
      %v5489 = vpack.c.b16 %v5457, %v5457
      %v5490 = vpack.c.b16 %v5458, %v5458
      %v5491 = vpack.c.b16 %v5459, %v5459
      %v5492 = vpack.c.b16 %v5460, %v5460
      %v5493 = vpack.c.b16 %v5461, %v5461
      %v5494 = vpack.c.b16 %v5462, %v5462
      %v5495 = vpack.c.b16 %v5463, %v5463
      %v5496 = vpack.c.b16 %v5464, %v5464
      %v5497 = vpack.c.b16 %v5465, %v5465
      %v5498 = vpack.c.b16 %v5466, %v5466
      %v5499 = vpack.c.b16 %v5467, %v5467
      %v5500 = vpack.c.b16 %v5468, %v5468
      %v5501 = vpack.c.b16 %v5469, %v5469
      %v5502 = vpack.c.b16 %v5470, %v5470
      %v5503 = vpack.c.b16 %v5471, %v5471
      %v5504 = vpack.c.b16 %v5472, %v5472
      %v5505 = vpack.c.b16 %v5473, %v5473
      %v5506 = vpack.c.b16 %v5474, %v5474
      %v5507 = vpack.c.b16 %v5475, %v5475
      %v5508 = vpack.c.b16 %v5476, %v5476
      %v5509 = vpack.c.b16 %v5477, %v5477
      %v5510 = vpack.c.b16 %v5478, %v5478
      %v5511 = vpack.c.b16 %v5479, %v5479
      %5544 = vst [vmem:[%s231] sm:$0xf] %v5480
      %5545 = vst [vmem:[%s231 + $0x4] sm:$0xf] %v5481
      %5546 = vst [vmem:[%s231 + $0x8] sm:$0xf] %v5482
      %5547 = vst [vmem:[%s231 + $0xc] sm:$0xf] %v5483
      %5548 = vst [vmem:[%s231 + $0x10] sm:$0xf] %v5484
      %5549 = vst [vmem:[%s231 + $0x14] sm:$0xf] %v5485
      %5550 = vst [vmem:[%s231 + $0x18] sm:$0xf] %v5486
      %5551 = vst [vmem:[%s231 + $0x1c] sm:$0xf] %v5487
      %5552 = vst [vmem:[%s231 + $0x20] sm:$0xf] %v5488
      %5553 = vst [vmem:[%s231 + $0x24] sm:$0xf] %v5489
      %5554 = vst [vmem:[%s231 + $0x28] sm:$0xf] %v5490
      %5555 = vst [vmem:[%s231 + $0x2c] sm:$0xf] %v5491
      %5556 = vst [vmem:[%s231 + $0x30] sm:$0xf] %v5492
      %5557 = vst [vmem:[%s231 + $0x34] sm:$0xf] %v5493
      %5558 = vst [vmem:[%s231 + $0x38] sm:$0xf] %v5494
      %5559 = vst [vmem:[%s231 + $0x3c] sm:$0xf] %v5495
      %5560 = vst [vmem:[%s231 + $0x40] sm:$0xf] %v5496
      %5561 = vst [vmem:[%s231 + $0x44] sm:$0xf] %v5497
      %5562 = vst [vmem:[%s231 + $0x48] sm:$0xf] %v5498
      %5563 = vst [vmem:[%s231 + $0x4c] sm:$0xf] %v5499
      %5564 = vst [vmem:[%s231 + $0x50] sm:$0xf] %v5500
      %5565 = vst [vmem:[%s231 + $0x54] sm:$0xf] %v5501
      %5566 = vst [vmem:[%s231 + $0x58] sm:$0xf] %v5502
      %5567 = vst [vmem:[%s231 + $0x5c] sm:$0xf] %v5503
      %5568 = vst [vmem:[%s231 + $0x60] sm:$0xf] %v5504
      %5569 = vst [vmem:[%s231 + $0x64] sm:$0xf] %v5505
      %5570 = vst [vmem:[%s231 + $0x68] sm:$0xf] %v5506
      %5571 = vst [vmem:[%s231 + $0x6c] sm:$0xf] %v5507
      %5572 = vst [vmem:[%s231 + $0x70] sm:$0xf] %v5508
      %5573 = vst [vmem:[%s231 + $0x74] sm:$0xf] %v5509
      %5574 = vst [vmem:[%s231 + $0x78] sm:$0xf] %v5510
      %5575 = vst [vmem:[%s231 + $0x7c] sm:$0xf] %v5511
      %v5576 = vadd.f32 %v5290, %v5293
      %v5577 = vadd.f32 %v5576, %v5298
      %v5578 = vadd.f32 %v5577, %v5301
      %v5579 = vadd.f32 %v5578, %v5306
      %v5580 = vadd.f32 %v5579, %v5309
      %v5581 = vadd.f32 %v5580, %v5314
      %v5582 = vadd.f32 %v5581, %v5317
      %v5583 = vadd.f32 %v5582, %v5322
      %v5584 = vadd.f32 %v5583, %v5325
      %v5585 = vadd.f32 %v5584, %v5330
      %v5586 = vadd.f32 %v5585, %v5333
      %v5587 = vadd.f32 %v5586, %v5338
      %v5588 = vadd.f32 %v5587, %v5341
      %v5589 = vadd.f32 %v5588, %v5346
      %v5590 = vadd.f32 %v5589, %v5349
      %v5591 = vadd.f32 %v5590, %v5354
      %v5592 = vadd.f32 %v5591, %v5357
      %v5593 = vadd.f32 %v5592, %v5362
      %v5594 = vadd.f32 %v5593, %v5365
      %v5595 = vadd.f32 %v5594, %v5370
      %v5596 = vadd.f32 %v5595, %v5373
      %v5597 = vadd.f32 %v5596, %v5378
      %v5598 = vadd.f32 %v5597, %v5381
      %v5599 = vadd.f32 %v5598, %v5386
      %v5600 = vadd.f32 %v5599, %v5389
      %v5601 = vadd.f32 %v5600, %v5394
      %v5602 = vadd.f32 %v5601, %v5397
      %v5603 = vadd.f32 %v5602, %v5402
      %v5604 = vadd.f32 %v5603, %v5405
      %v5605 = vadd.f32 %v5604, %v5410
      %v5606 = vadd.f32 %v5605, %v5413
      %v5607 = vrot.slane %v5606, 4
      %v5608 = vadd.f32 %v5606, %v5607
      %v5609 = vrot.slane %v5608, 2
      %v5610 = vadd.f32 %v5608, %v5609
      %v5611 = vrot.slane %v5610, 1
      %v5612 = vadd.f32 %v5610, %v5611
      %v5613 = vadd.f32 %v5612, 0.0
      %v5614 = vmul.f32 %v5290, %v5290
      %v5615 = vmul.f32 %v5293, %v5293
      %v5616 = vmul.f32 %v5298, %v5298
      %v5617 = vmul.f32 %v5301, %v5301
      %v5618 = vmul.f32 %v5306, %v5306
      %v5619 = vmul.f32 %v5309, %v5309
      %v5620 = vmul.f32 %v5314, %v5314
      %v5621 = vmul.f32 %v5317, %v5317
      %v5622 = vmul.f32 %v5322, %v5322
      %v5623 = vmul.f32 %v5325, %v5325
      %v5624 = vmul.f32 %v5330, %v5330
      %v5625 = vmul.f32 %v5333, %v5333
      %v5626 = vmul.f32 %v5338, %v5338
      %v5627 = vmul.f32 %v5341, %v5341
      %v5628 = vmul.f32 %v5346, %v5346
      %v5629 = vmul.f32 %v5349, %v5349
      %v5630 = vmul.f32 %v5354, %v5354
      %v5631 = vmul.f32 %v5357, %v5357
      %v5632 = vmul.f32 %v5362, %v5362
      %v5633 = vmul.f32 %v5365, %v5365
      %v5634 = vmul.f32 %v5370, %v5370
      %v5635 = vmul.f32 %v5373, %v5373
      %v5636 = vmul.f32 %v5378, %v5378
      %v5637 = vmul.f32 %v5381, %v5381
      %v5638 = vmul.f32 %v5386, %v5386
      %v5639 = vmul.f32 %v5389, %v5389
      %v5640 = vmul.f32 %v5394, %v5394
      %v5641 = vmul.f32 %v5397, %v5397
      %v5642 = vmul.f32 %v5402, %v5402
      %v5643 = vmul.f32 %v5405, %v5405
      %v5644 = vmul.f32 %v5410, %v5410
      %v5645 = vmul.f32 %v5413, %v5413
      %v5646 = vadd.f32 %v5614, %v5615
      %v5647 = vadd.f32 %v5646, %v5616
      %v5648 = vadd.f32 %v5647, %v5617
      %v5649 = vadd.f32 %v5648, %v5618
      %v5650 = vadd.f32 %v5649, %v5619
      %v5651 = vadd.f32 %v5650, %v5620
      %v5652 = vadd.f32 %v5651, %v5621
      %v5653 = vadd.f32 %v5652, %v5622
      %v5654 = vadd.f32 %v5653, %v5623
      %v5655 = vadd.f32 %v5654, %v5624
      %v5656 = vadd.f32 %v5655, %v5625
      %v5657 = vadd.f32 %v5656, %v5626
      %v5658 = vadd.f32 %v5657, %v5627
      %v5659 = vadd.f32 %v5658, %v5628
      %v5660 = vadd.f32 %v5659, %v5629
      %v5661 = vadd.f32 %v5660, %v5630
      %v5662 = vadd.f32 %v5661, %v5631
      %v5663 = vadd.f32 %v5662, %v5632
      %v5664 = vadd.f32 %v5663, %v5633
      %v5665 = vadd.f32 %v5664, %v5634
      %v5666 = vadd.f32 %v5665, %v5635
      %v5667 = vadd.f32 %v5666, %v5636
      %v5668 = vadd.f32 %v5667, %v5637
      %v5669 = vadd.f32 %v5668, %v5638
      %v5670 = vadd.f32 %v5669, %v5639
      %v5671 = vadd.f32 %v5670, %v5640
      %v5672 = vadd.f32 %v5671, %v5641
      %v5673 = vadd.f32 %v5672, %v5642
      %v5674 = vadd.f32 %v5673, %v5643
      %v5675 = vadd.f32 %v5674, %v5644
      %v5676 = vadd.f32 %v5675, %v5645
      %v5677 = vrot.slane %v5676, 4
      %v5678 = vadd.f32 %v5676, %v5677
      %v5679 = vrot.slane %v5678, 2
      %v5680 = vadd.f32 %v5678, %v5679
      %v5681 = vrot.slane %v5680, 1
      %v5682 = vadd.f32 %v5680, %v5681
      %v5683 = vadd.f32 %v5682, 0.0
      %5684 = vst [vmem:[%s235] sm:$0x1] %v5613
      %5685 = vst [vmem:[%s235 + $0x1] sm:$0x1] %v5683
      %p5686 = scmp.lt.s32.totalorder %s17, 1
      %s5687 = scalar_select %p5686, %s17, 1
      %s5688 = smul.addr %s5687, 32
      %s5689 = smul.addr %s5688, 4
      %s5690 = scalar_lea.vmem %s4, %s5689
      %p5691 = scmp.lt.s32.totalorder %s17, 1
      %s5692 = scalar_select %p5691, %s17, 1
      %s5693 = smul.addr %s5692, 2
      %s5694 = scalar_lea.vmem %s5, %s5693
      // Predicated region
      $region37: #{residual_block_decoder_fwd.4} parent=35 // pred_check
        %p5695 = pneg %p124
      $region38: #{residual_block_decoder_fwd.4} parent=35 // pred_check_branch
        %5697 = sbr.rel (%p5695) target = $region40
      $region39: #{residual_block_decoder_fwd.4} parent=35 // pred_region
        _
      $region40: #{residual_block_decoder_fwd.4} parent=35 // pred_fallthru
        _
      // Predicated region
      $region41: #{residual_block_decoder_fwd.4} parent=35 // pred_check
        %p5698 = pneg %p150
      $region42: #{residual_block_decoder_fwd.4} parent=35 // pred_check_branch
        %5700 = sbr.rel (%p5698) target = $region44
      $region43: #{residual_block_decoder_fwd.4} parent=35 // pred_region
        _
      $region44: #{residual_block_decoder_fwd.4} parent=35 // pred_fallthru
        _
    $region36: #{residual_block_decoder_fwd.4} parent=5 // pred_fallthru
      _
    %p5701 = scmp.le.s32.totalorder 2, %s12
    // Predicated region
    $region45: #{residual_block_decoder_fwd.4} parent=5 // pred_check
      %p5702 = pneg %p5701
    $region46: #{residual_block_decoder_fwd.4} parent=5 // pred_check_branch
      %5704 = sbr.rel (%p5702) target = $region48
    $region47: #{residual_block_decoder_fwd.4} parent=5 // pred_region
      %s5705 = ssub.s32 %s12, 2
      // Predicated region
      $region49: #{residual_block_decoder_fwd.4} parent=47 // pred_check
        %p5706 = pneg %p130
      $region50: #{residual_block_decoder_fwd.4} parent=47 // pred_check_branch
        %5708 = sbr.rel (%p5706) target = $region52
      $region51: #{residual_block_decoder_fwd.4} parent=47 // pred_region
        %p5709 = scmp.lt.s32.totalorder %s18, 1
        %s5710 = scalar_select %p5709, %s18, 1
        %s5711 = smul.addr %s5710, 32
        %s5712 = smul.addr %s5711, 4
        %s5713 = scalar_lea.vmem %s4, %s5712
      $region52: #{residual_block_decoder_fwd.4} parent=47 // pred_fallthru
        _
      // Predicated region
      $region53: #{residual_block_decoder_fwd.4} parent=47 // pred_check
        %p5714 = pneg %p156
      $region54: #{residual_block_decoder_fwd.4} parent=47 // pred_check_branch
        %5716 = sbr.rel (%p5714) target = $region56
      $region55: #{residual_block_decoder_fwd.4} parent=47 // pred_region
        %p5717 = scmp.lt.s32.totalorder %s18, 1
        %s5718 = scalar_select %p5717, %s18, 1
        %s5719 = smul.addr %s5718, 2
        %s5720 = scalar_lea.vmem %s5, %s5719
      $region56: #{residual_block_decoder_fwd.4} parent=47 // pred_fallthru
        _
    $region48: #{residual_block_decoder_fwd.4} parent=5 // pred_fallthru
      _
  $region6: #{residual_block_decoder_fwd.4} parent=0 // loop_footer
    %s16 = sadd.s32 1, %s12
  $region7: #{residual_block_decoder_fwd.4} parent=0 // loop_footer_branch
    %11 = sbr.rel target = $region3
  $region8: #{residual_block_decoder_fwd.4} parent=0 // loop_exit
    _

</llo_original>
